<compile_context>
chip_gen: v7x
topology: tpu7x:2x2x1
jax: 0.10.0
libtpu: 0.0.40
codegen_flags: <defaults>
</compile_context>

<pallas_src>
import functools

import jax
import jax.numpy as jnp
from jax import lax
from jax.experimental import pallas as pl
from jax.experimental.pallas import tpu as pltpu


def implicit_layer_kernel(a_ref, b_ref, c_ref, d_ref, ut_ref, y_ref, *,
                          n_chains):
    """One batch tile:  y = C @ fixpoint(X) + D @ Ut  for m_tile lane columns."""
    n = a_ref.shape[0]
    m_tile = ut_ref.shape[1]
    sub = m_tile // n_chains

    A = a_ref[...]                                   # (n, n) strictly upper-tri
    Ut = ut_ref[...]                                 # (p, m_tile)

    # B @ U^T is loop-invariant: one MXU pass per batch tile.
    BU = jnp.dot(b_ref[...], Ut.astype(b_ref.dtype),
                 preferred_element_type=jnp.float32)  # (n, m_tile)

    # Static, lane-aligned (multiple-of-128) sub-chunks: slices never cross an
    # (8,128) tile boundary, so no VMEM copies are materialized.
    bu_chunks = [BU[:, c * sub:(c + 1) * sub] for c in range(n_chains)]

    # X0 is mathematically irrelevant: strictly-upper-triangular A is
    # nilpotent, so n Picard steps reach the exact fixed point from any start.
    # Start from X = relu(B U) (== one step from X0 = 0) and take n-1 more
    # steps -> one fewer MXU pass per tile and no X0 HBM stream.
    x_chunks = tuple(jnp.maximum(bu, 0.0) for bu in bu_chunks)

    def body(_, chains):
        # Interleave the independent lane sub-chunks so one chain's vmatmul
        # push fills the other chain's relu -> next-push latency bubble.
        new = []
        for Xc, BUc in zip(chains, bu_chunks):
            AX = jnp.dot(A, Xc.astype(A.dtype),
                         preferred_element_type=jnp.float32)
            new.append(jnp.maximum(AX + BUc, 0.0))
        return tuple(new)

    # Fully unrolled (n is small and static) so the LLO scheduler can overlap
    # MXU pushes/pops and relus across steps and chains.
    x_chunks = lax.fori_loop(0, n - 1, body, x_chunks, unroll=True)

    # Epilogue: Y = C @ X + D @ U^T as two accumulating dots (no concat copy).
    # Per-chunk stores are static and lane-aligned -> unmasked full-lane vst.
    C = c_ref[...]
    D = d_ref[...]
    for c in range(n_chains):
        Xc = x_chunks[c]
        Uc = Ut[:, c * sub:(c + 1) * sub]
        Yc = jnp.dot(C, Xc.astype(C.dtype), preferred_element_type=jnp.float32)
        Yc = Yc + jnp.dot(D, Uc.astype(D.dtype),
                          preferred_element_type=jnp.float32)
        y_ref[:, c * sub:(c + 1) * sub] = Yc


def implicit_layer_forward(A, B, C, D, X0, U, *, m_tile=None, n_chains=2,
                           weights_dtype=jnp.float32):
    """Forward pass of ImplicitLayer.

    U:  (m, p) batch-major input (the module transposes it internally).
    Returns (m, q), matching `transpose(C @ X + D @ U^T)`.

    X0 is accepted for module-API parity but never streamed: with the Triu
    projection the exact n-step fixed point is independent of X0.

    weights_dtype=jnp.bfloat16 enables native bf16 MXU passes on v6e/v7x
    (f32 accumulation kept via preferred_element_type); default stays f32 so
    the result matches the reference to tight tolerance, since bf16 rounding
    compounds over the n chained Picard steps.
    """
    del X0  # mathematically irrelevant for ImplicitFunctionTriu (see above)

    n, p = B.shape
    q = C.shape[0]
    m = U.shape[0]
    assert A.shape == (n, n) and C.shape == (q, n) and D.shape == (q, p)

    # --- one-time parameter prep (amortized over all batch tiles) ----------
    A_tri = jnp.triu(A, 1).astype(weights_dtype)   # ImplicitFunctionTriu proj
    Bw = B.astype(weights_dtype)
    Cw = C.astype(weights_dtype)
    Dw = D.astype(weights_dtype)

    # Feature-major activations: batch on the lane axis.
    Ut = U.T.astype(jnp.float32)                   # (p, m)
    # TODO(synk): for very large m, take U batch-major with an (m_tile, p)
    # block and transpose in-kernel (XLU) to avoid this extra HBM pass of U.

    # --- lane-dense batch tiling -------------------------------------------
    if m_tile is None:
        # Largest lane-dense tile (cap 1024) while keeping >= 2 grid tiles
        # when m allows it: v7x has 2 TensorCores and megacore-shards the
        # "parallel" axis; v5e/v6e just amortize per-grid-step overhead.
        half = -(-m // 2)
        m_tile = min(1024, max(128, -(-half // 128) * 128))
    else:
        m_tile = max(128, -(-m_tile // 128) * 128)

    # Sub-chunks of the Picard chain must stay lane-aligned (x128).
    while n_chains > 1 and m_tile % (128 * n_chains) != 0:
        n_chains -= 1

    n_tiles = -(-m // m_tile)
    m_pad = n_tiles * m_tile
    if m_pad != m:
        # Zero padding is exact: padded columns stay zero through relu and are
        # trimmed after the call.
        Ut = jnp.pad(Ut, ((0, 0), (0, m_pad - m)))

    kernel = functools.partial(implicit_layer_kernel, n_chains=n_chains)

    y = pl.pallas_call(
        kernel,
        out_shape=jax.ShapeDtypeStruct((q, m_pad), jnp.float32),
        grid_spec=pltpu.PrefetchScalarGridSpec(
            num_scalar_prefetch=0,
            grid=(n_tiles,),
            in_specs=[
                pl.BlockSpec((n, n), lambda i: (0, 0)),       # A   (resident)
                pl.BlockSpec((n, p), lambda i: (0, 0)),       # B   (resident)
                pl.BlockSpec((q, n), lambda i: (0, 0)),       # C   (resident)
                pl.BlockSpec((q, p), lambda i: (0, 0)),       # D   (resident)
                pl.BlockSpec((p, m_tile), lambda i: (0, i)),  # U^T batch tile
            ],
            out_specs=pl.BlockSpec((q, m_tile), lambda i: (0, i)),
        ),
        compiler_params=pltpu.CompilerParams(
            dimension_semantics=("parallel",),
        ),
    )(A_tri, Bw, Cw, Dw, Ut)

    return y[:, :m].T                                # (m, q)


def _reference(A, B, C, D, X0, U):
    """Pure-JAX reference of the module semantics (uses X0 explicitly, which
    also demonstrates that the n-step Triu fixed point is X0-independent)."""
    n = A.shape[0]
    At = jnp.triu(A, 1)
    Ut = U.T
    BU = B @ Ut
    X = X0
    for _ in range(n):
        X = jnp.maximum(At @ X + BU, 0.0)
    return (C @ X + D @ Ut).T


if __name__ == "__main__":
    # Module dims: n (state), m (batch), p (input feat), q (output feat).
    # m = 500 exercises the lane-dense batch grid (2 tiles of 256) + padding.
    n, m, p, q = 32, 500, 16, 8

    key = jax.random.PRNGKey(0)
    kA, kB, kC, kD, kX0, kU = jax.random.split(key, 6)

    # Deterministic parameter init mirroring torch.randn(...) / n scaling.
    A = jax.random.normal(kA, (n, n), jnp.float32) / n
    B = jax.random.normal(kB, (n, p), jnp.float32) / n
    C = jax.random.normal(kC, (q, n), jnp.float32) / n
    D = jax.random.normal(kD, (q, p), jnp.float32) / n
    X0 = jax.random.normal(kX0, (n, m), jnp.float32)

    # Input U: (m, p) = (batch, features).
    U = jax.random.normal(kU, (m, p), jnp.float32)

    out = implicit_layer_forward(A, B, C, D, X0, U)
    out = jax.block_until_ready(out)

    ref = _reference(A, B, C, D, X0, U)
    assert out.shape == (m, q)
    err = jnp.max(jnp.abs(out - ref))
    assert jnp.allclose(out, ref, atol=2e-5, rtol=1e-4), f"max abs err {err}"

    print("KERNEL_OK")
</pallas_src>

<mosaic_0001>
module attributes {stable_mosaic.version = 11 : i64} {
  func.func @implicit_layer_kernel(%arg0: i32, %arg1: memref<32x32xf32, #tpu.memory_space<vmem>>, %arg2: memref<32x16xf32, #tpu.memory_space<vmem>>, %arg3: memref<8x32xf32, #tpu.memory_space<vmem>>, %arg4: memref<8x16xf32, #tpu.memory_space<vmem>>, %arg5: memref<16x256xf32, #tpu.memory_space<vmem>>, %arg6: memref<8x256xf32, #tpu.memory_space<vmem>>) attributes {dimension_semantics = [#tpu.dimension_semantics<parallel>], iteration_bounds = array<i64: 2>, scalar_prefetch = 0 : i64, scratch_operands = 0 : i64, tpu.core_type = #tpu.core_type<tc>, window_params = [{pipeline_mode = #tpu.pipeline_mode<synchronous>, transform_indices = @transform_0, window_bounds = array<i64: 32, 32>}, {pipeline_mode = #tpu.pipeline_mode<synchronous>, transform_indices = @transform_1, window_bounds = array<i64: 32, 16>}, {pipeline_mode = #tpu.pipeline_mode<synchronous>, transform_indices = @transform_2, window_bounds = array<i64: 8, 32>}, {pipeline_mode = #tpu.pipeline_mode<synchronous>, transform_indices = @transform_3, window_bounds = array<i64: 8, 16>}, {transform_indices = @transform_4, window_bounds = array<i64: 16, 256>}, {transform_indices = @transform_5, window_bounds = array<i64: 8, 256>}]} {
    %c0 = arith.constant 0 : index
    %c0_0 = arith.constant 0 : index
    %0 = vector.load %arg1[%c0, %c0_0] : memref<32x32xf32, #tpu.memory_space<vmem>>, vector<32x32xf32>
    %c0_1 = arith.constant 0 : index
    %c0_2 = arith.constant 0 : index
    %1 = vector.load %arg5[%c0_1, %c0_2] : memref<16x256xf32, #tpu.memory_space<vmem>>, vector<16x256xf32>
    %c0_3 = arith.constant 0 : index
    %c0_4 = arith.constant 0 : index
    %2 = vector.load %arg2[%c0_3, %c0_4] : memref<32x16xf32, #tpu.memory_space<vmem>>, vector<32x16xf32>
    %cst = arith.constant dense<0.000000e+00> : vector<32x256xf32>
    %3 = tpu.matmul %2, %1, %cst {dimension_numbers = #tpu.dot_dimension_numbers<[1], [0], [0], [1], [0, 0, 1, 1], [], []>} : vector<32x16xf32>, vector<16x256xf32>, vector<32x256xf32> -> vector<32x256xf32>
    %4 = vector.extract_strided_slice %3 {offsets = [0, 0], sizes = [32, 128], strides = [1, 1]} : vector<32x256xf32> to vector<32x128xf32>
    %5 = vector.extract_strided_slice %3 {offsets = [0, 128], sizes = [32, 128], strides = [1, 1]} : vector<32x256xf32> to vector<32x128xf32>
    %cst_5 = arith.constant 0.000000e+00 : f32
    %6 = vector.broadcast %cst_5 : f32 to vector<32x128xf32>
    %7 = arith.maximumf %4, %6 : vector<32x128xf32>
    %cst_6 = arith.constant 0.000000e+00 : f32
    %8 = vector.broadcast %cst_6 : f32 to vector<32x128xf32>
    %9 = arith.maximumf %5, %8 : vector<32x128xf32>
    %c0_i32 = arith.constant 0 : i32
    %cst_7 = arith.constant dense<0.000000e+00> : vector<32x128xf32>
    %10 = tpu.matmul %0, %7, %cst_7 {dimension_numbers = #tpu.dot_dimension_numbers<[1], [0], [0], [1], [0, 0, 1, 1], [], []>} : vector<32x32xf32>, vector<32x128xf32>, vector<32x128xf32> -> vector<32x128xf32>
    %11 = arith.addf %10, %4 : vector<32x128xf32>
    %cst_8 = arith.constant 0.000000e+00 : f32
    %12 = vector.broadcast %cst_8 : f32 to vector<32x128xf32>
    %13 = arith.maximumf %11, %12 : vector<32x128xf32>
    %cst_9 = arith.constant dense<0.000000e+00> : vector<32x128xf32>
    %14 = tpu.matmul %0, %9, %cst_9 {dimension_numbers = #tpu.dot_dimension_numbers<[1], [0], [0], [1], [0, 0, 1, 1], [], []>} : vector<32x32xf32>, vector<32x128xf32>, vector<32x128xf32> -> vector<32x128xf32>
    %15 = arith.addf %14, %5 : vector<32x128xf32>
    %cst_10 = arith.constant 0.000000e+00 : f32
    %16 = vector.broadcast %cst_10 : f32 to vector<32x128xf32>
    %17 = arith.maximumf %15, %16 : vector<32x128xf32>
    %c1_i32 = arith.constant 1 : i32
    %cst_11 = arith.constant dense<0.000000e+00> : vector<32x128xf32>
    %18 = tpu.matmul %0, %13, %cst_11 {dimension_numbers = #tpu.dot_dimension_numbers<[1], [0], [0], [1], [0, 0, 1, 1], [], []>} : vector<32x32xf32>, vector<32x128xf32>, vector<32x128xf32> -> vector<32x128xf32>
    %19 = arith.addf %18, %4 : vector<32x128xf32>
    %cst_12 = arith.constant 0.000000e+00 : f32
    %20 = vector.broadcast %cst_12 : f32 to vector<32x128xf32>
    %21 = arith.maximumf %19, %20 : vector<32x128xf32>
    %cst_13 = arith.constant dense<0.000000e+00> : vector<32x128xf32>
    %22 = tpu.matmul %0, %17, %cst_13 {dimension_numbers = #tpu.dot_dimension_numbers<[1], [0], [0], [1], [0, 0, 1, 1], [], []>} : vector<32x32xf32>, vector<32x128xf32>, vector<32x128xf32> -> vector<32x128xf32>
    %23 = arith.addf %22, %5 : vector<32x128xf32>
    %cst_14 = arith.constant 0.000000e+00 : f32
    %24 = vector.broadcast %cst_14 : f32 to vector<32x128xf32>
    %25 = arith.maximumf %23, %24 : vector<32x128xf32>
    %c2_i32 = arith.constant 2 : i32
    %cst_15 = arith.constant dense<0.000000e+00> : vector<32x128xf32>
    %26 = tpu.matmul %0, %21, %cst_15 {dimension_numbers = #tpu.dot_dimension_numbers<[1], [0], [0], [1], [0, 0, 1, 1], [], []>} : vector<32x32xf32>, vector<32x128xf32>, vector<32x128xf32> -> vector<32x128xf32>
    %27 = arith.addf %26, %4 : vector<32x128xf32>
    %cst_16 = arith.constant 0.000000e+00 : f32
    %28 = vector.broadcast %cst_16 : f32 to vector<32x128xf32>
    %29 = arith.maximumf %27, %28 : vector<32x128xf32>
    %cst_17 = arith.constant dense<0.000000e+00> : vector<32x128xf32>
    %30 = tpu.matmul %0, %25, %cst_17 {dimension_numbers = #tpu.dot_dimension_numbers<[1], [0], [0], [1], [0, 0, 1, 1], [], []>} : vector<32x32xf32>, vector<32x128xf32>, vector<32x128xf32> -> vector<32x128xf32>
    %31 = arith.addf %30, %5 : vector<32x128xf32>
    %cst_18 = arith.constant 0.000000e+00 : f32
    %32 = vector.broadcast %cst_18 : f32 to vector<32x128xf32>
    %33 = arith.maximumf %31, %32 : vector<32x128xf32>
    %c3_i32 = arith.constant 3 : i32
    %cst_19 = arith.constant dense<0.000000e+00> : vector<32x128xf32>
    %34 = tpu.matmul %0, %29, %cst_19 {dimension_numbers = #tpu.dot_dimension_numbers<[1], [0], [0], [1], [0, 0, 1, 1], [], []>} : vector<32x32xf32>, vector<32x128xf32>, vector<32x128xf32> -> vector<32x128xf32>
    %35 = arith.addf %34, %4 : vector<32x128xf32>
    %cst_20 = arith.constant 0.000000e+00 : f32
    %36 = vector.broadcast %cst_20 : f32 to vector<32x128xf32>
    %37 = arith.maximumf %35, %36 : vector<32x128xf32>
    %cst_21 = arith.constant dense<0.000000e+00> : vector<32x128xf32>
    %38 = tpu.matmul %0, %33, %cst_21 {dimension_numbers = #tpu.dot_dimension_numbers<[1], [0], [0], [1], [0, 0, 1, 1], [], []>} : vector<32x32xf32>, vector<32x128xf32>, vector<32x128xf32> -> vector<32x128xf32>
    %39 = arith.addf %38, %5 : vector<32x128xf32>
    %cst_22 = arith.constant 0.000000e+00 : f32
    %40 = vector.broadcast %cst_22 : f32 to vector<32x128xf32>
    %41 = arith.maximumf %39, %40 : vector<32x128xf32>
    %c4_i32 = arith.constant 4 : i32
    %cst_23 = arith.constant dense<0.000000e+00> : vector<32x128xf32>
    %42 = tpu.matmul %0, %37, %cst_23 {dimension_numbers = #tpu.dot_dimension_numbers<[1], [0], [0], [1], [0, 0, 1, 1], [], []>} : vector<32x32xf32>, vector<32x128xf32>, vector<32x128xf32> -> vector<32x128xf32>
    %43 = arith.addf %42, %4 : vector<32x128xf32>
    %cst_24 = arith.constant 0.000000e+00 : f32
    %44 = vector.broadcast %cst_24 : f32 to vector<32x128xf32>
    %45 = arith.maximumf %43, %44 : vector<32x128xf32>
    %cst_25 = arith.constant dense<0.000000e+00> : vector<32x128xf32>
    %46 = tpu.matmul %0, %41, %cst_25 {dimension_numbers = #tpu.dot_dimension_numbers<[1], [0], [0], [1], [0, 0, 1, 1], [], []>} : vector<32x32xf32>, vector<32x128xf32>, vector<32x128xf32> -> vector<32x128xf32>
    %47 = arith.addf %46, %5 : vector<32x128xf32>
    %cst_26 = arith.constant 0.000000e+00 : f32
    %48 = vector.broadcast %cst_26 : f32 to vector<32x128xf32>
    %49 = arith.maximumf %47, %48 : vector<32x128xf32>
    %c5_i32 = arith.constant 5 : i32
    %cst_27 = arith.constant dense<0.000000e+00> : vector<32x128xf32>
    %50 = tpu.matmul %0, %45, %cst_27 {dimension_numbers = #tpu.dot_dimension_numbers<[1], [0], [0], [1], [0, 0, 1, 1], [], []>} : vector<32x32xf32>, vector<32x128xf32>, vector<32x128xf32> -> vector<32x128xf32>
    %51 = arith.addf %50, %4 : vector<32x128xf32>
    %cst_28 = arith.constant 0.000000e+00 : f32
    %52 = vector.broadcast %cst_28 : f32 to vector<32x128xf32>
    %53 = arith.maximumf %51, %52 : vector<32x128xf32>
    %cst_29 = arith.constant dense<0.000000e+00> : vector<32x128xf32>
    %54 = tpu.matmul %0, %49, %cst_29 {dimension_numbers = #tpu.dot_dimension_numbers<[1], [0], [0], [1], [0, 0, 1, 1], [], []>} : vector<32x32xf32>, vector<32x128xf32>, vector<32x128xf32> -> vector<32x128xf32>
    %55 = arith.addf %54, %5 : vector<32x128xf32>
    %cst_30 = arith.constant 0.000000e+00 : f32
    %56 = vector.broadcast %cst_30 : f32 to vector<32x128xf32>
    %57 = arith.maximumf %55, %56 : vector<32x128xf32>
    %c6_i32 = arith.constant 6 : i32
    %cst_31 = arith.constant dense<0.000000e+00> : vector<32x128xf32>
    %58 = tpu.matmul %0, %53, %cst_31 {dimension_numbers = #tpu.dot_dimension_numbers<[1], [0], [0], [1], [0, 0, 1, 1], [], []>} : vector<32x32xf32>, vector<32x128xf32>, vector<32x128xf32> -> vector<32x128xf32>
    %59 = arith.addf %58, %4 : vector<32x128xf32>
    %cst_32 = arith.constant 0.000000e+00 : f32
    %60 = vector.broadcast %cst_32 : f32 to vector<32x128xf32>
    %61 = arith.maximumf %59, %60 : vector<32x128xf32>
    %cst_33 = arith.constant dense<0.000000e+00> : vector<32x128xf32>
    %62 = tpu.matmul %0, %57, %cst_33 {dimension_numbers = #tpu.dot_dimension_numbers<[1], [0], [0], [1], [0, 0, 1, 1], [], []>} : vector<32x32xf32>, vector<32x128xf32>, vector<32x128xf32> -> vector<32x128xf32>
    %63 = arith.addf %62, %5 : vector<32x128xf32>
    %cst_34 = arith.constant 0.000000e+00 : f32
    %64 = vector.broadcast %cst_34 : f32 to vector<32x128xf32>
    %65 = arith.maximumf %63, %64 : vector<32x128xf32>
    %c7_i32 = arith.constant 7 : i32
    %cst_35 = arith.constant dense<0.000000e+00> : vector<32x128xf32>
    %66 = tpu.matmul %0, %61, %cst_35 {dimension_numbers = #tpu.dot_dimension_numbers<[1], [0], [0], [1], [0, 0, 1, 1], [], []>} : vector<32x32xf32>, vector<32x128xf32>, vector<32x128xf32> -> vector<32x128xf32>
    %67 = arith.addf %66, %4 : vector<32x128xf32>
    %cst_36 = arith.constant 0.000000e+00 : f32
    %68 = vector.broadcast %cst_36 : f32 to vector<32x128xf32>
    %69 = arith.maximumf %67, %68 : vector<32x128xf32>
    %cst_37 = arith.constant dense<0.000000e+00> : vector<32x128xf32>
    %70 = tpu.matmul %0, %65, %cst_37 {dimension_numbers = #tpu.dot_dimension_numbers<[1], [0], [0], [1], [0, 0, 1, 1], [], []>} : vector<32x32xf32>, vector<32x128xf32>, vector<32x128xf32> -> vector<32x128xf32>
    %71 = arith.addf %70, %5 : vector<32x128xf32>
    %cst_38 = arith.constant 0.000000e+00 : f32
    %72 = vector.broadcast %cst_38 : f32 to vector<32x128xf32>
    %73 = arith.maximumf %71, %72 : vector<32x128xf32>
    %c8_i32 = arith.constant 8 : i32
    %cst_39 = arith.constant dense<0.000000e+00> : vector<32x128xf32>
    %74 = tpu.matmul %0, %69, %cst_39 {dimension_numbers = #tpu.dot_dimension_numbers<[1], [0], [0], [1], [0, 0, 1, 1], [], []>} : vector<32x32xf32>, vector<32x128xf32>, vector<32x128xf32> -> vector<32x128xf32>
    %75 = arith.addf %74, %4 : vector<32x128xf32>
    %cst_40 = arith.constant 0.000000e+00 : f32
    %76 = vector.broadcast %cst_40 : f32 to vector<32x128xf32>
    %77 = arith.maximumf %75, %76 : vector<32x128xf32>
    %cst_41 = arith.constant dense<0.000000e+00> : vector<32x128xf32>
    %78 = tpu.matmul %0, %73, %cst_41 {dimension_numbers = #tpu.dot_dimension_numbers<[1], [0], [0], [1], [0, 0, 1, 1], [], []>} : vector<32x32xf32>, vector<32x128xf32>, vector<32x128xf32> -> vector<32x128xf32>
    %79 = arith.addf %78, %5 : vector<32x128xf32>
    %cst_42 = arith.constant 0.000000e+00 : f32
    %80 = vector.broadcast %cst_42 : f32 to vector<32x128xf32>
    %81 = arith.maximumf %79, %80 : vector<32x128xf32>
    %c9_i32 = arith.constant 9 : i32
    %cst_43 = arith.constant dense<0.000000e+00> : vector<32x128xf32>
    %82 = tpu.matmul %0, %77, %cst_43 {dimension_numbers = #tpu.dot_dimension_numbers<[1], [0], [0], [1], [0, 0, 1, 1], [], []>} : vector<32x32xf32>, vector<32x128xf32>, vector<32x128xf32> -> vector<32x128xf32>
    %83 = arith.addf %82, %4 : vector<32x128xf32>
    %cst_44 = arith.constant 0.000000e+00 : f32
    %84 = vector.broadcast %cst_44 : f32 to vector<32x128xf32>
    %85 = arith.maximumf %83, %84 : vector<32x128xf32>
    %cst_45 = arith.constant dense<0.000000e+00> : vector<32x128xf32>
    %86 = tpu.matmul %0, %81, %cst_45 {dimension_numbers = #tpu.dot_dimension_numbers<[1], [0], [0], [1], [0, 0, 1, 1], [], []>} : vector<32x32xf32>, vector<32x128xf32>, vector<32x128xf32> -> vector<32x128xf32>
    %87 = arith.addf %86, %5 : vector<32x128xf32>
    %cst_46 = arith.constant 0.000000e+00 : f32
    %88 = vector.broadcast %cst_46 : f32 to vector<32x128xf32>
    %89 = arith.maximumf %87, %88 : vector<32x128xf32>
    %c10_i32 = arith.constant 10 : i32
    %cst_47 = arith.constant dense<0.000000e+00> : vector<32x128xf32>
    %90 = tpu.matmul %0, %85, %cst_47 {dimension_numbers = #tpu.dot_dimension_numbers<[1], [0], [0], [1], [0, 0, 1, 1], [], []>} : vector<32x32xf32>, vector<32x128xf32>, vector<32x128xf32> -> vector<32x128xf32>
    %91 = arith.addf %90, %4 : vector<32x128xf32>
    %cst_48 = arith.constant 0.000000e+00 : f32
    %92 = vector.broadcast %cst_48 : f32 to vector<32x128xf32>
    %93 = arith.maximumf %91, %92 : vector<32x128xf32>
    %cst_49 = arith.constant dense<0.000000e+00> : vector<32x128xf32>
    %94 = tpu.matmul %0, %89, %cst_49 {dimension_numbers = #tpu.dot_dimension_numbers<[1], [0], [0], [1], [0, 0, 1, 1], [], []>} : vector<32x32xf32>, vector<32x128xf32>, vector<32x128xf32> -> vector<32x128xf32>
    %95 = arith.addf %94, %5 : vector<32x128xf32>
    %cst_50 = arith.constant 0.000000e+00 : f32
    %96 = vector.broadcast %cst_50 : f32 to vector<32x128xf32>
    %97 = arith.maximumf %95, %96 : vector<32x128xf32>
    %c11_i32 = arith.constant 11 : i32
    %cst_51 = arith.constant dense<0.000000e+00> : vector<32x128xf32>
    %98 = tpu.matmul %0, %93, %cst_51 {dimension_numbers = #tpu.dot_dimension_numbers<[1], [0], [0], [1], [0, 0, 1, 1], [], []>} : vector<32x32xf32>, vector<32x128xf32>, vector<32x128xf32> -> vector<32x128xf32>
    %99 = arith.addf %98, %4 : vector<32x128xf32>
    %cst_52 = arith.constant 0.000000e+00 : f32
    %100 = vector.broadcast %cst_52 : f32 to vector<32x128xf32>
    %101 = arith.maximumf %99, %100 : vector<32x128xf32>
    %cst_53 = arith.constant dense<0.000000e+00> : vector<32x128xf32>
    %102 = tpu.matmul %0, %97, %cst_53 {dimension_numbers = #tpu.dot_dimension_numbers<[1], [0], [0], [1], [0, 0, 1, 1], [], []>} : vector<32x32xf32>, vector<32x128xf32>, vector<32x128xf32> -> vector<32x128xf32>
    %103 = arith.addf %102, %5 : vector<32x128xf32>
    %cst_54 = arith.constant 0.000000e+00 : f32
    %104 = vector.broadcast %cst_54 : f32 to vector<32x128xf32>
    %105 = arith.maximumf %103, %104 : vector<32x128xf32>
    %c12_i32 = arith.constant 12 : i32
    %cst_55 = arith.constant dense<0.000000e+00> : vector<32x128xf32>
    %106 = tpu.matmul %0, %101, %cst_55 {dimension_numbers = #tpu.dot_dimension_numbers<[1], [0], [0], [1], [0, 0, 1, 1], [], []>} : vector<32x32xf32>, vector<32x128xf32>, vector<32x128xf32> -> vector<32x128xf32>
    %107 = arith.addf %106, %4 : vector<32x128xf32>
    %cst_56 = arith.constant 0.000000e+00 : f32
    %108 = vector.broadcast %cst_56 : f32 to vector<32x128xf32>
    %109 = arith.maximumf %107, %108 : vector<32x128xf32>
    %cst_57 = arith.constant dense<0.000000e+00> : vector<32x128xf32>
    %110 = tpu.matmul %0, %105, %cst_57 {dimension_numbers = #tpu.dot_dimension_numbers<[1], [0], [0], [1], [0, 0, 1, 1], [], []>} : vector<32x32xf32>, vector<32x128xf32>, vector<32x128xf32> -> vector<32x128xf32>
    %111 = arith.addf %110, %5 : vector<32x128xf32>
    %cst_58 = arith.constant 0.000000e+00 : f32
    %112 = vector.broadcast %cst_58 : f32 to vector<32x128xf32>
    %113 = arith.maximumf %111, %112 : vector<32x128xf32>
    %c13_i32 = arith.constant 13 : i32
    %cst_59 = arith.constant dense<0.000000e+00> : vector<32x128xf32>
    %114 = tpu.matmul %0, %109, %cst_59 {dimension_numbers = #tpu.dot_dimension_numbers<[1], [0], [0], [1], [0, 0, 1, 1], [], []>} : vector<32x32xf32>, vector<32x128xf32>, vector<32x128xf32> -> vector<32x128xf32>
    %115 = arith.addf %114, %4 : vector<32x128xf32>
    %cst_60 = arith.constant 0.000000e+00 : f32
    %116 = vector.broadcast %cst_60 : f32 to vector<32x128xf32>
    %117 = arith.maximumf %115, %116 : vector<32x128xf32>
    %cst_61 = arith.constant dense<0.000000e+00> : vector<32x128xf32>
    %118 = tpu.matmul %0, %113, %cst_61 {dimension_numbers = #tpu.dot_dimension_numbers<[1], [0], [0], [1], [0, 0, 1, 1], [], []>} : vector<32x32xf32>, vector<32x128xf32>, vector<32x128xf32> -> vector<32x128xf32>
    %119 = arith.addf %118, %5 : vector<32x128xf32>
    %cst_62 = arith.constant 0.000000e+00 : f32
    %120 = vector.broadcast %cst_62 : f32 to vector<32x128xf32>
    %121 = arith.maximumf %119, %120 : vector<32x128xf32>
    %c14_i32 = arith.constant 14 : i32
    %cst_63 = arith.constant dense<0.000000e+00> : vector<32x128xf32>
    %122 = tpu.matmul %0, %117, %cst_63 {dimension_numbers = #tpu.dot_dimension_numbers<[1], [0], [0], [1], [0, 0, 1, 1], [], []>} : vector<32x32xf32>, vector<32x128xf32>, vector<32x128xf32> -> vector<32x128xf32>
    %123 = arith.addf %122, %4 : vector<32x128xf32>
    %cst_64 = arith.constant 0.000000e+00 : f32
    %124 = vector.broadcast %cst_64 : f32 to vector<32x128xf32>
    %125 = arith.maximumf %123, %124 : vector<32x128xf32>
    %cst_65 = arith.constant dense<0.000000e+00> : vector<32x128xf32>
    %126 = tpu.matmul %0, %121, %cst_65 {dimension_numbers = #tpu.dot_dimension_numbers<[1], [0], [0], [1], [0, 0, 1, 1], [], []>} : vector<32x32xf32>, vector<32x128xf32>, vector<32x128xf32> -> vector<32x128xf32>
    %127 = arith.addf %126, %5 : vector<32x128xf32>
    %cst_66 = arith.constant 0.000000e+00 : f32
    %128 = vector.broadcast %cst_66 : f32 to vector<32x128xf32>
    %129 = arith.maximumf %127, %128 : vector<32x128xf32>
    %c15_i32 = arith.constant 15 : i32
    %cst_67 = arith.constant dense<0.000000e+00> : vector<32x128xf32>
    %130 = tpu.matmul %0, %125, %cst_67 {dimension_numbers = #tpu.dot_dimension_numbers<[1], [0], [0], [1], [0, 0, 1, 1], [], []>} : vector<32x32xf32>, vector<32x128xf32>, vector<32x128xf32> -> vector<32x128xf32>
    %131 = arith.addf %130, %4 : vector<32x128xf32>
    %cst_68 = arith.constant 0.000000e+00 : f32
    %132 = vector.broadcast %cst_68 : f32 to vector<32x128xf32>
    %133 = arith.maximumf %131, %132 : vector<32x128xf32>
    %cst_69 = arith.constant dense<0.000000e+00> : vector<32x128xf32>
    %134 = tpu.matmul %0, %129, %cst_69 {dimension_numbers = #tpu.dot_dimension_numbers<[1], [0], [0], [1], [0, 0, 1, 1], [], []>} : vector<32x32xf32>, vector<32x128xf32>, vector<32x128xf32> -> vector<32x128xf32>
    %135 = arith.addf %134, %5 : vector<32x128xf32>
    %cst_70 = arith.constant 0.000000e+00 : f32
    %136 = vector.broadcast %cst_70 : f32 to vector<32x128xf32>
    %137 = arith.maximumf %135, %136 : vector<32x128xf32>
    %c16_i32 = arith.constant 16 : i32
    %cst_71 = arith.constant dense<0.000000e+00> : vector<32x128xf32>
    %138 = tpu.matmul %0, %133, %cst_71 {dimension_numbers = #tpu.dot_dimension_numbers<[1], [0], [0], [1], [0, 0, 1, 1], [], []>} : vector<32x32xf32>, vector<32x128xf32>, vector<32x128xf32> -> vector<32x128xf32>
    %139 = arith.addf %138, %4 : vector<32x128xf32>
    %cst_72 = arith.constant 0.000000e+00 : f32
    %140 = vector.broadcast %cst_72 : f32 to vector<32x128xf32>
    %141 = arith.maximumf %139, %140 : vector<32x128xf32>
    %cst_73 = arith.constant dense<0.000000e+00> : vector<32x128xf32>
    %142 = tpu.matmul %0, %137, %cst_73 {dimension_numbers = #tpu.dot_dimension_numbers<[1], [0], [0], [1], [0, 0, 1, 1], [], []>} : vector<32x32xf32>, vector<32x128xf32>, vector<32x128xf32> -> vector<32x128xf32>
    %143 = arith.addf %142, %5 : vector<32x128xf32>
    %cst_74 = arith.constant 0.000000e+00 : f32
    %144 = vector.broadcast %cst_74 : f32 to vector<32x128xf32>
    %145 = arith.maximumf %143, %144 : vector<32x128xf32>
    %c17_i32 = arith.constant 17 : i32
    %cst_75 = arith.constant dense<0.000000e+00> : vector<32x128xf32>
    %146 = tpu.matmul %0, %141, %cst_75 {dimension_numbers = #tpu.dot_dimension_numbers<[1], [0], [0], [1], [0, 0, 1, 1], [], []>} : vector<32x32xf32>, vector<32x128xf32>, vector<32x128xf32> -> vector<32x128xf32>
    %147 = arith.addf %146, %4 : vector<32x128xf32>
    %cst_76 = arith.constant 0.000000e+00 : f32
    %148 = vector.broadcast %cst_76 : f32 to vector<32x128xf32>
    %149 = arith.maximumf %147, %148 : vector<32x128xf32>
    %cst_77 = arith.constant dense<0.000000e+00> : vector<32x128xf32>
    %150 = tpu.matmul %0, %145, %cst_77 {dimension_numbers = #tpu.dot_dimension_numbers<[1], [0], [0], [1], [0, 0, 1, 1], [], []>} : vector<32x32xf32>, vector<32x128xf32>, vector<32x128xf32> -> vector<32x128xf32>
    %151 = arith.addf %150, %5 : vector<32x128xf32>
    %cst_78 = arith.constant 0.000000e+00 : f32
    %152 = vector.broadcast %cst_78 : f32 to vector<32x128xf32>
    %153 = arith.maximumf %151, %152 : vector<32x128xf32>
    %c18_i32 = arith.constant 18 : i32
    %cst_79 = arith.constant dense<0.000000e+00> : vector<32x128xf32>
    %154 = tpu.matmul %0, %149, %cst_79 {dimension_numbers = #tpu.dot_dimension_numbers<[1], [0], [0], [1], [0, 0, 1, 1], [], []>} : vector<32x32xf32>, vector<32x128xf32>, vector<32x128xf32> -> vector<32x128xf32>
    %155 = arith.addf %154, %4 : vector<32x128xf32>
    %cst_80 = arith.constant 0.000000e+00 : f32
    %156 = vector.broadcast %cst_80 : f32 to vector<32x128xf32>
    %157 = arith.maximumf %155, %156 : vector<32x128xf32>
    %cst_81 = arith.constant dense<0.000000e+00> : vector<32x128xf32>
    %158 = tpu.matmul %0, %153, %cst_81 {dimension_numbers = #tpu.dot_dimension_numbers<[1], [0], [0], [1], [0, 0, 1, 1], [], []>} : vector<32x32xf32>, vector<32x128xf32>, vector<32x128xf32> -> vector<32x128xf32>
    %159 = arith.addf %158, %5 : vector<32x128xf32>
    %cst_82 = arith.constant 0.000000e+00 : f32
    %160 = vector.broadcast %cst_82 : f32 to vector<32x128xf32>
    %161 = arith.maximumf %159, %160 : vector<32x128xf32>
    %c19_i32 = arith.constant 19 : i32
    %cst_83 = arith.constant dense<0.000000e+00> : vector<32x128xf32>
    %162 = tpu.matmul %0, %157, %cst_83 {dimension_numbers = #tpu.dot_dimension_numbers<[1], [0], [0], [1], [0, 0, 1, 1], [], []>} : vector<32x32xf32>, vector<32x128xf32>, vector<32x128xf32> -> vector<32x128xf32>
    %163 = arith.addf %162, %4 : vector<32x128xf32>
    %cst_84 = arith.constant 0.000000e+00 : f32
    %164 = vector.broadcast %cst_84 : f32 to vector<32x128xf32>
    %165 = arith.maximumf %163, %164 : vector<32x128xf32>
    %cst_85 = arith.constant dense<0.000000e+00> : vector<32x128xf32>
    %166 = tpu.matmul %0, %161, %cst_85 {dimension_numbers = #tpu.dot_dimension_numbers<[1], [0], [0], [1], [0, 0, 1, 1], [], []>} : vector<32x32xf32>, vector<32x128xf32>, vector<32x128xf32> -> vector<32x128xf32>
    %167 = arith.addf %166, %5 : vector<32x128xf32>
    %cst_86 = arith.constant 0.000000e+00 : f32
    %168 = vector.broadcast %cst_86 : f32 to vector<32x128xf32>
    %169 = arith.maximumf %167, %168 : vector<32x128xf32>
    %c20_i32 = arith.constant 20 : i32
    %cst_87 = arith.constant dense<0.000000e+00> : vector<32x128xf32>
    %170 = tpu.matmul %0, %165, %cst_87 {dimension_numbers = #tpu.dot_dimension_numbers<[1], [0], [0], [1], [0, 0, 1, 1], [], []>} : vector<32x32xf32>, vector<32x128xf32>, vector<32x128xf32> -> vector<32x128xf32>
    %171 = arith.addf %170, %4 : vector<32x128xf32>
    %cst_88 = arith.constant 0.000000e+00 : f32
    %172 = vector.broadcast %cst_88 : f32 to vector<32x128xf32>
    %173 = arith.maximumf %171, %172 : vector<32x128xf32>
    %cst_89 = arith.constant dense<0.000000e+00> : vector<32x128xf32>
    %174 = tpu.matmul %0, %169, %cst_89 {dimension_numbers = #tpu.dot_dimension_numbers<[1], [0], [0], [1], [0, 0, 1, 1], [], []>} : vector<32x32xf32>, vector<32x128xf32>, vector<32x128xf32> -> vector<32x128xf32>
    %175 = arith.addf %174, %5 : vector<32x128xf32>
    %cst_90 = arith.constant 0.000000e+00 : f32
    %176 = vector.broadcast %cst_90 : f32 to vector<32x128xf32>
    %177 = arith.maximumf %175, %176 : vector<32x128xf32>
    %c21_i32 = arith.constant 21 : i32
    %cst_91 = arith.constant dense<0.000000e+00> : vector<32x128xf32>
    %178 = tpu.matmul %0, %173, %cst_91 {dimension_numbers = #tpu.dot_dimension_numbers<[1], [0], [0], [1], [0, 0, 1, 1], [], []>} : vector<32x32xf32>, vector<32x128xf32>, vector<32x128xf32> -> vector<32x128xf32>
    %179 = arith.addf %178, %4 : vector<32x128xf32>
    %cst_92 = arith.constant 0.000000e+00 : f32
    %180 = vector.broadcast %cst_92 : f32 to vector<32x128xf32>
    %181 = arith.maximumf %179, %180 : vector<32x128xf32>
    %cst_93 = arith.constant dense<0.000000e+00> : vector<32x128xf32>
    %182 = tpu.matmul %0, %177, %cst_93 {dimension_numbers = #tpu.dot_dimension_numbers<[1], [0], [0], [1], [0, 0, 1, 1], [], []>} : vector<32x32xf32>, vector<32x128xf32>, vector<32x128xf32> -> vector<32x128xf32>
    %183 = arith.addf %182, %5 : vector<32x128xf32>
    %cst_94 = arith.constant 0.000000e+00 : f32
    %184 = vector.broadcast %cst_94 : f32 to vector<32x128xf32>
    %185 = arith.maximumf %183, %184 : vector<32x128xf32>
    %c22_i32 = arith.constant 22 : i32
    %cst_95 = arith.constant dense<0.000000e+00> : vector<32x128xf32>
    %186 = tpu.matmul %0, %181, %cst_95 {dimension_numbers = #tpu.dot_dimension_numbers<[1], [0], [0], [1], [0, 0, 1, 1], [], []>} : vector<32x32xf32>, vector<32x128xf32>, vector<32x128xf32> -> vector<32x128xf32>
    %187 = arith.addf %186, %4 : vector<32x128xf32>
    %cst_96 = arith.constant 0.000000e+00 : f32
    %188 = vector.broadcast %cst_96 : f32 to vector<32x128xf32>
    %189 = arith.maximumf %187, %188 : vector<32x128xf32>
    %cst_97 = arith.constant dense<0.000000e+00> : vector<32x128xf32>
    %190 = tpu.matmul %0, %185, %cst_97 {dimension_numbers = #tpu.dot_dimension_numbers<[1], [0], [0], [1], [0, 0, 1, 1], [], []>} : vector<32x32xf32>, vector<32x128xf32>, vector<32x128xf32> -> vector<32x128xf32>
    %191 = arith.addf %190, %5 : vector<32x128xf32>
    %cst_98 = arith.constant 0.000000e+00 : f32
    %192 = vector.broadcast %cst_98 : f32 to vector<32x128xf32>
    %193 = arith.maximumf %191, %192 : vector<32x128xf32>
    %c23_i32 = arith.constant 23 : i32
    %cst_99 = arith.constant dense<0.000000e+00> : vector<32x128xf32>
    %194 = tpu.matmul %0, %189, %cst_99 {dimension_numbers = #tpu.dot_dimension_numbers<[1], [0], [0], [1], [0, 0, 1, 1], [], []>} : vector<32x32xf32>, vector<32x128xf32>, vector<32x128xf32> -> vector<32x128xf32>
    %195 = arith.addf %194, %4 : vector<32x128xf32>
    %cst_100 = arith.constant 0.000000e+00 : f32
    %196 = vector.broadcast %cst_100 : f32 to vector<32x128xf32>
    %197 = arith.maximumf %195, %196 : vector<32x128xf32>
    %cst_101 = arith.constant dense<0.000000e+00> : vector<32x128xf32>
    %198 = tpu.matmul %0, %193, %cst_101 {dimension_numbers = #tpu.dot_dimension_numbers<[1], [0], [0], [1], [0, 0, 1, 1], [], []>} : vector<32x32xf32>, vector<32x128xf32>, vector<32x128xf32> -> vector<32x128xf32>
    %199 = arith.addf %198, %5 : vector<32x128xf32>
    %cst_102 = arith.constant 0.000000e+00 : f32
    %200 = vector.broadcast %cst_102 : f32 to vector<32x128xf32>
    %201 = arith.maximumf %199, %200 : vector<32x128xf32>
    %c24_i32 = arith.constant 24 : i32
    %cst_103 = arith.constant dense<0.000000e+00> : vector<32x128xf32>
    %202 = tpu.matmul %0, %197, %cst_103 {dimension_numbers = #tpu.dot_dimension_numbers<[1], [0], [0], [1], [0, 0, 1, 1], [], []>} : vector<32x32xf32>, vector<32x128xf32>, vector<32x128xf32> -> vector<32x128xf32>
    %203 = arith.addf %202, %4 : vector<32x128xf32>
    %cst_104 = arith.constant 0.000000e+00 : f32
    %204 = vector.broadcast %cst_104 : f32 to vector<32x128xf32>
    %205 = arith.maximumf %203, %204 : vector<32x128xf32>
    %cst_105 = arith.constant dense<0.000000e+00> : vector<32x128xf32>
    %206 = tpu.matmul %0, %201, %cst_105 {dimension_numbers = #tpu.dot_dimension_numbers<[1], [0], [0], [1], [0, 0, 1, 1], [], []>} : vector<32x32xf32>, vector<32x128xf32>, vector<32x128xf32> -> vector<32x128xf32>
    %207 = arith.addf %206, %5 : vector<32x128xf32>
    %cst_106 = arith.constant 0.000000e+00 : f32
    %208 = vector.broadcast %cst_106 : f32 to vector<32x128xf32>
    %209 = arith.maximumf %207, %208 : vector<32x128xf32>
    %c25_i32 = arith.constant 25 : i32
    %cst_107 = arith.constant dense<0.000000e+00> : vector<32x128xf32>
    %210 = tpu.matmul %0, %205, %cst_107 {dimension_numbers = #tpu.dot_dimension_numbers<[1], [0], [0], [1], [0, 0, 1, 1], [], []>} : vector<32x32xf32>, vector<32x128xf32>, vector<32x128xf32> -> vector<32x128xf32>
    %211 = arith.addf %210, %4 : vector<32x128xf32>
    %cst_108 = arith.constant 0.000000e+00 : f32
    %212 = vector.broadcast %cst_108 : f32 to vector<32x128xf32>
    %213 = arith.maximumf %211, %212 : vector<32x128xf32>
    %cst_109 = arith.constant dense<0.000000e+00> : vector<32x128xf32>
    %214 = tpu.matmul %0, %209, %cst_109 {dimension_numbers = #tpu.dot_dimension_numbers<[1], [0], [0], [1], [0, 0, 1, 1], [], []>} : vector<32x32xf32>, vector<32x128xf32>, vector<32x128xf32> -> vector<32x128xf32>
    %215 = arith.addf %214, %5 : vector<32x128xf32>
    %cst_110 = arith.constant 0.000000e+00 : f32
    %216 = vector.broadcast %cst_110 : f32 to vector<32x128xf32>
    %217 = arith.maximumf %215, %216 : vector<32x128xf32>
    %c26_i32 = arith.constant 26 : i32
    %cst_111 = arith.constant dense<0.000000e+00> : vector<32x128xf32>
    %218 = tpu.matmul %0, %213, %cst_111 {dimension_numbers = #tpu.dot_dimension_numbers<[1], [0], [0], [1], [0, 0, 1, 1], [], []>} : vector<32x32xf32>, vector<32x128xf32>, vector<32x128xf32> -> vector<32x128xf32>
    %219 = arith.addf %218, %4 : vector<32x128xf32>
    %cst_112 = arith.constant 0.000000e+00 : f32
    %220 = vector.broadcast %cst_112 : f32 to vector<32x128xf32>
    %221 = arith.maximumf %219, %220 : vector<32x128xf32>
    %cst_113 = arith.constant dense<0.000000e+00> : vector<32x128xf32>
    %222 = tpu.matmul %0, %217, %cst_113 {dimension_numbers = #tpu.dot_dimension_numbers<[1], [0], [0], [1], [0, 0, 1, 1], [], []>} : vector<32x32xf32>, vector<32x128xf32>, vector<32x128xf32> -> vector<32x128xf32>
    %223 = arith.addf %222, %5 : vector<32x128xf32>
    %cst_114 = arith.constant 0.000000e+00 : f32
    %224 = vector.broadcast %cst_114 : f32 to vector<32x128xf32>
    %225 = arith.maximumf %223, %224 : vector<32x128xf32>
    %c27_i32 = arith.constant 27 : i32
    %cst_115 = arith.constant dense<0.000000e+00> : vector<32x128xf32>
    %226 = tpu.matmul %0, %221, %cst_115 {dimension_numbers = #tpu.dot_dimension_numbers<[1], [0], [0], [1], [0, 0, 1, 1], [], []>} : vector<32x32xf32>, vector<32x128xf32>, vector<32x128xf32> -> vector<32x128xf32>
    %227 = arith.addf %226, %4 : vector<32x128xf32>
    %cst_116 = arith.constant 0.000000e+00 : f32
    %228 = vector.broadcast %cst_116 : f32 to vector<32x128xf32>
    %229 = arith.maximumf %227, %228 : vector<32x128xf32>
    %cst_117 = arith.constant dense<0.000000e+00> : vector<32x128xf32>
    %230 = tpu.matmul %0, %225, %cst_117 {dimension_numbers = #tpu.dot_dimension_numbers<[1], [0], [0], [1], [0, 0, 1, 1], [], []>} : vector<32x32xf32>, vector<32x128xf32>, vector<32x128xf32> -> vector<32x128xf32>
    %231 = arith.addf %230, %5 : vector<32x128xf32>
    %cst_118 = arith.constant 0.000000e+00 : f32
    %232 = vector.broadcast %cst_118 : f32 to vector<32x128xf32>
    %233 = arith.maximumf %231, %232 : vector<32x128xf32>
    %c28_i32 = arith.constant 28 : i32
    %cst_119 = arith.constant dense<0.000000e+00> : vector<32x128xf32>
    %234 = tpu.matmul %0, %229, %cst_119 {dimension_numbers = #tpu.dot_dimension_numbers<[1], [0], [0], [1], [0, 0, 1, 1], [], []>} : vector<32x32xf32>, vector<32x128xf32>, vector<32x128xf32> -> vector<32x128xf32>
    %235 = arith.addf %234, %4 : vector<32x128xf32>
    %cst_120 = arith.constant 0.000000e+00 : f32
    %236 = vector.broadcast %cst_120 : f32 to vector<32x128xf32>
    %237 = arith.maximumf %235, %236 : vector<32x128xf32>
    %cst_121 = arith.constant dense<0.000000e+00> : vector<32x128xf32>
    %238 = tpu.matmul %0, %233, %cst_121 {dimension_numbers = #tpu.dot_dimension_numbers<[1], [0], [0], [1], [0, 0, 1, 1], [], []>} : vector<32x32xf32>, vector<32x128xf32>, vector<32x128xf32> -> vector<32x128xf32>
    %239 = arith.addf %238, %5 : vector<32x128xf32>
    %cst_122 = arith.constant 0.000000e+00 : f32
    %240 = vector.broadcast %cst_122 : f32 to vector<32x128xf32>
    %241 = arith.maximumf %239, %240 : vector<32x128xf32>
    %c29_i32 = arith.constant 29 : i32
    %cst_123 = arith.constant dense<0.000000e+00> : vector<32x128xf32>
    %242 = tpu.matmul %0, %237, %cst_123 {dimension_numbers = #tpu.dot_dimension_numbers<[1], [0], [0], [1], [0, 0, 1, 1], [], []>} : vector<32x32xf32>, vector<32x128xf32>, vector<32x128xf32> -> vector<32x128xf32>
    %243 = arith.addf %242, %4 : vector<32x128xf32>
    %cst_124 = arith.constant 0.000000e+00 : f32
    %244 = vector.broadcast %cst_124 : f32 to vector<32x128xf32>
    %245 = arith.maximumf %243, %244 : vector<32x128xf32>
    %cst_125 = arith.constant dense<0.000000e+00> : vector<32x128xf32>
    %246 = tpu.matmul %0, %241, %cst_125 {dimension_numbers = #tpu.dot_dimension_numbers<[1], [0], [0], [1], [0, 0, 1, 1], [], []>} : vector<32x32xf32>, vector<32x128xf32>, vector<32x128xf32> -> vector<32x128xf32>
    %247 = arith.addf %246, %5 : vector<32x128xf32>
    %cst_126 = arith.constant 0.000000e+00 : f32
    %248 = vector.broadcast %cst_126 : f32 to vector<32x128xf32>
    %249 = arith.maximumf %247, %248 : vector<32x128xf32>
    %c30_i32 = arith.constant 30 : i32
    %cst_127 = arith.constant dense<0.000000e+00> : vector<32x128xf32>
    %250 = tpu.matmul %0, %245, %cst_127 {dimension_numbers = #tpu.dot_dimension_numbers<[1], [0], [0], [1], [0, 0, 1, 1], [], []>} : vector<32x32xf32>, vector<32x128xf32>, vector<32x128xf32> -> vector<32x128xf32>
    %251 = arith.addf %250, %4 : vector<32x128xf32>
    %cst_128 = arith.constant 0.000000e+00 : f32
    %252 = vector.broadcast %cst_128 : f32 to vector<32x128xf32>
    %253 = arith.maximumf %251, %252 : vector<32x128xf32>
    %cst_129 = arith.constant dense<0.000000e+00> : vector<32x128xf32>
    %254 = tpu.matmul %0, %249, %cst_129 {dimension_numbers = #tpu.dot_dimension_numbers<[1], [0], [0], [1], [0, 0, 1, 1], [], []>} : vector<32x32xf32>, vector<32x128xf32>, vector<32x128xf32> -> vector<32x128xf32>
    %255 = arith.addf %254, %5 : vector<32x128xf32>
    %cst_130 = arith.constant 0.000000e+00 : f32
    %256 = vector.broadcast %cst_130 : f32 to vector<32x128xf32>
    %257 = arith.maximumf %255, %256 : vector<32x128xf32>
    %c0_131 = arith.constant 0 : index
    %c0_132 = arith.constant 0 : index
    %258 = vector.load %arg3[%c0_131, %c0_132] : memref<8x32xf32, #tpu.memory_space<vmem>>, vector<8x32xf32>
    %c0_133 = arith.constant 0 : index
    %c0_134 = arith.constant 0 : index
    %259 = vector.load %arg4[%c0_133, %c0_134] : memref<8x16xf32, #tpu.memory_space<vmem>>, vector<8x16xf32>
    %260 = vector.extract_strided_slice %1 {offsets = [0, 0], sizes = [16, 128], strides = [1, 1]} : vector<16x256xf32> to vector<16x128xf32>
    %cst_135 = arith.constant dense<0.000000e+00> : vector<8x128xf32>
    %261 = tpu.matmul %258, %253, %cst_135 {dimension_numbers = #tpu.dot_dimension_numbers<[1], [0], [0], [1], [0, 0, 1, 1], [], []>} : vector<8x32xf32>, vector<32x128xf32>, vector<8x128xf32> -> vector<8x128xf32>
    %cst_136 = arith.constant dense<0.000000e+00> : vector<8x128xf32>
    %262 = tpu.matmul %259, %260, %cst_136 {dimension_numbers = #tpu.dot_dimension_numbers<[1], [0], [0], [1], [0, 0, 1, 1], [], []>} : vector<8x16xf32>, vector<16x128xf32>, vector<8x128xf32> -> vector<8x128xf32>
    %263 = arith.addf %261, %262 : vector<8x128xf32>
    %c0_137 = arith.constant 0 : index
    %c0_138 = arith.constant 0 : index
    %264 = vector.load %arg6[%c0_137, %c0_138] : memref<8x256xf32, #tpu.memory_space<vmem>>, vector<8x128xf32>
    tpu.vector_store %arg6[%c0_137, %c0_138], %263 {strides = array<i32>} : memref<8x256xf32, #tpu.memory_space<vmem>>, vector<8x128xf32>,
    %265 = vector.extract_strided_slice %1 {offsets = [0, 128], sizes = [16, 128], strides = [1, 1]} : vector<16x256xf32> to vector<16x128xf32>
    %cst_139 = arith.constant dense<0.000000e+00> : vector<8x128xf32>
    %266 = tpu.matmul %258, %257, %cst_139 {dimension_numbers = #tpu.dot_dimension_numbers<[1], [0], [0], [1], [0, 0, 1, 1], [], []>} : vector<8x32xf32>, vector<32x128xf32>, vector<8x128xf32> -> vector<8x128xf32>
    %cst_140 = arith.constant dense<0.000000e+00> : vector<8x128xf32>
    %267 = tpu.matmul %259, %265, %cst_140 {dimension_numbers = #tpu.dot_dimension_numbers<[1], [0], [0], [1], [0, 0, 1, 1], [], []>} : vector<8x16xf32>, vector<16x128xf32>, vector<8x128xf32> -> vector<8x128xf32>
    %268 = arith.addf %266, %267 : vector<8x128xf32>
    %c0_141 = arith.constant 0 : index
    %c128 = arith.constant 128 : index
    %269 = vector.load %arg6[%c0_141, %c128] : memref<8x256xf32, #tpu.memory_space<vmem>>, vector<8x128xf32>
    tpu.vector_store %arg6[%c0_141, %c128], %268 {strides = array<i32>} : memref<8x256xf32, #tpu.memory_space<vmem>>, vector<8x128xf32>,
    return
  }
  func.func @transform_0(%arg0: i32) -> (i32, i32) {
    %c0_i32 = arith.constant 0 : i32
    %c0_i32_0 = arith.constant 0 : i32
    %c0_i32_1 = arith.constant 0 : i32
    return %c0_i32, %c0_i32_0 : i32, i32
  }
  func.func @transform_1(%arg0: i32) -> (i32, i32) {
    %c0_i32 = arith.constant 0 : i32
    %c0_i32_0 = arith.constant 0 : i32
    %c0_i32_1 = arith.constant 0 : i32
    return %c0_i32, %c0_i32_0 : i32, i32
  }
  func.func @transform_2(%arg0: i32) -> (i32, i32) {
    %c0_i32 = arith.constant 0 : i32
    %c0_i32_0 = arith.constant 0 : i32
    %c0_i32_1 = arith.constant 0 : i32
    return %c0_i32, %c0_i32_0 : i32, i32
  }
  func.func @transform_3(%arg0: i32) -> (i32, i32) {
    %c0_i32 = arith.constant 0 : i32
    %c0_i32_0 = arith.constant 0 : i32
    %c0_i32_1 = arith.constant 0 : i32
    return %c0_i32, %c0_i32_0 : i32, i32
  }
  func.func @transform_4(%arg0: i32) -> (i32, i32) {
    %c0_i32 = arith.constant 0 : i32
    %c0_i32_0 = arith.constant 0 : i32
    return %c0_i32, %arg0 : i32, i32
  }
  func.func @transform_5(%arg0: i32) -> (i32, i32) {
    %c0_i32 = arith.constant 0 : i32
    %c0_i32_0 = arith.constant 0 : i32
    return %c0_i32, %arg0 : i32, i32
  }
}

</mosaic_0001>

<llo_original>
// kernel: tpu_custom_call.1
$region0: #{tpu_custom_call.1}
  #allocation0 [shape = 'u32[]', space=smem, size = 0x4, offset = 0x4, fixed_abs, tag = 'smem constant byte address 0x4 - core index']
  #allocation1 [shape = 'u32[144,128]{1,0:T(1,128)}', space=vmem, size = 0x12000, scoped, tag = 'internal scratch']
  %s0 = inlined_call_operand.vmem [shape: f32[32,32], index: 0, kind: input, shape index: {}]
  %s1 = inlined_call_operand.vmem [shape: f32[32,16], index: 1, kind: input, shape index: {}]
  %s2 = inlined_call_operand.vmem [shape: f32[8,32], index: 2, kind: input, shape index: {}]
  %s3 = inlined_call_operand.vmem [shape: f32[8,16], index: 3, kind: input, shape index: {}]
  %s4 = inlined_call_operand.hbm [shape: f32[16,512], index: 4, kind: input, shape index: {}]
  %s5 = inlined_call_operand.hbm [shape: f32[8,512], index: 5, kind: output, shape index: {}]
  %s6 = sld [smem:[#allocation0]]
  $region57: #{tpu_custom_call.1} parent=0
    _
  %s8 = ssub.s32 1, %s6
  %s9 = scalar_select 0, %s8, %s6
  $region1: #{tpu_custom_call.1} parent=0
    #allocation2 [shape = 'u8[32768]{0}', space=vmem, size = 0x8000, scoped, tag = 'input window, operand 4']
    #allocation3 [shape = 's32[2]{0}', space=sflag, size = 0x8, scoped, tag = 'scoped memory for tpu_custom_call.1']
    #allocation4 [shape = 's32[2]{0}', space=sflag, size = 0x8, scoped, tag = 'scoped memory for tpu_custom_call.1']
    #allocation5 [shape = 'u8[16384]{0}', space=vmem, size = 0x4000, scoped, tag = 'output window, operand 0']
    %10 = vsyncpa [#allocation3], 0
    %s11 = scalar_lea.sflag [#allocation3], 1
    %12 = vsyncpa %s11, 0
    %13 = vsyncpa [#allocation4], 0
    %s14 = scalar_lea.sflag [#allocation4], 1
    %15 = vsyncpa %s14, 0
    loop: start=0, step=1, limit=4
    $region2: #{tpu_custom_call.1} parent=1 // loop_pre_header
      _
    $region3: #{tpu_custom_call.1} parent=1 // loop_header
      %s17 = sphi 0, %s21
      %p18 = scmp.ge.s32.totalorder %s17, 4
      %s25 = sphi 0, %s25
      %s27 = sphi 0, %s25
      %s28 = sphi 0, %s27
      %s42 = sphi 0, %s28
      %s46 = sphi 0, %s46
      %s48 = sphi 0, %s46
      %s49 = sphi 0, %s48
      %s63 = sphi 0, %s49
      %s67 = sphi 0, %s67
      %s69 = sphi 0, %s67
      %s70 = sphi 0, %s69
      %s84 = sphi 0, %s70
      %s88 = sphi 0, %s88
      %s90 = sphi 0, %s88
      %s91 = sphi 0, %s90
      %s105 = sphi 0, %s91
      %s111 = sphi 0, %s113
      %s114 = sphi 0, %s111
      %s115 = sphi 0, %s114
      %s131 = sphi 0, %s115
      %s137 = sphi 0, %s139
      %s140 = sphi 0, %s137
      %s141 = sphi 0, %s140
      %s157 = sphi 0, %s141
    $region4: #{tpu_custom_call.1} parent=1 // loop_header_branch
      %20 = sbr.rel (%p18) target = $region8
    $region5: #{tpu_custom_call.1} parent=1 // loop_body
      %s22 = ssub.s32 %s17, 1
      %s23 = ssub.s32 %s17, 2
      %s24 = sadd.s32 %s17, 1
      %s26 = sadd.s32 %s25, 1
      %p29 = scmp.eq.s32.totalorder %s17, 1
      %p30 = scmp.ne.s32.totalorder %s25, %s27
      %p31 = scmp.eq.s32.totalorder %s17, 0
      %p32 = por %p30, %p31
      %p33 = scmp.ne.s32.totalorder %s25, %s27
      %p34 = scmp.eq.s32.totalorder %s22, 1
      %p35 = por %p33, %p34
      %p36 = scmp.ne.s32.totalorder %s27, %s28
      %p37 = scmp.eq.s32.totalorder %s22, 0
      %p38 = por %p36, %p37
      %p39 = scmp.ne.s32.totalorder %s27, %s28
      %p40 = scmp.eq.s32.totalorder %s23, 1
      %p41 = por %p39, %p40
      %p43 = scmp.ne.s32.totalorder %s28, %s42
      %p44 = scmp.eq.s32.totalorder %s23, 0
      %p45 = por %p43, %p44
      %s47 = sadd.s32 %s46, 1
      %p50 = scmp.eq.s32.totalorder %s17, 1
      %p51 = scmp.ne.s32.totalorder %s46, %s48
      %p52 = scmp.eq.s32.totalorder %s17, 0
      %p53 = por %p51, %p52
      %p54 = scmp.ne.s32.totalorder %s46, %s48
      %p55 = scmp.eq.s32.totalorder %s22, 1
      %p56 = por %p54, %p55
      %p57 = scmp.ne.s32.totalorder %s48, %s49
      %p58 = scmp.eq.s32.totalorder %s22, 0
      %p59 = por %p57, %p58
      %p60 = scmp.ne.s32.totalorder %s48, %s49
      %p61 = scmp.eq.s32.totalorder %s23, 1
      %p62 = por %p60, %p61
      %p64 = scmp.ne.s32.totalorder %s49, %s63
      %p65 = scmp.eq.s32.totalorder %s23, 0
      %p66 = por %p64, %p65
      %s68 = sadd.s32 %s67, 1
      %p71 = scmp.eq.s32.totalorder %s17, 1
      %p72 = scmp.ne.s32.totalorder %s67, %s69
      %p73 = scmp.eq.s32.totalorder %s17, 0
      %p74 = por %p72, %p73
      %p75 = scmp.ne.s32.totalorder %s67, %s69
      %p76 = scmp.eq.s32.totalorder %s22, 1
      %p77 = por %p75, %p76
      %p78 = scmp.ne.s32.totalorder %s69, %s70
      %p79 = scmp.eq.s32.totalorder %s22, 0
      %p80 = por %p78, %p79
      %p81 = scmp.ne.s32.totalorder %s69, %s70
      %p82 = scmp.eq.s32.totalorder %s23, 1
      %p83 = por %p81, %p82
      %p85 = scmp.ne.s32.totalorder %s70, %s84
      %p86 = scmp.eq.s32.totalorder %s23, 0
      %p87 = por %p85, %p86
      %s89 = sadd.s32 %s88, 1
      %p92 = scmp.eq.s32.totalorder %s17, 1
      %p93 = scmp.ne.s32.totalorder %s88, %s90
      %p94 = scmp.eq.s32.totalorder %s17, 0
      %p95 = por %p93, %p94
      %p96 = scmp.ne.s32.totalorder %s88, %s90
      %p97 = scmp.eq.s32.totalorder %s22, 1
      %p98 = por %p96, %p97
      %p99 = scmp.ne.s32.totalorder %s90, %s91
      %p100 = scmp.eq.s32.totalorder %s22, 0
      %p101 = por %p99, %p100
      %p102 = scmp.ne.s32.totalorder %s90, %s91
      %p103 = scmp.eq.s32.totalorder %s23, 1
      %p104 = por %p102, %p103
      %p106 = scmp.ne.s32.totalorder %s91, %s105
      %p107 = scmp.eq.s32.totalorder %s23, 0
      %p108 = por %p106, %p107
      %s109 = ssub.s32 %s17, %s24
      %p110 = scmp.eq.s32.totalorder %s109, 0
      %s112 = sadd.s32 %s111, 1
      %s113 = scalar_select %p110, %s111, %s112
      %p116 = pneg %p110
      %p117 = scmp.eq.s32.totalorder %s17, 1
      %p118 = por %p116, %p117
      %p119 = scmp.ne.s32.totalorder %s111, %s114
      %p120 = scmp.eq.s32.totalorder %s17, 0
      %p121 = por %p119, %p120
      %p122 = scmp.ne.s32.totalorder %s111, %s114
      %p123 = scmp.eq.s32.totalorder %s22, 1
      %p124 = por %p122, %p123
      %p125 = scmp.ne.s32.totalorder %s114, %s115
      %p126 = scmp.eq.s32.totalorder %s22, 0
      %p127 = por %p125, %p126
      %p128 = scmp.ne.s32.totalorder %s114, %s115
      %p129 = scmp.eq.s32.totalorder %s23, 1
      %p130 = por %p128, %p129
      %p132 = scmp.ne.s32.totalorder %s115, %s131
      %p133 = scmp.eq.s32.totalorder %s23, 0
      %p134 = por %p132, %p133
      %s135 = ssub.s32 %s17, %s24
      %p136 = scmp.eq.s32.totalorder %s135, 0
      %s138 = sadd.s32 %s137, 1
      %s139 = scalar_select %p136, %s137, %s138
      %p142 = pneg %p136
      %p143 = scmp.eq.s32.totalorder %s17, 1
      %p144 = por %p142, %p143
      %p145 = scmp.ne.s32.totalorder %s137, %s140
      %p146 = scmp.eq.s32.totalorder %s17, 0
      %p147 = por %p145, %p146
      %p148 = scmp.ne.s32.totalorder %s137, %s140
      %p149 = scmp.eq.s32.totalorder %s22, 1
      %p150 = por %p148, %p149
      %p151 = scmp.ne.s32.totalorder %s140, %s141
      %p152 = scmp.eq.s32.totalorder %s22, 0
      %p153 = por %p151, %p152
      %p154 = scmp.ne.s32.totalorder %s140, %s141
      %p155 = scmp.eq.s32.totalorder %s23, 1
      %p156 = por %p154, %p155
      %p158 = scmp.ne.s32.totalorder %s141, %s157
      %p159 = scmp.eq.s32.totalorder %s23, 0
      %p160 = por %p158, %p159
      %p161 = scmp.le.s32.totalorder 1, %s17
      %p162 = scmp.lt.s32.totalorder %s17, 3
      %p163 = pnand %p161, %p162
      %p164 = pneg %p163
      // Predicated region
      $region9: #{tpu_custom_call.1} parent=5 // pred_check
        _
      $region10: #{tpu_custom_call.1} parent=5 // pred_check_branch
        %166 = sbr.rel (%p163) target = $region12
      $region11: #{tpu_custom_call.1} parent=5 // pred_region
        %s167 = ssub.s32 %s17, 1
        // Predicated region
        $region13: #{tpu_custom_call.1} parent=11 // pred_check
          %p168 = pneg %p38
        $region14: #{tpu_custom_call.1} parent=11 // pred_check_branch
          %170 = sbr.rel (%p168) target = $region16
        $region15: #{tpu_custom_call.1} parent=11 // pred_region
          _
        $region16: #{tpu_custom_call.1} parent=11 // pred_fallthru
          _
        // Predicated region
        $region17: #{tpu_custom_call.1} parent=11 // pred_check
          %p171 = pneg %p59
        $region18: #{tpu_custom_call.1} parent=11 // pred_check_branch
          %173 = sbr.rel (%p171) target = $region20
        $region19: #{tpu_custom_call.1} parent=11 // pred_region
          _
        $region20: #{tpu_custom_call.1} parent=11 // pred_fallthru
          _
        // Predicated region
        $region21: #{tpu_custom_call.1} parent=11 // pred_check
          %p174 = pneg %p80
        $region22: #{tpu_custom_call.1} parent=11 // pred_check_branch
          %176 = sbr.rel (%p174) target = $region24
        $region23: #{tpu_custom_call.1} parent=11 // pred_region
          _
        $region24: #{tpu_custom_call.1} parent=11 // pred_fallthru
          _
        // Predicated region
        $region25: #{tpu_custom_call.1} parent=11 // pred_check
          %p177 = pneg %p101
        $region26: #{tpu_custom_call.1} parent=11 // pred_check_branch
          %179 = sbr.rel (%p177) target = $region28
        $region27: #{tpu_custom_call.1} parent=11 // pred_region
          _
        $region28: #{tpu_custom_call.1} parent=11 // pred_fallthru
          _
      $region12: #{tpu_custom_call.1} parent=5 // pred_fallthru
        _
      %p180 = scmp.lt.s32.totalorder %s17, 2
      // Predicated region
      $region29: #{tpu_custom_call.1} parent=5 // pred_check
        %p181 = pneg %p180
      $region30: #{tpu_custom_call.1} parent=5 // pred_check_branch
        %183 = sbr.rel (%p181) target = $region32
      $region31: #{tpu_custom_call.1} parent=5 // pred_region
        // Predicated region
        $region33: #{tpu_custom_call.1} parent=31 // pred_check
          %p184 = pneg %p121
        $region34: #{tpu_custom_call.1} parent=31 // pred_check_branch
          %186 = sbr.rel (%p184) target = $region36
        $region35: #{tpu_custom_call.1} parent=31 // pred_region
          %s187 = sand.u32 %s111, 1
          %s188 = scalar_lea.sflag [#allocation3], %s187
          %s189 = sand.u32 %s111, 1
          %s190 = smul.addr %s189, 32
          %s191 = scalar_lea.vmem [#allocation2], %s190
          %s192 = smul.u32 2, %s17
          %s194 = ssub.s32 512, 512
          %195 = vsyncadd %s188, %s194
          %s196 = smul.addr %s192, 128
          %s197 = scalar_lea.hbm %s4, %s196
          %s198 = sshll.u32 %s191, 4
          %s199 = int_to_ptr.vmem [resolvable:$true] %s198
          %204 = dma.hbm_to_vmem [thread:$0]  %s197, 512, %s199, %s188, 512, 256, 16
        $region36: #{tpu_custom_call.1} parent=31 // pred_fallthru
          _
      $region32: #{tpu_custom_call.1} parent=5 // pred_fallthru
        _
      %p205 = scmp.le.s32.totalorder 1, %s17
      %p206 = scmp.lt.s32.totalorder %s17, 3
      %p207 = pnand %p205, %p206
      %p208 = pneg %p207
      // Predicated region
      $region37: #{tpu_custom_call.1} parent=5 // pred_check
        _
      $region38: #{tpu_custom_call.1} parent=5 // pred_check_branch
        %210 = sbr.rel (%p207) target = $region40
      $region39: #{tpu_custom_call.1} parent=5 // pred_region
        %s211 = ssub.s32 %s17, 1
        %s212 = sand.u32 %s114, 1
        %s213 = scalar_lea.sflag [#allocation3], %s212
        %s214 = sand.u32 %s114, 1
        %s215 = smul.addr %s214, 32
        %s216 = scalar_lea.vmem [#allocation2], %s215
        // Predicated region
        $region41: #{tpu_custom_call.1} parent=39 // pred_check
          %p217 = pneg %p127
        $region42: #{tpu_custom_call.1} parent=39 // pred_check_branch
          %219 = sbr.rel (%p217) target = $region44
        $region43: #{tpu_custom_call.1} parent=39 // pred_region
          %220 = dma.done %s213, 512
        $region44: #{tpu_custom_call.1} parent=39 // pred_fallthru
          _
        %p221 = pneg %p38
        %p222 = pneg %p35
        %p223 = pneg %p59
        %p224 = pneg %p56
        %p225 = pneg %p80
        %p226 = pneg %p77
        %p227 = pneg %p101
        %p228 = pneg %p98
        %s229 = sand.u32 %s114, 1
        %s230 = scalar_lea.sflag [#allocation3], %s229
        %s231 = sand.u32 %s114, 1
        %s232 = smul.addr %s231, 32
        %s233 = scalar_lea.vmem [#allocation2], %s232
        %p234 = pneg %p127
        %p235 = pneg %p124
        %p236 = pneg %p153
        %p237 = pneg %p150
        %s238 = sand.u32 %s140, 1
        %s239 = scalar_lea.sflag [#allocation4], %s238
        %s240 = sand.u32 %s140, 1
        %s241 = smul.addr %s240, 16
        %s242 = scalar_lea.vmem [#allocation5], %s241
        %s243 = smul.u32 2, %s22
        %s244 = smul.u32 2, %s22
        %v245 = vld [vmem:[%s0] sm:$0xff]
        %v246 = vld [vmem:[%s0 + $0x8] sm:$0xff]
        %v247 = vld [vmem:[%s0 + $0x10] sm:$0xff]
        %v248 = vld [vmem:[%s0 + $0x18] sm:$0xff]
        %v249 = vld [vmem:[%s216] sm:$0xff]
        %v250 = vld [vmem:[%s216 + $0x8] sm:$0xff]
        %v251 = vld [vmem:[%s216 + $0x10] sm:$0xff]
        %v252 = vld [vmem:[%s216 + $0x18] sm:$0xff]
        %v253 = vld [vmem:[%s1] sm:$0xff]
        %v254 = vld [vmem:[%s1 + $0x8] sm:$0xff]
        %v255 = vld [vmem:[%s1 + $0x10] sm:$0xff]
        %v256 = vld [vmem:[%s1 + $0x18] sm:$0xff]
        %vm257 = vcmask 130048
        %v259 = vsel %vm257, %v253, 0
        %v262 = vsel %vm257, %v254, 0
        %v265 = vsel %vm257, %v255, 0
        %v268 = vsel %vm257, %v256, 0
        %270 = vmatprep.subr.mxu0 %v250
        %271 = vmatpush1.msra.mxu0 %v249
        %272 = vmatprep.subr.mxu0 %v252
        %273 = vmatpush1.msra.mxu0 %v251
        %274 = vmatprep.subr.mxu0 0.0
        %275 = vmatpush1.msra.mxu0 0.0
        %276 = vmatprep.subr.mxu0 0.0
        %277 = vmatpush1.msra.mxu0 0.0
        %278 = vmatprep.subr.mxu0 0.0
        %279 = vmatpush1.msra.mxu0 0.0
        %280 = vmatprep.subr.mxu0 0.0
        %281 = vmatpush1.msra.mxu0 0.0
        %282 = vmatprep.subr.mxu0 0.0
        %283 = vmatpush1.msra.mxu0 0.0
        %284 = vmatprep.subr.mxu0 0.0
        %285 = vmatpush1.msra.mxu0 0.0
        %286 = vmatprep.subr.mxu0 0.0
        %287 = vmatpush1.msra.mxu0 0.0
        %288 = vmatprep.subr.mxu0 0.0
        %289 = vmatpush1.msra.mxu0 0.0
        %290 = vmatprep.subr.mxu0 0.0
        %291 = vmatpush1.msra.mxu0 0.0
        %292 = vmatprep.subr.mxu0 0.0
        %293 = vmatpush1.msra.mxu0 0.0
        %294 = vmatprep.subr.mxu0 0.0
        %295 = vmatpush1.msra.mxu0 0.0
        %296 = vmatprep.subr.mxu0 0.0
        %297 = vmatpush1.msra.mxu0 0.0
        %298 = vmatprep.subr.mxu0 0.0
        %299 = vmatpush1.msra.mxu0 0.0
        %300 = vmatprep.subr.mxu0 0.0
        %301 = vmatpush1.msra.mxu0 0.0
        %302 = vmatprep.subr.mxu0 0.0
        %303 = vmatpush1.msra.mxu0 0.0
        %304 = vmatprep.subr.mxu0 0.0
        %305 = vmatpush1.msra.mxu0 0.0
        %306 = vmatprep.subr.mxu0 0.0
        %307 = vmatpush1.msra.mxu0 0.0
        %308 = vmatprep.subr.mxu0 0.0
        %309 = vmatpush1.msra.mxu0 0.0
        %310 = vmatprep.subr.mxu0 0.0
        %311 = vmatpush1.msra.mxu0 0.0
        %312 = vmatprep.subr.mxu0 0.0
        %313 = vmatpush1.msra.mxu0 0.0
        %314 = vmatprep.subr.mxu0 0.0
        %315 = vmatpush1.msra.mxu0 0.0
        %316 = vmatprep.subr.mxu0 0.0
        %317 = vmatpush1.msra.mxu0 0.0
        %318 = vmatprep.subr.mxu0 0.0
        %319 = vmatpush1.msra.mxu0 0.0
        %320 = vmatprep.subr.mxu0 0.0
        %321 = vmatpush1.msra.mxu0 0.0
        %322 = vmatprep.subr.mxu0 0.0
        %323 = vmatpush1.msra.mxu0 0.0
        %324 = vmatprep.subr.mxu0 0.0
        %325 = vmatpush1.msra.mxu0 0.0
        %326 = vmatprep.subr.mxu0 0.0
        %327 = vmatpush1.msra.mxu0 0.0
        %328 = vmatprep.subr.mxu0 0.0
        %329 = vmatpush1.msra.mxu0 0.0
        %330 = vmatprep.subr.mxu0 0.0
        %331 = vmatpush1.msra.mxu0 0.0
        %332 = vmatprep.subr.mxu0 0.0
        %333 = vmatpush1.msra.mxu0 0.0
        %334 = vmatprep.mubr.f32.mxu0 0.0
        %335 = vmatmul.mubr.f32.gmra.mrb[0].mxu0 %v259
        %v336 = vpop.f32.mrb[0].mxu0
        %v337 = vadd.f32 0.0, %v336
        %v338 = vpop.f32.mrb[0].mxu0
        %v339 = vadd.f32 0.0, %v338
        %340 = vmatprep.mubr.f32.mxu0 0.0
        %341 = vmatmul.mubr.f32.gmra.mrb[0].mxu0 %v262
        %v342 = vpop.f32.mrb[0].mxu0
        %v343 = vadd.f32 0.0, %v342
        %v344 = vpop.f32.mrb[0].mxu0
        %v345 = vadd.f32 0.0, %v344
        %346 = vmatprep.mubr.f32.mxu0 0.0
        %347 = vmatmul.mubr.f32.gmra.mrb[0].mxu0 %v265
        %v348 = vpop.f32.mrb[0].mxu0
        %v349 = vadd.f32 0.0, %v348
        %v350 = vpop.f32.mrb[0].mxu0
        %v351 = vadd.f32 0.0, %v350
        %352 = vmatprep.mubr.f32.mxu0 0.0
        %353 = vmatmul.mubr.f32.gmra.mrb[0].mxu0 %v268
        %v354 = vpop.f32.mrb[0].mxu0
        %v355 = vadd.f32 0.0, %v354
        %v356 = vpop.f32.mrb[0].mxu0
        %v357 = vadd.f32 0.0, %v356
        %358 = vdwg.mxu0
        %v359 = vmax.f32 %v337, 0.0
        %v360 = vmax.f32 %v343, 0.0
        %v361 = vmax.f32 %v349, 0.0
        %v362 = vmax.f32 %v355, 0.0
        %v363 = vmax.f32 %v339, 0.0
        %v364 = vmax.f32 %v345, 0.0
        %v365 = vmax.f32 %v351, 0.0
        %v366 = vmax.f32 %v357, 0.0
        %vm367 = vcmask 261120
        %v369 = vsel %vm367, %v245, 0
        %v372 = vsel %vm367, %v246, 0
        %v375 = vsel %vm367, %v247, 0
        %v378 = vsel %vm367, %v248, 0
        %380 = vmatprep.subr.mxu0 0.0
        %381 = vmatpush1.msra.mxu0 %v359
        %382 = vmatprep.subr.mxu0 0.0
        %383 = vmatpush1.msra.mxu0 %v360
        %384 = vmatprep.subr.mxu0 0.0
        %385 = vmatpush1.msra.mxu0 %v361
        %386 = vmatprep.subr.mxu0 0.0
        %387 = vmatpush1.msra.mxu0 %v362
        %388 = vmatprep.subr.mxu0 0.0
        %389 = vmatpush1.msra.mxu0 0.0
        %390 = vmatprep.subr.mxu0 0.0
        %391 = vmatpush1.msra.mxu0 0.0
        %392 = vmatprep.subr.mxu0 0.0
        %393 = vmatpush1.msra.mxu0 0.0
        %394 = vmatprep.subr.mxu0 0.0
        %395 = vmatpush1.msra.mxu0 0.0
        %396 = vmatprep.subr.mxu0 0.0
        %397 = vmatpush1.msra.mxu0 0.0
        %398 = vmatprep.subr.mxu0 0.0
        %399 = vmatpush1.msra.mxu0 0.0
        %400 = vmatprep.subr.mxu0 0.0
        %401 = vmatpush1.msra.mxu0 0.0
        %402 = vmatprep.subr.mxu0 0.0
        %403 = vmatpush1.msra.mxu0 0.0
        %404 = vmatprep.subr.mxu0 0.0
        %405 = vmatpush1.msra.mxu0 0.0
        %406 = vmatprep.subr.mxu0 0.0
        %407 = vmatpush1.msra.mxu0 0.0
        %408 = vmatprep.subr.mxu0 0.0
        %409 = vmatpush1.msra.mxu0 0.0
        %410 = vmatprep.subr.mxu0 0.0
        %411 = vmatpush1.msra.mxu0 0.0
        %412 = vmatprep.subr.mxu0 0.0
        %413 = vmatpush1.msra.mxu0 0.0
        %414 = vmatprep.subr.mxu0 0.0
        %415 = vmatpush1.msra.mxu0 0.0
        %416 = vmatprep.subr.mxu0 0.0
        %417 = vmatpush1.msra.mxu0 0.0
        %418 = vmatprep.subr.mxu0 0.0
        %419 = vmatpush1.msra.mxu0 0.0
        %420 = vmatprep.subr.mxu0 0.0
        %421 = vmatpush1.msra.mxu0 0.0
        %422 = vmatprep.subr.mxu0 0.0
        %423 = vmatpush1.msra.mxu0 0.0
        %424 = vmatprep.subr.mxu0 0.0
        %425 = vmatpush1.msra.mxu0 0.0
        %426 = vmatprep.subr.mxu0 0.0
        %427 = vmatpush1.msra.mxu0 0.0
        %428 = vmatprep.subr.mxu0 0.0
        %429 = vmatpush1.msra.mxu0 0.0
        %430 = vmatprep.subr.mxu0 0.0
        %431 = vmatpush1.msra.mxu0 0.0
        %432 = vmatprep.subr.mxu0 0.0
        %433 = vmatpush1.msra.mxu0 0.0
        %434 = vmatprep.subr.mxu0 0.0
        %435 = vmatpush1.msra.mxu0 0.0
        %436 = vmatprep.subr.mxu0 0.0
        %437 = vmatpush1.msra.mxu0 0.0
        %438 = vmatprep.subr.mxu0 0.0
        %439 = vmatpush1.msra.mxu0 0.0
        %440 = vmatprep.subr.mxu0 0.0
        %441 = vmatpush1.msra.mxu0 0.0
        %442 = vmatprep.subr.mxu0 0.0
        %443 = vmatpush1.msra.mxu0 0.0
        %444 = vmatprep.mubr.f32.mxu0 0.0
        %445 = vmatmul.mubr.f32.gmra.mrb[0].mxu0 %v369
        %v446 = vpop.f32.mrb[0].mxu0
        %v447 = vadd.f32 %v337, %v446
        %v448 = vpop.f32.mrb[0].mxu0
        %449 = vmatprep.mubr.f32.mxu0 0.0
        %450 = vmatmul.mubr.f32.gmra.mrb[0].mxu0 %v372
        %v451 = vpop.f32.mrb[0].mxu0
        %v452 = vadd.f32 %v343, %v451
        %v453 = vpop.f32.mrb[0].mxu0
        %454 = vmatprep.mubr.f32.mxu0 0.0
        %455 = vmatmul.mubr.f32.gmra.mrb[0].mxu0 %v375
        %v456 = vpop.f32.mrb[0].mxu0
        %v457 = vadd.f32 %v349, %v456
        %v458 = vpop.f32.mrb[0].mxu0
        %459 = vmatprep.mubr.f32.mxu0 0.0
        %460 = vmatmul.mubr.f32.gmra.mrb[0].mxu0 %v378
        %v461 = vpop.f32.mrb[0].mxu0
        %v462 = vadd.f32 %v355, %v461
        %v463 = vpop.f32.mrb[0].mxu0
        %464 = vdwg.mxu0
        %v465 = vmax.f32 %v447, 0.0
        %v466 = vmax.f32 %v452, 0.0
        %v467 = vmax.f32 %v457, 0.0
        %v468 = vmax.f32 %v462, 0.0
        %469 = vmatprep.subr.mxu0 0.0
        %470 = vmatpush1.msra.mxu0 %v363
        %471 = vmatprep.subr.mxu0 0.0
        %472 = vmatpush1.msra.mxu0 %v364
        %473 = vmatprep.subr.mxu0 0.0
        %474 = vmatpush1.msra.mxu0 %v365
        %475 = vmatprep.subr.mxu0 0.0
        %476 = vmatpush1.msra.mxu0 %v366
        %477 = vmatprep.subr.mxu0 0.0
        %478 = vmatpush1.msra.mxu0 0.0
        %479 = vmatprep.subr.mxu0 0.0
        %480 = vmatpush1.msra.mxu0 0.0
        %481 = vmatprep.subr.mxu0 0.0
        %482 = vmatpush1.msra.mxu0 0.0
        %483 = vmatprep.subr.mxu0 0.0
        %484 = vmatpush1.msra.mxu0 0.0
        %485 = vmatprep.subr.mxu0 0.0
        %486 = vmatpush1.msra.mxu0 0.0
        %487 = vmatprep.subr.mxu0 0.0
        %488 = vmatpush1.msra.mxu0 0.0
        %489 = vmatprep.subr.mxu0 0.0
        %490 = vmatpush1.msra.mxu0 0.0
        %491 = vmatprep.subr.mxu0 0.0
        %492 = vmatpush1.msra.mxu0 0.0
        %493 = vmatprep.subr.mxu0 0.0
        %494 = vmatpush1.msra.mxu0 0.0
        %495 = vmatprep.subr.mxu0 0.0
        %496 = vmatpush1.msra.mxu0 0.0
        %497 = vmatprep.subr.mxu0 0.0
        %498 = vmatpush1.msra.mxu0 0.0
        %499 = vmatprep.subr.mxu0 0.0
        %500 = vmatpush1.msra.mxu0 0.0
        %501 = vmatprep.subr.mxu0 0.0
        %502 = vmatpush1.msra.mxu0 0.0
        %503 = vmatprep.subr.mxu0 0.0
        %504 = vmatpush1.msra.mxu0 0.0
        %505 = vmatprep.subr.mxu0 0.0
        %506 = vmatpush1.msra.mxu0 0.0
        %507 = vmatprep.subr.mxu0 0.0
        %508 = vmatpush1.msra.mxu0 0.0
        %509 = vmatprep.subr.mxu0 0.0
        %510 = vmatpush1.msra.mxu0 0.0
        %511 = vmatprep.subr.mxu0 0.0
        %512 = vmatpush1.msra.mxu0 0.0
        %513 = vmatprep.subr.mxu0 0.0
        %514 = vmatpush1.msra.mxu0 0.0
        %515 = vmatprep.subr.mxu0 0.0
        %516 = vmatpush1.msra.mxu0 0.0
        %517 = vmatprep.subr.mxu0 0.0
        %518 = vmatpush1.msra.mxu0 0.0
        %519 = vmatprep.subr.mxu0 0.0
        %520 = vmatpush1.msra.mxu0 0.0
        %521 = vmatprep.subr.mxu0 0.0
        %522 = vmatpush1.msra.mxu0 0.0
        %523 = vmatprep.subr.mxu0 0.0
        %524 = vmatpush1.msra.mxu0 0.0
        %525 = vmatprep.subr.mxu0 0.0
        %526 = vmatpush1.msra.mxu0 0.0
        %527 = vmatprep.subr.mxu0 0.0
        %528 = vmatpush1.msra.mxu0 0.0
        %529 = vmatprep.subr.mxu0 0.0
        %530 = vmatpush1.msra.mxu0 0.0
        %531 = vmatprep.subr.mxu0 0.0
        %532 = vmatpush1.msra.mxu0 0.0
        %533 = vmatprep.mubr.f32.mxu0 0.0
        %534 = vmatmul.mubr.f32.gmra.mrb[0].mxu0 %v369
        %v535 = vpop.f32.mrb[0].mxu0
        %v536 = vadd.f32 %v339, %v535
        %v537 = vpop.f32.mrb[0].mxu0
        %538 = vmatprep.mubr.f32.mxu0 0.0
        %539 = vmatmul.mubr.f32.gmra.mrb[0].mxu0 %v372
        %v540 = vpop.f32.mrb[0].mxu0
        %v541 = vadd.f32 %v345, %v540
        %v542 = vpop.f32.mrb[0].mxu0
        %543 = vmatprep.mubr.f32.mxu0 0.0
        %544 = vmatmul.mubr.f32.gmra.mrb[0].mxu0 %v375
        %v545 = vpop.f32.mrb[0].mxu0
        %v546 = vadd.f32 %v351, %v545
        %v547 = vpop.f32.mrb[0].mxu0
        %548 = vmatprep.mubr.f32.mxu0 0.0
        %549 = vmatmul.mubr.f32.gmra.mrb[0].mxu0 %v378
        %v550 = vpop.f32.mrb[0].mxu0
        %v551 = vadd.f32 %v357, %v550
        %v552 = vpop.f32.mrb[0].mxu0
        %553 = vdwg.mxu0
        %v554 = vmax.f32 %v536, 0.0
        %v555 = vmax.f32 %v541, 0.0
        %v556 = vmax.f32 %v546, 0.0
        %v557 = vmax.f32 %v551, 0.0
        %558 = vmatprep.subr.mxu0 0.0
        %559 = vmatpush1.msra.mxu0 %v465
        %560 = vmatprep.subr.mxu0 0.0
        %561 = vmatpush1.msra.mxu0 %v466
        %562 = vmatprep.subr.mxu0 0.0
        %563 = vmatpush1.msra.mxu0 %v467
        %564 = vmatprep.subr.mxu0 0.0
        %565 = vmatpush1.msra.mxu0 %v468
        %566 = vmatprep.subr.mxu0 0.0
        %567 = vmatpush1.msra.mxu0 0.0
        %568 = vmatprep.subr.mxu0 0.0
        %569 = vmatpush1.msra.mxu0 0.0
        %570 = vmatprep.subr.mxu0 0.0
        %571 = vmatpush1.msra.mxu0 0.0
        %572 = vmatprep.subr.mxu0 0.0
        %573 = vmatpush1.msra.mxu0 0.0
        %574 = vmatprep.subr.mxu0 0.0
        %575 = vmatpush1.msra.mxu0 0.0
        %576 = vmatprep.subr.mxu0 0.0
        %577 = vmatpush1.msra.mxu0 0.0
        %578 = vmatprep.subr.mxu0 0.0
        %579 = vmatpush1.msra.mxu0 0.0
        %580 = vmatprep.subr.mxu0 0.0
        %581 = vmatpush1.msra.mxu0 0.0
        %582 = vmatprep.subr.mxu0 0.0
        %583 = vmatpush1.msra.mxu0 0.0
        %584 = vmatprep.subr.mxu0 0.0
        %585 = vmatpush1.msra.mxu0 0.0
        %586 = vmatprep.subr.mxu0 0.0
        %587 = vmatpush1.msra.mxu0 0.0
        %588 = vmatprep.subr.mxu0 0.0
        %589 = vmatpush1.msra.mxu0 0.0
        %590 = vmatprep.subr.mxu0 0.0
        %591 = vmatpush1.msra.mxu0 0.0
        %592 = vmatprep.subr.mxu0 0.0
        %593 = vmatpush1.msra.mxu0 0.0
        %594 = vmatprep.subr.mxu0 0.0
        %595 = vmatpush1.msra.mxu0 0.0
        %596 = vmatprep.subr.mxu0 0.0
        %597 = vmatpush1.msra.mxu0 0.0
        %598 = vmatprep.subr.mxu0 0.0
        %599 = vmatpush1.msra.mxu0 0.0
        %600 = vmatprep.subr.mxu0 0.0
        %601 = vmatpush1.msra.mxu0 0.0
        %602 = vmatprep.subr.mxu0 0.0
        %603 = vmatpush1.msra.mxu0 0.0
        %604 = vmatprep.subr.mxu0 0.0
        %605 = vmatpush1.msra.mxu0 0.0
        %606 = vmatprep.subr.mxu0 0.0
        %607 = vmatpush1.msra.mxu0 0.0
        %608 = vmatprep.subr.mxu0 0.0
        %609 = vmatpush1.msra.mxu0 0.0
        %610 = vmatprep.subr.mxu0 0.0
        %611 = vmatpush1.msra.mxu0 0.0
        %612 = vmatprep.subr.mxu0 0.0
        %613 = vmatpush1.msra.mxu0 0.0
        %614 = vmatprep.subr.mxu0 0.0
        %615 = vmatpush1.msra.mxu0 0.0
        %616 = vmatprep.subr.mxu0 0.0
        %617 = vmatpush1.msra.mxu0 0.0
        %618 = vmatprep.subr.mxu0 0.0
        %619 = vmatpush1.msra.mxu0 0.0
        %620 = vmatprep.subr.mxu0 0.0
        %621 = vmatpush1.msra.mxu0 0.0
        %622 = vmatprep.mubr.f32.mxu0 0.0
        %623 = vmatmul.mubr.f32.gmra.mrb[0].mxu0 %v369
        %v624 = vpop.f32.mrb[0].mxu0
        %v625 = vadd.f32 %v337, %v624
        %v626 = vpop.f32.mrb[0].mxu0
        %627 = vmatprep.mubr.f32.mxu0 0.0
        %628 = vmatmul.mubr.f32.gmra.mrb[0].mxu0 %v372
        %v629 = vpop.f32.mrb[0].mxu0
        %v630 = vadd.f32 %v343, %v629
        %v631 = vpop.f32.mrb[0].mxu0
        %632 = vmatprep.mubr.f32.mxu0 0.0
        %633 = vmatmul.mubr.f32.gmra.mrb[0].mxu0 %v375
        %v634 = vpop.f32.mrb[0].mxu0
        %v635 = vadd.f32 %v349, %v634
        %v636 = vpop.f32.mrb[0].mxu0
        %637 = vmatprep.mubr.f32.mxu0 0.0
        %638 = vmatmul.mubr.f32.gmra.mrb[0].mxu0 %v378
        %v639 = vpop.f32.mrb[0].mxu0
        %v640 = vadd.f32 %v355, %v639
        %v641 = vpop.f32.mrb[0].mxu0
        %642 = vdwg.mxu0
        %v643 = vmax.f32 %v625, 0.0
        %v644 = vmax.f32 %v630, 0.0
        %v645 = vmax.f32 %v635, 0.0
        %v646 = vmax.f32 %v640, 0.0
        %647 = vmatprep.subr.mxu0 0.0
        %648 = vmatpush1.msra.mxu0 %v554
        %649 = vmatprep.subr.mxu0 0.0
        %650 = vmatpush1.msra.mxu0 %v555
        %651 = vmatprep.subr.mxu0 0.0
        %652 = vmatpush1.msra.mxu0 %v556
        %653 = vmatprep.subr.mxu0 0.0
        %654 = vmatpush1.msra.mxu0 %v557
        %655 = vmatprep.subr.mxu0 0.0
        %656 = vmatpush1.msra.mxu0 0.0
        %657 = vmatprep.subr.mxu0 0.0
        %658 = vmatpush1.msra.mxu0 0.0
        %659 = vmatprep.subr.mxu0 0.0
        %660 = vmatpush1.msra.mxu0 0.0
        %661 = vmatprep.subr.mxu0 0.0
        %662 = vmatpush1.msra.mxu0 0.0
        %663 = vmatprep.subr.mxu0 0.0
        %664 = vmatpush1.msra.mxu0 0.0
        %665 = vmatprep.subr.mxu0 0.0
        %666 = vmatpush1.msra.mxu0 0.0
        %667 = vmatprep.subr.mxu0 0.0
        %668 = vmatpush1.msra.mxu0 0.0
        %669 = vmatprep.subr.mxu0 0.0
        %670 = vmatpush1.msra.mxu0 0.0
        %671 = vmatprep.subr.mxu0 0.0
        %672 = vmatpush1.msra.mxu0 0.0
        %673 = vmatprep.subr.mxu0 0.0
        %674 = vmatpush1.msra.mxu0 0.0
        %675 = vmatprep.subr.mxu0 0.0
        %676 = vmatpush1.msra.mxu0 0.0
        %677 = vmatprep.subr.mxu0 0.0
        %678 = vmatpush1.msra.mxu0 0.0
        %679 = vmatprep.subr.mxu0 0.0
        %680 = vmatpush1.msra.mxu0 0.0
        %681 = vmatprep.subr.mxu0 0.0
        %682 = vmatpush1.msra.mxu0 0.0
        %683 = vmatprep.subr.mxu0 0.0
        %684 = vmatpush1.msra.mxu0 0.0
        %685 = vmatprep.subr.mxu0 0.0
        %686 = vmatpush1.msra.mxu0 0.0
        %687 = vmatprep.subr.mxu0 0.0
        %688 = vmatpush1.msra.mxu0 0.0
        %689 = vmatprep.subr.mxu0 0.0
        %690 = vmatpush1.msra.mxu0 0.0
        %691 = vmatprep.subr.mxu0 0.0
        %692 = vmatpush1.msra.mxu0 0.0
        %693 = vmatprep.subr.mxu0 0.0
        %694 = vmatpush1.msra.mxu0 0.0
        %695 = vmatprep.subr.mxu0 0.0
        %696 = vmatpush1.msra.mxu0 0.0
        %697 = vmatprep.subr.mxu0 0.0
        %698 = vmatpush1.msra.mxu0 0.0
        %699 = vmatprep.subr.mxu0 0.0
        %700 = vmatpush1.msra.mxu0 0.0
        %701 = vmatprep.subr.mxu0 0.0
        %702 = vmatpush1.msra.mxu0 0.0
        %703 = vmatprep.subr.mxu0 0.0
        %704 = vmatpush1.msra.mxu0 0.0
        %705 = vmatprep.subr.mxu0 0.0
        %706 = vmatpush1.msra.mxu0 0.0
        %707 = vmatprep.subr.mxu0 0.0
        %708 = vmatpush1.msra.mxu0 0.0
        %709 = vmatprep.subr.mxu0 0.0
        %710 = vmatpush1.msra.mxu0 0.0
        %711 = vmatprep.mubr.f32.mxu0 0.0
        %712 = vmatmul.mubr.f32.gmra.mrb[0].mxu0 %v369
        %v713 = vpop.f32.mrb[0].mxu0
        %v714 = vadd.f32 %v339, %v713
        %v715 = vpop.f32.mrb[0].mxu0
        %716 = vmatprep.mubr.f32.mxu0 0.0
        %717 = vmatmul.mubr.f32.gmra.mrb[0].mxu0 %v372
        %v718 = vpop.f32.mrb[0].mxu0
        %v719 = vadd.f32 %v345, %v718
        %v720 = vpop.f32.mrb[0].mxu0
        %721 = vmatprep.mubr.f32.mxu0 0.0
        %722 = vmatmul.mubr.f32.gmra.mrb[0].mxu0 %v375
        %v723 = vpop.f32.mrb[0].mxu0
        %v724 = vadd.f32 %v351, %v723
        %v725 = vpop.f32.mrb[0].mxu0
        %726 = vmatprep.mubr.f32.mxu0 0.0
        %727 = vmatmul.mubr.f32.gmra.mrb[0].mxu0 %v378
        %v728 = vpop.f32.mrb[0].mxu0
        %v729 = vadd.f32 %v357, %v728
        %v730 = vpop.f32.mrb[0].mxu0
        %731 = vdwg.mxu0
        %v732 = vmax.f32 %v714, 0.0
        %v733 = vmax.f32 %v719, 0.0
        %v734 = vmax.f32 %v724, 0.0
        %v735 = vmax.f32 %v729, 0.0
        %736 = vmatprep.subr.mxu0 0.0
        %737 = vmatpush1.msra.mxu0 %v643
        %738 = vmatprep.subr.mxu0 0.0
        %739 = vmatpush1.msra.mxu0 %v644
        %740 = vmatprep.subr.mxu0 0.0
        %741 = vmatpush1.msra.mxu0 %v645
        %742 = vmatprep.subr.mxu0 0.0
        %743 = vmatpush1.msra.mxu0 %v646
        %744 = vmatprep.subr.mxu0 0.0
        %745 = vmatpush1.msra.mxu0 0.0
        %746 = vmatprep.subr.mxu0 0.0
        %747 = vmatpush1.msra.mxu0 0.0
        %748 = vmatprep.subr.mxu0 0.0
        %749 = vmatpush1.msra.mxu0 0.0
        %750 = vmatprep.subr.mxu0 0.0
        %751 = vmatpush1.msra.mxu0 0.0
        %752 = vmatprep.subr.mxu0 0.0
        %753 = vmatpush1.msra.mxu0 0.0
        %754 = vmatprep.subr.mxu0 0.0
        %755 = vmatpush1.msra.mxu0 0.0
        %756 = vmatprep.subr.mxu0 0.0
        %757 = vmatpush1.msra.mxu0 0.0
        %758 = vmatprep.subr.mxu0 0.0
        %759 = vmatpush1.msra.mxu0 0.0
        %760 = vmatprep.subr.mxu0 0.0
        %761 = vmatpush1.msra.mxu0 0.0
        %762 = vmatprep.subr.mxu0 0.0
        %763 = vmatpush1.msra.mxu0 0.0
        %764 = vmatprep.subr.mxu0 0.0
        %765 = vmatpush1.msra.mxu0 0.0
        %766 = vmatprep.subr.mxu0 0.0
        %767 = vmatpush1.msra.mxu0 0.0
        %768 = vmatprep.subr.mxu0 0.0
        %769 = vmatpush1.msra.mxu0 0.0
        %770 = vmatprep.subr.mxu0 0.0
        %771 = vmatpush1.msra.mxu0 0.0
        %772 = vmatprep.subr.mxu0 0.0
        %773 = vmatpush1.msra.mxu0 0.0
        %774 = vmatprep.subr.mxu0 0.0
        %775 = vmatpush1.msra.mxu0 0.0
        %776 = vmatprep.subr.mxu0 0.0
        %777 = vmatpush1.msra.mxu0 0.0
        %778 = vmatprep.subr.mxu0 0.0
        %779 = vmatpush1.msra.mxu0 0.0
        %780 = vmatprep.subr.mxu0 0.0
        %781 = vmatpush1.msra.mxu0 0.0
        %782 = vmatprep.subr.mxu0 0.0
        %783 = vmatpush1.msra.mxu0 0.0
        %784 = vmatprep.subr.mxu0 0.0
        %785 = vmatpush1.msra.mxu0 0.0
        %786 = vmatprep.subr.mxu0 0.0
        %787 = vmatpush1.msra.mxu0 0.0
        %788 = vmatprep.subr.mxu0 0.0
        %789 = vmatpush1.msra.mxu0 0.0
        %790 = vmatprep.subr.mxu0 0.0
        %791 = vmatpush1.msra.mxu0 0.0
        %792 = vmatprep.subr.mxu0 0.0
        %793 = vmatpush1.msra.mxu0 0.0
        %794 = vmatprep.subr.mxu0 0.0
        %795 = vmatpush1.msra.mxu0 0.0
        %796 = vmatprep.subr.mxu0 0.0
        %797 = vmatpush1.msra.mxu0 0.0
        %798 = vmatprep.subr.mxu0 0.0
        %799 = vmatpush1.msra.mxu0 0.0
        %800 = vmatprep.mubr.f32.mxu0 0.0
        %801 = vmatmul.mubr.f32.gmra.mrb[0].mxu0 %v369
        %v802 = vpop.f32.mrb[0].mxu0
        %v803 = vadd.f32 %v337, %v802
        %v804 = vpop.f32.mrb[0].mxu0
        %805 = vmatprep.mubr.f32.mxu0 0.0
        %806 = vmatmul.mubr.f32.gmra.mrb[0].mxu0 %v372
        %v807 = vpop.f32.mrb[0].mxu0
        %v808 = vadd.f32 %v343, %v807
        %v809 = vpop.f32.mrb[0].mxu0
        %810 = vmatprep.mubr.f32.mxu0 0.0
        %811 = vmatmul.mubr.f32.gmra.mrb[0].mxu0 %v375
        %v812 = vpop.f32.mrb[0].mxu0
        %v813 = vadd.f32 %v349, %v812
        %v814 = vpop.f32.mrb[0].mxu0
        %815 = vmatprep.mubr.f32.mxu0 0.0
        %816 = vmatmul.mubr.f32.gmra.mrb[0].mxu0 %v378
        %v817 = vpop.f32.mrb[0].mxu0
        %v818 = vadd.f32 %v355, %v817
        %v819 = vpop.f32.mrb[0].mxu0
        %820 = vdwg.mxu0
        %v821 = vmax.f32 %v803, 0.0
        %v822 = vmax.f32 %v808, 0.0
        %v823 = vmax.f32 %v813, 0.0
        %v824 = vmax.f32 %v818, 0.0
        %825 = vmatprep.subr.mxu0 0.0
        %826 = vmatpush1.msra.mxu0 %v732
        %827 = vmatprep.subr.mxu0 0.0
        %828 = vmatpush1.msra.mxu0 %v733
        %829 = vmatprep.subr.mxu0 0.0
        %830 = vmatpush1.msra.mxu0 %v734
        %831 = vmatprep.subr.mxu0 0.0
        %832 = vmatpush1.msra.mxu0 %v735
        %833 = vmatprep.subr.mxu0 0.0
        %834 = vmatpush1.msra.mxu0 0.0
        %835 = vmatprep.subr.mxu0 0.0
        %836 = vmatpush1.msra.mxu0 0.0
        %837 = vmatprep.subr.mxu0 0.0
        %838 = vmatpush1.msra.mxu0 0.0
        %839 = vmatprep.subr.mxu0 0.0
        %840 = vmatpush1.msra.mxu0 0.0
        %841 = vmatprep.subr.mxu0 0.0
        %842 = vmatpush1.msra.mxu0 0.0
        %843 = vmatprep.subr.mxu0 0.0
        %844 = vmatpush1.msra.mxu0 0.0
        %845 = vmatprep.subr.mxu0 0.0
        %846 = vmatpush1.msra.mxu0 0.0
        %847 = vmatprep.subr.mxu0 0.0
        %848 = vmatpush1.msra.mxu0 0.0
        %849 = vmatprep.subr.mxu0 0.0
        %850 = vmatpush1.msra.mxu0 0.0
        %851 = vmatprep.subr.mxu0 0.0
        %852 = vmatpush1.msra.mxu0 0.0
        %853 = vmatprep.subr.mxu0 0.0
        %854 = vmatpush1.msra.mxu0 0.0
        %855 = vmatprep.subr.mxu0 0.0
        %856 = vmatpush1.msra.mxu0 0.0
        %857 = vmatprep.subr.mxu0 0.0
        %858 = vmatpush1.msra.mxu0 0.0
        %859 = vmatprep.subr.mxu0 0.0
        %860 = vmatpush1.msra.mxu0 0.0
        %861 = vmatprep.subr.mxu0 0.0
        %862 = vmatpush1.msra.mxu0 0.0
        %863 = vmatprep.subr.mxu0 0.0
        %864 = vmatpush1.msra.mxu0 0.0
        %865 = vmatprep.subr.mxu0 0.0
        %866 = vmatpush1.msra.mxu0 0.0
        %867 = vmatprep.subr.mxu0 0.0
        %868 = vmatpush1.msra.mxu0 0.0
        %869 = vmatprep.subr.mxu0 0.0
        %870 = vmatpush1.msra.mxu0 0.0
        %871 = vmatprep.subr.mxu0 0.0
        %872 = vmatpush1.msra.mxu0 0.0
        %873 = vmatprep.subr.mxu0 0.0
        %874 = vmatpush1.msra.mxu0 0.0
        %875 = vmatprep.subr.mxu0 0.0
        %876 = vmatpush1.msra.mxu0 0.0
        %877 = vmatprep.subr.mxu0 0.0
        %878 = vmatpush1.msra.mxu0 0.0
        %879 = vmatprep.subr.mxu0 0.0
        %880 = vmatpush1.msra.mxu0 0.0
        %881 = vmatprep.subr.mxu0 0.0
        %882 = vmatpush1.msra.mxu0 0.0
        %883 = vmatprep.subr.mxu0 0.0
        %884 = vmatpush1.msra.mxu0 0.0
        %885 = vmatprep.subr.mxu0 0.0
        %886 = vmatpush1.msra.mxu0 0.0
        %887 = vmatprep.subr.mxu0 0.0
        %888 = vmatpush1.msra.mxu0 0.0
        %889 = vmatprep.mubr.f32.mxu0 0.0
        %890 = vmatmul.mubr.f32.gmra.mrb[0].mxu0 %v369
        %v891 = vpop.f32.mrb[0].mxu0
        %v892 = vadd.f32 %v339, %v891
        %v893 = vpop.f32.mrb[0].mxu0
        %894 = vmatprep.mubr.f32.mxu0 0.0
        %895 = vmatmul.mubr.f32.gmra.mrb[0].mxu0 %v372
        %v896 = vpop.f32.mrb[0].mxu0
        %v897 = vadd.f32 %v345, %v896
        %v898 = vpop.f32.mrb[0].mxu0
        %899 = vmatprep.mubr.f32.mxu0 0.0
        %900 = vmatmul.mubr.f32.gmra.mrb[0].mxu0 %v375
        %v901 = vpop.f32.mrb[0].mxu0
        %v902 = vadd.f32 %v351, %v901
        %v903 = vpop.f32.mrb[0].mxu0
        %904 = vmatprep.mubr.f32.mxu0 0.0
        %905 = vmatmul.mubr.f32.gmra.mrb[0].mxu0 %v378
        %v906 = vpop.f32.mrb[0].mxu0
        %v907 = vadd.f32 %v357, %v906
        %v908 = vpop.f32.mrb[0].mxu0
        %909 = vdwg.mxu0
        %v910 = vmax.f32 %v892, 0.0
        %v911 = vmax.f32 %v897, 0.0
        %v912 = vmax.f32 %v902, 0.0
        %v913 = vmax.f32 %v907, 0.0
        %914 = vmatprep.subr.mxu0 0.0
        %915 = vmatpush1.msra.mxu0 %v821
        %916 = vmatprep.subr.mxu0 0.0
        %917 = vmatpush1.msra.mxu0 %v822
        %918 = vmatprep.subr.mxu0 0.0
        %919 = vmatpush1.msra.mxu0 %v823
        %920 = vmatprep.subr.mxu0 0.0
        %921 = vmatpush1.msra.mxu0 %v824
        %922 = vmatprep.subr.mxu0 0.0
        %923 = vmatpush1.msra.mxu0 0.0
        %924 = vmatprep.subr.mxu0 0.0
        %925 = vmatpush1.msra.mxu0 0.0
        %926 = vmatprep.subr.mxu0 0.0
        %927 = vmatpush1.msra.mxu0 0.0
        %928 = vmatprep.subr.mxu0 0.0
        %929 = vmatpush1.msra.mxu0 0.0
        %930 = vmatprep.subr.mxu0 0.0
        %931 = vmatpush1.msra.mxu0 0.0
        %932 = vmatprep.subr.mxu0 0.0
        %933 = vmatpush1.msra.mxu0 0.0
        %934 = vmatprep.subr.mxu0 0.0
        %935 = vmatpush1.msra.mxu0 0.0
        %936 = vmatprep.subr.mxu0 0.0
        %937 = vmatpush1.msra.mxu0 0.0
        %938 = vmatprep.subr.mxu0 0.0
        %939 = vmatpush1.msra.mxu0 0.0
        %940 = vmatprep.subr.mxu0 0.0
        %941 = vmatpush1.msra.mxu0 0.0
        %942 = vmatprep.subr.mxu0 0.0
        %943 = vmatpush1.msra.mxu0 0.0
        %944 = vmatprep.subr.mxu0 0.0
        %945 = vmatpush1.msra.mxu0 0.0
        %946 = vmatprep.subr.mxu0 0.0
        %947 = vmatpush1.msra.mxu0 0.0
        %948 = vmatprep.subr.mxu0 0.0
        %949 = vmatpush1.msra.mxu0 0.0
        %950 = vmatprep.subr.mxu0 0.0
        %951 = vmatpush1.msra.mxu0 0.0
        %952 = vmatprep.subr.mxu0 0.0
        %953 = vmatpush1.msra.mxu0 0.0
        %954 = vmatprep.subr.mxu0 0.0
        %955 = vmatpush1.msra.mxu0 0.0
        %956 = vmatprep.subr.mxu0 0.0
        %957 = vmatpush1.msra.mxu0 0.0
        %958 = vmatprep.subr.mxu0 0.0
        %959 = vmatpush1.msra.mxu0 0.0
        %960 = vmatprep.subr.mxu0 0.0
        %961 = vmatpush1.msra.mxu0 0.0
        %962 = vmatprep.subr.mxu0 0.0
        %963 = vmatpush1.msra.mxu0 0.0
        %964 = vmatprep.subr.mxu0 0.0
        %965 = vmatpush1.msra.mxu0 0.0
        %966 = vmatprep.subr.mxu0 0.0
        %967 = vmatpush1.msra.mxu0 0.0
        %968 = vmatprep.subr.mxu0 0.0
        %969 = vmatpush1.msra.mxu0 0.0
        %970 = vmatprep.subr.mxu0 0.0
        %971 = vmatpush1.msra.mxu0 0.0
        %972 = vmatprep.subr.mxu0 0.0
        %973 = vmatpush1.msra.mxu0 0.0
        %974 = vmatprep.subr.mxu0 0.0
        %975 = vmatpush1.msra.mxu0 0.0
        %976 = vmatprep.subr.mxu0 0.0
        %977 = vmatpush1.msra.mxu0 0.0
        %978 = vmatprep.mubr.f32.mxu0 0.0
        %979 = vmatmul.mubr.f32.gmra.mrb[0].mxu0 %v369
        %v980 = vpop.f32.mrb[0].mxu0
        %v981 = vadd.f32 %v337, %v980
        %v982 = vpop.f32.mrb[0].mxu0
        %983 = vmatprep.mubr.f32.mxu0 0.0
        %984 = vmatmul.mubr.f32.gmra.mrb[0].mxu0 %v372
        %v985 = vpop.f32.mrb[0].mxu0
        %v986 = vadd.f32 %v343, %v985
        %v987 = vpop.f32.mrb[0].mxu0
        %988 = vmatprep.mubr.f32.mxu0 0.0
        %989 = vmatmul.mubr.f32.gmra.mrb[0].mxu0 %v375
        %v990 = vpop.f32.mrb[0].mxu0
        %v991 = vadd.f32 %v349, %v990
        %v992 = vpop.f32.mrb[0].mxu0
        %993 = vmatprep.mubr.f32.mxu0 0.0
        %994 = vmatmul.mubr.f32.gmra.mrb[0].mxu0 %v378
        %v995 = vpop.f32.mrb[0].mxu0
        %v996 = vadd.f32 %v355, %v995
        %v997 = vpop.f32.mrb[0].mxu0
        %998 = vdwg.mxu0
        %v999 = vmax.f32 %v981, 0.0
        %v1000 = vmax.f32 %v986, 0.0
        %v1001 = vmax.f32 %v991, 0.0
        %v1002 = vmax.f32 %v996, 0.0
        %1003 = vmatprep.subr.mxu0 0.0
        %1004 = vmatpush1.msra.mxu0 %v910
        %1005 = vmatprep.subr.mxu0 0.0
        %1006 = vmatpush1.msra.mxu0 %v911
        %1007 = vmatprep.subr.mxu0 0.0
        %1008 = vmatpush1.msra.mxu0 %v912
        %1009 = vmatprep.subr.mxu0 0.0
        %1010 = vmatpush1.msra.mxu0 %v913
        %1011 = vmatprep.subr.mxu0 0.0
        %1012 = vmatpush1.msra.mxu0 0.0
        %1013 = vmatprep.subr.mxu0 0.0
        %1014 = vmatpush1.msra.mxu0 0.0
        %1015 = vmatprep.subr.mxu0 0.0
        %1016 = vmatpush1.msra.mxu0 0.0
        %1017 = vmatprep.subr.mxu0 0.0
        %1018 = vmatpush1.msra.mxu0 0.0
        %1019 = vmatprep.subr.mxu0 0.0
        %1020 = vmatpush1.msra.mxu0 0.0
        %1021 = vmatprep.subr.mxu0 0.0
        %1022 = vmatpush1.msra.mxu0 0.0
        %1023 = vmatprep.subr.mxu0 0.0
        %1024 = vmatpush1.msra.mxu0 0.0
        %1025 = vmatprep.subr.mxu0 0.0
        %1026 = vmatpush1.msra.mxu0 0.0
        %1027 = vmatprep.subr.mxu0 0.0
        %1028 = vmatpush1.msra.mxu0 0.0
        %1029 = vmatprep.subr.mxu0 0.0
        %1030 = vmatpush1.msra.mxu0 0.0
        %1031 = vmatprep.subr.mxu0 0.0
        %1032 = vmatpush1.msra.mxu0 0.0
        %1033 = vmatprep.subr.mxu0 0.0
        %1034 = vmatpush1.msra.mxu0 0.0
        %1035 = vmatprep.subr.mxu0 0.0
        %1036 = vmatpush1.msra.mxu0 0.0
        %1037 = vmatprep.subr.mxu0 0.0
        %1038 = vmatpush1.msra.mxu0 0.0
        %1039 = vmatprep.subr.mxu0 0.0
        %1040 = vmatpush1.msra.mxu0 0.0
        %1041 = vmatprep.subr.mxu0 0.0
        %1042 = vmatpush1.msra.mxu0 0.0
        %1043 = vmatprep.subr.mxu0 0.0
        %1044 = vmatpush1.msra.mxu0 0.0
        %1045 = vmatprep.subr.mxu0 0.0
        %1046 = vmatpush1.msra.mxu0 0.0
        %1047 = vmatprep.subr.mxu0 0.0
        %1048 = vmatpush1.msra.mxu0 0.0
        %1049 = vmatprep.subr.mxu0 0.0
        %1050 = vmatpush1.msra.mxu0 0.0
        %1051 = vmatprep.subr.mxu0 0.0
        %1052 = vmatpush1.msra.mxu0 0.0
        %1053 = vmatprep.subr.mxu0 0.0
        %1054 = vmatpush1.msra.mxu0 0.0
        %1055 = vmatprep.subr.mxu0 0.0
        %1056 = vmatpush1.msra.mxu0 0.0
        %1057 = vmatprep.subr.mxu0 0.0
        %1058 = vmatpush1.msra.mxu0 0.0
        %1059 = vmatprep.subr.mxu0 0.0
        %1060 = vmatpush1.msra.mxu0 0.0
        %1061 = vmatprep.subr.mxu0 0.0
        %1062 = vmatpush1.msra.mxu0 0.0
        %1063 = vmatprep.subr.mxu0 0.0
        %1064 = vmatpush1.msra.mxu0 0.0
        %1065 = vmatprep.subr.mxu0 0.0
        %1066 = vmatpush1.msra.mxu0 0.0
        %1067 = vmatprep.mubr.f32.mxu0 0.0
        %1068 = vmatmul.mubr.f32.gmra.mrb[0].mxu0 %v369
        %v1069 = vpop.f32.mrb[0].mxu0
        %v1070 = vadd.f32 %v339, %v1069
        %v1071 = vpop.f32.mrb[0].mxu0
        %1072 = vmatprep.mubr.f32.mxu0 0.0
        %1073 = vmatmul.mubr.f32.gmra.mrb[0].mxu0 %v372
        %v1074 = vpop.f32.mrb[0].mxu0
        %v1075 = vadd.f32 %v345, %v1074
        %v1076 = vpop.f32.mrb[0].mxu0
        %1077 = vmatprep.mubr.f32.mxu0 0.0
        %1078 = vmatmul.mubr.f32.gmra.mrb[0].mxu0 %v375
        %v1079 = vpop.f32.mrb[0].mxu0
        %v1080 = vadd.f32 %v351, %v1079
        %v1081 = vpop.f32.mrb[0].mxu0
        %1082 = vmatprep.mubr.f32.mxu0 0.0
        %1083 = vmatmul.mubr.f32.gmra.mrb[0].mxu0 %v378
        %v1084 = vpop.f32.mrb[0].mxu0
        %v1085 = vadd.f32 %v357, %v1084
        %v1086 = vpop.f32.mrb[0].mxu0
        %1087 = vdwg.mxu0
        %v1088 = vmax.f32 %v1070, 0.0
        %v1089 = vmax.f32 %v1075, 0.0
        %v1090 = vmax.f32 %v1080, 0.0
        %v1091 = vmax.f32 %v1085, 0.0
        %1092 = vmatprep.subr.mxu0 0.0
        %1093 = vmatpush1.msra.mxu0 %v999
        %1094 = vmatprep.subr.mxu0 0.0
        %1095 = vmatpush1.msra.mxu0 %v1000
        %1096 = vmatprep.subr.mxu0 0.0
        %1097 = vmatpush1.msra.mxu0 %v1001
        %1098 = vmatprep.subr.mxu0 0.0
        %1099 = vmatpush1.msra.mxu0 %v1002
        %1100 = vmatprep.subr.mxu0 0.0
        %1101 = vmatpush1.msra.mxu0 0.0
        %1102 = vmatprep.subr.mxu0 0.0
        %1103 = vmatpush1.msra.mxu0 0.0
        %1104 = vmatprep.subr.mxu0 0.0
        %1105 = vmatpush1.msra.mxu0 0.0
        %1106 = vmatprep.subr.mxu0 0.0
        %1107 = vmatpush1.msra.mxu0 0.0
        %1108 = vmatprep.subr.mxu0 0.0
        %1109 = vmatpush1.msra.mxu0 0.0
        %1110 = vmatprep.subr.mxu0 0.0
        %1111 = vmatpush1.msra.mxu0 0.0
        %1112 = vmatprep.subr.mxu0 0.0
        %1113 = vmatpush1.msra.mxu0 0.0
        %1114 = vmatprep.subr.mxu0 0.0
        %1115 = vmatpush1.msra.mxu0 0.0
        %1116 = vmatprep.subr.mxu0 0.0
        %1117 = vmatpush1.msra.mxu0 0.0
        %1118 = vmatprep.subr.mxu0 0.0
        %1119 = vmatpush1.msra.mxu0 0.0
        %1120 = vmatprep.subr.mxu0 0.0
        %1121 = vmatpush1.msra.mxu0 0.0
        %1122 = vmatprep.subr.mxu0 0.0
        %1123 = vmatpush1.msra.mxu0 0.0
        %1124 = vmatprep.subr.mxu0 0.0
        %1125 = vmatpush1.msra.mxu0 0.0
        %1126 = vmatprep.subr.mxu0 0.0
        %1127 = vmatpush1.msra.mxu0 0.0
        %1128 = vmatprep.subr.mxu0 0.0
        %1129 = vmatpush1.msra.mxu0 0.0
        %1130 = vmatprep.subr.mxu0 0.0
        %1131 = vmatpush1.msra.mxu0 0.0
        %1132 = vmatprep.subr.mxu0 0.0
        %1133 = vmatpush1.msra.mxu0 0.0
        %1134 = vmatprep.subr.mxu0 0.0
        %1135 = vmatpush1.msra.mxu0 0.0
        %1136 = vmatprep.subr.mxu0 0.0
        %1137 = vmatpush1.msra.mxu0 0.0
        %1138 = vmatprep.subr.mxu0 0.0
        %1139 = vmatpush1.msra.mxu0 0.0
        %1140 = vmatprep.subr.mxu0 0.0
        %1141 = vmatpush1.msra.mxu0 0.0
        %1142 = vmatprep.subr.mxu0 0.0
        %1143 = vmatpush1.msra.mxu0 0.0
        %1144 = vmatprep.subr.mxu0 0.0
        %1145 = vmatpush1.msra.mxu0 0.0
        %1146 = vmatprep.subr.mxu0 0.0
        %1147 = vmatpush1.msra.mxu0 0.0
        %1148 = vmatprep.subr.mxu0 0.0
        %1149 = vmatpush1.msra.mxu0 0.0
        %1150 = vmatprep.subr.mxu0 0.0
        %1151 = vmatpush1.msra.mxu0 0.0
        %1152 = vmatprep.subr.mxu0 0.0
        %1153 = vmatpush1.msra.mxu0 0.0
        %1154 = vmatprep.subr.mxu0 0.0
        %1155 = vmatpush1.msra.mxu0 0.0
        %1156 = vmatprep.mubr.f32.mxu0 0.0
        %1157 = vmatmul.mubr.f32.gmra.mrb[0].mxu0 %v369
        %v1158 = vpop.f32.mrb[0].mxu0
        %v1159 = vadd.f32 %v337, %v1158
        %v1160 = vpop.f32.mrb[0].mxu0
        %1161 = vmatprep.mubr.f32.mxu0 0.0
        %1162 = vmatmul.mubr.f32.gmra.mrb[0].mxu0 %v372
        %v1163 = vpop.f32.mrb[0].mxu0
        %v1164 = vadd.f32 %v343, %v1163
        %v1165 = vpop.f32.mrb[0].mxu0
        %1166 = vmatprep.mubr.f32.mxu0 0.0
        %1167 = vmatmul.mubr.f32.gmra.mrb[0].mxu0 %v375
        %v1168 = vpop.f32.mrb[0].mxu0
        %v1169 = vadd.f32 %v349, %v1168
        %v1170 = vpop.f32.mrb[0].mxu0
        %1171 = vmatprep.mubr.f32.mxu0 0.0
        %1172 = vmatmul.mubr.f32.gmra.mrb[0].mxu0 %v378
        %v1173 = vpop.f32.mrb[0].mxu0
        %v1174 = vadd.f32 %v355, %v1173
        %v1175 = vpop.f32.mrb[0].mxu0
        %1176 = vdwg.mxu0
        %v1177 = vmax.f32 %v1159, 0.0
        %v1178 = vmax.f32 %v1164, 0.0
        %v1179 = vmax.f32 %v1169, 0.0
        %v1180 = vmax.f32 %v1174, 0.0
        %1181 = vmatprep.subr.mxu0 0.0
        %1182 = vmatpush1.msra.mxu0 %v1088
        %1183 = vmatprep.subr.mxu0 0.0
        %1184 = vmatpush1.msra.mxu0 %v1089
        %1185 = vmatprep.subr.mxu0 0.0
        %1186 = vmatpush1.msra.mxu0 %v1090
        %1187 = vmatprep.subr.mxu0 0.0
        %1188 = vmatpush1.msra.mxu0 %v1091
        %1189 = vmatprep.subr.mxu0 0.0
        %1190 = vmatpush1.msra.mxu0 0.0
        %1191 = vmatprep.subr.mxu0 0.0
        %1192 = vmatpush1.msra.mxu0 0.0
        %1193 = vmatprep.subr.mxu0 0.0
        %1194 = vmatpush1.msra.mxu0 0.0
        %1195 = vmatprep.subr.mxu0 0.0
        %1196 = vmatpush1.msra.mxu0 0.0
        %1197 = vmatprep.subr.mxu0 0.0
        %1198 = vmatpush1.msra.mxu0 0.0
        %1199 = vmatprep.subr.mxu0 0.0
        %1200 = vmatpush1.msra.mxu0 0.0
        %1201 = vmatprep.subr.mxu0 0.0
        %1202 = vmatpush1.msra.mxu0 0.0
        %1203 = vmatprep.subr.mxu0 0.0
        %1204 = vmatpush1.msra.mxu0 0.0
        %1205 = vmatprep.subr.mxu0 0.0
        %1206 = vmatpush1.msra.mxu0 0.0
        %1207 = vmatprep.subr.mxu0 0.0
        %1208 = vmatpush1.msra.mxu0 0.0
        %1209 = vmatprep.subr.mxu0 0.0
        %1210 = vmatpush1.msra.mxu0 0.0
        %1211 = vmatprep.subr.mxu0 0.0
        %1212 = vmatpush1.msra.mxu0 0.0
        %1213 = vmatprep.subr.mxu0 0.0
        %1214 = vmatpush1.msra.mxu0 0.0
        %1215 = vmatprep.subr.mxu0 0.0
        %1216 = vmatpush1.msra.mxu0 0.0
        %1217 = vmatprep.subr.mxu0 0.0
        %1218 = vmatpush1.msra.mxu0 0.0
        %1219 = vmatprep.subr.mxu0 0.0
        %1220 = vmatpush1.msra.mxu0 0.0
        %1221 = vmatprep.subr.mxu0 0.0
        %1222 = vmatpush1.msra.mxu0 0.0
        %1223 = vmatprep.subr.mxu0 0.0
        %1224 = vmatpush1.msra.mxu0 0.0
        %1225 = vmatprep.subr.mxu0 0.0
        %1226 = vmatpush1.msra.mxu0 0.0
        %1227 = vmatprep.subr.mxu0 0.0
        %1228 = vmatpush1.msra.mxu0 0.0
        %1229 = vmatprep.subr.mxu0 0.0
        %1230 = vmatpush1.msra.mxu0 0.0
        %1231 = vmatprep.subr.mxu0 0.0
        %1232 = vmatpush1.msra.mxu0 0.0
        %1233 = vmatprep.subr.mxu0 0.0
        %1234 = vmatpush1.msra.mxu0 0.0
        %1235 = vmatprep.subr.mxu0 0.0
        %1236 = vmatpush1.msra.mxu0 0.0
        %1237 = vmatprep.subr.mxu0 0.0
        %1238 = vmatpush1.msra.mxu0 0.0
        %1239 = vmatprep.subr.mxu0 0.0
        %1240 = vmatpush1.msra.mxu0 0.0
        %1241 = vmatprep.subr.mxu0 0.0
        %1242 = vmatpush1.msra.mxu0 0.0
        %1243 = vmatprep.subr.mxu0 0.0
        %1244 = vmatpush1.msra.mxu0 0.0
        %1245 = vmatprep.mubr.f32.mxu0 0.0
        %1246 = vmatmul.mubr.f32.gmra.mrb[0].mxu0 %v369
        %v1247 = vpop.f32.mrb[0].mxu0
        %v1248 = vadd.f32 %v339, %v1247
        %v1249 = vpop.f32.mrb[0].mxu0
        %1250 = vmatprep.mubr.f32.mxu0 0.0
        %1251 = vmatmul.mubr.f32.gmra.mrb[0].mxu0 %v372
        %v1252 = vpop.f32.mrb[0].mxu0
        %v1253 = vadd.f32 %v345, %v1252
        %v1254 = vpop.f32.mrb[0].mxu0
        %1255 = vmatprep.mubr.f32.mxu0 0.0
        %1256 = vmatmul.mubr.f32.gmra.mrb[0].mxu0 %v375
        %v1257 = vpop.f32.mrb[0].mxu0
        %v1258 = vadd.f32 %v351, %v1257
        %v1259 = vpop.f32.mrb[0].mxu0
        %1260 = vmatprep.mubr.f32.mxu0 0.0
        %1261 = vmatmul.mubr.f32.gmra.mrb[0].mxu0 %v378
        %v1262 = vpop.f32.mrb[0].mxu0
        %v1263 = vadd.f32 %v357, %v1262
        %v1264 = vpop.f32.mrb[0].mxu0
        %1265 = vdwg.mxu0
        %v1266 = vmax.f32 %v1248, 0.0
        %v1267 = vmax.f32 %v1253, 0.0
        %v1268 = vmax.f32 %v1258, 0.0
        %v1269 = vmax.f32 %v1263, 0.0
        %1270 = vmatprep.subr.mxu0 0.0
        %1271 = vmatpush1.msra.mxu0 %v1177
        %1272 = vmatprep.subr.mxu0 0.0
        %1273 = vmatpush1.msra.mxu0 %v1178
        %1274 = vmatprep.subr.mxu0 0.0
        %1275 = vmatpush1.msra.mxu0 %v1179
        %1276 = vmatprep.subr.mxu0 0.0
        %1277 = vmatpush1.msra.mxu0 %v1180
        %1278 = vmatprep.subr.mxu0 0.0
        %1279 = vmatpush1.msra.mxu0 0.0
        %1280 = vmatprep.subr.mxu0 0.0
        %1281 = vmatpush1.msra.mxu0 0.0
        %1282 = vmatprep.subr.mxu0 0.0
        %1283 = vmatpush1.msra.mxu0 0.0
        %1284 = vmatprep.subr.mxu0 0.0
        %1285 = vmatpush1.msra.mxu0 0.0
        %1286 = vmatprep.subr.mxu0 0.0
        %1287 = vmatpush1.msra.mxu0 0.0
        %1288 = vmatprep.subr.mxu0 0.0
        %1289 = vmatpush1.msra.mxu0 0.0
        %1290 = vmatprep.subr.mxu0 0.0
        %1291 = vmatpush1.msra.mxu0 0.0
        %1292 = vmatprep.subr.mxu0 0.0
        %1293 = vmatpush1.msra.mxu0 0.0
        %1294 = vmatprep.subr.mxu0 0.0
        %1295 = vmatpush1.msra.mxu0 0.0
        %1296 = vmatprep.subr.mxu0 0.0
        %1297 = vmatpush1.msra.mxu0 0.0
        %1298 = vmatprep.subr.mxu0 0.0
        %1299 = vmatpush1.msra.mxu0 0.0
        %1300 = vmatprep.subr.mxu0 0.0
        %1301 = vmatpush1.msra.mxu0 0.0
        %1302 = vmatprep.subr.mxu0 0.0
        %1303 = vmatpush1.msra.mxu0 0.0
        %1304 = vmatprep.subr.mxu0 0.0
        %1305 = vmatpush1.msra.mxu0 0.0
        %1306 = vmatprep.subr.mxu0 0.0
        %1307 = vmatpush1.msra.mxu0 0.0
        %1308 = vmatprep.subr.mxu0 0.0
        %1309 = vmatpush1.msra.mxu0 0.0
        %1310 = vmatprep.subr.mxu0 0.0
        %1311 = vmatpush1.msra.mxu0 0.0
        %1312 = vmatprep.subr.mxu0 0.0
        %1313 = vmatpush1.msra.mxu0 0.0
        %1314 = vmatprep.subr.mxu0 0.0
        %1315 = vmatpush1.msra.mxu0 0.0
        %1316 = vmatprep.subr.mxu0 0.0
        %1317 = vmatpush1.msra.mxu0 0.0
        %1318 = vmatprep.subr.mxu0 0.0
        %1319 = vmatpush1.msra.mxu0 0.0
        %1320 = vmatprep.subr.mxu0 0.0
        %1321 = vmatpush1.msra.mxu0 0.0
        %1322 = vmatprep.subr.mxu0 0.0
        %1323 = vmatpush1.msra.mxu0 0.0
        %1324 = vmatprep.subr.mxu0 0.0
        %1325 = vmatpush1.msra.mxu0 0.0
        %1326 = vmatprep.subr.mxu0 0.0
        %1327 = vmatpush1.msra.mxu0 0.0
        %1328 = vmatprep.subr.mxu0 0.0
        %1329 = vmatpush1.msra.mxu0 0.0
        %1330 = vmatprep.subr.mxu0 0.0
        %1331 = vmatpush1.msra.mxu0 0.0
        %1332 = vmatprep.subr.mxu0 0.0
        %1333 = vmatpush1.msra.mxu0 0.0
        %1334 = vmatprep.mubr.f32.mxu0 0.0
        %1335 = vmatmul.mubr.f32.gmra.mrb[0].mxu0 %v369
        %v1336 = vpop.f32.mrb[0].mxu0
        %v1337 = vadd.f32 %v337, %v1336
        %v1338 = vpop.f32.mrb[0].mxu0
        %1339 = vmatprep.mubr.f32.mxu0 0.0
        %1340 = vmatmul.mubr.f32.gmra.mrb[0].mxu0 %v372
        %v1341 = vpop.f32.mrb[0].mxu0
        %v1342 = vadd.f32 %v343, %v1341
        %v1343 = vpop.f32.mrb[0].mxu0
        %1344 = vmatprep.mubr.f32.mxu0 0.0
        %1345 = vmatmul.mubr.f32.gmra.mrb[0].mxu0 %v375
        %v1346 = vpop.f32.mrb[0].mxu0
        %v1347 = vadd.f32 %v349, %v1346
        %v1348 = vpop.f32.mrb[0].mxu0
        %1349 = vmatprep.mubr.f32.mxu0 0.0
        %1350 = vmatmul.mubr.f32.gmra.mrb[0].mxu0 %v378
        %v1351 = vpop.f32.mrb[0].mxu0
        %v1352 = vadd.f32 %v355, %v1351
        %v1353 = vpop.f32.mrb[0].mxu0
        %1354 = vdwg.mxu0
        %v1355 = vmax.f32 %v1337, 0.0
        %v1356 = vmax.f32 %v1342, 0.0
        %v1357 = vmax.f32 %v1347, 0.0
        %v1358 = vmax.f32 %v1352, 0.0
        %1359 = vmatprep.subr.mxu0 0.0
        %1360 = vmatpush1.msra.mxu0 %v1266
        %1361 = vmatprep.subr.mxu0 0.0
        %1362 = vmatpush1.msra.mxu0 %v1267
        %1363 = vmatprep.subr.mxu0 0.0
        %1364 = vmatpush1.msra.mxu0 %v1268
        %1365 = vmatprep.subr.mxu0 0.0
        %1366 = vmatpush1.msra.mxu0 %v1269
        %1367 = vmatprep.subr.mxu0 0.0
        %1368 = vmatpush1.msra.mxu0 0.0
        %1369 = vmatprep.subr.mxu0 0.0
        %1370 = vmatpush1.msra.mxu0 0.0
        %1371 = vmatprep.subr.mxu0 0.0
        %1372 = vmatpush1.msra.mxu0 0.0
        %1373 = vmatprep.subr.mxu0 0.0
        %1374 = vmatpush1.msra.mxu0 0.0
        %1375 = vmatprep.subr.mxu0 0.0
        %1376 = vmatpush1.msra.mxu0 0.0
        %1377 = vmatprep.subr.mxu0 0.0
        %1378 = vmatpush1.msra.mxu0 0.0
        %1379 = vmatprep.subr.mxu0 0.0
        %1380 = vmatpush1.msra.mxu0 0.0
        %1381 = vmatprep.subr.mxu0 0.0
        %1382 = vmatpush1.msra.mxu0 0.0
        %1383 = vmatprep.subr.mxu0 0.0
        %1384 = vmatpush1.msra.mxu0 0.0
        %1385 = vmatprep.subr.mxu0 0.0
        %1386 = vmatpush1.msra.mxu0 0.0
        %1387 = vmatprep.subr.mxu0 0.0
        %1388 = vmatpush1.msra.mxu0 0.0
        %1389 = vmatprep.subr.mxu0 0.0
        %1390 = vmatpush1.msra.mxu0 0.0
        %1391 = vmatprep.subr.mxu0 0.0
        %1392 = vmatpush1.msra.mxu0 0.0
        %1393 = vmatprep.subr.mxu0 0.0
        %1394 = vmatpush1.msra.mxu0 0.0
        %1395 = vmatprep.subr.mxu0 0.0
        %1396 = vmatpush1.msra.mxu0 0.0
        %1397 = vmatprep.subr.mxu0 0.0
        %1398 = vmatpush1.msra.mxu0 0.0
        %1399 = vmatprep.subr.mxu0 0.0
        %1400 = vmatpush1.msra.mxu0 0.0
        %1401 = vmatprep.subr.mxu0 0.0
        %1402 = vmatpush1.msra.mxu0 0.0
        %1403 = vmatprep.subr.mxu0 0.0
        %1404 = vmatpush1.msra.mxu0 0.0
        %1405 = vmatprep.subr.mxu0 0.0
        %1406 = vmatpush1.msra.mxu0 0.0
        %1407 = vmatprep.subr.mxu0 0.0
        %1408 = vmatpush1.msra.mxu0 0.0
        %1409 = vmatprep.subr.mxu0 0.0
        %1410 = vmatpush1.msra.mxu0 0.0
        %1411 = vmatprep.subr.mxu0 0.0
        %1412 = vmatpush1.msra.mxu0 0.0
        %1413 = vmatprep.subr.mxu0 0.0
        %1414 = vmatpush1.msra.mxu0 0.0
        %1415 = vmatprep.subr.mxu0 0.0
        %1416 = vmatpush1.msra.mxu0 0.0
        %1417 = vmatprep.subr.mxu0 0.0
        %1418 = vmatpush1.msra.mxu0 0.0
        %1419 = vmatprep.subr.mxu0 0.0
        %1420 = vmatpush1.msra.mxu0 0.0
        %1421 = vmatprep.subr.mxu0 0.0
        %1422 = vmatpush1.msra.mxu0 0.0
        %1423 = vmatprep.mubr.f32.mxu0 0.0
        %1424 = vmatmul.mubr.f32.gmra.mrb[0].mxu0 %v369
        %v1425 = vpop.f32.mrb[0].mxu0
        %v1426 = vadd.f32 %v339, %v1425
        %v1427 = vpop.f32.mrb[0].mxu0
        %1428 = vmatprep.mubr.f32.mxu0 0.0
        %1429 = vmatmul.mubr.f32.gmra.mrb[0].mxu0 %v372
        %v1430 = vpop.f32.mrb[0].mxu0
        %v1431 = vadd.f32 %v345, %v1430
        %v1432 = vpop.f32.mrb[0].mxu0
        %1433 = vmatprep.mubr.f32.mxu0 0.0
        %1434 = vmatmul.mubr.f32.gmra.mrb[0].mxu0 %v375
        %v1435 = vpop.f32.mrb[0].mxu0
        %v1436 = vadd.f32 %v351, %v1435
        %v1437 = vpop.f32.mrb[0].mxu0
        %1438 = vmatprep.mubr.f32.mxu0 0.0
        %1439 = vmatmul.mubr.f32.gmra.mrb[0].mxu0 %v378
        %v1440 = vpop.f32.mrb[0].mxu0
        %v1441 = vadd.f32 %v357, %v1440
        %v1442 = vpop.f32.mrb[0].mxu0
        %1443 = vdwg.mxu0
        %v1444 = vmax.f32 %v1426, 0.0
        %v1445 = vmax.f32 %v1431, 0.0
        %v1446 = vmax.f32 %v1436, 0.0
        %v1447 = vmax.f32 %v1441, 0.0
        %1448 = vmatprep.subr.mxu0 0.0
        %1449 = vmatpush1.msra.mxu0 %v1355
        %1450 = vmatprep.subr.mxu0 0.0
        %1451 = vmatpush1.msra.mxu0 %v1356
        %1452 = vmatprep.subr.mxu0 0.0
        %1453 = vmatpush1.msra.mxu0 %v1357
        %1454 = vmatprep.subr.mxu0 0.0
        %1455 = vmatpush1.msra.mxu0 %v1358
        %1456 = vmatprep.subr.mxu0 0.0
        %1457 = vmatpush1.msra.mxu0 0.0
        %1458 = vmatprep.subr.mxu0 0.0
        %1459 = vmatpush1.msra.mxu0 0.0
        %1460 = vmatprep.subr.mxu0 0.0
        %1461 = vmatpush1.msra.mxu0 0.0
        %1462 = vmatprep.subr.mxu0 0.0
        %1463 = vmatpush1.msra.mxu0 0.0
        %1464 = vmatprep.subr.mxu0 0.0
        %1465 = vmatpush1.msra.mxu0 0.0
        %1466 = vmatprep.subr.mxu0 0.0
        %1467 = vmatpush1.msra.mxu0 0.0
        %1468 = vmatprep.subr.mxu0 0.0
        %1469 = vmatpush1.msra.mxu0 0.0
        %1470 = vmatprep.subr.mxu0 0.0
        %1471 = vmatpush1.msra.mxu0 0.0
        %1472 = vmatprep.subr.mxu0 0.0
        %1473 = vmatpush1.msra.mxu0 0.0
        %1474 = vmatprep.subr.mxu0 0.0
        %1475 = vmatpush1.msra.mxu0 0.0
        %1476 = vmatprep.subr.mxu0 0.0
        %1477 = vmatpush1.msra.mxu0 0.0
        %1478 = vmatprep.subr.mxu0 0.0
        %1479 = vmatpush1.msra.mxu0 0.0
        %1480 = vmatprep.subr.mxu0 0.0
        %1481 = vmatpush1.msra.mxu0 0.0
        %1482 = vmatprep.subr.mxu0 0.0
        %1483 = vmatpush1.msra.mxu0 0.0
        %1484 = vmatprep.subr.mxu0 0.0
        %1485 = vmatpush1.msra.mxu0 0.0
        %1486 = vmatprep.subr.mxu0 0.0
        %1487 = vmatpush1.msra.mxu0 0.0
        %1488 = vmatprep.subr.mxu0 0.0
        %1489 = vmatpush1.msra.mxu0 0.0
        %1490 = vmatprep.subr.mxu0 0.0
        %1491 = vmatpush1.msra.mxu0 0.0
        %1492 = vmatprep.subr.mxu0 0.0
        %1493 = vmatpush1.msra.mxu0 0.0
        %1494 = vmatprep.subr.mxu0 0.0
        %1495 = vmatpush1.msra.mxu0 0.0
        %1496 = vmatprep.subr.mxu0 0.0
        %1497 = vmatpush1.msra.mxu0 0.0
        %1498 = vmatprep.subr.mxu0 0.0
        %1499 = vmatpush1.msra.mxu0 0.0
        %1500 = vmatprep.subr.mxu0 0.0
        %1501 = vmatpush1.msra.mxu0 0.0
        %1502 = vmatprep.subr.mxu0 0.0
        %1503 = vmatpush1.msra.mxu0 0.0
        %1504 = vmatprep.subr.mxu0 0.0
        %1505 = vmatpush1.msra.mxu0 0.0
        %1506 = vmatprep.subr.mxu0 0.0
        %1507 = vmatpush1.msra.mxu0 0.0
        %1508 = vmatprep.subr.mxu0 0.0
        %1509 = vmatpush1.msra.mxu0 0.0
        %1510 = vmatprep.subr.mxu0 0.0
        %1511 = vmatpush1.msra.mxu0 0.0
        %1512 = vmatprep.mubr.f32.mxu0 0.0
        %1513 = vmatmul.mubr.f32.gmra.mrb[0].mxu0 %v369
        %v1514 = vpop.f32.mrb[0].mxu0
        %v1515 = vadd.f32 %v337, %v1514
        %v1516 = vpop.f32.mrb[0].mxu0
        %1517 = vmatprep.mubr.f32.mxu0 0.0
        %1518 = vmatmul.mubr.f32.gmra.mrb[0].mxu0 %v372
        %v1519 = vpop.f32.mrb[0].mxu0
        %v1520 = vadd.f32 %v343, %v1519
        %v1521 = vpop.f32.mrb[0].mxu0
        %1522 = vmatprep.mubr.f32.mxu0 0.0
        %1523 = vmatmul.mubr.f32.gmra.mrb[0].mxu0 %v375
        %v1524 = vpop.f32.mrb[0].mxu0
        %v1525 = vadd.f32 %v349, %v1524
        %v1526 = vpop.f32.mrb[0].mxu0
        %1527 = vmatprep.mubr.f32.mxu0 0.0
        %1528 = vmatmul.mubr.f32.gmra.mrb[0].mxu0 %v378
        %v1529 = vpop.f32.mrb[0].mxu0
        %v1530 = vadd.f32 %v355, %v1529
        %v1531 = vpop.f32.mrb[0].mxu0
        %1532 = vdwg.mxu0
        %v1533 = vmax.f32 %v1515, 0.0
        %v1534 = vmax.f32 %v1520, 0.0
        %v1535 = vmax.f32 %v1525, 0.0
        %v1536 = vmax.f32 %v1530, 0.0
        %1537 = vmatprep.subr.mxu0 0.0
        %1538 = vmatpush1.msra.mxu0 %v1444
        %1539 = vmatprep.subr.mxu0 0.0
        %1540 = vmatpush1.msra.mxu0 %v1445
        %1541 = vmatprep.subr.mxu0 0.0
        %1542 = vmatpush1.msra.mxu0 %v1446
        %1543 = vmatprep.subr.mxu0 0.0
        %1544 = vmatpush1.msra.mxu0 %v1447
        %1545 = vmatprep.subr.mxu0 0.0
        %1546 = vmatpush1.msra.mxu0 0.0
        %1547 = vmatprep.subr.mxu0 0.0
        %1548 = vmatpush1.msra.mxu0 0.0
        %1549 = vmatprep.subr.mxu0 0.0
        %1550 = vmatpush1.msra.mxu0 0.0
        %1551 = vmatprep.subr.mxu0 0.0
        %1552 = vmatpush1.msra.mxu0 0.0
        %1553 = vmatprep.subr.mxu0 0.0
        %1554 = vmatpush1.msra.mxu0 0.0
        %1555 = vmatprep.subr.mxu0 0.0
        %1556 = vmatpush1.msra.mxu0 0.0
        %1557 = vmatprep.subr.mxu0 0.0
        %1558 = vmatpush1.msra.mxu0 0.0
        %1559 = vmatprep.subr.mxu0 0.0
        %1560 = vmatpush1.msra.mxu0 0.0
        %1561 = vmatprep.subr.mxu0 0.0
        %1562 = vmatpush1.msra.mxu0 0.0
        %1563 = vmatprep.subr.mxu0 0.0
        %1564 = vmatpush1.msra.mxu0 0.0
        %1565 = vmatprep.subr.mxu0 0.0
        %1566 = vmatpush1.msra.mxu0 0.0
        %1567 = vmatprep.subr.mxu0 0.0
        %1568 = vmatpush1.msra.mxu0 0.0
        %1569 = vmatprep.subr.mxu0 0.0
        %1570 = vmatpush1.msra.mxu0 0.0
        %1571 = vmatprep.subr.mxu0 0.0
        %1572 = vmatpush1.msra.mxu0 0.0
        %1573 = vmatprep.subr.mxu0 0.0
        %1574 = vmatpush1.msra.mxu0 0.0
        %1575 = vmatprep.subr.mxu0 0.0
        %1576 = vmatpush1.msra.mxu0 0.0
        %1577 = vmatprep.subr.mxu0 0.0
        %1578 = vmatpush1.msra.mxu0 0.0
        %1579 = vmatprep.subr.mxu0 0.0
        %1580 = vmatpush1.msra.mxu0 0.0
        %1581 = vmatprep.subr.mxu0 0.0
        %1582 = vmatpush1.msra.mxu0 0.0
        %1583 = vmatprep.subr.mxu0 0.0
        %1584 = vmatpush1.msra.mxu0 0.0
        %1585 = vmatprep.subr.mxu0 0.0
        %1586 = vmatpush1.msra.mxu0 0.0
        %1587 = vmatprep.subr.mxu0 0.0
        %1588 = vmatpush1.msra.mxu0 0.0
        %1589 = vmatprep.subr.mxu0 0.0
        %1590 = vmatpush1.msra.mxu0 0.0
        %1591 = vmatprep.subr.mxu0 0.0
        %1592 = vmatpush1.msra.mxu0 0.0
        %1593 = vmatprep.subr.mxu0 0.0
        %1594 = vmatpush1.msra.mxu0 0.0
        %1595 = vmatprep.subr.mxu0 0.0
        %1596 = vmatpush1.msra.mxu0 0.0
        %1597 = vmatprep.subr.mxu0 0.0
        %1598 = vmatpush1.msra.mxu0 0.0
        %1599 = vmatprep.subr.mxu0 0.0
        %1600 = vmatpush1.msra.mxu0 0.0
        %1601 = vmatprep.mubr.f32.mxu0 0.0
        %1602 = vmatmul.mubr.f32.gmra.mrb[0].mxu0 %v369
        %v1603 = vpop.f32.mrb[0].mxu0
        %v1604 = vadd.f32 %v339, %v1603
        %v1605 = vpop.f32.mrb[0].mxu0
        %1606 = vmatprep.mubr.f32.mxu0 0.0
        %1607 = vmatmul.mubr.f32.gmra.mrb[0].mxu0 %v372
        %v1608 = vpop.f32.mrb[0].mxu0
        %v1609 = vadd.f32 %v345, %v1608
        %v1610 = vpop.f32.mrb[0].mxu0
        %1611 = vmatprep.mubr.f32.mxu0 0.0
        %1612 = vmatmul.mubr.f32.gmra.mrb[0].mxu0 %v375
        %v1613 = vpop.f32.mrb[0].mxu0
        %v1614 = vadd.f32 %v351, %v1613
        %v1615 = vpop.f32.mrb[0].mxu0
        %1616 = vmatprep.mubr.f32.mxu0 0.0
        %1617 = vmatmul.mubr.f32.gmra.mrb[0].mxu0 %v378
        %v1618 = vpop.f32.mrb[0].mxu0
        %v1619 = vadd.f32 %v357, %v1618
        %v1620 = vpop.f32.mrb[0].mxu0
        %1621 = vdwg.mxu0
        %v1622 = vmax.f32 %v1604, 0.0
        %v1623 = vmax.f32 %v1609, 0.0
        %v1624 = vmax.f32 %v1614, 0.0
        %v1625 = vmax.f32 %v1619, 0.0
        %1626 = vmatprep.subr.mxu0 0.0
        %1627 = vmatpush1.msra.mxu0 %v1533
        %1628 = vmatprep.subr.mxu0 0.0
        %1629 = vmatpush1.msra.mxu0 %v1534
        %1630 = vmatprep.subr.mxu0 0.0
        %1631 = vmatpush1.msra.mxu0 %v1535
        %1632 = vmatprep.subr.mxu0 0.0
        %1633 = vmatpush1.msra.mxu0 %v1536
        %1634 = vmatprep.subr.mxu0 0.0
        %1635 = vmatpush1.msra.mxu0 0.0
        %1636 = vmatprep.subr.mxu0 0.0
        %1637 = vmatpush1.msra.mxu0 0.0
        %1638 = vmatprep.subr.mxu0 0.0
        %1639 = vmatpush1.msra.mxu0 0.0
        %1640 = vmatprep.subr.mxu0 0.0
        %1641 = vmatpush1.msra.mxu0 0.0
        %1642 = vmatprep.subr.mxu0 0.0
        %1643 = vmatpush1.msra.mxu0 0.0
        %1644 = vmatprep.subr.mxu0 0.0
        %1645 = vmatpush1.msra.mxu0 0.0
        %1646 = vmatprep.subr.mxu0 0.0
        %1647 = vmatpush1.msra.mxu0 0.0
        %1648 = vmatprep.subr.mxu0 0.0
        %1649 = vmatpush1.msra.mxu0 0.0
        %1650 = vmatprep.subr.mxu0 0.0
        %1651 = vmatpush1.msra.mxu0 0.0
        %1652 = vmatprep.subr.mxu0 0.0
        %1653 = vmatpush1.msra.mxu0 0.0
        %1654 = vmatprep.subr.mxu0 0.0
        %1655 = vmatpush1.msra.mxu0 0.0
        %1656 = vmatprep.subr.mxu0 0.0
        %1657 = vmatpush1.msra.mxu0 0.0
        %1658 = vmatprep.subr.mxu0 0.0
        %1659 = vmatpush1.msra.mxu0 0.0
        %1660 = vmatprep.subr.mxu0 0.0
        %1661 = vmatpush1.msra.mxu0 0.0
        %1662 = vmatprep.subr.mxu0 0.0
        %1663 = vmatpush1.msra.mxu0 0.0
        %1664 = vmatprep.subr.mxu0 0.0
        %1665 = vmatpush1.msra.mxu0 0.0
        %1666 = vmatprep.subr.mxu0 0.0
        %1667 = vmatpush1.msra.mxu0 0.0
        %1668 = vmatprep.subr.mxu0 0.0
        %1669 = vmatpush1.msra.mxu0 0.0
        %1670 = vmatprep.subr.mxu0 0.0
        %1671 = vmatpush1.msra.mxu0 0.0
        %1672 = vmatprep.subr.mxu0 0.0
        %1673 = vmatpush1.msra.mxu0 0.0
        %1674 = vmatprep.subr.mxu0 0.0
        %1675 = vmatpush1.msra.mxu0 0.0
        %1676 = vmatprep.subr.mxu0 0.0
        %1677 = vmatpush1.msra.mxu0 0.0
        %1678 = vmatprep.subr.mxu0 0.0
        %1679 = vmatpush1.msra.mxu0 0.0
        %1680 = vmatprep.subr.mxu0 0.0
        %1681 = vmatpush1.msra.mxu0 0.0
        %1682 = vmatprep.subr.mxu0 0.0
        %1683 = vmatpush1.msra.mxu0 0.0
        %1684 = vmatprep.subr.mxu0 0.0
        %1685 = vmatpush1.msra.mxu0 0.0
        %1686 = vmatprep.subr.mxu0 0.0
        %1687 = vmatpush1.msra.mxu0 0.0
        %1688 = vmatprep.subr.mxu0 0.0
        %1689 = vmatpush1.msra.mxu0 0.0
        %1690 = vmatprep.mubr.f32.mxu0 0.0
        %1691 = vmatmul.mubr.f32.gmra.mrb[0].mxu0 %v369
        %v1692 = vpop.f32.mrb[0].mxu0
        %v1693 = vadd.f32 %v337, %v1692
        %v1694 = vpop.f32.mrb[0].mxu0
        %1695 = vmatprep.mubr.f32.mxu0 0.0
        %1696 = vmatmul.mubr.f32.gmra.mrb[0].mxu0 %v372
        %v1697 = vpop.f32.mrb[0].mxu0
        %v1698 = vadd.f32 %v343, %v1697
        %v1699 = vpop.f32.mrb[0].mxu0
        %1700 = vmatprep.mubr.f32.mxu0 0.0
        %1701 = vmatmul.mubr.f32.gmra.mrb[0].mxu0 %v375
        %v1702 = vpop.f32.mrb[0].mxu0
        %v1703 = vadd.f32 %v349, %v1702
        %v1704 = vpop.f32.mrb[0].mxu0
        %1705 = vmatprep.mubr.f32.mxu0 0.0
        %1706 = vmatmul.mubr.f32.gmra.mrb[0].mxu0 %v378
        %v1707 = vpop.f32.mrb[0].mxu0
        %v1708 = vadd.f32 %v355, %v1707
        %v1709 = vpop.f32.mrb[0].mxu0
        %1710 = vdwg.mxu0
        %v1711 = vmax.f32 %v1693, 0.0
        %v1712 = vmax.f32 %v1698, 0.0
        %v1713 = vmax.f32 %v1703, 0.0
        %v1714 = vmax.f32 %v1708, 0.0
        %1715 = vmatprep.subr.mxu0 0.0
        %1716 = vmatpush1.msra.mxu0 %v1622
        %1717 = vmatprep.subr.mxu0 0.0
        %1718 = vmatpush1.msra.mxu0 %v1623
        %1719 = vmatprep.subr.mxu0 0.0
        %1720 = vmatpush1.msra.mxu0 %v1624
        %1721 = vmatprep.subr.mxu0 0.0
        %1722 = vmatpush1.msra.mxu0 %v1625
        %1723 = vmatprep.subr.mxu0 0.0
        %1724 = vmatpush1.msra.mxu0 0.0
        %1725 = vmatprep.subr.mxu0 0.0
        %1726 = vmatpush1.msra.mxu0 0.0
        %1727 = vmatprep.subr.mxu0 0.0
        %1728 = vmatpush1.msra.mxu0 0.0
        %1729 = vmatprep.subr.mxu0 0.0
        %1730 = vmatpush1.msra.mxu0 0.0
        %1731 = vmatprep.subr.mxu0 0.0
        %1732 = vmatpush1.msra.mxu0 0.0
        %1733 = vmatprep.subr.mxu0 0.0
        %1734 = vmatpush1.msra.mxu0 0.0
        %1735 = vmatprep.subr.mxu0 0.0
        %1736 = vmatpush1.msra.mxu0 0.0
        %1737 = vmatprep.subr.mxu0 0.0
        %1738 = vmatpush1.msra.mxu0 0.0
        %1739 = vmatprep.subr.mxu0 0.0
        %1740 = vmatpush1.msra.mxu0 0.0
        %1741 = vmatprep.subr.mxu0 0.0
        %1742 = vmatpush1.msra.mxu0 0.0
        %1743 = vmatprep.subr.mxu0 0.0
        %1744 = vmatpush1.msra.mxu0 0.0
        %1745 = vmatprep.subr.mxu0 0.0
        %1746 = vmatpush1.msra.mxu0 0.0
        %1747 = vmatprep.subr.mxu0 0.0
        %1748 = vmatpush1.msra.mxu0 0.0
        %1749 = vmatprep.subr.mxu0 0.0
        %1750 = vmatpush1.msra.mxu0 0.0
        %1751 = vmatprep.subr.mxu0 0.0
        %1752 = vmatpush1.msra.mxu0 0.0
        %1753 = vmatprep.subr.mxu0 0.0
        %1754 = vmatpush1.msra.mxu0 0.0
        %1755 = vmatprep.subr.mxu0 0.0
        %1756 = vmatpush1.msra.mxu0 0.0
        %1757 = vmatprep.subr.mxu0 0.0
        %1758 = vmatpush1.msra.mxu0 0.0
        %1759 = vmatprep.subr.mxu0 0.0
        %1760 = vmatpush1.msra.mxu0 0.0
        %1761 = vmatprep.subr.mxu0 0.0
        %1762 = vmatpush1.msra.mxu0 0.0
        %1763 = vmatprep.subr.mxu0 0.0
        %1764 = vmatpush1.msra.mxu0 0.0
        %1765 = vmatprep.subr.mxu0 0.0
        %1766 = vmatpush1.msra.mxu0 0.0
        %1767 = vmatprep.subr.mxu0 0.0
        %1768 = vmatpush1.msra.mxu0 0.0
        %1769 = vmatprep.subr.mxu0 0.0
        %1770 = vmatpush1.msra.mxu0 0.0
        %1771 = vmatprep.subr.mxu0 0.0
        %1772 = vmatpush1.msra.mxu0 0.0
        %1773 = vmatprep.subr.mxu0 0.0
        %1774 = vmatpush1.msra.mxu0 0.0
        %1775 = vmatprep.subr.mxu0 0.0
        %1776 = vmatpush1.msra.mxu0 0.0
        %1777 = vmatprep.subr.mxu0 0.0
        %1778 = vmatpush1.msra.mxu0 0.0
        %1779 = vmatprep.mubr.f32.mxu0 0.0
        %1780 = vmatmul.mubr.f32.gmra.mrb[0].mxu0 %v369
        %v1781 = vpop.f32.mrb[0].mxu0
        %v1782 = vadd.f32 %v339, %v1781
        %v1783 = vpop.f32.mrb[0].mxu0
        %1784 = vmatprep.mubr.f32.mxu0 0.0
        %1785 = vmatmul.mubr.f32.gmra.mrb[0].mxu0 %v372
        %v1786 = vpop.f32.mrb[0].mxu0
        %v1787 = vadd.f32 %v345, %v1786
        %v1788 = vpop.f32.mrb[0].mxu0
        %1789 = vmatprep.mubr.f32.mxu0 0.0
        %1790 = vmatmul.mubr.f32.gmra.mrb[0].mxu0 %v375
        %v1791 = vpop.f32.mrb[0].mxu0
        %v1792 = vadd.f32 %v351, %v1791
        %v1793 = vpop.f32.mrb[0].mxu0
        %1794 = vmatprep.mubr.f32.mxu0 0.0
        %1795 = vmatmul.mubr.f32.gmra.mrb[0].mxu0 %v378
        %v1796 = vpop.f32.mrb[0].mxu0
        %v1797 = vadd.f32 %v357, %v1796
        %v1798 = vpop.f32.mrb[0].mxu0
        %1799 = vdwg.mxu0
        %v1800 = vmax.f32 %v1782, 0.0
        %v1801 = vmax.f32 %v1787, 0.0
        %v1802 = vmax.f32 %v1792, 0.0
        %v1803 = vmax.f32 %v1797, 0.0
        %1804 = vmatprep.subr.mxu0 0.0
        %1805 = vmatpush1.msra.mxu0 %v1711
        %1806 = vmatprep.subr.mxu0 0.0
        %1807 = vmatpush1.msra.mxu0 %v1712
        %1808 = vmatprep.subr.mxu0 0.0
        %1809 = vmatpush1.msra.mxu0 %v1713
        %1810 = vmatprep.subr.mxu0 0.0
        %1811 = vmatpush1.msra.mxu0 %v1714
        %1812 = vmatprep.subr.mxu0 0.0
        %1813 = vmatpush1.msra.mxu0 0.0
        %1814 = vmatprep.subr.mxu0 0.0
        %1815 = vmatpush1.msra.mxu0 0.0
        %1816 = vmatprep.subr.mxu0 0.0
        %1817 = vmatpush1.msra.mxu0 0.0
        %1818 = vmatprep.subr.mxu0 0.0
        %1819 = vmatpush1.msra.mxu0 0.0
        %1820 = vmatprep.subr.mxu0 0.0
        %1821 = vmatpush1.msra.mxu0 0.0
        %1822 = vmatprep.subr.mxu0 0.0
        %1823 = vmatpush1.msra.mxu0 0.0
        %1824 = vmatprep.subr.mxu0 0.0
        %1825 = vmatpush1.msra.mxu0 0.0
        %1826 = vmatprep.subr.mxu0 0.0
        %1827 = vmatpush1.msra.mxu0 0.0
        %1828 = vmatprep.subr.mxu0 0.0
        %1829 = vmatpush1.msra.mxu0 0.0
        %1830 = vmatprep.subr.mxu0 0.0
        %1831 = vmatpush1.msra.mxu0 0.0
        %1832 = vmatprep.subr.mxu0 0.0
        %1833 = vmatpush1.msra.mxu0 0.0
        %1834 = vmatprep.subr.mxu0 0.0
        %1835 = vmatpush1.msra.mxu0 0.0
        %1836 = vmatprep.subr.mxu0 0.0
        %1837 = vmatpush1.msra.mxu0 0.0
        %1838 = vmatprep.subr.mxu0 0.0
        %1839 = vmatpush1.msra.mxu0 0.0
        %1840 = vmatprep.subr.mxu0 0.0
        %1841 = vmatpush1.msra.mxu0 0.0
        %1842 = vmatprep.subr.mxu0 0.0
        %1843 = vmatpush1.msra.mxu0 0.0
        %1844 = vmatprep.subr.mxu0 0.0
        %1845 = vmatpush1.msra.mxu0 0.0
        %1846 = vmatprep.subr.mxu0 0.0
        %1847 = vmatpush1.msra.mxu0 0.0
        %1848 = vmatprep.subr.mxu0 0.0
        %1849 = vmatpush1.msra.mxu0 0.0
        %1850 = vmatprep.subr.mxu0 0.0
        %1851 = vmatpush1.msra.mxu0 0.0
        %1852 = vmatprep.subr.mxu0 0.0
        %1853 = vmatpush1.msra.mxu0 0.0
        %1854 = vmatprep.subr.mxu0 0.0
        %1855 = vmatpush1.msra.mxu0 0.0
        %1856 = vmatprep.subr.mxu0 0.0
        %1857 = vmatpush1.msra.mxu0 0.0
        %1858 = vmatprep.subr.mxu0 0.0
        %1859 = vmatpush1.msra.mxu0 0.0
        %1860 = vmatprep.subr.mxu0 0.0
        %1861 = vmatpush1.msra.mxu0 0.0
        %1862 = vmatprep.subr.mxu0 0.0
        %1863 = vmatpush1.msra.mxu0 0.0
        %1864 = vmatprep.subr.mxu0 0.0
        %1865 = vmatpush1.msra.mxu0 0.0
        %1866 = vmatprep.subr.mxu0 0.0
        %1867 = vmatpush1.msra.mxu0 0.0
        %1868 = vmatprep.mubr.f32.mxu0 0.0
        %1869 = vmatmul.mubr.f32.gmra.mrb[0].mxu0 %v369
        %v1870 = vpop.f32.mrb[0].mxu0
        %v1871 = vadd.f32 %v337, %v1870
        %v1872 = vpop.f32.mrb[0].mxu0
        %1873 = vmatprep.mubr.f32.mxu0 0.0
        %1874 = vmatmul.mubr.f32.gmra.mrb[0].mxu0 %v372
        %v1875 = vpop.f32.mrb[0].mxu0
        %v1876 = vadd.f32 %v343, %v1875
        %v1877 = vpop.f32.mrb[0].mxu0
        %1878 = vmatprep.mubr.f32.mxu0 0.0
        %1879 = vmatmul.mubr.f32.gmra.mrb[0].mxu0 %v375
        %v1880 = vpop.f32.mrb[0].mxu0
        %v1881 = vadd.f32 %v349, %v1880
        %v1882 = vpop.f32.mrb[0].mxu0
        %1883 = vmatprep.mubr.f32.mxu0 0.0
        %1884 = vmatmul.mubr.f32.gmra.mrb[0].mxu0 %v378
        %v1885 = vpop.f32.mrb[0].mxu0
        %v1886 = vadd.f32 %v355, %v1885
        %v1887 = vpop.f32.mrb[0].mxu0
        %1888 = vdwg.mxu0
        %v1889 = vmax.f32 %v1871, 0.0
        %v1890 = vmax.f32 %v1876, 0.0
        %v1891 = vmax.f32 %v1881, 0.0
        %v1892 = vmax.f32 %v1886, 0.0
        %1893 = vmatprep.subr.mxu0 0.0
        %1894 = vmatpush1.msra.mxu0 %v1800
        %1895 = vmatprep.subr.mxu0 0.0
        %1896 = vmatpush1.msra.mxu0 %v1801
        %1897 = vmatprep.subr.mxu0 0.0
        %1898 = vmatpush1.msra.mxu0 %v1802
        %1899 = vmatprep.subr.mxu0 0.0
        %1900 = vmatpush1.msra.mxu0 %v1803
        %1901 = vmatprep.subr.mxu0 0.0
        %1902 = vmatpush1.msra.mxu0 0.0
        %1903 = vmatprep.subr.mxu0 0.0
        %1904 = vmatpush1.msra.mxu0 0.0
        %1905 = vmatprep.subr.mxu0 0.0
        %1906 = vmatpush1.msra.mxu0 0.0
        %1907 = vmatprep.subr.mxu0 0.0
        %1908 = vmatpush1.msra.mxu0 0.0
        %1909 = vmatprep.subr.mxu0 0.0
        %1910 = vmatpush1.msra.mxu0 0.0
        %1911 = vmatprep.subr.mxu0 0.0
        %1912 = vmatpush1.msra.mxu0 0.0
        %1913 = vmatprep.subr.mxu0 0.0
        %1914 = vmatpush1.msra.mxu0 0.0
        %1915 = vmatprep.subr.mxu0 0.0
        %1916 = vmatpush1.msra.mxu0 0.0
        %1917 = vmatprep.subr.mxu0 0.0
        %1918 = vmatpush1.msra.mxu0 0.0
        %1919 = vmatprep.subr.mxu0 0.0
        %1920 = vmatpush1.msra.mxu0 0.0
        %1921 = vmatprep.subr.mxu0 0.0
        %1922 = vmatpush1.msra.mxu0 0.0
        %1923 = vmatprep.subr.mxu0 0.0
        %1924 = vmatpush1.msra.mxu0 0.0
        %1925 = vmatprep.subr.mxu0 0.0
        %1926 = vmatpush1.msra.mxu0 0.0
        %1927 = vmatprep.subr.mxu0 0.0
        %1928 = vmatpush1.msra.mxu0 0.0
        %1929 = vmatprep.subr.mxu0 0.0
        %1930 = vmatpush1.msra.mxu0 0.0
        %1931 = vmatprep.subr.mxu0 0.0
        %1932 = vmatpush1.msra.mxu0 0.0
        %1933 = vmatprep.subr.mxu0 0.0
        %1934 = vmatpush1.msra.mxu0 0.0
        %1935 = vmatprep.subr.mxu0 0.0
        %1936 = vmatpush1.msra.mxu0 0.0
        %1937 = vmatprep.subr.mxu0 0.0
        %1938 = vmatpush1.msra.mxu0 0.0
        %1939 = vmatprep.subr.mxu0 0.0
        %1940 = vmatpush1.msra.mxu0 0.0
        %1941 = vmatprep.subr.mxu0 0.0
        %1942 = vmatpush1.msra.mxu0 0.0
        %1943 = vmatprep.subr.mxu0 0.0
        %1944 = vmatpush1.msra.mxu0 0.0
        %1945 = vmatprep.subr.mxu0 0.0
        %1946 = vmatpush1.msra.mxu0 0.0
        %1947 = vmatprep.subr.mxu0 0.0
        %1948 = vmatpush1.msra.mxu0 0.0
        %1949 = vmatprep.subr.mxu0 0.0
        %1950 = vmatpush1.msra.mxu0 0.0
        %1951 = vmatprep.subr.mxu0 0.0
        %1952 = vmatpush1.msra.mxu0 0.0
        %1953 = vmatprep.subr.mxu0 0.0
        %1954 = vmatpush1.msra.mxu0 0.0
        %1955 = vmatprep.subr.mxu0 0.0
        %1956 = vmatpush1.msra.mxu0 0.0
        %1957 = vmatprep.mubr.f32.mxu0 0.0
        %1958 = vmatmul.mubr.f32.gmra.mrb[0].mxu0 %v369
        %v1959 = vpop.f32.mrb[0].mxu0
        %v1960 = vadd.f32 %v339, %v1959
        %v1961 = vpop.f32.mrb[0].mxu0
        %1962 = vmatprep.mubr.f32.mxu0 0.0
        %1963 = vmatmul.mubr.f32.gmra.mrb[0].mxu0 %v372
        %v1964 = vpop.f32.mrb[0].mxu0
        %v1965 = vadd.f32 %v345, %v1964
        %v1966 = vpop.f32.mrb[0].mxu0
        %1967 = vmatprep.mubr.f32.mxu0 0.0
        %1968 = vmatmul.mubr.f32.gmra.mrb[0].mxu0 %v375
        %v1969 = vpop.f32.mrb[0].mxu0
        %v1970 = vadd.f32 %v351, %v1969
        %v1971 = vpop.f32.mrb[0].mxu0
        %1972 = vmatprep.mubr.f32.mxu0 0.0
        %1973 = vmatmul.mubr.f32.gmra.mrb[0].mxu0 %v378
        %v1974 = vpop.f32.mrb[0].mxu0
        %v1975 = vadd.f32 %v357, %v1974
        %v1976 = vpop.f32.mrb[0].mxu0
        %1977 = vdwg.mxu0
        %v1978 = vmax.f32 %v1960, 0.0
        %v1979 = vmax.f32 %v1965, 0.0
        %v1980 = vmax.f32 %v1970, 0.0
        %v1981 = vmax.f32 %v1975, 0.0
        %1982 = vmatprep.subr.mxu0 0.0
        %1983 = vmatpush1.msra.mxu0 %v1889
        %1984 = vmatprep.subr.mxu0 0.0
        %1985 = vmatpush1.msra.mxu0 %v1890
        %1986 = vmatprep.subr.mxu0 0.0
        %1987 = vmatpush1.msra.mxu0 %v1891
        %1988 = vmatprep.subr.mxu0 0.0
        %1989 = vmatpush1.msra.mxu0 %v1892
        %1990 = vmatprep.subr.mxu0 0.0
        %1991 = vmatpush1.msra.mxu0 0.0
        %1992 = vmatprep.subr.mxu0 0.0
        %1993 = vmatpush1.msra.mxu0 0.0
        %1994 = vmatprep.subr.mxu0 0.0
        %1995 = vmatpush1.msra.mxu0 0.0
        %1996 = vmatprep.subr.mxu0 0.0
        %1997 = vmatpush1.msra.mxu0 0.0
        %1998 = vmatprep.subr.mxu0 0.0
        %1999 = vmatpush1.msra.mxu0 0.0
        %2000 = vmatprep.subr.mxu0 0.0
        %2001 = vmatpush1.msra.mxu0 0.0
        %2002 = vmatprep.subr.mxu0 0.0
        %2003 = vmatpush1.msra.mxu0 0.0
        %2004 = vmatprep.subr.mxu0 0.0
        %2005 = vmatpush1.msra.mxu0 0.0
        %2006 = vmatprep.subr.mxu0 0.0
        %2007 = vmatpush1.msra.mxu0 0.0
        %2008 = vmatprep.subr.mxu0 0.0
        %2009 = vmatpush1.msra.mxu0 0.0
        %2010 = vmatprep.subr.mxu0 0.0
        %2011 = vmatpush1.msra.mxu0 0.0
        %2012 = vmatprep.subr.mxu0 0.0
        %2013 = vmatpush1.msra.mxu0 0.0
        %2014 = vmatprep.subr.mxu0 0.0
        %2015 = vmatpush1.msra.mxu0 0.0
        %2016 = vmatprep.subr.mxu0 0.0
        %2017 = vmatpush1.msra.mxu0 0.0
        %2018 = vmatprep.subr.mxu0 0.0
        %2019 = vmatpush1.msra.mxu0 0.0
        %2020 = vmatprep.subr.mxu0 0.0
        %2021 = vmatpush1.msra.mxu0 0.0
        %2022 = vmatprep.subr.mxu0 0.0
        %2023 = vmatpush1.msra.mxu0 0.0
        %2024 = vmatprep.subr.mxu0 0.0
        %2025 = vmatpush1.msra.mxu0 0.0
        %2026 = vmatprep.subr.mxu0 0.0
        %2027 = vmatpush1.msra.mxu0 0.0
        %2028 = vmatprep.subr.mxu0 0.0
        %2029 = vmatpush1.msra.mxu0 0.0
        %2030 = vmatprep.subr.mxu0 0.0
        %2031 = vmatpush1.msra.mxu0 0.0
        %2032 = vmatprep.subr.mxu0 0.0
        %2033 = vmatpush1.msra.mxu0 0.0
        %2034 = vmatprep.subr.mxu0 0.0
        %2035 = vmatpush1.msra.mxu0 0.0
        %2036 = vmatprep.subr.mxu0 0.0
        %2037 = vmatpush1.msra.mxu0 0.0
        %2038 = vmatprep.subr.mxu0 0.0
        %2039 = vmatpush1.msra.mxu0 0.0
        %2040 = vmatprep.subr.mxu0 0.0
        %2041 = vmatpush1.msra.mxu0 0.0
        %2042 = vmatprep.subr.mxu0 0.0
        %2043 = vmatpush1.msra.mxu0 0.0
        %2044 = vmatprep.subr.mxu0 0.0
        %2045 = vmatpush1.msra.mxu0 0.0
        %2046 = vmatprep.mubr.f32.mxu0 0.0
        %2047 = vmatmul.mubr.f32.gmra.mrb[0].mxu0 %v369
        %v2048 = vpop.f32.mrb[0].mxu0
        %v2049 = vadd.f32 %v337, %v2048
        %v2050 = vpop.f32.mrb[0].mxu0
        %2051 = vmatprep.mubr.f32.mxu0 0.0
        %2052 = vmatmul.mubr.f32.gmra.mrb[0].mxu0 %v372
        %v2053 = vpop.f32.mrb[0].mxu0
        %v2054 = vadd.f32 %v343, %v2053
        %v2055 = vpop.f32.mrb[0].mxu0
        %2056 = vmatprep.mubr.f32.mxu0 0.0
        %2057 = vmatmul.mubr.f32.gmra.mrb[0].mxu0 %v375
        %v2058 = vpop.f32.mrb[0].mxu0
        %v2059 = vadd.f32 %v349, %v2058
        %v2060 = vpop.f32.mrb[0].mxu0
        %2061 = vmatprep.mubr.f32.mxu0 0.0
        %2062 = vmatmul.mubr.f32.gmra.mrb[0].mxu0 %v378
        %v2063 = vpop.f32.mrb[0].mxu0
        %v2064 = vadd.f32 %v355, %v2063
        %v2065 = vpop.f32.mrb[0].mxu0
        %2066 = vdwg.mxu0
        %v2067 = vmax.f32 %v2049, 0.0
        %v2068 = vmax.f32 %v2054, 0.0
        %v2069 = vmax.f32 %v2059, 0.0
        %v2070 = vmax.f32 %v2064, 0.0
        %2071 = vmatprep.subr.mxu0 0.0
        %2072 = vmatpush1.msra.mxu0 %v1978
        %2073 = vmatprep.subr.mxu0 0.0
        %2074 = vmatpush1.msra.mxu0 %v1979
        %2075 = vmatprep.subr.mxu0 0.0
        %2076 = vmatpush1.msra.mxu0 %v1980
        %2077 = vmatprep.subr.mxu0 0.0
        %2078 = vmatpush1.msra.mxu0 %v1981
        %2079 = vmatprep.subr.mxu0 0.0
        %2080 = vmatpush1.msra.mxu0 0.0
        %2081 = vmatprep.subr.mxu0 0.0
        %2082 = vmatpush1.msra.mxu0 0.0
        %2083 = vmatprep.subr.mxu0 0.0
        %2084 = vmatpush1.msra.mxu0 0.0
        %2085 = vmatprep.subr.mxu0 0.0
        %2086 = vmatpush1.msra.mxu0 0.0
        %2087 = vmatprep.subr.mxu0 0.0
        %2088 = vmatpush1.msra.mxu0 0.0
        %2089 = vmatprep.subr.mxu0 0.0
        %2090 = vmatpush1.msra.mxu0 0.0
        %2091 = vmatprep.subr.mxu0 0.0
        %2092 = vmatpush1.msra.mxu0 0.0
        %2093 = vmatprep.subr.mxu0 0.0
        %2094 = vmatpush1.msra.mxu0 0.0
        %2095 = vmatprep.subr.mxu0 0.0
        %2096 = vmatpush1.msra.mxu0 0.0
        %2097 = vmatprep.subr.mxu0 0.0
        %2098 = vmatpush1.msra.mxu0 0.0
        %2099 = vmatprep.subr.mxu0 0.0
        %2100 = vmatpush1.msra.mxu0 0.0
        %2101 = vmatprep.subr.mxu0 0.0
        %2102 = vmatpush1.msra.mxu0 0.0
        %2103 = vmatprep.subr.mxu0 0.0
        %2104 = vmatpush1.msra.mxu0 0.0
        %2105 = vmatprep.subr.mxu0 0.0
        %2106 = vmatpush1.msra.mxu0 0.0
        %2107 = vmatprep.subr.mxu0 0.0
        %2108 = vmatpush1.msra.mxu0 0.0
        %2109 = vmatprep.subr.mxu0 0.0
        %2110 = vmatpush1.msra.mxu0 0.0
        %2111 = vmatprep.subr.mxu0 0.0
        %2112 = vmatpush1.msra.mxu0 0.0
        %2113 = vmatprep.subr.mxu0 0.0
        %2114 = vmatpush1.msra.mxu0 0.0
        %2115 = vmatprep.subr.mxu0 0.0
        %2116 = vmatpush1.msra.mxu0 0.0
        %2117 = vmatprep.subr.mxu0 0.0
        %2118 = vmatpush1.msra.mxu0 0.0
        %2119 = vmatprep.subr.mxu0 0.0
        %2120 = vmatpush1.msra.mxu0 0.0
        %2121 = vmatprep.subr.mxu0 0.0
        %2122 = vmatpush1.msra.mxu0 0.0
        %2123 = vmatprep.subr.mxu0 0.0
        %2124 = vmatpush1.msra.mxu0 0.0
        %2125 = vmatprep.subr.mxu0 0.0
        %2126 = vmatpush1.msra.mxu0 0.0
        %2127 = vmatprep.subr.mxu0 0.0
        %2128 = vmatpush1.msra.mxu0 0.0
        %2129 = vmatprep.subr.mxu0 0.0
        %2130 = vmatpush1.msra.mxu0 0.0
        %2131 = vmatprep.subr.mxu0 0.0
        %2132 = vmatpush1.msra.mxu0 0.0
        %2133 = vmatprep.subr.mxu0 0.0
        %2134 = vmatpush1.msra.mxu0 0.0
        %2135 = vmatprep.mubr.f32.mxu0 0.0
        %2136 = vmatmul.mubr.f32.gmra.mrb[0].mxu0 %v369
        %v2137 = vpop.f32.mrb[0].mxu0
        %v2138 = vadd.f32 %v339, %v2137
        %v2139 = vpop.f32.mrb[0].mxu0
        %2140 = vmatprep.mubr.f32.mxu0 0.0
        %2141 = vmatmul.mubr.f32.gmra.mrb[0].mxu0 %v372
        %v2142 = vpop.f32.mrb[0].mxu0
        %v2143 = vadd.f32 %v345, %v2142
        %v2144 = vpop.f32.mrb[0].mxu0
        %2145 = vmatprep.mubr.f32.mxu0 0.0
        %2146 = vmatmul.mubr.f32.gmra.mrb[0].mxu0 %v375
        %v2147 = vpop.f32.mrb[0].mxu0
        %v2148 = vadd.f32 %v351, %v2147
        %v2149 = vpop.f32.mrb[0].mxu0
        %2150 = vmatprep.mubr.f32.mxu0 0.0
        %2151 = vmatmul.mubr.f32.gmra.mrb[0].mxu0 %v378
        %v2152 = vpop.f32.mrb[0].mxu0
        %v2153 = vadd.f32 %v357, %v2152
        %v2154 = vpop.f32.mrb[0].mxu0
        %2155 = vdwg.mxu0
        %v2156 = vmax.f32 %v2138, 0.0
        %v2157 = vmax.f32 %v2143, 0.0
        %v2158 = vmax.f32 %v2148, 0.0
        %v2159 = vmax.f32 %v2153, 0.0
        %2160 = vmatprep.subr.mxu0 0.0
        %2161 = vmatpush1.msra.mxu0 %v2067
        %2162 = vmatprep.subr.mxu0 0.0
        %2163 = vmatpush1.msra.mxu0 %v2068
        %2164 = vmatprep.subr.mxu0 0.0
        %2165 = vmatpush1.msra.mxu0 %v2069
        %2166 = vmatprep.subr.mxu0 0.0
        %2167 = vmatpush1.msra.mxu0 %v2070
        %2168 = vmatprep.subr.mxu0 0.0
        %2169 = vmatpush1.msra.mxu0 0.0
        %2170 = vmatprep.subr.mxu0 0.0
        %2171 = vmatpush1.msra.mxu0 0.0
        %2172 = vmatprep.subr.mxu0 0.0
        %2173 = vmatpush1.msra.mxu0 0.0
        %2174 = vmatprep.subr.mxu0 0.0
        %2175 = vmatpush1.msra.mxu0 0.0
        %2176 = vmatprep.subr.mxu0 0.0
        %2177 = vmatpush1.msra.mxu0 0.0
        %2178 = vmatprep.subr.mxu0 0.0
        %2179 = vmatpush1.msra.mxu0 0.0
        %2180 = vmatprep.subr.mxu0 0.0
        %2181 = vmatpush1.msra.mxu0 0.0
        %2182 = vmatprep.subr.mxu0 0.0
        %2183 = vmatpush1.msra.mxu0 0.0
        %2184 = vmatprep.subr.mxu0 0.0
        %2185 = vmatpush1.msra.mxu0 0.0
        %2186 = vmatprep.subr.mxu0 0.0
        %2187 = vmatpush1.msra.mxu0 0.0
        %2188 = vmatprep.subr.mxu0 0.0
        %2189 = vmatpush1.msra.mxu0 0.0
        %2190 = vmatprep.subr.mxu0 0.0
        %2191 = vmatpush1.msra.mxu0 0.0
        %2192 = vmatprep.subr.mxu0 0.0
        %2193 = vmatpush1.msra.mxu0 0.0
        %2194 = vmatprep.subr.mxu0 0.0
        %2195 = vmatpush1.msra.mxu0 0.0
        %2196 = vmatprep.subr.mxu0 0.0
        %2197 = vmatpush1.msra.mxu0 0.0
        %2198 = vmatprep.subr.mxu0 0.0
        %2199 = vmatpush1.msra.mxu0 0.0
        %2200 = vmatprep.subr.mxu0 0.0
        %2201 = vmatpush1.msra.mxu0 0.0
        %2202 = vmatprep.subr.mxu0 0.0
        %2203 = vmatpush1.msra.mxu0 0.0
        %2204 = vmatprep.subr.mxu0 0.0
        %2205 = vmatpush1.msra.mxu0 0.0
        %2206 = vmatprep.subr.mxu0 0.0
        %2207 = vmatpush1.msra.mxu0 0.0
        %2208 = vmatprep.subr.mxu0 0.0
        %2209 = vmatpush1.msra.mxu0 0.0
        %2210 = vmatprep.subr.mxu0 0.0
        %2211 = vmatpush1.msra.mxu0 0.0
        %2212 = vmatprep.subr.mxu0 0.0
        %2213 = vmatpush1.msra.mxu0 0.0
        %2214 = vmatprep.subr.mxu0 0.0
        %2215 = vmatpush1.msra.mxu0 0.0
        %2216 = vmatprep.subr.mxu0 0.0
        %2217 = vmatpush1.msra.mxu0 0.0
        %2218 = vmatprep.subr.mxu0 0.0
        %2219 = vmatpush1.msra.mxu0 0.0
        %2220 = vmatprep.subr.mxu0 0.0
        %2221 = vmatpush1.msra.mxu0 0.0
        %2222 = vmatprep.subr.mxu0 0.0
        %2223 = vmatpush1.msra.mxu0 0.0
        %2224 = vmatprep.mubr.f32.mxu0 0.0
        %2225 = vmatmul.mubr.f32.gmra.mrb[0].mxu0 %v369
        %v2226 = vpop.f32.mrb[0].mxu0
        %v2227 = vadd.f32 %v337, %v2226
        %v2228 = vpop.f32.mrb[0].mxu0
        %2229 = vmatprep.mubr.f32.mxu0 0.0
        %2230 = vmatmul.mubr.f32.gmra.mrb[0].mxu0 %v372
        %v2231 = vpop.f32.mrb[0].mxu0
        %v2232 = vadd.f32 %v343, %v2231
        %v2233 = vpop.f32.mrb[0].mxu0
        %2234 = vmatprep.mubr.f32.mxu0 0.0
        %2235 = vmatmul.mubr.f32.gmra.mrb[0].mxu0 %v375
        %v2236 = vpop.f32.mrb[0].mxu0
        %v2237 = vadd.f32 %v349, %v2236
        %v2238 = vpop.f32.mrb[0].mxu0
        %2239 = vmatprep.mubr.f32.mxu0 0.0
        %2240 = vmatmul.mubr.f32.gmra.mrb[0].mxu0 %v378
        %v2241 = vpop.f32.mrb[0].mxu0
        %v2242 = vadd.f32 %v355, %v2241
        %v2243 = vpop.f32.mrb[0].mxu0
        %2244 = vdwg.mxu0
        %v2245 = vmax.f32 %v2227, 0.0
        %v2246 = vmax.f32 %v2232, 0.0
        %v2247 = vmax.f32 %v2237, 0.0
        %v2248 = vmax.f32 %v2242, 0.0
        %2249 = vmatprep.subr.mxu0 0.0
        %2250 = vmatpush1.msra.mxu0 %v2156
        %2251 = vmatprep.subr.mxu0 0.0
        %2252 = vmatpush1.msra.mxu0 %v2157
        %2253 = vmatprep.subr.mxu0 0.0
        %2254 = vmatpush1.msra.mxu0 %v2158
        %2255 = vmatprep.subr.mxu0 0.0
        %2256 = vmatpush1.msra.mxu0 %v2159
        %2257 = vmatprep.subr.mxu0 0.0
        %2258 = vmatpush1.msra.mxu0 0.0
        %2259 = vmatprep.subr.mxu0 0.0
        %2260 = vmatpush1.msra.mxu0 0.0
        %2261 = vmatprep.subr.mxu0 0.0
        %2262 = vmatpush1.msra.mxu0 0.0
        %2263 = vmatprep.subr.mxu0 0.0
        %2264 = vmatpush1.msra.mxu0 0.0
        %2265 = vmatprep.subr.mxu0 0.0
        %2266 = vmatpush1.msra.mxu0 0.0
        %2267 = vmatprep.subr.mxu0 0.0
        %2268 = vmatpush1.msra.mxu0 0.0
        %2269 = vmatprep.subr.mxu0 0.0
        %2270 = vmatpush1.msra.mxu0 0.0
        %2271 = vmatprep.subr.mxu0 0.0
        %2272 = vmatpush1.msra.mxu0 0.0
        %2273 = vmatprep.subr.mxu0 0.0
        %2274 = vmatpush1.msra.mxu0 0.0
        %2275 = vmatprep.subr.mxu0 0.0
        %2276 = vmatpush1.msra.mxu0 0.0
        %2277 = vmatprep.subr.mxu0 0.0
        %2278 = vmatpush1.msra.mxu0 0.0
        %2279 = vmatprep.subr.mxu0 0.0
        %2280 = vmatpush1.msra.mxu0 0.0
        %2281 = vmatprep.subr.mxu0 0.0
        %2282 = vmatpush1.msra.mxu0 0.0
        %2283 = vmatprep.subr.mxu0 0.0
        %2284 = vmatpush1.msra.mxu0 0.0
        %2285 = vmatprep.subr.mxu0 0.0
        %2286 = vmatpush1.msra.mxu0 0.0
        %2287 = vmatprep.subr.mxu0 0.0
        %2288 = vmatpush1.msra.mxu0 0.0
        %2289 = vmatprep.subr.mxu0 0.0
        %2290 = vmatpush1.msra.mxu0 0.0
        %2291 = vmatprep.subr.mxu0 0.0
        %2292 = vmatpush1.msra.mxu0 0.0
        %2293 = vmatprep.subr.mxu0 0.0
        %2294 = vmatpush1.msra.mxu0 0.0
        %2295 = vmatprep.subr.mxu0 0.0
        %2296 = vmatpush1.msra.mxu0 0.0
        %2297 = vmatprep.subr.mxu0 0.0
        %2298 = vmatpush1.msra.mxu0 0.0
        %2299 = vmatprep.subr.mxu0 0.0
        %2300 = vmatpush1.msra.mxu0 0.0
        %2301 = vmatprep.subr.mxu0 0.0
        %2302 = vmatpush1.msra.mxu0 0.0
        %2303 = vmatprep.subr.mxu0 0.0
        %2304 = vmatpush1.msra.mxu0 0.0
        %2305 = vmatprep.subr.mxu0 0.0
        %2306 = vmatpush1.msra.mxu0 0.0
        %2307 = vmatprep.subr.mxu0 0.0
        %2308 = vmatpush1.msra.mxu0 0.0
        %2309 = vmatprep.subr.mxu0 0.0
        %2310 = vmatpush1.msra.mxu0 0.0
        %2311 = vmatprep.subr.mxu0 0.0
        %2312 = vmatpush1.msra.mxu0 0.0
        %2313 = vmatprep.mubr.f32.mxu0 0.0
        %2314 = vmatmul.mubr.f32.gmra.mrb[0].mxu0 %v369
        %v2315 = vpop.f32.mrb[0].mxu0
        %v2316 = vadd.f32 %v339, %v2315
        %v2317 = vpop.f32.mrb[0].mxu0
        %2318 = vmatprep.mubr.f32.mxu0 0.0
        %2319 = vmatmul.mubr.f32.gmra.mrb[0].mxu0 %v372
        %v2320 = vpop.f32.mrb[0].mxu0
        %v2321 = vadd.f32 %v345, %v2320
        %v2322 = vpop.f32.mrb[0].mxu0
        %2323 = vmatprep.mubr.f32.mxu0 0.0
        %2324 = vmatmul.mubr.f32.gmra.mrb[0].mxu0 %v375
        %v2325 = vpop.f32.mrb[0].mxu0
        %v2326 = vadd.f32 %v351, %v2325
        %v2327 = vpop.f32.mrb[0].mxu0
        %2328 = vmatprep.mubr.f32.mxu0 0.0
        %2329 = vmatmul.mubr.f32.gmra.mrb[0].mxu0 %v378
        %v2330 = vpop.f32.mrb[0].mxu0
        %v2331 = vadd.f32 %v357, %v2330
        %v2332 = vpop.f32.mrb[0].mxu0
        %2333 = vdwg.mxu0
        %v2334 = vmax.f32 %v2316, 0.0
        %v2335 = vmax.f32 %v2321, 0.0
        %v2336 = vmax.f32 %v2326, 0.0
        %v2337 = vmax.f32 %v2331, 0.0
        %2338 = vmatprep.subr.mxu0 0.0
        %2339 = vmatpush1.msra.mxu0 %v2245
        %2340 = vmatprep.subr.mxu0 0.0
        %2341 = vmatpush1.msra.mxu0 %v2246
        %2342 = vmatprep.subr.mxu0 0.0
        %2343 = vmatpush1.msra.mxu0 %v2247
        %2344 = vmatprep.subr.mxu0 0.0
        %2345 = vmatpush1.msra.mxu0 %v2248
        %2346 = vmatprep.subr.mxu0 0.0
        %2347 = vmatpush1.msra.mxu0 0.0
        %2348 = vmatprep.subr.mxu0 0.0
        %2349 = vmatpush1.msra.mxu0 0.0
        %2350 = vmatprep.subr.mxu0 0.0
        %2351 = vmatpush1.msra.mxu0 0.0
        %2352 = vmatprep.subr.mxu0 0.0
        %2353 = vmatpush1.msra.mxu0 0.0
        %2354 = vmatprep.subr.mxu0 0.0
        %2355 = vmatpush1.msra.mxu0 0.0
        %2356 = vmatprep.subr.mxu0 0.0
        %2357 = vmatpush1.msra.mxu0 0.0
        %2358 = vmatprep.subr.mxu0 0.0
        %2359 = vmatpush1.msra.mxu0 0.0
        %2360 = vmatprep.subr.mxu0 0.0
        %2361 = vmatpush1.msra.mxu0 0.0
        %2362 = vmatprep.subr.mxu0 0.0
        %2363 = vmatpush1.msra.mxu0 0.0
        %2364 = vmatprep.subr.mxu0 0.0
        %2365 = vmatpush1.msra.mxu0 0.0
        %2366 = vmatprep.subr.mxu0 0.0
        %2367 = vmatpush1.msra.mxu0 0.0
        %2368 = vmatprep.subr.mxu0 0.0
        %2369 = vmatpush1.msra.mxu0 0.0
        %2370 = vmatprep.subr.mxu0 0.0
        %2371 = vmatpush1.msra.mxu0 0.0
        %2372 = vmatprep.subr.mxu0 0.0
        %2373 = vmatpush1.msra.mxu0 0.0
        %2374 = vmatprep.subr.mxu0 0.0
        %2375 = vmatpush1.msra.mxu0 0.0
        %2376 = vmatprep.subr.mxu0 0.0
        %2377 = vmatpush1.msra.mxu0 0.0
        %2378 = vmatprep.subr.mxu0 0.0
        %2379 = vmatpush1.msra.mxu0 0.0
        %2380 = vmatprep.subr.mxu0 0.0
        %2381 = vmatpush1.msra.mxu0 0.0
        %2382 = vmatprep.subr.mxu0 0.0
        %2383 = vmatpush1.msra.mxu0 0.0
        %2384 = vmatprep.subr.mxu0 0.0
        %2385 = vmatpush1.msra.mxu0 0.0
        %2386 = vmatprep.subr.mxu0 0.0
        %2387 = vmatpush1.msra.mxu0 0.0
        %2388 = vmatprep.subr.mxu0 0.0
        %2389 = vmatpush1.msra.mxu0 0.0
        %2390 = vmatprep.subr.mxu0 0.0
        %2391 = vmatpush1.msra.mxu0 0.0
        %2392 = vmatprep.subr.mxu0 0.0
        %2393 = vmatpush1.msra.mxu0 0.0
        %2394 = vmatprep.subr.mxu0 0.0
        %2395 = vmatpush1.msra.mxu0 0.0
        %2396 = vmatprep.subr.mxu0 0.0
        %2397 = vmatpush1.msra.mxu0 0.0
        %2398 = vmatprep.subr.mxu0 0.0
        %2399 = vmatpush1.msra.mxu0 0.0
        %2400 = vmatprep.subr.mxu0 0.0
        %2401 = vmatpush1.msra.mxu0 0.0
        %2402 = vmatprep.mubr.f32.mxu0 0.0
        %2403 = vmatmul.mubr.f32.gmra.mrb[0].mxu0 %v369
        %v2404 = vpop.f32.mrb[0].mxu0
        %v2405 = vadd.f32 %v337, %v2404
        %v2406 = vpop.f32.mrb[0].mxu0
        %2407 = vmatprep.mubr.f32.mxu0 0.0
        %2408 = vmatmul.mubr.f32.gmra.mrb[0].mxu0 %v372
        %v2409 = vpop.f32.mrb[0].mxu0
        %v2410 = vadd.f32 %v343, %v2409
        %v2411 = vpop.f32.mrb[0].mxu0
        %2412 = vmatprep.mubr.f32.mxu0 0.0
        %2413 = vmatmul.mubr.f32.gmra.mrb[0].mxu0 %v375
        %v2414 = vpop.f32.mrb[0].mxu0
        %v2415 = vadd.f32 %v349, %v2414
        %v2416 = vpop.f32.mrb[0].mxu0
        %2417 = vmatprep.mubr.f32.mxu0 0.0
        %2418 = vmatmul.mubr.f32.gmra.mrb[0].mxu0 %v378
        %v2419 = vpop.f32.mrb[0].mxu0
        %v2420 = vadd.f32 %v355, %v2419
        %v2421 = vpop.f32.mrb[0].mxu0
        %2422 = vdwg.mxu0
        %v2423 = vmax.f32 %v2405, 0.0
        %v2424 = vmax.f32 %v2410, 0.0
        %v2425 = vmax.f32 %v2415, 0.0
        %v2426 = vmax.f32 %v2420, 0.0
        %2427 = vmatprep.subr.mxu0 0.0
        %2428 = vmatpush1.msra.mxu0 %v2334
        %2429 = vmatprep.subr.mxu0 0.0
        %2430 = vmatpush1.msra.mxu0 %v2335
        %2431 = vmatprep.subr.mxu0 0.0
        %2432 = vmatpush1.msra.mxu0 %v2336
        %2433 = vmatprep.subr.mxu0 0.0
        %2434 = vmatpush1.msra.mxu0 %v2337
        %2435 = vmatprep.subr.mxu0 0.0
        %2436 = vmatpush1.msra.mxu0 0.0
        %2437 = vmatprep.subr.mxu0 0.0
        %2438 = vmatpush1.msra.mxu0 0.0
        %2439 = vmatprep.subr.mxu0 0.0
        %2440 = vmatpush1.msra.mxu0 0.0
        %2441 = vmatprep.subr.mxu0 0.0
        %2442 = vmatpush1.msra.mxu0 0.0
        %2443 = vmatprep.subr.mxu0 0.0
        %2444 = vmatpush1.msra.mxu0 0.0
        %2445 = vmatprep.subr.mxu0 0.0
        %2446 = vmatpush1.msra.mxu0 0.0
        %2447 = vmatprep.subr.mxu0 0.0
        %2448 = vmatpush1.msra.mxu0 0.0
        %2449 = vmatprep.subr.mxu0 0.0
        %2450 = vmatpush1.msra.mxu0 0.0
        %2451 = vmatprep.subr.mxu0 0.0
        %2452 = vmatpush1.msra.mxu0 0.0
        %2453 = vmatprep.subr.mxu0 0.0
        %2454 = vmatpush1.msra.mxu0 0.0
        %2455 = vmatprep.subr.mxu0 0.0
        %2456 = vmatpush1.msra.mxu0 0.0
        %2457 = vmatprep.subr.mxu0 0.0
        %2458 = vmatpush1.msra.mxu0 0.0
        %2459 = vmatprep.subr.mxu0 0.0
        %2460 = vmatpush1.msra.mxu0 0.0
        %2461 = vmatprep.subr.mxu0 0.0
        %2462 = vmatpush1.msra.mxu0 0.0
        %2463 = vmatprep.subr.mxu0 0.0
        %2464 = vmatpush1.msra.mxu0 0.0
        %2465 = vmatprep.subr.mxu0 0.0
        %2466 = vmatpush1.msra.mxu0 0.0
        %2467 = vmatprep.subr.mxu0 0.0
        %2468 = vmatpush1.msra.mxu0 0.0
        %2469 = vmatprep.subr.mxu0 0.0
        %2470 = vmatpush1.msra.mxu0 0.0
        %2471 = vmatprep.subr.mxu0 0.0
        %2472 = vmatpush1.msra.mxu0 0.0
        %2473 = vmatprep.subr.mxu0 0.0
        %2474 = vmatpush1.msra.mxu0 0.0
        %2475 = vmatprep.subr.mxu0 0.0
        %2476 = vmatpush1.msra.mxu0 0.0
        %2477 = vmatprep.subr.mxu0 0.0
        %2478 = vmatpush1.msra.mxu0 0.0
        %2479 = vmatprep.subr.mxu0 0.0
        %2480 = vmatpush1.msra.mxu0 0.0
        %2481 = vmatprep.subr.mxu0 0.0
        %2482 = vmatpush1.msra.mxu0 0.0
        %2483 = vmatprep.subr.mxu0 0.0
        %2484 = vmatpush1.msra.mxu0 0.0
        %2485 = vmatprep.subr.mxu0 0.0
        %2486 = vmatpush1.msra.mxu0 0.0
        %2487 = vmatprep.subr.mxu0 0.0
        %2488 = vmatpush1.msra.mxu0 0.0
        %2489 = vmatprep.subr.mxu0 0.0
        %2490 = vmatpush1.msra.mxu0 0.0
        %2491 = vmatprep.mubr.f32.mxu0 0.0
        %2492 = vmatmul.mubr.f32.gmra.mrb[0].mxu0 %v369
        %v2493 = vpop.f32.mrb[0].mxu0
        %v2494 = vadd.f32 %v339, %v2493
        %v2495 = vpop.f32.mrb[0].mxu0
        %2496 = vmatprep.mubr.f32.mxu0 0.0
        %2497 = vmatmul.mubr.f32.gmra.mrb[0].mxu0 %v372
        %v2498 = vpop.f32.mrb[0].mxu0
        %v2499 = vadd.f32 %v345, %v2498
        %v2500 = vpop.f32.mrb[0].mxu0
        %2501 = vmatprep.mubr.f32.mxu0 0.0
        %2502 = vmatmul.mubr.f32.gmra.mrb[0].mxu0 %v375
        %v2503 = vpop.f32.mrb[0].mxu0
        %v2504 = vadd.f32 %v351, %v2503
        %v2505 = vpop.f32.mrb[0].mxu0
        %2506 = vmatprep.mubr.f32.mxu0 0.0
        %2507 = vmatmul.mubr.f32.gmra.mrb[0].mxu0 %v378
        %v2508 = vpop.f32.mrb[0].mxu0
        %v2509 = vadd.f32 %v357, %v2508
        %v2510 = vpop.f32.mrb[0].mxu0
        %2511 = vdwg.mxu0
        %v2512 = vmax.f32 %v2494, 0.0
        %v2513 = vmax.f32 %v2499, 0.0
        %v2514 = vmax.f32 %v2504, 0.0
        %v2515 = vmax.f32 %v2509, 0.0
        %2516 = vmatprep.subr.mxu0 0.0
        %2517 = vmatpush1.msra.mxu0 %v2423
        %2518 = vmatprep.subr.mxu0 0.0
        %2519 = vmatpush1.msra.mxu0 %v2424
        %2520 = vmatprep.subr.mxu0 0.0
        %2521 = vmatpush1.msra.mxu0 %v2425
        %2522 = vmatprep.subr.mxu0 0.0
        %2523 = vmatpush1.msra.mxu0 %v2426
        %2524 = vmatprep.subr.mxu0 0.0
        %2525 = vmatpush1.msra.mxu0 0.0
        %2526 = vmatprep.subr.mxu0 0.0
        %2527 = vmatpush1.msra.mxu0 0.0
        %2528 = vmatprep.subr.mxu0 0.0
        %2529 = vmatpush1.msra.mxu0 0.0
        %2530 = vmatprep.subr.mxu0 0.0
        %2531 = vmatpush1.msra.mxu0 0.0
        %2532 = vmatprep.subr.mxu0 0.0
        %2533 = vmatpush1.msra.mxu0 0.0
        %2534 = vmatprep.subr.mxu0 0.0
        %2535 = vmatpush1.msra.mxu0 0.0
        %2536 = vmatprep.subr.mxu0 0.0
        %2537 = vmatpush1.msra.mxu0 0.0
        %2538 = vmatprep.subr.mxu0 0.0
        %2539 = vmatpush1.msra.mxu0 0.0
        %2540 = vmatprep.subr.mxu0 0.0
        %2541 = vmatpush1.msra.mxu0 0.0
        %2542 = vmatprep.subr.mxu0 0.0
        %2543 = vmatpush1.msra.mxu0 0.0
        %2544 = vmatprep.subr.mxu0 0.0
        %2545 = vmatpush1.msra.mxu0 0.0
        %2546 = vmatprep.subr.mxu0 0.0
        %2547 = vmatpush1.msra.mxu0 0.0
        %2548 = vmatprep.subr.mxu0 0.0
        %2549 = vmatpush1.msra.mxu0 0.0
        %2550 = vmatprep.subr.mxu0 0.0
        %2551 = vmatpush1.msra.mxu0 0.0
        %2552 = vmatprep.subr.mxu0 0.0
        %2553 = vmatpush1.msra.mxu0 0.0
        %2554 = vmatprep.subr.mxu0 0.0
        %2555 = vmatpush1.msra.mxu0 0.0
        %2556 = vmatprep.subr.mxu0 0.0
        %2557 = vmatpush1.msra.mxu0 0.0
        %2558 = vmatprep.subr.mxu0 0.0
        %2559 = vmatpush1.msra.mxu0 0.0
        %2560 = vmatprep.subr.mxu0 0.0
        %2561 = vmatpush1.msra.mxu0 0.0
        %2562 = vmatprep.subr.mxu0 0.0
        %2563 = vmatpush1.msra.mxu0 0.0
        %2564 = vmatprep.subr.mxu0 0.0
        %2565 = vmatpush1.msra.mxu0 0.0
        %2566 = vmatprep.subr.mxu0 0.0
        %2567 = vmatpush1.msra.mxu0 0.0
        %2568 = vmatprep.subr.mxu0 0.0
        %2569 = vmatpush1.msra.mxu0 0.0
        %2570 = vmatprep.subr.mxu0 0.0
        %2571 = vmatpush1.msra.mxu0 0.0
        %2572 = vmatprep.subr.mxu0 0.0
        %2573 = vmatpush1.msra.mxu0 0.0
        %2574 = vmatprep.subr.mxu0 0.0
        %2575 = vmatpush1.msra.mxu0 0.0
        %2576 = vmatprep.subr.mxu0 0.0
        %2577 = vmatpush1.msra.mxu0 0.0
        %2578 = vmatprep.subr.mxu0 0.0
        %2579 = vmatpush1.msra.mxu0 0.0
        %2580 = vmatprep.mubr.f32.mxu0 0.0
        %2581 = vmatmul.mubr.f32.gmra.mrb[0].mxu0 %v369
        %v2582 = vpop.f32.mrb[0].mxu0
        %v2583 = vadd.f32 %v337, %v2582
        %v2584 = vpop.f32.mrb[0].mxu0
        %2585 = vmatprep.mubr.f32.mxu0 0.0
        %2586 = vmatmul.mubr.f32.gmra.mrb[0].mxu0 %v372
        %v2587 = vpop.f32.mrb[0].mxu0
        %v2588 = vadd.f32 %v343, %v2587
        %v2589 = vpop.f32.mrb[0].mxu0
        %2590 = vmatprep.mubr.f32.mxu0 0.0
        %2591 = vmatmul.mubr.f32.gmra.mrb[0].mxu0 %v375
        %v2592 = vpop.f32.mrb[0].mxu0
        %v2593 = vadd.f32 %v349, %v2592
        %v2594 = vpop.f32.mrb[0].mxu0
        %2595 = vmatprep.mubr.f32.mxu0 0.0
        %2596 = vmatmul.mubr.f32.gmra.mrb[0].mxu0 %v378
        %v2597 = vpop.f32.mrb[0].mxu0
        %v2598 = vadd.f32 %v355, %v2597
        %v2599 = vpop.f32.mrb[0].mxu0
        %2600 = vdwg.mxu0
        %v2601 = vmax.f32 %v2583, 0.0
        %v2602 = vmax.f32 %v2588, 0.0
        %v2603 = vmax.f32 %v2593, 0.0
        %v2604 = vmax.f32 %v2598, 0.0
        %2605 = vmatprep.subr.mxu0 0.0
        %2606 = vmatpush1.msra.mxu0 %v2512
        %2607 = vmatprep.subr.mxu0 0.0
        %2608 = vmatpush1.msra.mxu0 %v2513
        %2609 = vmatprep.subr.mxu0 0.0
        %2610 = vmatpush1.msra.mxu0 %v2514
        %2611 = vmatprep.subr.mxu0 0.0
        %2612 = vmatpush1.msra.mxu0 %v2515
        %2613 = vmatprep.subr.mxu0 0.0
        %2614 = vmatpush1.msra.mxu0 0.0
        %2615 = vmatprep.subr.mxu0 0.0
        %2616 = vmatpush1.msra.mxu0 0.0
        %2617 = vmatprep.subr.mxu0 0.0
        %2618 = vmatpush1.msra.mxu0 0.0
        %2619 = vmatprep.subr.mxu0 0.0
        %2620 = vmatpush1.msra.mxu0 0.0
        %2621 = vmatprep.subr.mxu0 0.0
        %2622 = vmatpush1.msra.mxu0 0.0
        %2623 = vmatprep.subr.mxu0 0.0
        %2624 = vmatpush1.msra.mxu0 0.0
        %2625 = vmatprep.subr.mxu0 0.0
        %2626 = vmatpush1.msra.mxu0 0.0
        %2627 = vmatprep.subr.mxu0 0.0
        %2628 = vmatpush1.msra.mxu0 0.0
        %2629 = vmatprep.subr.mxu0 0.0
        %2630 = vmatpush1.msra.mxu0 0.0
        %2631 = vmatprep.subr.mxu0 0.0
        %2632 = vmatpush1.msra.mxu0 0.0
        %2633 = vmatprep.subr.mxu0 0.0
        %2634 = vmatpush1.msra.mxu0 0.0
        %2635 = vmatprep.subr.mxu0 0.0
        %2636 = vmatpush1.msra.mxu0 0.0
        %2637 = vmatprep.subr.mxu0 0.0
        %2638 = vmatpush1.msra.mxu0 0.0
        %2639 = vmatprep.subr.mxu0 0.0
        %2640 = vmatpush1.msra.mxu0 0.0
        %2641 = vmatprep.subr.mxu0 0.0
        %2642 = vmatpush1.msra.mxu0 0.0
        %2643 = vmatprep.subr.mxu0 0.0
        %2644 = vmatpush1.msra.mxu0 0.0
        %2645 = vmatprep.subr.mxu0 0.0
        %2646 = vmatpush1.msra.mxu0 0.0
        %2647 = vmatprep.subr.mxu0 0.0
        %2648 = vmatpush1.msra.mxu0 0.0
        %2649 = vmatprep.subr.mxu0 0.0
        %2650 = vmatpush1.msra.mxu0 0.0
        %2651 = vmatprep.subr.mxu0 0.0
        %2652 = vmatpush1.msra.mxu0 0.0
        %2653 = vmatprep.subr.mxu0 0.0
        %2654 = vmatpush1.msra.mxu0 0.0
        %2655 = vmatprep.subr.mxu0 0.0
        %2656 = vmatpush1.msra.mxu0 0.0
        %2657 = vmatprep.subr.mxu0 0.0
        %2658 = vmatpush1.msra.mxu0 0.0
        %2659 = vmatprep.subr.mxu0 0.0
        %2660 = vmatpush1.msra.mxu0 0.0
        %2661 = vmatprep.subr.mxu0 0.0
        %2662 = vmatpush1.msra.mxu0 0.0
        %2663 = vmatprep.subr.mxu0 0.0
        %2664 = vmatpush1.msra.mxu0 0.0
        %2665 = vmatprep.subr.mxu0 0.0
        %2666 = vmatpush1.msra.mxu0 0.0
        %2667 = vmatprep.subr.mxu0 0.0
        %2668 = vmatpush1.msra.mxu0 0.0
        %2669 = vmatprep.mubr.f32.mxu0 0.0
        %2670 = vmatmul.mubr.f32.gmra.mrb[0].mxu0 %v369
        %v2671 = vpop.f32.mrb[0].mxu0
        %v2672 = vadd.f32 %v339, %v2671
        %v2673 = vpop.f32.mrb[0].mxu0
        %2674 = vmatprep.mubr.f32.mxu0 0.0
        %2675 = vmatmul.mubr.f32.gmra.mrb[0].mxu0 %v372
        %v2676 = vpop.f32.mrb[0].mxu0
        %v2677 = vadd.f32 %v345, %v2676
        %v2678 = vpop.f32.mrb[0].mxu0
        %2679 = vmatprep.mubr.f32.mxu0 0.0
        %2680 = vmatmul.mubr.f32.gmra.mrb[0].mxu0 %v375
        %v2681 = vpop.f32.mrb[0].mxu0
        %v2682 = vadd.f32 %v351, %v2681
        %v2683 = vpop.f32.mrb[0].mxu0
        %2684 = vmatprep.mubr.f32.mxu0 0.0
        %2685 = vmatmul.mubr.f32.gmra.mrb[0].mxu0 %v378
        %v2686 = vpop.f32.mrb[0].mxu0
        %v2687 = vadd.f32 %v357, %v2686
        %v2688 = vpop.f32.mrb[0].mxu0
        %2689 = vdwg.mxu0
        %v2690 = vmax.f32 %v2672, 0.0
        %v2691 = vmax.f32 %v2677, 0.0
        %v2692 = vmax.f32 %v2682, 0.0
        %v2693 = vmax.f32 %v2687, 0.0
        %2694 = vmatprep.subr.mxu0 0.0
        %2695 = vmatpush1.msra.mxu0 %v2601
        %2696 = vmatprep.subr.mxu0 0.0
        %2697 = vmatpush1.msra.mxu0 %v2602
        %2698 = vmatprep.subr.mxu0 0.0
        %2699 = vmatpush1.msra.mxu0 %v2603
        %2700 = vmatprep.subr.mxu0 0.0
        %2701 = vmatpush1.msra.mxu0 %v2604
        %2702 = vmatprep.subr.mxu0 0.0
        %2703 = vmatpush1.msra.mxu0 0.0
        %2704 = vmatprep.subr.mxu0 0.0
        %2705 = vmatpush1.msra.mxu0 0.0
        %2706 = vmatprep.subr.mxu0 0.0
        %2707 = vmatpush1.msra.mxu0 0.0
        %2708 = vmatprep.subr.mxu0 0.0
        %2709 = vmatpush1.msra.mxu0 0.0
        %2710 = vmatprep.subr.mxu0 0.0
        %2711 = vmatpush1.msra.mxu0 0.0
        %2712 = vmatprep.subr.mxu0 0.0
        %2713 = vmatpush1.msra.mxu0 0.0
        %2714 = vmatprep.subr.mxu0 0.0
        %2715 = vmatpush1.msra.mxu0 0.0
        %2716 = vmatprep.subr.mxu0 0.0
        %2717 = vmatpush1.msra.mxu0 0.0
        %2718 = vmatprep.subr.mxu0 0.0
        %2719 = vmatpush1.msra.mxu0 0.0
        %2720 = vmatprep.subr.mxu0 0.0
        %2721 = vmatpush1.msra.mxu0 0.0
        %2722 = vmatprep.subr.mxu0 0.0
        %2723 = vmatpush1.msra.mxu0 0.0
        %2724 = vmatprep.subr.mxu0 0.0
        %2725 = vmatpush1.msra.mxu0 0.0
        %2726 = vmatprep.subr.mxu0 0.0
        %2727 = vmatpush1.msra.mxu0 0.0
        %2728 = vmatprep.subr.mxu0 0.0
        %2729 = vmatpush1.msra.mxu0 0.0
        %2730 = vmatprep.subr.mxu0 0.0
        %2731 = vmatpush1.msra.mxu0 0.0
        %2732 = vmatprep.subr.mxu0 0.0
        %2733 = vmatpush1.msra.mxu0 0.0
        %2734 = vmatprep.subr.mxu0 0.0
        %2735 = vmatpush1.msra.mxu0 0.0
        %2736 = vmatprep.subr.mxu0 0.0
        %2737 = vmatpush1.msra.mxu0 0.0
        %2738 = vmatprep.subr.mxu0 0.0
        %2739 = vmatpush1.msra.mxu0 0.0
        %2740 = vmatprep.subr.mxu0 0.0
        %2741 = vmatpush1.msra.mxu0 0.0
        %2742 = vmatprep.subr.mxu0 0.0
        %2743 = vmatpush1.msra.mxu0 0.0
        %2744 = vmatprep.subr.mxu0 0.0
        %2745 = vmatpush1.msra.mxu0 0.0
        %2746 = vmatprep.subr.mxu0 0.0
        %2747 = vmatpush1.msra.mxu0 0.0
        %2748 = vmatprep.subr.mxu0 0.0
        %2749 = vmatpush1.msra.mxu0 0.0
        %2750 = vmatprep.subr.mxu0 0.0
        %2751 = vmatpush1.msra.mxu0 0.0
        %2752 = vmatprep.subr.mxu0 0.0
        %2753 = vmatpush1.msra.mxu0 0.0
        %2754 = vmatprep.subr.mxu0 0.0
        %2755 = vmatpush1.msra.mxu0 0.0
        %2756 = vmatprep.subr.mxu0 0.0
        %2757 = vmatpush1.msra.mxu0 0.0
        %2758 = vmatprep.mubr.f32.mxu0 0.0
        %2759 = vmatmul.mubr.f32.gmra.mrb[0].mxu0 %v369
        %v2760 = vpop.f32.mrb[0].mxu0
        %v2761 = vadd.f32 %v337, %v2760
        %v2762 = vpop.f32.mrb[0].mxu0
        %2763 = vmatprep.mubr.f32.mxu0 0.0
        %2764 = vmatmul.mubr.f32.gmra.mrb[0].mxu0 %v372
        %v2765 = vpop.f32.mrb[0].mxu0
        %v2766 = vadd.f32 %v343, %v2765
        %v2767 = vpop.f32.mrb[0].mxu0
        %2768 = vmatprep.mubr.f32.mxu0 0.0
        %2769 = vmatmul.mubr.f32.gmra.mrb[0].mxu0 %v375
        %v2770 = vpop.f32.mrb[0].mxu0
        %v2771 = vadd.f32 %v349, %v2770
        %v2772 = vpop.f32.mrb[0].mxu0
        %2773 = vmatprep.mubr.f32.mxu0 0.0
        %2774 = vmatmul.mubr.f32.gmra.mrb[0].mxu0 %v378
        %v2775 = vpop.f32.mrb[0].mxu0
        %v2776 = vadd.f32 %v355, %v2775
        %v2777 = vpop.f32.mrb[0].mxu0
        %2778 = vdwg.mxu0
        %v2779 = vmax.f32 %v2761, 0.0
        %v2780 = vmax.f32 %v2766, 0.0
        %v2781 = vmax.f32 %v2771, 0.0
        %v2782 = vmax.f32 %v2776, 0.0
        %2783 = vmatprep.subr.mxu0 0.0
        %2784 = vmatpush1.msra.mxu0 %v2690
        %2785 = vmatprep.subr.mxu0 0.0
        %2786 = vmatpush1.msra.mxu0 %v2691
        %2787 = vmatprep.subr.mxu0 0.0
        %2788 = vmatpush1.msra.mxu0 %v2692
        %2789 = vmatprep.subr.mxu0 0.0
        %2790 = vmatpush1.msra.mxu0 %v2693
        %2791 = vmatprep.subr.mxu0 0.0
        %2792 = vmatpush1.msra.mxu0 0.0
        %2793 = vmatprep.subr.mxu0 0.0
        %2794 = vmatpush1.msra.mxu0 0.0
        %2795 = vmatprep.subr.mxu0 0.0
        %2796 = vmatpush1.msra.mxu0 0.0
        %2797 = vmatprep.subr.mxu0 0.0
        %2798 = vmatpush1.msra.mxu0 0.0
        %2799 = vmatprep.subr.mxu0 0.0
        %2800 = vmatpush1.msra.mxu0 0.0
        %2801 = vmatprep.subr.mxu0 0.0
        %2802 = vmatpush1.msra.mxu0 0.0
        %2803 = vmatprep.subr.mxu0 0.0
        %2804 = vmatpush1.msra.mxu0 0.0
        %2805 = vmatprep.subr.mxu0 0.0
        %2806 = vmatpush1.msra.mxu0 0.0
        %2807 = vmatprep.subr.mxu0 0.0
        %2808 = vmatpush1.msra.mxu0 0.0
        %2809 = vmatprep.subr.mxu0 0.0
        %2810 = vmatpush1.msra.mxu0 0.0
        %2811 = vmatprep.subr.mxu0 0.0
        %2812 = vmatpush1.msra.mxu0 0.0
        %2813 = vmatprep.subr.mxu0 0.0
        %2814 = vmatpush1.msra.mxu0 0.0
        %2815 = vmatprep.subr.mxu0 0.0
        %2816 = vmatpush1.msra.mxu0 0.0
        %2817 = vmatprep.subr.mxu0 0.0
        %2818 = vmatpush1.msra.mxu0 0.0
        %2819 = vmatprep.subr.mxu0 0.0
        %2820 = vmatpush1.msra.mxu0 0.0
        %2821 = vmatprep.subr.mxu0 0.0
        %2822 = vmatpush1.msra.mxu0 0.0
        %2823 = vmatprep.subr.mxu0 0.0
        %2824 = vmatpush1.msra.mxu0 0.0
        %2825 = vmatprep.subr.mxu0 0.0
        %2826 = vmatpush1.msra.mxu0 0.0
        %2827 = vmatprep.subr.mxu0 0.0
        %2828 = vmatpush1.msra.mxu0 0.0
        %2829 = vmatprep.subr.mxu0 0.0
        %2830 = vmatpush1.msra.mxu0 0.0
        %2831 = vmatprep.subr.mxu0 0.0
        %2832 = vmatpush1.msra.mxu0 0.0
        %2833 = vmatprep.subr.mxu0 0.0
        %2834 = vmatpush1.msra.mxu0 0.0
        %2835 = vmatprep.subr.mxu0 0.0
        %2836 = vmatpush1.msra.mxu0 0.0
        %2837 = vmatprep.subr.mxu0 0.0
        %2838 = vmatpush1.msra.mxu0 0.0
        %2839 = vmatprep.subr.mxu0 0.0
        %2840 = vmatpush1.msra.mxu0 0.0
        %2841 = vmatprep.subr.mxu0 0.0
        %2842 = vmatpush1.msra.mxu0 0.0
        %2843 = vmatprep.subr.mxu0 0.0
        %2844 = vmatpush1.msra.mxu0 0.0
        %2845 = vmatprep.subr.mxu0 0.0
        %2846 = vmatpush1.msra.mxu0 0.0
        %2847 = vmatprep.mubr.f32.mxu0 0.0
        %2848 = vmatmul.mubr.f32.gmra.mrb[0].mxu0 %v369
        %v2849 = vpop.f32.mrb[0].mxu0
        %v2850 = vadd.f32 %v339, %v2849
        %v2851 = vpop.f32.mrb[0].mxu0
        %2852 = vmatprep.mubr.f32.mxu0 0.0
        %2853 = vmatmul.mubr.f32.gmra.mrb[0].mxu0 %v372
        %v2854 = vpop.f32.mrb[0].mxu0
        %v2855 = vadd.f32 %v345, %v2854
        %v2856 = vpop.f32.mrb[0].mxu0
        %2857 = vmatprep.mubr.f32.mxu0 0.0
        %2858 = vmatmul.mubr.f32.gmra.mrb[0].mxu0 %v375
        %v2859 = vpop.f32.mrb[0].mxu0
        %v2860 = vadd.f32 %v351, %v2859
        %v2861 = vpop.f32.mrb[0].mxu0
        %2862 = vmatprep.mubr.f32.mxu0 0.0
        %2863 = vmatmul.mubr.f32.gmra.mrb[0].mxu0 %v378
        %v2864 = vpop.f32.mrb[0].mxu0
        %v2865 = vadd.f32 %v357, %v2864
        %v2866 = vpop.f32.mrb[0].mxu0
        %2867 = vdwg.mxu0
        %v2868 = vmax.f32 %v2850, 0.0
        %v2869 = vmax.f32 %v2855, 0.0
        %v2870 = vmax.f32 %v2860, 0.0
        %v2871 = vmax.f32 %v2865, 0.0
        %2872 = vmatprep.subr.mxu0 0.0
        %2873 = vmatpush1.msra.mxu0 %v2779
        %2874 = vmatprep.subr.mxu0 0.0
        %2875 = vmatpush1.msra.mxu0 %v2780
        %2876 = vmatprep.subr.mxu0 0.0
        %2877 = vmatpush1.msra.mxu0 %v2781
        %2878 = vmatprep.subr.mxu0 0.0
        %2879 = vmatpush1.msra.mxu0 %v2782
        %2880 = vmatprep.subr.mxu0 0.0
        %2881 = vmatpush1.msra.mxu0 0.0
        %2882 = vmatprep.subr.mxu0 0.0
        %2883 = vmatpush1.msra.mxu0 0.0
        %2884 = vmatprep.subr.mxu0 0.0
        %2885 = vmatpush1.msra.mxu0 0.0
        %2886 = vmatprep.subr.mxu0 0.0
        %2887 = vmatpush1.msra.mxu0 0.0
        %2888 = vmatprep.subr.mxu0 0.0
        %2889 = vmatpush1.msra.mxu0 0.0
        %2890 = vmatprep.subr.mxu0 0.0
        %2891 = vmatpush1.msra.mxu0 0.0
        %2892 = vmatprep.subr.mxu0 0.0
        %2893 = vmatpush1.msra.mxu0 0.0
        %2894 = vmatprep.subr.mxu0 0.0
        %2895 = vmatpush1.msra.mxu0 0.0
        %2896 = vmatprep.subr.mxu0 0.0
        %2897 = vmatpush1.msra.mxu0 0.0
        %2898 = vmatprep.subr.mxu0 0.0
        %2899 = vmatpush1.msra.mxu0 0.0
        %2900 = vmatprep.subr.mxu0 0.0
        %2901 = vmatpush1.msra.mxu0 0.0
        %2902 = vmatprep.subr.mxu0 0.0
        %2903 = vmatpush1.msra.mxu0 0.0
        %2904 = vmatprep.subr.mxu0 0.0
        %2905 = vmatpush1.msra.mxu0 0.0
        %2906 = vmatprep.subr.mxu0 0.0
        %2907 = vmatpush1.msra.mxu0 0.0
        %2908 = vmatprep.subr.mxu0 0.0
        %2909 = vmatpush1.msra.mxu0 0.0
        %2910 = vmatprep.subr.mxu0 0.0
        %2911 = vmatpush1.msra.mxu0 0.0
        %2912 = vmatprep.subr.mxu0 0.0
        %2913 = vmatpush1.msra.mxu0 0.0
        %2914 = vmatprep.subr.mxu0 0.0
        %2915 = vmatpush1.msra.mxu0 0.0
        %2916 = vmatprep.subr.mxu0 0.0
        %2917 = vmatpush1.msra.mxu0 0.0
        %2918 = vmatprep.subr.mxu0 0.0
        %2919 = vmatpush1.msra.mxu0 0.0
        %2920 = vmatprep.subr.mxu0 0.0
        %2921 = vmatpush1.msra.mxu0 0.0
        %2922 = vmatprep.subr.mxu0 0.0
        %2923 = vmatpush1.msra.mxu0 0.0
        %2924 = vmatprep.subr.mxu0 0.0
        %2925 = vmatpush1.msra.mxu0 0.0
        %2926 = vmatprep.subr.mxu0 0.0
        %2927 = vmatpush1.msra.mxu0 0.0
        %2928 = vmatprep.subr.mxu0 0.0
        %2929 = vmatpush1.msra.mxu0 0.0
        %2930 = vmatprep.subr.mxu0 0.0
        %2931 = vmatpush1.msra.mxu0 0.0
        %2932 = vmatprep.subr.mxu0 0.0
        %2933 = vmatpush1.msra.mxu0 0.0
        %2934 = vmatprep.subr.mxu0 0.0
        %2935 = vmatpush1.msra.mxu0 0.0
        %2936 = vmatprep.mubr.f32.mxu0 0.0
        %2937 = vmatmul.mubr.f32.gmra.mrb[0].mxu0 %v369
        %v2938 = vpop.f32.mrb[0].mxu0
        %v2939 = vadd.f32 %v337, %v2938
        %v2940 = vpop.f32.mrb[0].mxu0
        %2941 = vmatprep.mubr.f32.mxu0 0.0
        %2942 = vmatmul.mubr.f32.gmra.mrb[0].mxu0 %v372
        %v2943 = vpop.f32.mrb[0].mxu0
        %v2944 = vadd.f32 %v343, %v2943
        %v2945 = vpop.f32.mrb[0].mxu0
        %2946 = vmatprep.mubr.f32.mxu0 0.0
        %2947 = vmatmul.mubr.f32.gmra.mrb[0].mxu0 %v375
        %v2948 = vpop.f32.mrb[0].mxu0
        %v2949 = vadd.f32 %v349, %v2948
        %v2950 = vpop.f32.mrb[0].mxu0
        %2951 = vmatprep.mubr.f32.mxu0 0.0
        %2952 = vmatmul.mubr.f32.gmra.mrb[0].mxu0 %v378
        %v2953 = vpop.f32.mrb[0].mxu0
        %v2954 = vadd.f32 %v355, %v2953
        %v2955 = vpop.f32.mrb[0].mxu0
        %2956 = vdwg.mxu0
        %v2957 = vmax.f32 %v2939, 0.0
        %v2958 = vmax.f32 %v2944, 0.0
        %v2959 = vmax.f32 %v2949, 0.0
        %v2960 = vmax.f32 %v2954, 0.0
        %2961 = vmatprep.subr.mxu0 0.0
        %2962 = vmatpush1.msra.mxu0 %v2868
        %2963 = vmatprep.subr.mxu0 0.0
        %2964 = vmatpush1.msra.mxu0 %v2869
        %2965 = vmatprep.subr.mxu0 0.0
        %2966 = vmatpush1.msra.mxu0 %v2870
        %2967 = vmatprep.subr.mxu0 0.0
        %2968 = vmatpush1.msra.mxu0 %v2871
        %2969 = vmatprep.subr.mxu0 0.0
        %2970 = vmatpush1.msra.mxu0 0.0
        %2971 = vmatprep.subr.mxu0 0.0
        %2972 = vmatpush1.msra.mxu0 0.0
        %2973 = vmatprep.subr.mxu0 0.0
        %2974 = vmatpush1.msra.mxu0 0.0
        %2975 = vmatprep.subr.mxu0 0.0
        %2976 = vmatpush1.msra.mxu0 0.0
        %2977 = vmatprep.subr.mxu0 0.0
        %2978 = vmatpush1.msra.mxu0 0.0
        %2979 = vmatprep.subr.mxu0 0.0
        %2980 = vmatpush1.msra.mxu0 0.0
        %2981 = vmatprep.subr.mxu0 0.0
        %2982 = vmatpush1.msra.mxu0 0.0
        %2983 = vmatprep.subr.mxu0 0.0
        %2984 = vmatpush1.msra.mxu0 0.0
        %2985 = vmatprep.subr.mxu0 0.0
        %2986 = vmatpush1.msra.mxu0 0.0
        %2987 = vmatprep.subr.mxu0 0.0
        %2988 = vmatpush1.msra.mxu0 0.0
        %2989 = vmatprep.subr.mxu0 0.0
        %2990 = vmatpush1.msra.mxu0 0.0
        %2991 = vmatprep.subr.mxu0 0.0
        %2992 = vmatpush1.msra.mxu0 0.0
        %2993 = vmatprep.subr.mxu0 0.0
        %2994 = vmatpush1.msra.mxu0 0.0
        %2995 = vmatprep.subr.mxu0 0.0
        %2996 = vmatpush1.msra.mxu0 0.0
        %2997 = vmatprep.subr.mxu0 0.0
        %2998 = vmatpush1.msra.mxu0 0.0
        %2999 = vmatprep.subr.mxu0 0.0
        %3000 = vmatpush1.msra.mxu0 0.0
        %3001 = vmatprep.subr.mxu0 0.0
        %3002 = vmatpush1.msra.mxu0 0.0
        %3003 = vmatprep.subr.mxu0 0.0
        %3004 = vmatpush1.msra.mxu0 0.0
        %3005 = vmatprep.subr.mxu0 0.0
        %3006 = vmatpush1.msra.mxu0 0.0
        %3007 = vmatprep.subr.mxu0 0.0
        %3008 = vmatpush1.msra.mxu0 0.0
        %3009 = vmatprep.subr.mxu0 0.0
        %3010 = vmatpush1.msra.mxu0 0.0
        %3011 = vmatprep.subr.mxu0 0.0
        %3012 = vmatpush1.msra.mxu0 0.0
        %3013 = vmatprep.subr.mxu0 0.0
        %3014 = vmatpush1.msra.mxu0 0.0
        %3015 = vmatprep.subr.mxu0 0.0
        %3016 = vmatpush1.msra.mxu0 0.0
        %3017 = vmatprep.subr.mxu0 0.0
        %3018 = vmatpush1.msra.mxu0 0.0
        %3019 = vmatprep.subr.mxu0 0.0
        %3020 = vmatpush1.msra.mxu0 0.0
        %3021 = vmatprep.subr.mxu0 0.0
        %3022 = vmatpush1.msra.mxu0 0.0
        %3023 = vmatprep.subr.mxu0 0.0
        %3024 = vmatpush1.msra.mxu0 0.0
        %3025 = vmatprep.mubr.f32.mxu0 0.0
        %3026 = vmatmul.mubr.f32.gmra.mrb[0].mxu0 %v369
        %v3027 = vpop.f32.mrb[0].mxu0
        %v3028 = vadd.f32 %v339, %v3027
        %v3029 = vpop.f32.mrb[0].mxu0
        %3030 = vmatprep.mubr.f32.mxu0 0.0
        %3031 = vmatmul.mubr.f32.gmra.mrb[0].mxu0 %v372
        %v3032 = vpop.f32.mrb[0].mxu0
        %v3033 = vadd.f32 %v345, %v3032
        %v3034 = vpop.f32.mrb[0].mxu0
        %3035 = vmatprep.mubr.f32.mxu0 0.0
        %3036 = vmatmul.mubr.f32.gmra.mrb[0].mxu0 %v375
        %v3037 = vpop.f32.mrb[0].mxu0
        %v3038 = vadd.f32 %v351, %v3037
        %v3039 = vpop.f32.mrb[0].mxu0
        %3040 = vmatprep.mubr.f32.mxu0 0.0
        %3041 = vmatmul.mubr.f32.gmra.mrb[0].mxu0 %v378
        %v3042 = vpop.f32.mrb[0].mxu0
        %v3043 = vadd.f32 %v357, %v3042
        %v3044 = vpop.f32.mrb[0].mxu0
        %3045 = vdwg.mxu0
        %v3046 = vmax.f32 %v3028, 0.0
        %v3047 = vmax.f32 %v3033, 0.0
        %v3048 = vmax.f32 %v3038, 0.0
        %v3049 = vmax.f32 %v3043, 0.0
        %3050 = vmatprep.subr.mxu0 0.0
        %3051 = vmatpush1.msra.mxu0 %v2957
        %3052 = vmatprep.subr.mxu0 0.0
        %3053 = vmatpush1.msra.mxu0 %v2958
        %3054 = vmatprep.subr.mxu0 0.0
        %3055 = vmatpush1.msra.mxu0 %v2959
        %3056 = vmatprep.subr.mxu0 0.0
        %3057 = vmatpush1.msra.mxu0 %v2960
        %3058 = vmatprep.subr.mxu0 0.0
        %3059 = vmatpush1.msra.mxu0 0.0
        %3060 = vmatprep.subr.mxu0 0.0
        %3061 = vmatpush1.msra.mxu0 0.0
        %3062 = vmatprep.subr.mxu0 0.0
        %3063 = vmatpush1.msra.mxu0 0.0
        %3064 = vmatprep.subr.mxu0 0.0
        %3065 = vmatpush1.msra.mxu0 0.0
        %3066 = vmatprep.subr.mxu0 0.0
        %3067 = vmatpush1.msra.mxu0 0.0
        %3068 = vmatprep.subr.mxu0 0.0
        %3069 = vmatpush1.msra.mxu0 0.0
        %3070 = vmatprep.subr.mxu0 0.0
        %3071 = vmatpush1.msra.mxu0 0.0
        %3072 = vmatprep.subr.mxu0 0.0
        %3073 = vmatpush1.msra.mxu0 0.0
        %3074 = vmatprep.subr.mxu0 0.0
        %3075 = vmatpush1.msra.mxu0 0.0
        %3076 = vmatprep.subr.mxu0 0.0
        %3077 = vmatpush1.msra.mxu0 0.0
        %3078 = vmatprep.subr.mxu0 0.0
        %3079 = vmatpush1.msra.mxu0 0.0
        %3080 = vmatprep.subr.mxu0 0.0
        %3081 = vmatpush1.msra.mxu0 0.0
        %3082 = vmatprep.subr.mxu0 0.0
        %3083 = vmatpush1.msra.mxu0 0.0
        %3084 = vmatprep.subr.mxu0 0.0
        %3085 = vmatpush1.msra.mxu0 0.0
        %3086 = vmatprep.subr.mxu0 0.0
        %3087 = vmatpush1.msra.mxu0 0.0
        %3088 = vmatprep.subr.mxu0 0.0
        %3089 = vmatpush1.msra.mxu0 0.0
        %3090 = vmatprep.subr.mxu0 0.0
        %3091 = vmatpush1.msra.mxu0 0.0
        %3092 = vmatprep.subr.mxu0 0.0
        %3093 = vmatpush1.msra.mxu0 0.0
        %3094 = vmatprep.subr.mxu0 0.0
        %3095 = vmatpush1.msra.mxu0 0.0
        %3096 = vmatprep.subr.mxu0 0.0
        %3097 = vmatpush1.msra.mxu0 0.0
        %3098 = vmatprep.subr.mxu0 0.0
        %3099 = vmatpush1.msra.mxu0 0.0
        %3100 = vmatprep.subr.mxu0 0.0
        %3101 = vmatpush1.msra.mxu0 0.0
        %3102 = vmatprep.subr.mxu0 0.0
        %3103 = vmatpush1.msra.mxu0 0.0
        %3104 = vmatprep.subr.mxu0 0.0
        %3105 = vmatpush1.msra.mxu0 0.0
        %3106 = vmatprep.subr.mxu0 0.0
        %3107 = vmatpush1.msra.mxu0 0.0
        %3108 = vmatprep.subr.mxu0 0.0
        %3109 = vmatpush1.msra.mxu0 0.0
        %3110 = vmatprep.subr.mxu0 0.0
        %3111 = vmatpush1.msra.mxu0 0.0
        %3112 = vmatprep.subr.mxu0 0.0
        %3113 = vmatpush1.msra.mxu0 0.0
        %3114 = vmatprep.mubr.f32.mxu0 0.0
        %3115 = vmatmul.mubr.f32.gmra.mrb[0].mxu0 %v369
        %v3116 = vpop.f32.mrb[0].mxu0
        %v3117 = vadd.f32 %v337, %v3116
        %v3118 = vpop.f32.mrb[0].mxu0
        %3119 = vmatprep.mubr.f32.mxu0 0.0
        %3120 = vmatmul.mubr.f32.gmra.mrb[0].mxu0 %v372
        %v3121 = vpop.f32.mrb[0].mxu0
        %v3122 = vadd.f32 %v343, %v3121
        %v3123 = vpop.f32.mrb[0].mxu0
        %3124 = vmatprep.mubr.f32.mxu0 0.0
        %3125 = vmatmul.mubr.f32.gmra.mrb[0].mxu0 %v375
        %v3126 = vpop.f32.mrb[0].mxu0
        %v3127 = vadd.f32 %v349, %v3126
        %v3128 = vpop.f32.mrb[0].mxu0
        %3129 = vmatprep.mubr.f32.mxu0 0.0
        %3130 = vmatmul.mubr.f32.gmra.mrb[0].mxu0 %v378
        %v3131 = vpop.f32.mrb[0].mxu0
        %v3132 = vadd.f32 %v355, %v3131
        %v3133 = vpop.f32.mrb[0].mxu0
        %3134 = vdwg.mxu0
        %v3135 = vmax.f32 %v3117, 0.0
        %v3136 = vmax.f32 %v3122, 0.0
        %v3137 = vmax.f32 %v3127, 0.0
        %v3138 = vmax.f32 %v3132, 0.0
        %3139 = vmatprep.subr.mxu0 0.0
        %3140 = vmatpush1.msra.mxu0 %v3046
        %3141 = vmatprep.subr.mxu0 0.0
        %3142 = vmatpush1.msra.mxu0 %v3047
        %3143 = vmatprep.subr.mxu0 0.0
        %3144 = vmatpush1.msra.mxu0 %v3048
        %3145 = vmatprep.subr.mxu0 0.0
        %3146 = vmatpush1.msra.mxu0 %v3049
        %3147 = vmatprep.subr.mxu0 0.0
        %3148 = vmatpush1.msra.mxu0 0.0
        %3149 = vmatprep.subr.mxu0 0.0
        %3150 = vmatpush1.msra.mxu0 0.0
        %3151 = vmatprep.subr.mxu0 0.0
        %3152 = vmatpush1.msra.mxu0 0.0
        %3153 = vmatprep.subr.mxu0 0.0
        %3154 = vmatpush1.msra.mxu0 0.0
        %3155 = vmatprep.subr.mxu0 0.0
        %3156 = vmatpush1.msra.mxu0 0.0
        %3157 = vmatprep.subr.mxu0 0.0
        %3158 = vmatpush1.msra.mxu0 0.0
        %3159 = vmatprep.subr.mxu0 0.0
        %3160 = vmatpush1.msra.mxu0 0.0
        %3161 = vmatprep.subr.mxu0 0.0
        %3162 = vmatpush1.msra.mxu0 0.0
        %3163 = vmatprep.subr.mxu0 0.0
        %3164 = vmatpush1.msra.mxu0 0.0
        %3165 = vmatprep.subr.mxu0 0.0
        %3166 = vmatpush1.msra.mxu0 0.0
        %3167 = vmatprep.subr.mxu0 0.0
        %3168 = vmatpush1.msra.mxu0 0.0
        %3169 = vmatprep.subr.mxu0 0.0
        %3170 = vmatpush1.msra.mxu0 0.0
        %3171 = vmatprep.subr.mxu0 0.0
        %3172 = vmatpush1.msra.mxu0 0.0
        %3173 = vmatprep.subr.mxu0 0.0
        %3174 = vmatpush1.msra.mxu0 0.0
        %3175 = vmatprep.subr.mxu0 0.0
        %3176 = vmatpush1.msra.mxu0 0.0
        %3177 = vmatprep.subr.mxu0 0.0
        %3178 = vmatpush1.msra.mxu0 0.0
        %3179 = vmatprep.subr.mxu0 0.0
        %3180 = vmatpush1.msra.mxu0 0.0
        %3181 = vmatprep.subr.mxu0 0.0
        %3182 = vmatpush1.msra.mxu0 0.0
        %3183 = vmatprep.subr.mxu0 0.0
        %3184 = vmatpush1.msra.mxu0 0.0
        %3185 = vmatprep.subr.mxu0 0.0
        %3186 = vmatpush1.msra.mxu0 0.0
        %3187 = vmatprep.subr.mxu0 0.0
        %3188 = vmatpush1.msra.mxu0 0.0
        %3189 = vmatprep.subr.mxu0 0.0
        %3190 = vmatpush1.msra.mxu0 0.0
        %3191 = vmatprep.subr.mxu0 0.0
        %3192 = vmatpush1.msra.mxu0 0.0
        %3193 = vmatprep.subr.mxu0 0.0
        %3194 = vmatpush1.msra.mxu0 0.0
        %3195 = vmatprep.subr.mxu0 0.0
        %3196 = vmatpush1.msra.mxu0 0.0
        %3197 = vmatprep.subr.mxu0 0.0
        %3198 = vmatpush1.msra.mxu0 0.0
        %3199 = vmatprep.subr.mxu0 0.0
        %3200 = vmatpush1.msra.mxu0 0.0
        %3201 = vmatprep.subr.mxu0 0.0
        %3202 = vmatpush1.msra.mxu0 0.0
        %3203 = vmatprep.mubr.f32.mxu0 0.0
        %3204 = vmatmul.mubr.f32.gmra.mrb[0].mxu0 %v369
        %v3205 = vpop.f32.mrb[0].mxu0
        %v3206 = vadd.f32 %v339, %v3205
        %v3207 = vpop.f32.mrb[0].mxu0
        %3208 = vmatprep.mubr.f32.mxu0 0.0
        %3209 = vmatmul.mubr.f32.gmra.mrb[0].mxu0 %v372
        %v3210 = vpop.f32.mrb[0].mxu0
        %v3211 = vadd.f32 %v345, %v3210
        %v3212 = vpop.f32.mrb[0].mxu0
        %3213 = vmatprep.mubr.f32.mxu0 0.0
        %3214 = vmatmul.mubr.f32.gmra.mrb[0].mxu0 %v375
        %v3215 = vpop.f32.mrb[0].mxu0
        %v3216 = vadd.f32 %v351, %v3215
        %v3217 = vpop.f32.mrb[0].mxu0
        %3218 = vmatprep.mubr.f32.mxu0 0.0
        %3219 = vmatmul.mubr.f32.gmra.mrb[0].mxu0 %v378
        %v3220 = vpop.f32.mrb[0].mxu0
        %v3221 = vadd.f32 %v357, %v3220
        %v3222 = vpop.f32.mrb[0].mxu0
        %3223 = vdwg.mxu0
        %v3224 = vmax.f32 %v3206, 0.0
        %v3225 = vmax.f32 %v3211, 0.0
        %v3226 = vmax.f32 %v3216, 0.0
        %v3227 = vmax.f32 %v3221, 0.0
        %3228 = vmatprep.subr.mxu0 0.0
        %3229 = vmatpush1.msra.mxu0 %v3135
        %3230 = vmatprep.subr.mxu0 0.0
        %3231 = vmatpush1.msra.mxu0 %v3136
        %3232 = vmatprep.subr.mxu0 0.0
        %3233 = vmatpush1.msra.mxu0 %v3137
        %3234 = vmatprep.subr.mxu0 0.0
        %3235 = vmatpush1.msra.mxu0 %v3138
        %3236 = vmatprep.subr.mxu0 0.0
        %3237 = vmatpush1.msra.mxu0 0.0
        %3238 = vmatprep.subr.mxu0 0.0
        %3239 = vmatpush1.msra.mxu0 0.0
        %3240 = vmatprep.subr.mxu0 0.0
        %3241 = vmatpush1.msra.mxu0 0.0
        %3242 = vmatprep.subr.mxu0 0.0
        %3243 = vmatpush1.msra.mxu0 0.0
        %3244 = vmatprep.subr.mxu0 0.0
        %3245 = vmatpush1.msra.mxu0 0.0
        %3246 = vmatprep.subr.mxu0 0.0
        %3247 = vmatpush1.msra.mxu0 0.0
        %3248 = vmatprep.subr.mxu0 0.0
        %3249 = vmatpush1.msra.mxu0 0.0
        %3250 = vmatprep.subr.mxu0 0.0
        %3251 = vmatpush1.msra.mxu0 0.0
        %3252 = vmatprep.subr.mxu0 0.0
        %3253 = vmatpush1.msra.mxu0 0.0
        %3254 = vmatprep.subr.mxu0 0.0
        %3255 = vmatpush1.msra.mxu0 0.0
        %3256 = vmatprep.subr.mxu0 0.0
        %3257 = vmatpush1.msra.mxu0 0.0
        %3258 = vmatprep.subr.mxu0 0.0
        %3259 = vmatpush1.msra.mxu0 0.0
        %3260 = vmatprep.subr.mxu0 0.0
        %3261 = vmatpush1.msra.mxu0 0.0
        %3262 = vmatprep.subr.mxu0 0.0
        %3263 = vmatpush1.msra.mxu0 0.0
        %3264 = vmatprep.subr.mxu0 0.0
        %3265 = vmatpush1.msra.mxu0 0.0
        %3266 = vmatprep.subr.mxu0 0.0
        %3267 = vmatpush1.msra.mxu0 0.0
        %3268 = vmatprep.subr.mxu0 0.0
        %3269 = vmatpush1.msra.mxu0 0.0
        %3270 = vmatprep.subr.mxu0 0.0
        %3271 = vmatpush1.msra.mxu0 0.0
        %3272 = vmatprep.subr.mxu0 0.0
        %3273 = vmatpush1.msra.mxu0 0.0
        %3274 = vmatprep.subr.mxu0 0.0
        %3275 = vmatpush1.msra.mxu0 0.0
        %3276 = vmatprep.subr.mxu0 0.0
        %3277 = vmatpush1.msra.mxu0 0.0
        %3278 = vmatprep.subr.mxu0 0.0
        %3279 = vmatpush1.msra.mxu0 0.0
        %3280 = vmatprep.subr.mxu0 0.0
        %3281 = vmatpush1.msra.mxu0 0.0
        %3282 = vmatprep.subr.mxu0 0.0
        %3283 = vmatpush1.msra.mxu0 0.0
        %3284 = vmatprep.subr.mxu0 0.0
        %3285 = vmatpush1.msra.mxu0 0.0
        %3286 = vmatprep.subr.mxu0 0.0
        %3287 = vmatpush1.msra.mxu0 0.0
        %3288 = vmatprep.subr.mxu0 0.0
        %3289 = vmatpush1.msra.mxu0 0.0
        %3290 = vmatprep.subr.mxu0 0.0
        %3291 = vmatpush1.msra.mxu0 0.0
        %3292 = vmatprep.mubr.f32.mxu0 0.0
        %3293 = vmatmul.mubr.f32.gmra.mrb[0].mxu0 %v369
        %v3294 = vpop.f32.mrb[0].mxu0
        %v3295 = vadd.f32 %v337, %v3294
        %v3296 = vpop.f32.mrb[0].mxu0
        %3297 = vmatprep.mubr.f32.mxu0 0.0
        %3298 = vmatmul.mubr.f32.gmra.mrb[0].mxu0 %v372
        %v3299 = vpop.f32.mrb[0].mxu0
        %v3300 = vadd.f32 %v343, %v3299
        %v3301 = vpop.f32.mrb[0].mxu0
        %3302 = vmatprep.mubr.f32.mxu0 0.0
        %3303 = vmatmul.mubr.f32.gmra.mrb[0].mxu0 %v375
        %v3304 = vpop.f32.mrb[0].mxu0
        %v3305 = vadd.f32 %v349, %v3304
        %v3306 = vpop.f32.mrb[0].mxu0
        %3307 = vmatprep.mubr.f32.mxu0 0.0
        %3308 = vmatmul.mubr.f32.gmra.mrb[0].mxu0 %v378
        %v3309 = vpop.f32.mrb[0].mxu0
        %v3310 = vadd.f32 %v355, %v3309
        %v3311 = vpop.f32.mrb[0].mxu0
        %3312 = vdwg.mxu0
        %v3313 = vmax.f32 %v3295, 0.0
        %v3314 = vmax.f32 %v3300, 0.0
        %v3315 = vmax.f32 %v3305, 0.0
        %v3316 = vmax.f32 %v3310, 0.0
        %3317 = vmatprep.subr.mxu0 0.0
        %3318 = vmatpush1.msra.mxu0 %v3224
        %3319 = vmatprep.subr.mxu0 0.0
        %3320 = vmatpush1.msra.mxu0 %v3225
        %3321 = vmatprep.subr.mxu0 0.0
        %3322 = vmatpush1.msra.mxu0 %v3226
        %3323 = vmatprep.subr.mxu0 0.0
        %3324 = vmatpush1.msra.mxu0 %v3227
        %3325 = vmatprep.subr.mxu0 0.0
        %3326 = vmatpush1.msra.mxu0 0.0
        %3327 = vmatprep.subr.mxu0 0.0
        %3328 = vmatpush1.msra.mxu0 0.0
        %3329 = vmatprep.subr.mxu0 0.0
        %3330 = vmatpush1.msra.mxu0 0.0
        %3331 = vmatprep.subr.mxu0 0.0
        %3332 = vmatpush1.msra.mxu0 0.0
        %3333 = vmatprep.subr.mxu0 0.0
        %3334 = vmatpush1.msra.mxu0 0.0
        %3335 = vmatprep.subr.mxu0 0.0
        %3336 = vmatpush1.msra.mxu0 0.0
        %3337 = vmatprep.subr.mxu0 0.0
        %3338 = vmatpush1.msra.mxu0 0.0
        %3339 = vmatprep.subr.mxu0 0.0
        %3340 = vmatpush1.msra.mxu0 0.0
        %3341 = vmatprep.subr.mxu0 0.0
        %3342 = vmatpush1.msra.mxu0 0.0
        %3343 = vmatprep.subr.mxu0 0.0
        %3344 = vmatpush1.msra.mxu0 0.0
        %3345 = vmatprep.subr.mxu0 0.0
        %3346 = vmatpush1.msra.mxu0 0.0
        %3347 = vmatprep.subr.mxu0 0.0
        %3348 = vmatpush1.msra.mxu0 0.0
        %3349 = vmatprep.subr.mxu0 0.0
        %3350 = vmatpush1.msra.mxu0 0.0
        %3351 = vmatprep.subr.mxu0 0.0
        %3352 = vmatpush1.msra.mxu0 0.0
        %3353 = vmatprep.subr.mxu0 0.0
        %3354 = vmatpush1.msra.mxu0 0.0
        %3355 = vmatprep.subr.mxu0 0.0
        %3356 = vmatpush1.msra.mxu0 0.0
        %3357 = vmatprep.subr.mxu0 0.0
        %3358 = vmatpush1.msra.mxu0 0.0
        %3359 = vmatprep.subr.mxu0 0.0
        %3360 = vmatpush1.msra.mxu0 0.0
        %3361 = vmatprep.subr.mxu0 0.0
        %3362 = vmatpush1.msra.mxu0 0.0
        %3363 = vmatprep.subr.mxu0 0.0
        %3364 = vmatpush1.msra.mxu0 0.0
        %3365 = vmatprep.subr.mxu0 0.0
        %3366 = vmatpush1.msra.mxu0 0.0
        %3367 = vmatprep.subr.mxu0 0.0
        %3368 = vmatpush1.msra.mxu0 0.0
        %3369 = vmatprep.subr.mxu0 0.0
        %3370 = vmatpush1.msra.mxu0 0.0
        %3371 = vmatprep.subr.mxu0 0.0
        %3372 = vmatpush1.msra.mxu0 0.0
        %3373 = vmatprep.subr.mxu0 0.0
        %3374 = vmatpush1.msra.mxu0 0.0
        %3375 = vmatprep.subr.mxu0 0.0
        %3376 = vmatpush1.msra.mxu0 0.0
        %3377 = vmatprep.subr.mxu0 0.0
        %3378 = vmatpush1.msra.mxu0 0.0
        %3379 = vmatprep.subr.mxu0 0.0
        %3380 = vmatpush1.msra.mxu0 0.0
        %3381 = vmatprep.mubr.f32.mxu0 0.0
        %3382 = vmatmul.mubr.f32.gmra.mrb[0].mxu0 %v369
        %v3383 = vpop.f32.mrb[0].mxu0
        %v3384 = vadd.f32 %v339, %v3383
        %v3385 = vpop.f32.mrb[0].mxu0
        %3386 = vmatprep.mubr.f32.mxu0 0.0
        %3387 = vmatmul.mubr.f32.gmra.mrb[0].mxu0 %v372
        %v3388 = vpop.f32.mrb[0].mxu0
        %v3389 = vadd.f32 %v345, %v3388
        %v3390 = vpop.f32.mrb[0].mxu0
        %3391 = vmatprep.mubr.f32.mxu0 0.0
        %3392 = vmatmul.mubr.f32.gmra.mrb[0].mxu0 %v375
        %v3393 = vpop.f32.mrb[0].mxu0
        %v3394 = vadd.f32 %v351, %v3393
        %v3395 = vpop.f32.mrb[0].mxu0
        %3396 = vmatprep.mubr.f32.mxu0 0.0
        %3397 = vmatmul.mubr.f32.gmra.mrb[0].mxu0 %v378
        %v3398 = vpop.f32.mrb[0].mxu0
        %v3399 = vadd.f32 %v357, %v3398
        %v3400 = vpop.f32.mrb[0].mxu0
        %3401 = vdwg.mxu0
        %v3402 = vmax.f32 %v3384, 0.0
        %v3403 = vmax.f32 %v3389, 0.0
        %v3404 = vmax.f32 %v3394, 0.0
        %v3405 = vmax.f32 %v3399, 0.0
        %3406 = vmatprep.subr.mxu0 0.0
        %3407 = vmatpush1.msra.mxu0 %v3313
        %3408 = vmatprep.subr.mxu0 0.0
        %3409 = vmatpush1.msra.mxu0 %v3314
        %3410 = vmatprep.subr.mxu0 0.0
        %3411 = vmatpush1.msra.mxu0 %v3315
        %3412 = vmatprep.subr.mxu0 0.0
        %3413 = vmatpush1.msra.mxu0 %v3316
        %3414 = vmatprep.subr.mxu0 0.0
        %3415 = vmatpush1.msra.mxu0 0.0
        %3416 = vmatprep.subr.mxu0 0.0
        %3417 = vmatpush1.msra.mxu0 0.0
        %3418 = vmatprep.subr.mxu0 0.0
        %3419 = vmatpush1.msra.mxu0 0.0
        %3420 = vmatprep.subr.mxu0 0.0
        %3421 = vmatpush1.msra.mxu0 0.0
        %3422 = vmatprep.subr.mxu0 0.0
        %3423 = vmatpush1.msra.mxu0 0.0
        %3424 = vmatprep.subr.mxu0 0.0
        %3425 = vmatpush1.msra.mxu0 0.0
        %3426 = vmatprep.subr.mxu0 0.0
        %3427 = vmatpush1.msra.mxu0 0.0
        %3428 = vmatprep.subr.mxu0 0.0
        %3429 = vmatpush1.msra.mxu0 0.0
        %3430 = vmatprep.subr.mxu0 0.0
        %3431 = vmatpush1.msra.mxu0 0.0
        %3432 = vmatprep.subr.mxu0 0.0
        %3433 = vmatpush1.msra.mxu0 0.0
        %3434 = vmatprep.subr.mxu0 0.0
        %3435 = vmatpush1.msra.mxu0 0.0
        %3436 = vmatprep.subr.mxu0 0.0
        %3437 = vmatpush1.msra.mxu0 0.0
        %3438 = vmatprep.subr.mxu0 0.0
        %3439 = vmatpush1.msra.mxu0 0.0
        %3440 = vmatprep.subr.mxu0 0.0
        %3441 = vmatpush1.msra.mxu0 0.0
        %3442 = vmatprep.subr.mxu0 0.0
        %3443 = vmatpush1.msra.mxu0 0.0
        %3444 = vmatprep.subr.mxu0 0.0
        %3445 = vmatpush1.msra.mxu0 0.0
        %3446 = vmatprep.subr.mxu0 0.0
        %3447 = vmatpush1.msra.mxu0 0.0
        %3448 = vmatprep.subr.mxu0 0.0
        %3449 = vmatpush1.msra.mxu0 0.0
        %3450 = vmatprep.subr.mxu0 0.0
        %3451 = vmatpush1.msra.mxu0 0.0
        %3452 = vmatprep.subr.mxu0 0.0
        %3453 = vmatpush1.msra.mxu0 0.0
        %3454 = vmatprep.subr.mxu0 0.0
        %3455 = vmatpush1.msra.mxu0 0.0
        %3456 = vmatprep.subr.mxu0 0.0
        %3457 = vmatpush1.msra.mxu0 0.0
        %3458 = vmatprep.subr.mxu0 0.0
        %3459 = vmatpush1.msra.mxu0 0.0
        %3460 = vmatprep.subr.mxu0 0.0
        %3461 = vmatpush1.msra.mxu0 0.0
        %3462 = vmatprep.subr.mxu0 0.0
        %3463 = vmatpush1.msra.mxu0 0.0
        %3464 = vmatprep.subr.mxu0 0.0
        %3465 = vmatpush1.msra.mxu0 0.0
        %3466 = vmatprep.subr.mxu0 0.0
        %3467 = vmatpush1.msra.mxu0 0.0
        %3468 = vmatprep.subr.mxu0 0.0
        %3469 = vmatpush1.msra.mxu0 0.0
        %3470 = vmatprep.mubr.f32.mxu0 0.0
        %3471 = vmatmul.mubr.f32.gmra.mrb[0].mxu0 %v369
        %v3472 = vpop.f32.mrb[0].mxu0
        %v3473 = vadd.f32 %v337, %v3472
        %v3474 = vpop.f32.mrb[0].mxu0
        %3475 = vmatprep.mubr.f32.mxu0 0.0
        %3476 = vmatmul.mubr.f32.gmra.mrb[0].mxu0 %v372
        %v3477 = vpop.f32.mrb[0].mxu0
        %v3478 = vadd.f32 %v343, %v3477
        %v3479 = vpop.f32.mrb[0].mxu0
        %3480 = vmatprep.mubr.f32.mxu0 0.0
        %3481 = vmatmul.mubr.f32.gmra.mrb[0].mxu0 %v375
        %v3482 = vpop.f32.mrb[0].mxu0
        %v3483 = vadd.f32 %v349, %v3482
        %v3484 = vpop.f32.mrb[0].mxu0
        %3485 = vmatprep.mubr.f32.mxu0 0.0
        %3486 = vmatmul.mubr.f32.gmra.mrb[0].mxu0 %v378
        %v3487 = vpop.f32.mrb[0].mxu0
        %v3488 = vadd.f32 %v355, %v3487
        %v3489 = vpop.f32.mrb[0].mxu0
        %3490 = vdwg.mxu0
        %v3491 = vmax.f32 %v3473, 0.0
        %v3492 = vmax.f32 %v3478, 0.0
        %v3493 = vmax.f32 %v3483, 0.0
        %v3494 = vmax.f32 %v3488, 0.0
        %3495 = vmatprep.subr.mxu0 0.0
        %3496 = vmatpush1.msra.mxu0 %v3402
        %3497 = vmatprep.subr.mxu0 0.0
        %3498 = vmatpush1.msra.mxu0 %v3403
        %3499 = vmatprep.subr.mxu0 0.0
        %3500 = vmatpush1.msra.mxu0 %v3404
        %3501 = vmatprep.subr.mxu0 0.0
        %3502 = vmatpush1.msra.mxu0 %v3405
        %3503 = vmatprep.subr.mxu0 0.0
        %3504 = vmatpush1.msra.mxu0 0.0
        %3505 = vmatprep.subr.mxu0 0.0
        %3506 = vmatpush1.msra.mxu0 0.0
        %3507 = vmatprep.subr.mxu0 0.0
        %3508 = vmatpush1.msra.mxu0 0.0
        %3509 = vmatprep.subr.mxu0 0.0
        %3510 = vmatpush1.msra.mxu0 0.0
        %3511 = vmatprep.subr.mxu0 0.0
        %3512 = vmatpush1.msra.mxu0 0.0
        %3513 = vmatprep.subr.mxu0 0.0
        %3514 = vmatpush1.msra.mxu0 0.0
        %3515 = vmatprep.subr.mxu0 0.0
        %3516 = vmatpush1.msra.mxu0 0.0
        %3517 = vmatprep.subr.mxu0 0.0
        %3518 = vmatpush1.msra.mxu0 0.0
        %3519 = vmatprep.subr.mxu0 0.0
        %3520 = vmatpush1.msra.mxu0 0.0
        %3521 = vmatprep.subr.mxu0 0.0
        %3522 = vmatpush1.msra.mxu0 0.0
        %3523 = vmatprep.subr.mxu0 0.0
        %3524 = vmatpush1.msra.mxu0 0.0
        %3525 = vmatprep.subr.mxu0 0.0
        %3526 = vmatpush1.msra.mxu0 0.0
        %3527 = vmatprep.subr.mxu0 0.0
        %3528 = vmatpush1.msra.mxu0 0.0
        %3529 = vmatprep.subr.mxu0 0.0
        %3530 = vmatpush1.msra.mxu0 0.0
        %3531 = vmatprep.subr.mxu0 0.0
        %3532 = vmatpush1.msra.mxu0 0.0
        %3533 = vmatprep.subr.mxu0 0.0
        %3534 = vmatpush1.msra.mxu0 0.0
        %3535 = vmatprep.subr.mxu0 0.0
        %3536 = vmatpush1.msra.mxu0 0.0
        %3537 = vmatprep.subr.mxu0 0.0
        %3538 = vmatpush1.msra.mxu0 0.0
        %3539 = vmatprep.subr.mxu0 0.0
        %3540 = vmatpush1.msra.mxu0 0.0
        %3541 = vmatprep.subr.mxu0 0.0
        %3542 = vmatpush1.msra.mxu0 0.0
        %3543 = vmatprep.subr.mxu0 0.0
        %3544 = vmatpush1.msra.mxu0 0.0
        %3545 = vmatprep.subr.mxu0 0.0
        %3546 = vmatpush1.msra.mxu0 0.0
        %3547 = vmatprep.subr.mxu0 0.0
        %3548 = vmatpush1.msra.mxu0 0.0
        %3549 = vmatprep.subr.mxu0 0.0
        %3550 = vmatpush1.msra.mxu0 0.0
        %3551 = vmatprep.subr.mxu0 0.0
        %3552 = vmatpush1.msra.mxu0 0.0
        %3553 = vmatprep.subr.mxu0 0.0
        %3554 = vmatpush1.msra.mxu0 0.0
        %3555 = vmatprep.subr.mxu0 0.0
        %3556 = vmatpush1.msra.mxu0 0.0
        %3557 = vmatprep.subr.mxu0 0.0
        %3558 = vmatpush1.msra.mxu0 0.0
        %3559 = vmatprep.mubr.f32.mxu0 0.0
        %3560 = vmatmul.mubr.f32.gmra.mrb[0].mxu0 %v369
        %v3561 = vpop.f32.mrb[0].mxu0
        %v3562 = vadd.f32 %v339, %v3561
        %v3563 = vpop.f32.mrb[0].mxu0
        %3564 = vmatprep.mubr.f32.mxu0 0.0
        %3565 = vmatmul.mubr.f32.gmra.mrb[0].mxu0 %v372
        %v3566 = vpop.f32.mrb[0].mxu0
        %v3567 = vadd.f32 %v345, %v3566
        %v3568 = vpop.f32.mrb[0].mxu0
        %3569 = vmatprep.mubr.f32.mxu0 0.0
        %3570 = vmatmul.mubr.f32.gmra.mrb[0].mxu0 %v375
        %v3571 = vpop.f32.mrb[0].mxu0
        %v3572 = vadd.f32 %v351, %v3571
        %v3573 = vpop.f32.mrb[0].mxu0
        %3574 = vmatprep.mubr.f32.mxu0 0.0
        %3575 = vmatmul.mubr.f32.gmra.mrb[0].mxu0 %v378
        %v3576 = vpop.f32.mrb[0].mxu0
        %v3577 = vadd.f32 %v357, %v3576
        %v3578 = vpop.f32.mrb[0].mxu0
        %3579 = vdwg.mxu0
        %v3580 = vmax.f32 %v3562, 0.0
        %v3581 = vmax.f32 %v3567, 0.0
        %v3582 = vmax.f32 %v3572, 0.0
        %v3583 = vmax.f32 %v3577, 0.0
        %3584 = vmatprep.subr.mxu0 0.0
        %3585 = vmatpush1.msra.mxu0 %v3491
        %3586 = vmatprep.subr.mxu0 0.0
        %3587 = vmatpush1.msra.mxu0 %v3492
        %3588 = vmatprep.subr.mxu0 0.0
        %3589 = vmatpush1.msra.mxu0 %v3493
        %3590 = vmatprep.subr.mxu0 0.0
        %3591 = vmatpush1.msra.mxu0 %v3494
        %3592 = vmatprep.subr.mxu0 0.0
        %3593 = vmatpush1.msra.mxu0 0.0
        %3594 = vmatprep.subr.mxu0 0.0
        %3595 = vmatpush1.msra.mxu0 0.0
        %3596 = vmatprep.subr.mxu0 0.0
        %3597 = vmatpush1.msra.mxu0 0.0
        %3598 = vmatprep.subr.mxu0 0.0
        %3599 = vmatpush1.msra.mxu0 0.0
        %3600 = vmatprep.subr.mxu0 0.0
        %3601 = vmatpush1.msra.mxu0 0.0
        %3602 = vmatprep.subr.mxu0 0.0
        %3603 = vmatpush1.msra.mxu0 0.0
        %3604 = vmatprep.subr.mxu0 0.0
        %3605 = vmatpush1.msra.mxu0 0.0
        %3606 = vmatprep.subr.mxu0 0.0
        %3607 = vmatpush1.msra.mxu0 0.0
        %3608 = vmatprep.subr.mxu0 0.0
        %3609 = vmatpush1.msra.mxu0 0.0
        %3610 = vmatprep.subr.mxu0 0.0
        %3611 = vmatpush1.msra.mxu0 0.0
        %3612 = vmatprep.subr.mxu0 0.0
        %3613 = vmatpush1.msra.mxu0 0.0
        %3614 = vmatprep.subr.mxu0 0.0
        %3615 = vmatpush1.msra.mxu0 0.0
        %3616 = vmatprep.subr.mxu0 0.0
        %3617 = vmatpush1.msra.mxu0 0.0
        %3618 = vmatprep.subr.mxu0 0.0
        %3619 = vmatpush1.msra.mxu0 0.0
        %3620 = vmatprep.subr.mxu0 0.0
        %3621 = vmatpush1.msra.mxu0 0.0
        %3622 = vmatprep.subr.mxu0 0.0
        %3623 = vmatpush1.msra.mxu0 0.0
        %3624 = vmatprep.subr.mxu0 0.0
        %3625 = vmatpush1.msra.mxu0 0.0
        %3626 = vmatprep.subr.mxu0 0.0
        %3627 = vmatpush1.msra.mxu0 0.0
        %3628 = vmatprep.subr.mxu0 0.0
        %3629 = vmatpush1.msra.mxu0 0.0
        %3630 = vmatprep.subr.mxu0 0.0
        %3631 = vmatpush1.msra.mxu0 0.0
        %3632 = vmatprep.subr.mxu0 0.0
        %3633 = vmatpush1.msra.mxu0 0.0
        %3634 = vmatprep.subr.mxu0 0.0
        %3635 = vmatpush1.msra.mxu0 0.0
        %3636 = vmatprep.subr.mxu0 0.0
        %3637 = vmatpush1.msra.mxu0 0.0
        %3638 = vmatprep.subr.mxu0 0.0
        %3639 = vmatpush1.msra.mxu0 0.0
        %3640 = vmatprep.subr.mxu0 0.0
        %3641 = vmatpush1.msra.mxu0 0.0
        %3642 = vmatprep.subr.mxu0 0.0
        %3643 = vmatpush1.msra.mxu0 0.0
        %3644 = vmatprep.subr.mxu0 0.0
        %3645 = vmatpush1.msra.mxu0 0.0
        %3646 = vmatprep.subr.mxu0 0.0
        %3647 = vmatpush1.msra.mxu0 0.0
        %3648 = vmatprep.mubr.f32.mxu0 0.0
        %3649 = vmatmul.mubr.f32.gmra.mrb[0].mxu0 %v369
        %v3650 = vpop.f32.mrb[0].mxu0
        %v3651 = vadd.f32 %v337, %v3650
        %v3652 = vpop.f32.mrb[0].mxu0
        %3653 = vmatprep.mubr.f32.mxu0 0.0
        %3654 = vmatmul.mubr.f32.gmra.mrb[0].mxu0 %v372
        %v3655 = vpop.f32.mrb[0].mxu0
        %v3656 = vadd.f32 %v343, %v3655
        %v3657 = vpop.f32.mrb[0].mxu0
        %3658 = vmatprep.mubr.f32.mxu0 0.0
        %3659 = vmatmul.mubr.f32.gmra.mrb[0].mxu0 %v375
        %v3660 = vpop.f32.mrb[0].mxu0
        %v3661 = vadd.f32 %v349, %v3660
        %v3662 = vpop.f32.mrb[0].mxu0
        %3663 = vmatprep.mubr.f32.mxu0 0.0
        %3664 = vmatmul.mubr.f32.gmra.mrb[0].mxu0 %v378
        %v3665 = vpop.f32.mrb[0].mxu0
        %v3666 = vadd.f32 %v355, %v3665
        %v3667 = vpop.f32.mrb[0].mxu0
        %3668 = vdwg.mxu0
        %v3669 = vmax.f32 %v3651, 0.0
        %v3670 = vmax.f32 %v3656, 0.0
        %v3671 = vmax.f32 %v3661, 0.0
        %v3672 = vmax.f32 %v3666, 0.0
        %3673 = vmatprep.subr.mxu0 0.0
        %3674 = vmatpush1.msra.mxu0 %v3580
        %3675 = vmatprep.subr.mxu0 0.0
        %3676 = vmatpush1.msra.mxu0 %v3581
        %3677 = vmatprep.subr.mxu0 0.0
        %3678 = vmatpush1.msra.mxu0 %v3582
        %3679 = vmatprep.subr.mxu0 0.0
        %3680 = vmatpush1.msra.mxu0 %v3583
        %3681 = vmatprep.subr.mxu0 0.0
        %3682 = vmatpush1.msra.mxu0 0.0
        %3683 = vmatprep.subr.mxu0 0.0
        %3684 = vmatpush1.msra.mxu0 0.0
        %3685 = vmatprep.subr.mxu0 0.0
        %3686 = vmatpush1.msra.mxu0 0.0
        %3687 = vmatprep.subr.mxu0 0.0
        %3688 = vmatpush1.msra.mxu0 0.0
        %3689 = vmatprep.subr.mxu0 0.0
        %3690 = vmatpush1.msra.mxu0 0.0
        %3691 = vmatprep.subr.mxu0 0.0
        %3692 = vmatpush1.msra.mxu0 0.0
        %3693 = vmatprep.subr.mxu0 0.0
        %3694 = vmatpush1.msra.mxu0 0.0
        %3695 = vmatprep.subr.mxu0 0.0
        %3696 = vmatpush1.msra.mxu0 0.0
        %3697 = vmatprep.subr.mxu0 0.0
        %3698 = vmatpush1.msra.mxu0 0.0
        %3699 = vmatprep.subr.mxu0 0.0
        %3700 = vmatpush1.msra.mxu0 0.0
        %3701 = vmatprep.subr.mxu0 0.0
        %3702 = vmatpush1.msra.mxu0 0.0
        %3703 = vmatprep.subr.mxu0 0.0
        %3704 = vmatpush1.msra.mxu0 0.0
        %3705 = vmatprep.subr.mxu0 0.0
        %3706 = vmatpush1.msra.mxu0 0.0
        %3707 = vmatprep.subr.mxu0 0.0
        %3708 = vmatpush1.msra.mxu0 0.0
        %3709 = vmatprep.subr.mxu0 0.0
        %3710 = vmatpush1.msra.mxu0 0.0
        %3711 = vmatprep.subr.mxu0 0.0
        %3712 = vmatpush1.msra.mxu0 0.0
        %3713 = vmatprep.subr.mxu0 0.0
        %3714 = vmatpush1.msra.mxu0 0.0
        %3715 = vmatprep.subr.mxu0 0.0
        %3716 = vmatpush1.msra.mxu0 0.0
        %3717 = vmatprep.subr.mxu0 0.0
        %3718 = vmatpush1.msra.mxu0 0.0
        %3719 = vmatprep.subr.mxu0 0.0
        %3720 = vmatpush1.msra.mxu0 0.0
        %3721 = vmatprep.subr.mxu0 0.0
        %3722 = vmatpush1.msra.mxu0 0.0
        %3723 = vmatprep.subr.mxu0 0.0
        %3724 = vmatpush1.msra.mxu0 0.0
        %3725 = vmatprep.subr.mxu0 0.0
        %3726 = vmatpush1.msra.mxu0 0.0
        %3727 = vmatprep.subr.mxu0 0.0
        %3728 = vmatpush1.msra.mxu0 0.0
        %3729 = vmatprep.subr.mxu0 0.0
        %3730 = vmatpush1.msra.mxu0 0.0
        %3731 = vmatprep.subr.mxu0 0.0
        %3732 = vmatpush1.msra.mxu0 0.0
        %3733 = vmatprep.subr.mxu0 0.0
        %3734 = vmatpush1.msra.mxu0 0.0
        %3735 = vmatprep.subr.mxu0 0.0
        %3736 = vmatpush1.msra.mxu0 0.0
        %3737 = vmatprep.mubr.f32.mxu0 0.0
        %3738 = vmatmul.mubr.f32.gmra.mrb[0].mxu0 %v369
        %v3739 = vpop.f32.mrb[0].mxu0
        %v3740 = vadd.f32 %v339, %v3739
        %v3741 = vpop.f32.mrb[0].mxu0
        %3742 = vmatprep.mubr.f32.mxu0 0.0
        %3743 = vmatmul.mubr.f32.gmra.mrb[0].mxu0 %v372
        %v3744 = vpop.f32.mrb[0].mxu0
        %v3745 = vadd.f32 %v345, %v3744
        %v3746 = vpop.f32.mrb[0].mxu0
        %3747 = vmatprep.mubr.f32.mxu0 0.0
        %3748 = vmatmul.mubr.f32.gmra.mrb[0].mxu0 %v375
        %v3749 = vpop.f32.mrb[0].mxu0
        %v3750 = vadd.f32 %v351, %v3749
        %v3751 = vpop.f32.mrb[0].mxu0
        %3752 = vmatprep.mubr.f32.mxu0 0.0
        %3753 = vmatmul.mubr.f32.gmra.mrb[0].mxu0 %v378
        %v3754 = vpop.f32.mrb[0].mxu0
        %v3755 = vadd.f32 %v357, %v3754
        %v3756 = vpop.f32.mrb[0].mxu0
        %3757 = vdwg.mxu0
        %v3758 = vmax.f32 %v3740, 0.0
        %v3759 = vmax.f32 %v3745, 0.0
        %v3760 = vmax.f32 %v3750, 0.0
        %v3761 = vmax.f32 %v3755, 0.0
        %3762 = vmatprep.subr.mxu0 0.0
        %3763 = vmatpush1.msra.mxu0 %v3669
        %3764 = vmatprep.subr.mxu0 0.0
        %3765 = vmatpush1.msra.mxu0 %v3670
        %3766 = vmatprep.subr.mxu0 0.0
        %3767 = vmatpush1.msra.mxu0 %v3671
        %3768 = vmatprep.subr.mxu0 0.0
        %3769 = vmatpush1.msra.mxu0 %v3672
        %3770 = vmatprep.subr.mxu0 0.0
        %3771 = vmatpush1.msra.mxu0 0.0
        %3772 = vmatprep.subr.mxu0 0.0
        %3773 = vmatpush1.msra.mxu0 0.0
        %3774 = vmatprep.subr.mxu0 0.0
        %3775 = vmatpush1.msra.mxu0 0.0
        %3776 = vmatprep.subr.mxu0 0.0
        %3777 = vmatpush1.msra.mxu0 0.0
        %3778 = vmatprep.subr.mxu0 0.0
        %3779 = vmatpush1.msra.mxu0 0.0
        %3780 = vmatprep.subr.mxu0 0.0
        %3781 = vmatpush1.msra.mxu0 0.0
        %3782 = vmatprep.subr.mxu0 0.0
        %3783 = vmatpush1.msra.mxu0 0.0
        %3784 = vmatprep.subr.mxu0 0.0
        %3785 = vmatpush1.msra.mxu0 0.0
        %3786 = vmatprep.subr.mxu0 0.0
        %3787 = vmatpush1.msra.mxu0 0.0
        %3788 = vmatprep.subr.mxu0 0.0
        %3789 = vmatpush1.msra.mxu0 0.0
        %3790 = vmatprep.subr.mxu0 0.0
        %3791 = vmatpush1.msra.mxu0 0.0
        %3792 = vmatprep.subr.mxu0 0.0
        %3793 = vmatpush1.msra.mxu0 0.0
        %3794 = vmatprep.subr.mxu0 0.0
        %3795 = vmatpush1.msra.mxu0 0.0
        %3796 = vmatprep.subr.mxu0 0.0
        %3797 = vmatpush1.msra.mxu0 0.0
        %3798 = vmatprep.subr.mxu0 0.0
        %3799 = vmatpush1.msra.mxu0 0.0
        %3800 = vmatprep.subr.mxu0 0.0
        %3801 = vmatpush1.msra.mxu0 0.0
        %3802 = vmatprep.subr.mxu0 0.0
        %3803 = vmatpush1.msra.mxu0 0.0
        %3804 = vmatprep.subr.mxu0 0.0
        %3805 = vmatpush1.msra.mxu0 0.0
        %3806 = vmatprep.subr.mxu0 0.0
        %3807 = vmatpush1.msra.mxu0 0.0
        %3808 = vmatprep.subr.mxu0 0.0
        %3809 = vmatpush1.msra.mxu0 0.0
        %3810 = vmatprep.subr.mxu0 0.0
        %3811 = vmatpush1.msra.mxu0 0.0
        %3812 = vmatprep.subr.mxu0 0.0
        %3813 = vmatpush1.msra.mxu0 0.0
        %3814 = vmatprep.subr.mxu0 0.0
        %3815 = vmatpush1.msra.mxu0 0.0
        %3816 = vmatprep.subr.mxu0 0.0
        %3817 = vmatpush1.msra.mxu0 0.0
        %3818 = vmatprep.subr.mxu0 0.0
        %3819 = vmatpush1.msra.mxu0 0.0
        %3820 = vmatprep.subr.mxu0 0.0
        %3821 = vmatpush1.msra.mxu0 0.0
        %3822 = vmatprep.subr.mxu0 0.0
        %3823 = vmatpush1.msra.mxu0 0.0
        %3824 = vmatprep.subr.mxu0 0.0
        %3825 = vmatpush1.msra.mxu0 0.0
        %3826 = vmatprep.mubr.f32.mxu0 0.0
        %3827 = vmatmul.mubr.f32.gmra.mrb[0].mxu0 %v369
        %v3828 = vpop.f32.mrb[0].mxu0
        %v3829 = vadd.f32 %v337, %v3828
        %v3830 = vpop.f32.mrb[0].mxu0
        %3831 = vmatprep.mubr.f32.mxu0 0.0
        %3832 = vmatmul.mubr.f32.gmra.mrb[0].mxu0 %v372
        %v3833 = vpop.f32.mrb[0].mxu0
        %v3834 = vadd.f32 %v343, %v3833
        %v3835 = vpop.f32.mrb[0].mxu0
        %3836 = vmatprep.mubr.f32.mxu0 0.0
        %3837 = vmatmul.mubr.f32.gmra.mrb[0].mxu0 %v375
        %v3838 = vpop.f32.mrb[0].mxu0
        %v3839 = vadd.f32 %v349, %v3838
        %v3840 = vpop.f32.mrb[0].mxu0
        %3841 = vmatprep.mubr.f32.mxu0 0.0
        %3842 = vmatmul.mubr.f32.gmra.mrb[0].mxu0 %v378
        %v3843 = vpop.f32.mrb[0].mxu0
        %v3844 = vadd.f32 %v355, %v3843
        %v3845 = vpop.f32.mrb[0].mxu0
        %3846 = vdwg.mxu0
        %v3847 = vmax.f32 %v3829, 0.0
        %v3848 = vmax.f32 %v3834, 0.0
        %v3849 = vmax.f32 %v3839, 0.0
        %v3850 = vmax.f32 %v3844, 0.0
        %3851 = vmatprep.subr.mxu0 0.0
        %3852 = vmatpush1.msra.mxu0 %v3758
        %3853 = vmatprep.subr.mxu0 0.0
        %3854 = vmatpush1.msra.mxu0 %v3759
        %3855 = vmatprep.subr.mxu0 0.0
        %3856 = vmatpush1.msra.mxu0 %v3760
        %3857 = vmatprep.subr.mxu0 0.0
        %3858 = vmatpush1.msra.mxu0 %v3761
        %3859 = vmatprep.subr.mxu0 0.0
        %3860 = vmatpush1.msra.mxu0 0.0
        %3861 = vmatprep.subr.mxu0 0.0
        %3862 = vmatpush1.msra.mxu0 0.0
        %3863 = vmatprep.subr.mxu0 0.0
        %3864 = vmatpush1.msra.mxu0 0.0
        %3865 = vmatprep.subr.mxu0 0.0
        %3866 = vmatpush1.msra.mxu0 0.0
        %3867 = vmatprep.subr.mxu0 0.0
        %3868 = vmatpush1.msra.mxu0 0.0
        %3869 = vmatprep.subr.mxu0 0.0
        %3870 = vmatpush1.msra.mxu0 0.0
        %3871 = vmatprep.subr.mxu0 0.0
        %3872 = vmatpush1.msra.mxu0 0.0
        %3873 = vmatprep.subr.mxu0 0.0
        %3874 = vmatpush1.msra.mxu0 0.0
        %3875 = vmatprep.subr.mxu0 0.0
        %3876 = vmatpush1.msra.mxu0 0.0
        %3877 = vmatprep.subr.mxu0 0.0
        %3878 = vmatpush1.msra.mxu0 0.0
        %3879 = vmatprep.subr.mxu0 0.0
        %3880 = vmatpush1.msra.mxu0 0.0
        %3881 = vmatprep.subr.mxu0 0.0
        %3882 = vmatpush1.msra.mxu0 0.0
        %3883 = vmatprep.subr.mxu0 0.0
        %3884 = vmatpush1.msra.mxu0 0.0
        %3885 = vmatprep.subr.mxu0 0.0
        %3886 = vmatpush1.msra.mxu0 0.0
        %3887 = vmatprep.subr.mxu0 0.0
        %3888 = vmatpush1.msra.mxu0 0.0
        %3889 = vmatprep.subr.mxu0 0.0
        %3890 = vmatpush1.msra.mxu0 0.0
        %3891 = vmatprep.subr.mxu0 0.0
        %3892 = vmatpush1.msra.mxu0 0.0
        %3893 = vmatprep.subr.mxu0 0.0
        %3894 = vmatpush1.msra.mxu0 0.0
        %3895 = vmatprep.subr.mxu0 0.0
        %3896 = vmatpush1.msra.mxu0 0.0
        %3897 = vmatprep.subr.mxu0 0.0
        %3898 = vmatpush1.msra.mxu0 0.0
        %3899 = vmatprep.subr.mxu0 0.0
        %3900 = vmatpush1.msra.mxu0 0.0
        %3901 = vmatprep.subr.mxu0 0.0
        %3902 = vmatpush1.msra.mxu0 0.0
        %3903 = vmatprep.subr.mxu0 0.0
        %3904 = vmatpush1.msra.mxu0 0.0
        %3905 = vmatprep.subr.mxu0 0.0
        %3906 = vmatpush1.msra.mxu0 0.0
        %3907 = vmatprep.subr.mxu0 0.0
        %3908 = vmatpush1.msra.mxu0 0.0
        %3909 = vmatprep.subr.mxu0 0.0
        %3910 = vmatpush1.msra.mxu0 0.0
        %3911 = vmatprep.subr.mxu0 0.0
        %3912 = vmatpush1.msra.mxu0 0.0
        %3913 = vmatprep.subr.mxu0 0.0
        %3914 = vmatpush1.msra.mxu0 0.0
        %3915 = vmatprep.mubr.f32.mxu0 0.0
        %3916 = vmatmul.mubr.f32.gmra.mrb[0].mxu0 %v369
        %v3917 = vpop.f32.mrb[0].mxu0
        %v3918 = vadd.f32 %v339, %v3917
        %v3919 = vpop.f32.mrb[0].mxu0
        %3920 = vmatprep.mubr.f32.mxu0 0.0
        %3921 = vmatmul.mubr.f32.gmra.mrb[0].mxu0 %v372
        %v3922 = vpop.f32.mrb[0].mxu0
        %v3923 = vadd.f32 %v345, %v3922
        %v3924 = vpop.f32.mrb[0].mxu0
        %3925 = vmatprep.mubr.f32.mxu0 0.0
        %3926 = vmatmul.mubr.f32.gmra.mrb[0].mxu0 %v375
        %v3927 = vpop.f32.mrb[0].mxu0
        %v3928 = vadd.f32 %v351, %v3927
        %v3929 = vpop.f32.mrb[0].mxu0
        %3930 = vmatprep.mubr.f32.mxu0 0.0
        %3931 = vmatmul.mubr.f32.gmra.mrb[0].mxu0 %v378
        %v3932 = vpop.f32.mrb[0].mxu0
        %v3933 = vadd.f32 %v357, %v3932
        %v3934 = vpop.f32.mrb[0].mxu0
        %3935 = vdwg.mxu0
        %v3936 = vmax.f32 %v3918, 0.0
        %v3937 = vmax.f32 %v3923, 0.0
        %v3938 = vmax.f32 %v3928, 0.0
        %v3939 = vmax.f32 %v3933, 0.0
        %3940 = vmatprep.subr.mxu0 0.0
        %3941 = vmatpush1.msra.mxu0 %v3847
        %3942 = vmatprep.subr.mxu0 0.0
        %3943 = vmatpush1.msra.mxu0 %v3848
        %3944 = vmatprep.subr.mxu0 0.0
        %3945 = vmatpush1.msra.mxu0 %v3849
        %3946 = vmatprep.subr.mxu0 0.0
        %3947 = vmatpush1.msra.mxu0 %v3850
        %3948 = vmatprep.subr.mxu0 0.0
        %3949 = vmatpush1.msra.mxu0 0.0
        %3950 = vmatprep.subr.mxu0 0.0
        %3951 = vmatpush1.msra.mxu0 0.0
        %3952 = vmatprep.subr.mxu0 0.0
        %3953 = vmatpush1.msra.mxu0 0.0
        %3954 = vmatprep.subr.mxu0 0.0
        %3955 = vmatpush1.msra.mxu0 0.0
        %3956 = vmatprep.subr.mxu0 0.0
        %3957 = vmatpush1.msra.mxu0 0.0
        %3958 = vmatprep.subr.mxu0 0.0
        %3959 = vmatpush1.msra.mxu0 0.0
        %3960 = vmatprep.subr.mxu0 0.0
        %3961 = vmatpush1.msra.mxu0 0.0
        %3962 = vmatprep.subr.mxu0 0.0
        %3963 = vmatpush1.msra.mxu0 0.0
        %3964 = vmatprep.subr.mxu0 0.0
        %3965 = vmatpush1.msra.mxu0 0.0
        %3966 = vmatprep.subr.mxu0 0.0
        %3967 = vmatpush1.msra.mxu0 0.0
        %3968 = vmatprep.subr.mxu0 0.0
        %3969 = vmatpush1.msra.mxu0 0.0
        %3970 = vmatprep.subr.mxu0 0.0
        %3971 = vmatpush1.msra.mxu0 0.0
        %3972 = vmatprep.subr.mxu0 0.0
        %3973 = vmatpush1.msra.mxu0 0.0
        %3974 = vmatprep.subr.mxu0 0.0
        %3975 = vmatpush1.msra.mxu0 0.0
        %3976 = vmatprep.subr.mxu0 0.0
        %3977 = vmatpush1.msra.mxu0 0.0
        %3978 = vmatprep.subr.mxu0 0.0
        %3979 = vmatpush1.msra.mxu0 0.0
        %3980 = vmatprep.subr.mxu0 0.0
        %3981 = vmatpush1.msra.mxu0 0.0
        %3982 = vmatprep.subr.mxu0 0.0
        %3983 = vmatpush1.msra.mxu0 0.0
        %3984 = vmatprep.subr.mxu0 0.0
        %3985 = vmatpush1.msra.mxu0 0.0
        %3986 = vmatprep.subr.mxu0 0.0
        %3987 = vmatpush1.msra.mxu0 0.0
        %3988 = vmatprep.subr.mxu0 0.0
        %3989 = vmatpush1.msra.mxu0 0.0
        %3990 = vmatprep.subr.mxu0 0.0
        %3991 = vmatpush1.msra.mxu0 0.0
        %3992 = vmatprep.subr.mxu0 0.0
        %3993 = vmatpush1.msra.mxu0 0.0
        %3994 = vmatprep.subr.mxu0 0.0
        %3995 = vmatpush1.msra.mxu0 0.0
        %3996 = vmatprep.subr.mxu0 0.0
        %3997 = vmatpush1.msra.mxu0 0.0
        %3998 = vmatprep.subr.mxu0 0.0
        %3999 = vmatpush1.msra.mxu0 0.0
        %4000 = vmatprep.subr.mxu0 0.0
        %4001 = vmatpush1.msra.mxu0 0.0
        %4002 = vmatprep.subr.mxu0 0.0
        %4003 = vmatpush1.msra.mxu0 0.0
        %4004 = vmatprep.mubr.f32.mxu0 0.0
        %4005 = vmatmul.mubr.f32.gmra.mrb[0].mxu0 %v369
        %v4006 = vpop.f32.mrb[0].mxu0
        %v4007 = vadd.f32 %v337, %v4006
        %v4008 = vpop.f32.mrb[0].mxu0
        %4009 = vmatprep.mubr.f32.mxu0 0.0
        %4010 = vmatmul.mubr.f32.gmra.mrb[0].mxu0 %v372
        %v4011 = vpop.f32.mrb[0].mxu0
        %v4012 = vadd.f32 %v343, %v4011
        %v4013 = vpop.f32.mrb[0].mxu0
        %4014 = vmatprep.mubr.f32.mxu0 0.0
        %4015 = vmatmul.mubr.f32.gmra.mrb[0].mxu0 %v375
        %v4016 = vpop.f32.mrb[0].mxu0
        %v4017 = vadd.f32 %v349, %v4016
        %v4018 = vpop.f32.mrb[0].mxu0
        %4019 = vmatprep.mubr.f32.mxu0 0.0
        %4020 = vmatmul.mubr.f32.gmra.mrb[0].mxu0 %v378
        %v4021 = vpop.f32.mrb[0].mxu0
        %v4022 = vadd.f32 %v355, %v4021
        %v4023 = vpop.f32.mrb[0].mxu0
        %4024 = vdwg.mxu0
        %v4025 = vmax.f32 %v4007, 0.0
        %v4026 = vmax.f32 %v4012, 0.0
        %v4027 = vmax.f32 %v4017, 0.0
        %v4028 = vmax.f32 %v4022, 0.0
        %4029 = vmatprep.subr.mxu0 0.0
        %4030 = vmatpush1.msra.mxu0 %v3936
        %4031 = vmatprep.subr.mxu0 0.0
        %4032 = vmatpush1.msra.mxu0 %v3937
        %4033 = vmatprep.subr.mxu0 0.0
        %4034 = vmatpush1.msra.mxu0 %v3938
        %4035 = vmatprep.subr.mxu0 0.0
        %4036 = vmatpush1.msra.mxu0 %v3939
        %4037 = vmatprep.subr.mxu0 0.0
        %4038 = vmatpush1.msra.mxu0 0.0
        %4039 = vmatprep.subr.mxu0 0.0
        %4040 = vmatpush1.msra.mxu0 0.0
        %4041 = vmatprep.subr.mxu0 0.0
        %4042 = vmatpush1.msra.mxu0 0.0
        %4043 = vmatprep.subr.mxu0 0.0
        %4044 = vmatpush1.msra.mxu0 0.0
        %4045 = vmatprep.subr.mxu0 0.0
        %4046 = vmatpush1.msra.mxu0 0.0
        %4047 = vmatprep.subr.mxu0 0.0
        %4048 = vmatpush1.msra.mxu0 0.0
        %4049 = vmatprep.subr.mxu0 0.0
        %4050 = vmatpush1.msra.mxu0 0.0
        %4051 = vmatprep.subr.mxu0 0.0
        %4052 = vmatpush1.msra.mxu0 0.0
        %4053 = vmatprep.subr.mxu0 0.0
        %4054 = vmatpush1.msra.mxu0 0.0
        %4055 = vmatprep.subr.mxu0 0.0
        %4056 = vmatpush1.msra.mxu0 0.0
        %4057 = vmatprep.subr.mxu0 0.0
        %4058 = vmatpush1.msra.mxu0 0.0
        %4059 = vmatprep.subr.mxu0 0.0
        %4060 = vmatpush1.msra.mxu0 0.0
        %4061 = vmatprep.subr.mxu0 0.0
        %4062 = vmatpush1.msra.mxu0 0.0
        %4063 = vmatprep.subr.mxu0 0.0
        %4064 = vmatpush1.msra.mxu0 0.0
        %4065 = vmatprep.subr.mxu0 0.0
        %4066 = vmatpush1.msra.mxu0 0.0
        %4067 = vmatprep.subr.mxu0 0.0
        %4068 = vmatpush1.msra.mxu0 0.0
        %4069 = vmatprep.subr.mxu0 0.0
        %4070 = vmatpush1.msra.mxu0 0.0
        %4071 = vmatprep.subr.mxu0 0.0
        %4072 = vmatpush1.msra.mxu0 0.0
        %4073 = vmatprep.subr.mxu0 0.0
        %4074 = vmatpush1.msra.mxu0 0.0
        %4075 = vmatprep.subr.mxu0 0.0
        %4076 = vmatpush1.msra.mxu0 0.0
        %4077 = vmatprep.subr.mxu0 0.0
        %4078 = vmatpush1.msra.mxu0 0.0
        %4079 = vmatprep.subr.mxu0 0.0
        %4080 = vmatpush1.msra.mxu0 0.0
        %4081 = vmatprep.subr.mxu0 0.0
        %4082 = vmatpush1.msra.mxu0 0.0
        %4083 = vmatprep.subr.mxu0 0.0
        %4084 = vmatpush1.msra.mxu0 0.0
        %4085 = vmatprep.subr.mxu0 0.0
        %4086 = vmatpush1.msra.mxu0 0.0
        %4087 = vmatprep.subr.mxu0 0.0
        %4088 = vmatpush1.msra.mxu0 0.0
        %4089 = vmatprep.subr.mxu0 0.0
        %4090 = vmatpush1.msra.mxu0 0.0
        %4091 = vmatprep.subr.mxu0 0.0
        %4092 = vmatpush1.msra.mxu0 0.0
        %4093 = vmatprep.mubr.f32.mxu0 0.0
        %4094 = vmatmul.mubr.f32.gmra.mrb[0].mxu0 %v369
        %v4095 = vpop.f32.mrb[0].mxu0
        %v4096 = vadd.f32 %v339, %v4095
        %v4097 = vpop.f32.mrb[0].mxu0
        %4098 = vmatprep.mubr.f32.mxu0 0.0
        %4099 = vmatmul.mubr.f32.gmra.mrb[0].mxu0 %v372
        %v4100 = vpop.f32.mrb[0].mxu0
        %v4101 = vadd.f32 %v345, %v4100
        %v4102 = vpop.f32.mrb[0].mxu0
        %4103 = vmatprep.mubr.f32.mxu0 0.0
        %4104 = vmatmul.mubr.f32.gmra.mrb[0].mxu0 %v375
        %v4105 = vpop.f32.mrb[0].mxu0
        %v4106 = vadd.f32 %v351, %v4105
        %v4107 = vpop.f32.mrb[0].mxu0
        %4108 = vmatprep.mubr.f32.mxu0 0.0
        %4109 = vmatmul.mubr.f32.gmra.mrb[0].mxu0 %v378
        %v4110 = vpop.f32.mrb[0].mxu0
        %v4111 = vadd.f32 %v357, %v4110
        %v4112 = vpop.f32.mrb[0].mxu0
        %4113 = vdwg.mxu0
        %v4114 = vmax.f32 %v4096, 0.0
        %v4115 = vmax.f32 %v4101, 0.0
        %v4116 = vmax.f32 %v4106, 0.0
        %v4117 = vmax.f32 %v4111, 0.0
        %4118 = vmatprep.subr.mxu0 0.0
        %4119 = vmatpush1.msra.mxu0 %v4025
        %4120 = vmatprep.subr.mxu0 0.0
        %4121 = vmatpush1.msra.mxu0 %v4026
        %4122 = vmatprep.subr.mxu0 0.0
        %4123 = vmatpush1.msra.mxu0 %v4027
        %4124 = vmatprep.subr.mxu0 0.0
        %4125 = vmatpush1.msra.mxu0 %v4028
        %4126 = vmatprep.subr.mxu0 0.0
        %4127 = vmatpush1.msra.mxu0 0.0
        %4128 = vmatprep.subr.mxu0 0.0
        %4129 = vmatpush1.msra.mxu0 0.0
        %4130 = vmatprep.subr.mxu0 0.0
        %4131 = vmatpush1.msra.mxu0 0.0
        %4132 = vmatprep.subr.mxu0 0.0
        %4133 = vmatpush1.msra.mxu0 0.0
        %4134 = vmatprep.subr.mxu0 0.0
        %4135 = vmatpush1.msra.mxu0 0.0
        %4136 = vmatprep.subr.mxu0 0.0
        %4137 = vmatpush1.msra.mxu0 0.0
        %4138 = vmatprep.subr.mxu0 0.0
        %4139 = vmatpush1.msra.mxu0 0.0
        %4140 = vmatprep.subr.mxu0 0.0
        %4141 = vmatpush1.msra.mxu0 0.0
        %4142 = vmatprep.subr.mxu0 0.0
        %4143 = vmatpush1.msra.mxu0 0.0
        %4144 = vmatprep.subr.mxu0 0.0
        %4145 = vmatpush1.msra.mxu0 0.0
        %4146 = vmatprep.subr.mxu0 0.0
        %4147 = vmatpush1.msra.mxu0 0.0
        %4148 = vmatprep.subr.mxu0 0.0
        %4149 = vmatpush1.msra.mxu0 0.0
        %4150 = vmatprep.subr.mxu0 0.0
        %4151 = vmatpush1.msra.mxu0 0.0
        %4152 = vmatprep.subr.mxu0 0.0
        %4153 = vmatpush1.msra.mxu0 0.0
        %4154 = vmatprep.subr.mxu0 0.0
        %4155 = vmatpush1.msra.mxu0 0.0
        %4156 = vmatprep.subr.mxu0 0.0
        %4157 = vmatpush1.msra.mxu0 0.0
        %4158 = vmatprep.subr.mxu0 0.0
        %4159 = vmatpush1.msra.mxu0 0.0
        %4160 = vmatprep.subr.mxu0 0.0
        %4161 = vmatpush1.msra.mxu0 0.0
        %4162 = vmatprep.subr.mxu0 0.0
        %4163 = vmatpush1.msra.mxu0 0.0
        %4164 = vmatprep.subr.mxu0 0.0
        %4165 = vmatpush1.msra.mxu0 0.0
        %4166 = vmatprep.subr.mxu0 0.0
        %4167 = vmatpush1.msra.mxu0 0.0
        %4168 = vmatprep.subr.mxu0 0.0
        %4169 = vmatpush1.msra.mxu0 0.0
        %4170 = vmatprep.subr.mxu0 0.0
        %4171 = vmatpush1.msra.mxu0 0.0
        %4172 = vmatprep.subr.mxu0 0.0
        %4173 = vmatpush1.msra.mxu0 0.0
        %4174 = vmatprep.subr.mxu0 0.0
        %4175 = vmatpush1.msra.mxu0 0.0
        %4176 = vmatprep.subr.mxu0 0.0
        %4177 = vmatpush1.msra.mxu0 0.0
        %4178 = vmatprep.subr.mxu0 0.0
        %4179 = vmatpush1.msra.mxu0 0.0
        %4180 = vmatprep.subr.mxu0 0.0
        %4181 = vmatpush1.msra.mxu0 0.0
        %4182 = vmatprep.mubr.f32.mxu0 0.0
        %4183 = vmatmul.mubr.f32.gmra.mrb[0].mxu0 %v369
        %v4184 = vpop.f32.mrb[0].mxu0
        %v4185 = vadd.f32 %v337, %v4184
        %v4186 = vpop.f32.mrb[0].mxu0
        %4187 = vmatprep.mubr.f32.mxu0 0.0
        %4188 = vmatmul.mubr.f32.gmra.mrb[0].mxu0 %v372
        %v4189 = vpop.f32.mrb[0].mxu0
        %v4190 = vadd.f32 %v343, %v4189
        %v4191 = vpop.f32.mrb[0].mxu0
        %4192 = vmatprep.mubr.f32.mxu0 0.0
        %4193 = vmatmul.mubr.f32.gmra.mrb[0].mxu0 %v375
        %v4194 = vpop.f32.mrb[0].mxu0
        %v4195 = vadd.f32 %v349, %v4194
        %v4196 = vpop.f32.mrb[0].mxu0
        %4197 = vmatprep.mubr.f32.mxu0 0.0
        %4198 = vmatmul.mubr.f32.gmra.mrb[0].mxu0 %v378
        %v4199 = vpop.f32.mrb[0].mxu0
        %v4200 = vadd.f32 %v355, %v4199
        %v4201 = vpop.f32.mrb[0].mxu0
        %4202 = vdwg.mxu0
        %v4203 = vmax.f32 %v4185, 0.0
        %v4204 = vmax.f32 %v4190, 0.0
        %v4205 = vmax.f32 %v4195, 0.0
        %v4206 = vmax.f32 %v4200, 0.0
        %4207 = vmatprep.subr.mxu0 0.0
        %4208 = vmatpush1.msra.mxu0 %v4114
        %4209 = vmatprep.subr.mxu0 0.0
        %4210 = vmatpush1.msra.mxu0 %v4115
        %4211 = vmatprep.subr.mxu0 0.0
        %4212 = vmatpush1.msra.mxu0 %v4116
        %4213 = vmatprep.subr.mxu0 0.0
        %4214 = vmatpush1.msra.mxu0 %v4117
        %4215 = vmatprep.subr.mxu0 0.0
        %4216 = vmatpush1.msra.mxu0 0.0
        %4217 = vmatprep.subr.mxu0 0.0
        %4218 = vmatpush1.msra.mxu0 0.0
        %4219 = vmatprep.subr.mxu0 0.0
        %4220 = vmatpush1.msra.mxu0 0.0
        %4221 = vmatprep.subr.mxu0 0.0
        %4222 = vmatpush1.msra.mxu0 0.0
        %4223 = vmatprep.subr.mxu0 0.0
        %4224 = vmatpush1.msra.mxu0 0.0
        %4225 = vmatprep.subr.mxu0 0.0
        %4226 = vmatpush1.msra.mxu0 0.0
        %4227 = vmatprep.subr.mxu0 0.0
        %4228 = vmatpush1.msra.mxu0 0.0
        %4229 = vmatprep.subr.mxu0 0.0
        %4230 = vmatpush1.msra.mxu0 0.0
        %4231 = vmatprep.subr.mxu0 0.0
        %4232 = vmatpush1.msra.mxu0 0.0
        %4233 = vmatprep.subr.mxu0 0.0
        %4234 = vmatpush1.msra.mxu0 0.0
        %4235 = vmatprep.subr.mxu0 0.0
        %4236 = vmatpush1.msra.mxu0 0.0
        %4237 = vmatprep.subr.mxu0 0.0
        %4238 = vmatpush1.msra.mxu0 0.0
        %4239 = vmatprep.subr.mxu0 0.0
        %4240 = vmatpush1.msra.mxu0 0.0
        %4241 = vmatprep.subr.mxu0 0.0
        %4242 = vmatpush1.msra.mxu0 0.0
        %4243 = vmatprep.subr.mxu0 0.0
        %4244 = vmatpush1.msra.mxu0 0.0
        %4245 = vmatprep.subr.mxu0 0.0
        %4246 = vmatpush1.msra.mxu0 0.0
        %4247 = vmatprep.subr.mxu0 0.0
        %4248 = vmatpush1.msra.mxu0 0.0
        %4249 = vmatprep.subr.mxu0 0.0
        %4250 = vmatpush1.msra.mxu0 0.0
        %4251 = vmatprep.subr.mxu0 0.0
        %4252 = vmatpush1.msra.mxu0 0.0
        %4253 = vmatprep.subr.mxu0 0.0
        %4254 = vmatpush1.msra.mxu0 0.0
        %4255 = vmatprep.subr.mxu0 0.0
        %4256 = vmatpush1.msra.mxu0 0.0
        %4257 = vmatprep.subr.mxu0 0.0
        %4258 = vmatpush1.msra.mxu0 0.0
        %4259 = vmatprep.subr.mxu0 0.0
        %4260 = vmatpush1.msra.mxu0 0.0
        %4261 = vmatprep.subr.mxu0 0.0
        %4262 = vmatpush1.msra.mxu0 0.0
        %4263 = vmatprep.subr.mxu0 0.0
        %4264 = vmatpush1.msra.mxu0 0.0
        %4265 = vmatprep.subr.mxu0 0.0
        %4266 = vmatpush1.msra.mxu0 0.0
        %4267 = vmatprep.subr.mxu0 0.0
        %4268 = vmatpush1.msra.mxu0 0.0
        %4269 = vmatprep.subr.mxu0 0.0
        %4270 = vmatpush1.msra.mxu0 0.0
        %4271 = vmatprep.mubr.f32.mxu0 0.0
        %4272 = vmatmul.mubr.f32.gmra.mrb[0].mxu0 %v369
        %v4273 = vpop.f32.mrb[0].mxu0
        %v4274 = vadd.f32 %v339, %v4273
        %v4275 = vpop.f32.mrb[0].mxu0
        %4276 = vmatprep.mubr.f32.mxu0 0.0
        %4277 = vmatmul.mubr.f32.gmra.mrb[0].mxu0 %v372
        %v4278 = vpop.f32.mrb[0].mxu0
        %v4279 = vadd.f32 %v345, %v4278
        %v4280 = vpop.f32.mrb[0].mxu0
        %4281 = vmatprep.mubr.f32.mxu0 0.0
        %4282 = vmatmul.mubr.f32.gmra.mrb[0].mxu0 %v375
        %v4283 = vpop.f32.mrb[0].mxu0
        %v4284 = vadd.f32 %v351, %v4283
        %v4285 = vpop.f32.mrb[0].mxu0
        %4286 = vmatprep.mubr.f32.mxu0 0.0
        %4287 = vmatmul.mubr.f32.gmra.mrb[0].mxu0 %v378
        %v4288 = vpop.f32.mrb[0].mxu0
        %v4289 = vadd.f32 %v357, %v4288
        %v4290 = vpop.f32.mrb[0].mxu0
        %4291 = vdwg.mxu0
        %v4292 = vmax.f32 %v4274, 0.0
        %v4293 = vmax.f32 %v4279, 0.0
        %v4294 = vmax.f32 %v4284, 0.0
        %v4295 = vmax.f32 %v4289, 0.0
        %4296 = vmatprep.subr.mxu0 0.0
        %4297 = vmatpush1.msra.mxu0 %v4203
        %4298 = vmatprep.subr.mxu0 0.0
        %4299 = vmatpush1.msra.mxu0 %v4204
        %4300 = vmatprep.subr.mxu0 0.0
        %4301 = vmatpush1.msra.mxu0 %v4205
        %4302 = vmatprep.subr.mxu0 0.0
        %4303 = vmatpush1.msra.mxu0 %v4206
        %4304 = vmatprep.subr.mxu0 0.0
        %4305 = vmatpush1.msra.mxu0 0.0
        %4306 = vmatprep.subr.mxu0 0.0
        %4307 = vmatpush1.msra.mxu0 0.0
        %4308 = vmatprep.subr.mxu0 0.0
        %4309 = vmatpush1.msra.mxu0 0.0
        %4310 = vmatprep.subr.mxu0 0.0
        %4311 = vmatpush1.msra.mxu0 0.0
        %4312 = vmatprep.subr.mxu0 0.0
        %4313 = vmatpush1.msra.mxu0 0.0
        %4314 = vmatprep.subr.mxu0 0.0
        %4315 = vmatpush1.msra.mxu0 0.0
        %4316 = vmatprep.subr.mxu0 0.0
        %4317 = vmatpush1.msra.mxu0 0.0
        %4318 = vmatprep.subr.mxu0 0.0
        %4319 = vmatpush1.msra.mxu0 0.0
        %4320 = vmatprep.subr.mxu0 0.0
        %4321 = vmatpush1.msra.mxu0 0.0
        %4322 = vmatprep.subr.mxu0 0.0
        %4323 = vmatpush1.msra.mxu0 0.0
        %4324 = vmatprep.subr.mxu0 0.0
        %4325 = vmatpush1.msra.mxu0 0.0
        %4326 = vmatprep.subr.mxu0 0.0
        %4327 = vmatpush1.msra.mxu0 0.0
        %4328 = vmatprep.subr.mxu0 0.0
        %4329 = vmatpush1.msra.mxu0 0.0
        %4330 = vmatprep.subr.mxu0 0.0
        %4331 = vmatpush1.msra.mxu0 0.0
        %4332 = vmatprep.subr.mxu0 0.0
        %4333 = vmatpush1.msra.mxu0 0.0
        %4334 = vmatprep.subr.mxu0 0.0
        %4335 = vmatpush1.msra.mxu0 0.0
        %4336 = vmatprep.subr.mxu0 0.0
        %4337 = vmatpush1.msra.mxu0 0.0
        %4338 = vmatprep.subr.mxu0 0.0
        %4339 = vmatpush1.msra.mxu0 0.0
        %4340 = vmatprep.subr.mxu0 0.0
        %4341 = vmatpush1.msra.mxu0 0.0
        %4342 = vmatprep.subr.mxu0 0.0
        %4343 = vmatpush1.msra.mxu0 0.0
        %4344 = vmatprep.subr.mxu0 0.0
        %4345 = vmatpush1.msra.mxu0 0.0
        %4346 = vmatprep.subr.mxu0 0.0
        %4347 = vmatpush1.msra.mxu0 0.0
        %4348 = vmatprep.subr.mxu0 0.0
        %4349 = vmatpush1.msra.mxu0 0.0
        %4350 = vmatprep.subr.mxu0 0.0
        %4351 = vmatpush1.msra.mxu0 0.0
        %4352 = vmatprep.subr.mxu0 0.0
        %4353 = vmatpush1.msra.mxu0 0.0
        %4354 = vmatprep.subr.mxu0 0.0
        %4355 = vmatpush1.msra.mxu0 0.0
        %4356 = vmatprep.subr.mxu0 0.0
        %4357 = vmatpush1.msra.mxu0 0.0
        %4358 = vmatprep.subr.mxu0 0.0
        %4359 = vmatpush1.msra.mxu0 0.0
        %4360 = vmatprep.mubr.f32.mxu0 0.0
        %4361 = vmatmul.mubr.f32.gmra.mrb[0].mxu0 %v369
        %v4362 = vpop.f32.mrb[0].mxu0
        %v4363 = vadd.f32 %v337, %v4362
        %v4364 = vpop.f32.mrb[0].mxu0
        %4365 = vmatprep.mubr.f32.mxu0 0.0
        %4366 = vmatmul.mubr.f32.gmra.mrb[0].mxu0 %v372
        %v4367 = vpop.f32.mrb[0].mxu0
        %v4368 = vadd.f32 %v343, %v4367
        %v4369 = vpop.f32.mrb[0].mxu0
        %4370 = vmatprep.mubr.f32.mxu0 0.0
        %4371 = vmatmul.mubr.f32.gmra.mrb[0].mxu0 %v375
        %v4372 = vpop.f32.mrb[0].mxu0
        %v4373 = vadd.f32 %v349, %v4372
        %v4374 = vpop.f32.mrb[0].mxu0
        %4375 = vmatprep.mubr.f32.mxu0 0.0
        %4376 = vmatmul.mubr.f32.gmra.mrb[0].mxu0 %v378
        %v4377 = vpop.f32.mrb[0].mxu0
        %v4378 = vadd.f32 %v355, %v4377
        %v4379 = vpop.f32.mrb[0].mxu0
        %4380 = vdwg.mxu0
        %v4381 = vmax.f32 %v4363, 0.0
        %v4382 = vmax.f32 %v4368, 0.0
        %v4383 = vmax.f32 %v4373, 0.0
        %v4384 = vmax.f32 %v4378, 0.0
        %4385 = vmatprep.subr.mxu0 0.0
        %4386 = vmatpush1.msra.mxu0 %v4292
        %4387 = vmatprep.subr.mxu0 0.0
        %4388 = vmatpush1.msra.mxu0 %v4293
        %4389 = vmatprep.subr.mxu0 0.0
        %4390 = vmatpush1.msra.mxu0 %v4294
        %4391 = vmatprep.subr.mxu0 0.0
        %4392 = vmatpush1.msra.mxu0 %v4295
        %4393 = vmatprep.subr.mxu0 0.0
        %4394 = vmatpush1.msra.mxu0 0.0
        %4395 = vmatprep.subr.mxu0 0.0
        %4396 = vmatpush1.msra.mxu0 0.0
        %4397 = vmatprep.subr.mxu0 0.0
        %4398 = vmatpush1.msra.mxu0 0.0
        %4399 = vmatprep.subr.mxu0 0.0
        %4400 = vmatpush1.msra.mxu0 0.0
        %4401 = vmatprep.subr.mxu0 0.0
        %4402 = vmatpush1.msra.mxu0 0.0
        %4403 = vmatprep.subr.mxu0 0.0
        %4404 = vmatpush1.msra.mxu0 0.0
        %4405 = vmatprep.subr.mxu0 0.0
        %4406 = vmatpush1.msra.mxu0 0.0
        %4407 = vmatprep.subr.mxu0 0.0
        %4408 = vmatpush1.msra.mxu0 0.0
        %4409 = vmatprep.subr.mxu0 0.0
        %4410 = vmatpush1.msra.mxu0 0.0
        %4411 = vmatprep.subr.mxu0 0.0
        %4412 = vmatpush1.msra.mxu0 0.0
        %4413 = vmatprep.subr.mxu0 0.0
        %4414 = vmatpush1.msra.mxu0 0.0
        %4415 = vmatprep.subr.mxu0 0.0
        %4416 = vmatpush1.msra.mxu0 0.0
        %4417 = vmatprep.subr.mxu0 0.0
        %4418 = vmatpush1.msra.mxu0 0.0
        %4419 = vmatprep.subr.mxu0 0.0
        %4420 = vmatpush1.msra.mxu0 0.0
        %4421 = vmatprep.subr.mxu0 0.0
        %4422 = vmatpush1.msra.mxu0 0.0
        %4423 = vmatprep.subr.mxu0 0.0
        %4424 = vmatpush1.msra.mxu0 0.0
        %4425 = vmatprep.subr.mxu0 0.0
        %4426 = vmatpush1.msra.mxu0 0.0
        %4427 = vmatprep.subr.mxu0 0.0
        %4428 = vmatpush1.msra.mxu0 0.0
        %4429 = vmatprep.subr.mxu0 0.0
        %4430 = vmatpush1.msra.mxu0 0.0
        %4431 = vmatprep.subr.mxu0 0.0
        %4432 = vmatpush1.msra.mxu0 0.0
        %4433 = vmatprep.subr.mxu0 0.0
        %4434 = vmatpush1.msra.mxu0 0.0
        %4435 = vmatprep.subr.mxu0 0.0
        %4436 = vmatpush1.msra.mxu0 0.0
        %4437 = vmatprep.subr.mxu0 0.0
        %4438 = vmatpush1.msra.mxu0 0.0
        %4439 = vmatprep.subr.mxu0 0.0
        %4440 = vmatpush1.msra.mxu0 0.0
        %4441 = vmatprep.subr.mxu0 0.0
        %4442 = vmatpush1.msra.mxu0 0.0
        %4443 = vmatprep.subr.mxu0 0.0
        %4444 = vmatpush1.msra.mxu0 0.0
        %4445 = vmatprep.subr.mxu0 0.0
        %4446 = vmatpush1.msra.mxu0 0.0
        %4447 = vmatprep.subr.mxu0 0.0
        %4448 = vmatpush1.msra.mxu0 0.0
        %4449 = vmatprep.mubr.f32.mxu0 0.0
        %4450 = vmatmul.mubr.f32.gmra.mrb[0].mxu0 %v369
        %v4451 = vpop.f32.mrb[0].mxu0
        %v4452 = vadd.f32 %v339, %v4451
        %v4453 = vpop.f32.mrb[0].mxu0
        %4454 = vmatprep.mubr.f32.mxu0 0.0
        %4455 = vmatmul.mubr.f32.gmra.mrb[0].mxu0 %v372
        %v4456 = vpop.f32.mrb[0].mxu0
        %v4457 = vadd.f32 %v345, %v4456
        %v4458 = vpop.f32.mrb[0].mxu0
        %4459 = vmatprep.mubr.f32.mxu0 0.0
        %4460 = vmatmul.mubr.f32.gmra.mrb[0].mxu0 %v375
        %v4461 = vpop.f32.mrb[0].mxu0
        %v4462 = vadd.f32 %v351, %v4461
        %v4463 = vpop.f32.mrb[0].mxu0
        %4464 = vmatprep.mubr.f32.mxu0 0.0
        %4465 = vmatmul.mubr.f32.gmra.mrb[0].mxu0 %v378
        %v4466 = vpop.f32.mrb[0].mxu0
        %v4467 = vadd.f32 %v357, %v4466
        %v4468 = vpop.f32.mrb[0].mxu0
        %4469 = vdwg.mxu0
        %v4470 = vmax.f32 %v4452, 0.0
        %v4471 = vmax.f32 %v4457, 0.0
        %v4472 = vmax.f32 %v4462, 0.0
        %v4473 = vmax.f32 %v4467, 0.0
        %4474 = vmatprep.subr.mxu0 0.0
        %4475 = vmatpush1.msra.mxu0 %v4381
        %4476 = vmatprep.subr.mxu0 0.0
        %4477 = vmatpush1.msra.mxu0 %v4382
        %4478 = vmatprep.subr.mxu0 0.0
        %4479 = vmatpush1.msra.mxu0 %v4383
        %4480 = vmatprep.subr.mxu0 0.0
        %4481 = vmatpush1.msra.mxu0 %v4384
        %4482 = vmatprep.subr.mxu0 0.0
        %4483 = vmatpush1.msra.mxu0 0.0
        %4484 = vmatprep.subr.mxu0 0.0
        %4485 = vmatpush1.msra.mxu0 0.0
        %4486 = vmatprep.subr.mxu0 0.0
        %4487 = vmatpush1.msra.mxu0 0.0
        %4488 = vmatprep.subr.mxu0 0.0
        %4489 = vmatpush1.msra.mxu0 0.0
        %4490 = vmatprep.subr.mxu0 0.0
        %4491 = vmatpush1.msra.mxu0 0.0
        %4492 = vmatprep.subr.mxu0 0.0
        %4493 = vmatpush1.msra.mxu0 0.0
        %4494 = vmatprep.subr.mxu0 0.0
        %4495 = vmatpush1.msra.mxu0 0.0
        %4496 = vmatprep.subr.mxu0 0.0
        %4497 = vmatpush1.msra.mxu0 0.0
        %4498 = vmatprep.subr.mxu0 0.0
        %4499 = vmatpush1.msra.mxu0 0.0
        %4500 = vmatprep.subr.mxu0 0.0
        %4501 = vmatpush1.msra.mxu0 0.0
        %4502 = vmatprep.subr.mxu0 0.0
        %4503 = vmatpush1.msra.mxu0 0.0
        %4504 = vmatprep.subr.mxu0 0.0
        %4505 = vmatpush1.msra.mxu0 0.0
        %4506 = vmatprep.subr.mxu0 0.0
        %4507 = vmatpush1.msra.mxu0 0.0
        %4508 = vmatprep.subr.mxu0 0.0
        %4509 = vmatpush1.msra.mxu0 0.0
        %4510 = vmatprep.subr.mxu0 0.0
        %4511 = vmatpush1.msra.mxu0 0.0
        %4512 = vmatprep.subr.mxu0 0.0
        %4513 = vmatpush1.msra.mxu0 0.0
        %4514 = vmatprep.subr.mxu0 0.0
        %4515 = vmatpush1.msra.mxu0 0.0
        %4516 = vmatprep.subr.mxu0 0.0
        %4517 = vmatpush1.msra.mxu0 0.0
        %4518 = vmatprep.subr.mxu0 0.0
        %4519 = vmatpush1.msra.mxu0 0.0
        %4520 = vmatprep.subr.mxu0 0.0
        %4521 = vmatpush1.msra.mxu0 0.0
        %4522 = vmatprep.subr.mxu0 0.0
        %4523 = vmatpush1.msra.mxu0 0.0
        %4524 = vmatprep.subr.mxu0 0.0
        %4525 = vmatpush1.msra.mxu0 0.0
        %4526 = vmatprep.subr.mxu0 0.0
        %4527 = vmatpush1.msra.mxu0 0.0
        %4528 = vmatprep.subr.mxu0 0.0
        %4529 = vmatpush1.msra.mxu0 0.0
        %4530 = vmatprep.subr.mxu0 0.0
        %4531 = vmatpush1.msra.mxu0 0.0
        %4532 = vmatprep.subr.mxu0 0.0
        %4533 = vmatpush1.msra.mxu0 0.0
        %4534 = vmatprep.subr.mxu0 0.0
        %4535 = vmatpush1.msra.mxu0 0.0
        %4536 = vmatprep.subr.mxu0 0.0
        %4537 = vmatpush1.msra.mxu0 0.0
        %4538 = vmatprep.mubr.f32.mxu0 0.0
        %4539 = vmatmul.mubr.f32.gmra.mrb[0].mxu0 %v369
        %v4540 = vpop.f32.mrb[0].mxu0
        %v4541 = vadd.f32 %v337, %v4540
        %v4542 = vpop.f32.mrb[0].mxu0
        %4543 = vmatprep.mubr.f32.mxu0 0.0
        %4544 = vmatmul.mubr.f32.gmra.mrb[0].mxu0 %v372
        %v4545 = vpop.f32.mrb[0].mxu0
        %v4546 = vadd.f32 %v343, %v4545
        %v4547 = vpop.f32.mrb[0].mxu0
        %4548 = vmatprep.mubr.f32.mxu0 0.0
        %4549 = vmatmul.mubr.f32.gmra.mrb[0].mxu0 %v375
        %v4550 = vpop.f32.mrb[0].mxu0
        %v4551 = vadd.f32 %v349, %v4550
        %v4552 = vpop.f32.mrb[0].mxu0
        %4553 = vmatprep.mubr.f32.mxu0 0.0
        %4554 = vmatmul.mubr.f32.gmra.mrb[0].mxu0 %v378
        %v4555 = vpop.f32.mrb[0].mxu0
        %v4556 = vadd.f32 %v355, %v4555
        %v4557 = vpop.f32.mrb[0].mxu0
        %4558 = vdwg.mxu0
        %v4559 = vmax.f32 %v4541, 0.0
        %v4560 = vmax.f32 %v4546, 0.0
        %v4561 = vmax.f32 %v4551, 0.0
        %v4562 = vmax.f32 %v4556, 0.0
        %4563 = vmatprep.subr.mxu0 0.0
        %4564 = vmatpush1.msra.mxu0 %v4470
        %4565 = vmatprep.subr.mxu0 0.0
        %4566 = vmatpush1.msra.mxu0 %v4471
        %4567 = vmatprep.subr.mxu0 0.0
        %4568 = vmatpush1.msra.mxu0 %v4472
        %4569 = vmatprep.subr.mxu0 0.0
        %4570 = vmatpush1.msra.mxu0 %v4473
        %4571 = vmatprep.subr.mxu0 0.0
        %4572 = vmatpush1.msra.mxu0 0.0
        %4573 = vmatprep.subr.mxu0 0.0
        %4574 = vmatpush1.msra.mxu0 0.0
        %4575 = vmatprep.subr.mxu0 0.0
        %4576 = vmatpush1.msra.mxu0 0.0
        %4577 = vmatprep.subr.mxu0 0.0
        %4578 = vmatpush1.msra.mxu0 0.0
        %4579 = vmatprep.subr.mxu0 0.0
        %4580 = vmatpush1.msra.mxu0 0.0
        %4581 = vmatprep.subr.mxu0 0.0
        %4582 = vmatpush1.msra.mxu0 0.0
        %4583 = vmatprep.subr.mxu0 0.0
        %4584 = vmatpush1.msra.mxu0 0.0
        %4585 = vmatprep.subr.mxu0 0.0
        %4586 = vmatpush1.msra.mxu0 0.0
        %4587 = vmatprep.subr.mxu0 0.0
        %4588 = vmatpush1.msra.mxu0 0.0
        %4589 = vmatprep.subr.mxu0 0.0
        %4590 = vmatpush1.msra.mxu0 0.0
        %4591 = vmatprep.subr.mxu0 0.0
        %4592 = vmatpush1.msra.mxu0 0.0
        %4593 = vmatprep.subr.mxu0 0.0
        %4594 = vmatpush1.msra.mxu0 0.0
        %4595 = vmatprep.subr.mxu0 0.0
        %4596 = vmatpush1.msra.mxu0 0.0
        %4597 = vmatprep.subr.mxu0 0.0
        %4598 = vmatpush1.msra.mxu0 0.0
        %4599 = vmatprep.subr.mxu0 0.0
        %4600 = vmatpush1.msra.mxu0 0.0
        %4601 = vmatprep.subr.mxu0 0.0
        %4602 = vmatpush1.msra.mxu0 0.0
        %4603 = vmatprep.subr.mxu0 0.0
        %4604 = vmatpush1.msra.mxu0 0.0
        %4605 = vmatprep.subr.mxu0 0.0
        %4606 = vmatpush1.msra.mxu0 0.0
        %4607 = vmatprep.subr.mxu0 0.0
        %4608 = vmatpush1.msra.mxu0 0.0
        %4609 = vmatprep.subr.mxu0 0.0
        %4610 = vmatpush1.msra.mxu0 0.0
        %4611 = vmatprep.subr.mxu0 0.0
        %4612 = vmatpush1.msra.mxu0 0.0
        %4613 = vmatprep.subr.mxu0 0.0
        %4614 = vmatpush1.msra.mxu0 0.0
        %4615 = vmatprep.subr.mxu0 0.0
        %4616 = vmatpush1.msra.mxu0 0.0
        %4617 = vmatprep.subr.mxu0 0.0
        %4618 = vmatpush1.msra.mxu0 0.0
        %4619 = vmatprep.subr.mxu0 0.0
        %4620 = vmatpush1.msra.mxu0 0.0
        %4621 = vmatprep.subr.mxu0 0.0
        %4622 = vmatpush1.msra.mxu0 0.0
        %4623 = vmatprep.subr.mxu0 0.0
        %4624 = vmatpush1.msra.mxu0 0.0
        %4625 = vmatprep.subr.mxu0 0.0
        %4626 = vmatpush1.msra.mxu0 0.0
        %4627 = vmatprep.mubr.f32.mxu0 0.0
        %4628 = vmatmul.mubr.f32.gmra.mrb[0].mxu0 %v369
        %v4629 = vpop.f32.mrb[0].mxu0
        %v4630 = vadd.f32 %v339, %v4629
        %v4631 = vpop.f32.mrb[0].mxu0
        %4632 = vmatprep.mubr.f32.mxu0 0.0
        %4633 = vmatmul.mubr.f32.gmra.mrb[0].mxu0 %v372
        %v4634 = vpop.f32.mrb[0].mxu0
        %v4635 = vadd.f32 %v345, %v4634
        %v4636 = vpop.f32.mrb[0].mxu0
        %4637 = vmatprep.mubr.f32.mxu0 0.0
        %4638 = vmatmul.mubr.f32.gmra.mrb[0].mxu0 %v375
        %v4639 = vpop.f32.mrb[0].mxu0
        %v4640 = vadd.f32 %v351, %v4639
        %v4641 = vpop.f32.mrb[0].mxu0
        %4642 = vmatprep.mubr.f32.mxu0 0.0
        %4643 = vmatmul.mubr.f32.gmra.mrb[0].mxu0 %v378
        %v4644 = vpop.f32.mrb[0].mxu0
        %v4645 = vadd.f32 %v357, %v4644
        %v4646 = vpop.f32.mrb[0].mxu0
        %4647 = vdwg.mxu0
        %v4648 = vmax.f32 %v4630, 0.0
        %v4649 = vmax.f32 %v4635, 0.0
        %v4650 = vmax.f32 %v4640, 0.0
        %v4651 = vmax.f32 %v4645, 0.0
        %4652 = vmatprep.subr.mxu0 0.0
        %4653 = vmatpush1.msra.mxu0 %v4559
        %4654 = vmatprep.subr.mxu0 0.0
        %4655 = vmatpush1.msra.mxu0 %v4560
        %4656 = vmatprep.subr.mxu0 0.0
        %4657 = vmatpush1.msra.mxu0 %v4561
        %4658 = vmatprep.subr.mxu0 0.0
        %4659 = vmatpush1.msra.mxu0 %v4562
        %4660 = vmatprep.subr.mxu0 0.0
        %4661 = vmatpush1.msra.mxu0 0.0
        %4662 = vmatprep.subr.mxu0 0.0
        %4663 = vmatpush1.msra.mxu0 0.0
        %4664 = vmatprep.subr.mxu0 0.0
        %4665 = vmatpush1.msra.mxu0 0.0
        %4666 = vmatprep.subr.mxu0 0.0
        %4667 = vmatpush1.msra.mxu0 0.0
        %4668 = vmatprep.subr.mxu0 0.0
        %4669 = vmatpush1.msra.mxu0 0.0
        %4670 = vmatprep.subr.mxu0 0.0
        %4671 = vmatpush1.msra.mxu0 0.0
        %4672 = vmatprep.subr.mxu0 0.0
        %4673 = vmatpush1.msra.mxu0 0.0
        %4674 = vmatprep.subr.mxu0 0.0
        %4675 = vmatpush1.msra.mxu0 0.0
        %4676 = vmatprep.subr.mxu0 0.0
        %4677 = vmatpush1.msra.mxu0 0.0
        %4678 = vmatprep.subr.mxu0 0.0
        %4679 = vmatpush1.msra.mxu0 0.0
        %4680 = vmatprep.subr.mxu0 0.0
        %4681 = vmatpush1.msra.mxu0 0.0
        %4682 = vmatprep.subr.mxu0 0.0
        %4683 = vmatpush1.msra.mxu0 0.0
        %4684 = vmatprep.subr.mxu0 0.0
        %4685 = vmatpush1.msra.mxu0 0.0
        %4686 = vmatprep.subr.mxu0 0.0
        %4687 = vmatpush1.msra.mxu0 0.0
        %4688 = vmatprep.subr.mxu0 0.0
        %4689 = vmatpush1.msra.mxu0 0.0
        %4690 = vmatprep.subr.mxu0 0.0
        %4691 = vmatpush1.msra.mxu0 0.0
        %4692 = vmatprep.subr.mxu0 0.0
        %4693 = vmatpush1.msra.mxu0 0.0
        %4694 = vmatprep.subr.mxu0 0.0
        %4695 = vmatpush1.msra.mxu0 0.0
        %4696 = vmatprep.subr.mxu0 0.0
        %4697 = vmatpush1.msra.mxu0 0.0
        %4698 = vmatprep.subr.mxu0 0.0
        %4699 = vmatpush1.msra.mxu0 0.0
        %4700 = vmatprep.subr.mxu0 0.0
        %4701 = vmatpush1.msra.mxu0 0.0
        %4702 = vmatprep.subr.mxu0 0.0
        %4703 = vmatpush1.msra.mxu0 0.0
        %4704 = vmatprep.subr.mxu0 0.0
        %4705 = vmatpush1.msra.mxu0 0.0
        %4706 = vmatprep.subr.mxu0 0.0
        %4707 = vmatpush1.msra.mxu0 0.0
        %4708 = vmatprep.subr.mxu0 0.0
        %4709 = vmatpush1.msra.mxu0 0.0
        %4710 = vmatprep.subr.mxu0 0.0
        %4711 = vmatpush1.msra.mxu0 0.0
        %4712 = vmatprep.subr.mxu0 0.0
        %4713 = vmatpush1.msra.mxu0 0.0
        %4714 = vmatprep.subr.mxu0 0.0
        %4715 = vmatpush1.msra.mxu0 0.0
        %4716 = vmatprep.mubr.f32.mxu0 0.0
        %4717 = vmatmul.mubr.f32.gmra.mrb[0].mxu0 %v369
        %v4718 = vpop.f32.mrb[0].mxu0
        %v4719 = vadd.f32 %v337, %v4718
        %v4720 = vpop.f32.mrb[0].mxu0
        %4721 = vmatprep.mubr.f32.mxu0 0.0
        %4722 = vmatmul.mubr.f32.gmra.mrb[0].mxu0 %v372
        %v4723 = vpop.f32.mrb[0].mxu0
        %v4724 = vadd.f32 %v343, %v4723
        %v4725 = vpop.f32.mrb[0].mxu0
        %4726 = vmatprep.mubr.f32.mxu0 0.0
        %4727 = vmatmul.mubr.f32.gmra.mrb[0].mxu0 %v375
        %v4728 = vpop.f32.mrb[0].mxu0
        %v4729 = vadd.f32 %v349, %v4728
        %v4730 = vpop.f32.mrb[0].mxu0
        %4731 = vmatprep.mubr.f32.mxu0 0.0
        %4732 = vmatmul.mubr.f32.gmra.mrb[0].mxu0 %v378
        %v4733 = vpop.f32.mrb[0].mxu0
        %v4734 = vadd.f32 %v355, %v4733
        %v4735 = vpop.f32.mrb[0].mxu0
        %4736 = vdwg.mxu0
        %v4737 = vmax.f32 %v4719, 0.0
        %v4738 = vmax.f32 %v4724, 0.0
        %v4739 = vmax.f32 %v4729, 0.0
        %v4740 = vmax.f32 %v4734, 0.0
        %4741 = vmatprep.subr.mxu0 0.0
        %4742 = vmatpush1.msra.mxu0 %v4648
        %4743 = vmatprep.subr.mxu0 0.0
        %4744 = vmatpush1.msra.mxu0 %v4649
        %4745 = vmatprep.subr.mxu0 0.0
        %4746 = vmatpush1.msra.mxu0 %v4650
        %4747 = vmatprep.subr.mxu0 0.0
        %4748 = vmatpush1.msra.mxu0 %v4651
        %4749 = vmatprep.subr.mxu0 0.0
        %4750 = vmatpush1.msra.mxu0 0.0
        %4751 = vmatprep.subr.mxu0 0.0
        %4752 = vmatpush1.msra.mxu0 0.0
        %4753 = vmatprep.subr.mxu0 0.0
        %4754 = vmatpush1.msra.mxu0 0.0
        %4755 = vmatprep.subr.mxu0 0.0
        %4756 = vmatpush1.msra.mxu0 0.0
        %4757 = vmatprep.subr.mxu0 0.0
        %4758 = vmatpush1.msra.mxu0 0.0
        %4759 = vmatprep.subr.mxu0 0.0
        %4760 = vmatpush1.msra.mxu0 0.0
        %4761 = vmatprep.subr.mxu0 0.0
        %4762 = vmatpush1.msra.mxu0 0.0
        %4763 = vmatprep.subr.mxu0 0.0
        %4764 = vmatpush1.msra.mxu0 0.0
        %4765 = vmatprep.subr.mxu0 0.0
        %4766 = vmatpush1.msra.mxu0 0.0
        %4767 = vmatprep.subr.mxu0 0.0
        %4768 = vmatpush1.msra.mxu0 0.0
        %4769 = vmatprep.subr.mxu0 0.0
        %4770 = vmatpush1.msra.mxu0 0.0
        %4771 = vmatprep.subr.mxu0 0.0
        %4772 = vmatpush1.msra.mxu0 0.0
        %4773 = vmatprep.subr.mxu0 0.0
        %4774 = vmatpush1.msra.mxu0 0.0
        %4775 = vmatprep.subr.mxu0 0.0
        %4776 = vmatpush1.msra.mxu0 0.0
        %4777 = vmatprep.subr.mxu0 0.0
        %4778 = vmatpush1.msra.mxu0 0.0
        %4779 = vmatprep.subr.mxu0 0.0
        %4780 = vmatpush1.msra.mxu0 0.0
        %4781 = vmatprep.subr.mxu0 0.0
        %4782 = vmatpush1.msra.mxu0 0.0
        %4783 = vmatprep.subr.mxu0 0.0
        %4784 = vmatpush1.msra.mxu0 0.0
        %4785 = vmatprep.subr.mxu0 0.0
        %4786 = vmatpush1.msra.mxu0 0.0
        %4787 = vmatprep.subr.mxu0 0.0
        %4788 = vmatpush1.msra.mxu0 0.0
        %4789 = vmatprep.subr.mxu0 0.0
        %4790 = vmatpush1.msra.mxu0 0.0
        %4791 = vmatprep.subr.mxu0 0.0
        %4792 = vmatpush1.msra.mxu0 0.0
        %4793 = vmatprep.subr.mxu0 0.0
        %4794 = vmatpush1.msra.mxu0 0.0
        %4795 = vmatprep.subr.mxu0 0.0
        %4796 = vmatpush1.msra.mxu0 0.0
        %4797 = vmatprep.subr.mxu0 0.0
        %4798 = vmatpush1.msra.mxu0 0.0
        %4799 = vmatprep.subr.mxu0 0.0
        %4800 = vmatpush1.msra.mxu0 0.0
        %4801 = vmatprep.subr.mxu0 0.0
        %4802 = vmatpush1.msra.mxu0 0.0
        %4803 = vmatprep.subr.mxu0 0.0
        %4804 = vmatpush1.msra.mxu0 0.0
        %4805 = vmatprep.mubr.f32.mxu0 0.0
        %4806 = vmatmul.mubr.f32.gmra.mrb[0].mxu0 %v369
        %v4807 = vpop.f32.mrb[0].mxu0
        %v4808 = vadd.f32 %v339, %v4807
        %v4809 = vpop.f32.mrb[0].mxu0
        %4810 = vmatprep.mubr.f32.mxu0 0.0
        %4811 = vmatmul.mubr.f32.gmra.mrb[0].mxu0 %v372
        %v4812 = vpop.f32.mrb[0].mxu0
        %v4813 = vadd.f32 %v345, %v4812
        %v4814 = vpop.f32.mrb[0].mxu0
        %4815 = vmatprep.mubr.f32.mxu0 0.0
        %4816 = vmatmul.mubr.f32.gmra.mrb[0].mxu0 %v375
        %v4817 = vpop.f32.mrb[0].mxu0
        %v4818 = vadd.f32 %v351, %v4817
        %v4819 = vpop.f32.mrb[0].mxu0
        %4820 = vmatprep.mubr.f32.mxu0 0.0
        %4821 = vmatmul.mubr.f32.gmra.mrb[0].mxu0 %v378
        %v4822 = vpop.f32.mrb[0].mxu0
        %v4823 = vadd.f32 %v357, %v4822
        %v4824 = vpop.f32.mrb[0].mxu0
        %4825 = vdwg.mxu0
        %v4826 = vmax.f32 %v4808, 0.0
        %v4827 = vmax.f32 %v4813, 0.0
        %v4828 = vmax.f32 %v4818, 0.0
        %v4829 = vmax.f32 %v4823, 0.0
        %4830 = vmatprep.subr.mxu0 0.0
        %4831 = vmatpush1.msra.mxu0 %v4737
        %4832 = vmatprep.subr.mxu0 0.0
        %4833 = vmatpush1.msra.mxu0 %v4738
        %4834 = vmatprep.subr.mxu0 0.0
        %4835 = vmatpush1.msra.mxu0 %v4739
        %4836 = vmatprep.subr.mxu0 0.0
        %4837 = vmatpush1.msra.mxu0 %v4740
        %4838 = vmatprep.subr.mxu0 0.0
        %4839 = vmatpush1.msra.mxu0 0.0
        %4840 = vmatprep.subr.mxu0 0.0
        %4841 = vmatpush1.msra.mxu0 0.0
        %4842 = vmatprep.subr.mxu0 0.0
        %4843 = vmatpush1.msra.mxu0 0.0
        %4844 = vmatprep.subr.mxu0 0.0
        %4845 = vmatpush1.msra.mxu0 0.0
        %4846 = vmatprep.subr.mxu0 0.0
        %4847 = vmatpush1.msra.mxu0 0.0
        %4848 = vmatprep.subr.mxu0 0.0
        %4849 = vmatpush1.msra.mxu0 0.0
        %4850 = vmatprep.subr.mxu0 0.0
        %4851 = vmatpush1.msra.mxu0 0.0
        %4852 = vmatprep.subr.mxu0 0.0
        %4853 = vmatpush1.msra.mxu0 0.0
        %4854 = vmatprep.subr.mxu0 0.0
        %4855 = vmatpush1.msra.mxu0 0.0
        %4856 = vmatprep.subr.mxu0 0.0
        %4857 = vmatpush1.msra.mxu0 0.0
        %4858 = vmatprep.subr.mxu0 0.0
        %4859 = vmatpush1.msra.mxu0 0.0
        %4860 = vmatprep.subr.mxu0 0.0
        %4861 = vmatpush1.msra.mxu0 0.0
        %4862 = vmatprep.subr.mxu0 0.0
        %4863 = vmatpush1.msra.mxu0 0.0
        %4864 = vmatprep.subr.mxu0 0.0
        %4865 = vmatpush1.msra.mxu0 0.0
        %4866 = vmatprep.subr.mxu0 0.0
        %4867 = vmatpush1.msra.mxu0 0.0
        %4868 = vmatprep.subr.mxu0 0.0
        %4869 = vmatpush1.msra.mxu0 0.0
        %4870 = vmatprep.subr.mxu0 0.0
        %4871 = vmatpush1.msra.mxu0 0.0
        %4872 = vmatprep.subr.mxu0 0.0
        %4873 = vmatpush1.msra.mxu0 0.0
        %4874 = vmatprep.subr.mxu0 0.0
        %4875 = vmatpush1.msra.mxu0 0.0
        %4876 = vmatprep.subr.mxu0 0.0
        %4877 = vmatpush1.msra.mxu0 0.0
        %4878 = vmatprep.subr.mxu0 0.0
        %4879 = vmatpush1.msra.mxu0 0.0
        %4880 = vmatprep.subr.mxu0 0.0
        %4881 = vmatpush1.msra.mxu0 0.0
        %4882 = vmatprep.subr.mxu0 0.0
        %4883 = vmatpush1.msra.mxu0 0.0
        %4884 = vmatprep.subr.mxu0 0.0
        %4885 = vmatpush1.msra.mxu0 0.0
        %4886 = vmatprep.subr.mxu0 0.0
        %4887 = vmatpush1.msra.mxu0 0.0
        %4888 = vmatprep.subr.mxu0 0.0
        %4889 = vmatpush1.msra.mxu0 0.0
        %4890 = vmatprep.subr.mxu0 0.0
        %4891 = vmatpush1.msra.mxu0 0.0
        %4892 = vmatprep.subr.mxu0 0.0
        %4893 = vmatpush1.msra.mxu0 0.0
        %4894 = vmatprep.mubr.f32.mxu0 0.0
        %4895 = vmatmul.mubr.f32.gmra.mrb[0].mxu0 %v369
        %v4896 = vpop.f32.mrb[0].mxu0
        %v4897 = vadd.f32 %v337, %v4896
        %v4898 = vpop.f32.mrb[0].mxu0
        %4899 = vmatprep.mubr.f32.mxu0 0.0
        %4900 = vmatmul.mubr.f32.gmra.mrb[0].mxu0 %v372
        %v4901 = vpop.f32.mrb[0].mxu0
        %v4902 = vadd.f32 %v343, %v4901
        %v4903 = vpop.f32.mrb[0].mxu0
        %4904 = vmatprep.mubr.f32.mxu0 0.0
        %4905 = vmatmul.mubr.f32.gmra.mrb[0].mxu0 %v375
        %v4906 = vpop.f32.mrb[0].mxu0
        %v4907 = vadd.f32 %v349, %v4906
        %v4908 = vpop.f32.mrb[0].mxu0
        %4909 = vmatprep.mubr.f32.mxu0 0.0
        %4910 = vmatmul.mubr.f32.gmra.mrb[0].mxu0 %v378
        %v4911 = vpop.f32.mrb[0].mxu0
        %v4912 = vadd.f32 %v355, %v4911
        %v4913 = vpop.f32.mrb[0].mxu0
        %4914 = vdwg.mxu0
        %v4915 = vmax.f32 %v4897, 0.0
        %v4916 = vmax.f32 %v4902, 0.0
        %v4917 = vmax.f32 %v4907, 0.0
        %v4918 = vmax.f32 %v4912, 0.0
        %4919 = vmatprep.subr.mxu0 0.0
        %4920 = vmatpush1.msra.mxu0 %v4826
        %4921 = vmatprep.subr.mxu0 0.0
        %4922 = vmatpush1.msra.mxu0 %v4827
        %4923 = vmatprep.subr.mxu0 0.0
        %4924 = vmatpush1.msra.mxu0 %v4828
        %4925 = vmatprep.subr.mxu0 0.0
        %4926 = vmatpush1.msra.mxu0 %v4829
        %4927 = vmatprep.subr.mxu0 0.0
        %4928 = vmatpush1.msra.mxu0 0.0
        %4929 = vmatprep.subr.mxu0 0.0
        %4930 = vmatpush1.msra.mxu0 0.0
        %4931 = vmatprep.subr.mxu0 0.0
        %4932 = vmatpush1.msra.mxu0 0.0
        %4933 = vmatprep.subr.mxu0 0.0
        %4934 = vmatpush1.msra.mxu0 0.0
        %4935 = vmatprep.subr.mxu0 0.0
        %4936 = vmatpush1.msra.mxu0 0.0
        %4937 = vmatprep.subr.mxu0 0.0
        %4938 = vmatpush1.msra.mxu0 0.0
        %4939 = vmatprep.subr.mxu0 0.0
        %4940 = vmatpush1.msra.mxu0 0.0
        %4941 = vmatprep.subr.mxu0 0.0
        %4942 = vmatpush1.msra.mxu0 0.0
        %4943 = vmatprep.subr.mxu0 0.0
        %4944 = vmatpush1.msra.mxu0 0.0
        %4945 = vmatprep.subr.mxu0 0.0
        %4946 = vmatpush1.msra.mxu0 0.0
        %4947 = vmatprep.subr.mxu0 0.0
        %4948 = vmatpush1.msra.mxu0 0.0
        %4949 = vmatprep.subr.mxu0 0.0
        %4950 = vmatpush1.msra.mxu0 0.0
        %4951 = vmatprep.subr.mxu0 0.0
        %4952 = vmatpush1.msra.mxu0 0.0
        %4953 = vmatprep.subr.mxu0 0.0
        %4954 = vmatpush1.msra.mxu0 0.0
        %4955 = vmatprep.subr.mxu0 0.0
        %4956 = vmatpush1.msra.mxu0 0.0
        %4957 = vmatprep.subr.mxu0 0.0
        %4958 = vmatpush1.msra.mxu0 0.0
        %4959 = vmatprep.subr.mxu0 0.0
        %4960 = vmatpush1.msra.mxu0 0.0
        %4961 = vmatprep.subr.mxu0 0.0
        %4962 = vmatpush1.msra.mxu0 0.0
        %4963 = vmatprep.subr.mxu0 0.0
        %4964 = vmatpush1.msra.mxu0 0.0
        %4965 = vmatprep.subr.mxu0 0.0
        %4966 = vmatpush1.msra.mxu0 0.0
        %4967 = vmatprep.subr.mxu0 0.0
        %4968 = vmatpush1.msra.mxu0 0.0
        %4969 = vmatprep.subr.mxu0 0.0
        %4970 = vmatpush1.msra.mxu0 0.0
        %4971 = vmatprep.subr.mxu0 0.0
        %4972 = vmatpush1.msra.mxu0 0.0
        %4973 = vmatprep.subr.mxu0 0.0
        %4974 = vmatpush1.msra.mxu0 0.0
        %4975 = vmatprep.subr.mxu0 0.0
        %4976 = vmatpush1.msra.mxu0 0.0
        %4977 = vmatprep.subr.mxu0 0.0
        %4978 = vmatpush1.msra.mxu0 0.0
        %4979 = vmatprep.subr.mxu0 0.0
        %4980 = vmatpush1.msra.mxu0 0.0
        %4981 = vmatprep.subr.mxu0 0.0
        %4982 = vmatpush1.msra.mxu0 0.0
        %4983 = vmatprep.mubr.f32.mxu0 0.0
        %4984 = vmatmul.mubr.f32.gmra.mrb[0].mxu0 %v369
        %v4985 = vpop.f32.mrb[0].mxu0
        %v4986 = vadd.f32 %v339, %v4985
        %v4987 = vpop.f32.mrb[0].mxu0
        %4988 = vmatprep.mubr.f32.mxu0 0.0
        %4989 = vmatmul.mubr.f32.gmra.mrb[0].mxu0 %v372
        %v4990 = vpop.f32.mrb[0].mxu0
        %v4991 = vadd.f32 %v345, %v4990
        %v4992 = vpop.f32.mrb[0].mxu0
        %4993 = vmatprep.mubr.f32.mxu0 0.0
        %4994 = vmatmul.mubr.f32.gmra.mrb[0].mxu0 %v375
        %v4995 = vpop.f32.mrb[0].mxu0
        %v4996 = vadd.f32 %v351, %v4995
        %v4997 = vpop.f32.mrb[0].mxu0
        %4998 = vmatprep.mubr.f32.mxu0 0.0
        %4999 = vmatmul.mubr.f32.gmra.mrb[0].mxu0 %v378
        %v5000 = vpop.f32.mrb[0].mxu0
        %v5001 = vadd.f32 %v357, %v5000
        %v5002 = vpop.f32.mrb[0].mxu0
        %5003 = vdwg.mxu0
        %v5004 = vmax.f32 %v4986, 0.0
        %v5005 = vmax.f32 %v4991, 0.0
        %v5006 = vmax.f32 %v4996, 0.0
        %v5007 = vmax.f32 %v5001, 0.0
        %5008 = vmatprep.subr.mxu0 0.0
        %5009 = vmatpush1.msra.mxu0 %v4915
        %5010 = vmatprep.subr.mxu0 0.0
        %5011 = vmatpush1.msra.mxu0 %v4916
        %5012 = vmatprep.subr.mxu0 0.0
        %5013 = vmatpush1.msra.mxu0 %v4917
        %5014 = vmatprep.subr.mxu0 0.0
        %5015 = vmatpush1.msra.mxu0 %v4918
        %5016 = vmatprep.subr.mxu0 0.0
        %5017 = vmatpush1.msra.mxu0 0.0
        %5018 = vmatprep.subr.mxu0 0.0
        %5019 = vmatpush1.msra.mxu0 0.0
        %5020 = vmatprep.subr.mxu0 0.0
        %5021 = vmatpush1.msra.mxu0 0.0
        %5022 = vmatprep.subr.mxu0 0.0
        %5023 = vmatpush1.msra.mxu0 0.0
        %5024 = vmatprep.subr.mxu0 0.0
        %5025 = vmatpush1.msra.mxu0 0.0
        %5026 = vmatprep.subr.mxu0 0.0
        %5027 = vmatpush1.msra.mxu0 0.0
        %5028 = vmatprep.subr.mxu0 0.0
        %5029 = vmatpush1.msra.mxu0 0.0
        %5030 = vmatprep.subr.mxu0 0.0
        %5031 = vmatpush1.msra.mxu0 0.0
        %5032 = vmatprep.subr.mxu0 0.0
        %5033 = vmatpush1.msra.mxu0 0.0
        %5034 = vmatprep.subr.mxu0 0.0
        %5035 = vmatpush1.msra.mxu0 0.0
        %5036 = vmatprep.subr.mxu0 0.0
        %5037 = vmatpush1.msra.mxu0 0.0
        %5038 = vmatprep.subr.mxu0 0.0
        %5039 = vmatpush1.msra.mxu0 0.0
        %5040 = vmatprep.subr.mxu0 0.0
        %5041 = vmatpush1.msra.mxu0 0.0
        %5042 = vmatprep.subr.mxu0 0.0
        %5043 = vmatpush1.msra.mxu0 0.0
        %5044 = vmatprep.subr.mxu0 0.0
        %5045 = vmatpush1.msra.mxu0 0.0
        %5046 = vmatprep.subr.mxu0 0.0
        %5047 = vmatpush1.msra.mxu0 0.0
        %5048 = vmatprep.subr.mxu0 0.0
        %5049 = vmatpush1.msra.mxu0 0.0
        %5050 = vmatprep.subr.mxu0 0.0
        %5051 = vmatpush1.msra.mxu0 0.0
        %5052 = vmatprep.subr.mxu0 0.0
        %5053 = vmatpush1.msra.mxu0 0.0
        %5054 = vmatprep.subr.mxu0 0.0
        %5055 = vmatpush1.msra.mxu0 0.0
        %5056 = vmatprep.subr.mxu0 0.0
        %5057 = vmatpush1.msra.mxu0 0.0
        %5058 = vmatprep.subr.mxu0 0.0
        %5059 = vmatpush1.msra.mxu0 0.0
        %5060 = vmatprep.subr.mxu0 0.0
        %5061 = vmatpush1.msra.mxu0 0.0
        %5062 = vmatprep.subr.mxu0 0.0
        %5063 = vmatpush1.msra.mxu0 0.0
        %5064 = vmatprep.subr.mxu0 0.0
        %5065 = vmatpush1.msra.mxu0 0.0
        %5066 = vmatprep.subr.mxu0 0.0
        %5067 = vmatpush1.msra.mxu0 0.0
        %5068 = vmatprep.subr.mxu0 0.0
        %5069 = vmatpush1.msra.mxu0 0.0
        %5070 = vmatprep.subr.mxu0 0.0
        %5071 = vmatpush1.msra.mxu0 0.0
        %5072 = vmatprep.mubr.f32.mxu0 0.0
        %5073 = vmatmul.mubr.f32.gmra.mrb[0].mxu0 %v369
        %v5074 = vpop.f32.mrb[0].mxu0
        %v5075 = vadd.f32 %v337, %v5074
        %v5076 = vpop.f32.mrb[0].mxu0
        %5077 = vmatprep.mubr.f32.mxu0 0.0
        %5078 = vmatmul.mubr.f32.gmra.mrb[0].mxu0 %v372
        %v5079 = vpop.f32.mrb[0].mxu0
        %v5080 = vadd.f32 %v343, %v5079
        %v5081 = vpop.f32.mrb[0].mxu0
        %5082 = vmatprep.mubr.f32.mxu0 0.0
        %5083 = vmatmul.mubr.f32.gmra.mrb[0].mxu0 %v375
        %v5084 = vpop.f32.mrb[0].mxu0
        %v5085 = vadd.f32 %v349, %v5084
        %v5086 = vpop.f32.mrb[0].mxu0
        %5087 = vmatprep.mubr.f32.mxu0 0.0
        %5088 = vmatmul.mubr.f32.gmra.mrb[0].mxu0 %v378
        %v5089 = vpop.f32.mrb[0].mxu0
        %v5090 = vadd.f32 %v355, %v5089
        %v5091 = vpop.f32.mrb[0].mxu0
        %5092 = vdwg.mxu0
        %v5093 = vmax.f32 %v5075, 0.0
        %v5094 = vmax.f32 %v5080, 0.0
        %v5095 = vmax.f32 %v5085, 0.0
        %v5096 = vmax.f32 %v5090, 0.0
        %5097 = vmatprep.subr.mxu0 0.0
        %5098 = vmatpush1.msra.mxu0 %v5004
        %5099 = vmatprep.subr.mxu0 0.0
        %5100 = vmatpush1.msra.mxu0 %v5005
        %5101 = vmatprep.subr.mxu0 0.0
        %5102 = vmatpush1.msra.mxu0 %v5006
        %5103 = vmatprep.subr.mxu0 0.0
        %5104 = vmatpush1.msra.mxu0 %v5007
        %5105 = vmatprep.subr.mxu0 0.0
        %5106 = vmatpush1.msra.mxu0 0.0
        %5107 = vmatprep.subr.mxu0 0.0
        %5108 = vmatpush1.msra.mxu0 0.0
        %5109 = vmatprep.subr.mxu0 0.0
        %5110 = vmatpush1.msra.mxu0 0.0
        %5111 = vmatprep.subr.mxu0 0.0
        %5112 = vmatpush1.msra.mxu0 0.0
        %5113 = vmatprep.subr.mxu0 0.0
        %5114 = vmatpush1.msra.mxu0 0.0
        %5115 = vmatprep.subr.mxu0 0.0
        %5116 = vmatpush1.msra.mxu0 0.0
        %5117 = vmatprep.subr.mxu0 0.0
        %5118 = vmatpush1.msra.mxu0 0.0
        %5119 = vmatprep.subr.mxu0 0.0
        %5120 = vmatpush1.msra.mxu0 0.0
        %5121 = vmatprep.subr.mxu0 0.0
        %5122 = vmatpush1.msra.mxu0 0.0
        %5123 = vmatprep.subr.mxu0 0.0
        %5124 = vmatpush1.msra.mxu0 0.0
        %5125 = vmatprep.subr.mxu0 0.0
        %5126 = vmatpush1.msra.mxu0 0.0
        %5127 = vmatprep.subr.mxu0 0.0
        %5128 = vmatpush1.msra.mxu0 0.0
        %5129 = vmatprep.subr.mxu0 0.0
        %5130 = vmatpush1.msra.mxu0 0.0
        %5131 = vmatprep.subr.mxu0 0.0
        %5132 = vmatpush1.msra.mxu0 0.0
        %5133 = vmatprep.subr.mxu0 0.0
        %5134 = vmatpush1.msra.mxu0 0.0
        %5135 = vmatprep.subr.mxu0 0.0
        %5136 = vmatpush1.msra.mxu0 0.0
        %5137 = vmatprep.subr.mxu0 0.0
        %5138 = vmatpush1.msra.mxu0 0.0
        %5139 = vmatprep.subr.mxu0 0.0
        %5140 = vmatpush1.msra.mxu0 0.0
        %5141 = vmatprep.subr.mxu0 0.0
        %5142 = vmatpush1.msra.mxu0 0.0
        %5143 = vmatprep.subr.mxu0 0.0
        %5144 = vmatpush1.msra.mxu0 0.0
        %5145 = vmatprep.subr.mxu0 0.0
        %5146 = vmatpush1.msra.mxu0 0.0
        %5147 = vmatprep.subr.mxu0 0.0
        %5148 = vmatpush1.msra.mxu0 0.0
        %5149 = vmatprep.subr.mxu0 0.0
        %5150 = vmatpush1.msra.mxu0 0.0
        %5151 = vmatprep.subr.mxu0 0.0
        %5152 = vmatpush1.msra.mxu0 0.0
        %5153 = vmatprep.subr.mxu0 0.0
        %5154 = vmatpush1.msra.mxu0 0.0
        %5155 = vmatprep.subr.mxu0 0.0
        %5156 = vmatpush1.msra.mxu0 0.0
        %5157 = vmatprep.subr.mxu0 0.0
        %5158 = vmatpush1.msra.mxu0 0.0
        %5159 = vmatprep.subr.mxu0 0.0
        %5160 = vmatpush1.msra.mxu0 0.0
        %5161 = vmatprep.mubr.f32.mxu0 0.0
        %5162 = vmatmul.mubr.f32.gmra.mrb[0].mxu0 %v369
        %v5163 = vpop.f32.mrb[0].mxu0
        %v5164 = vadd.f32 %v339, %v5163
        %v5165 = vpop.f32.mrb[0].mxu0
        %5166 = vmatprep.mubr.f32.mxu0 0.0
        %5167 = vmatmul.mubr.f32.gmra.mrb[0].mxu0 %v372
        %v5168 = vpop.f32.mrb[0].mxu0
        %v5169 = vadd.f32 %v345, %v5168
        %v5170 = vpop.f32.mrb[0].mxu0
        %5171 = vmatprep.mubr.f32.mxu0 0.0
        %5172 = vmatmul.mubr.f32.gmra.mrb[0].mxu0 %v375
        %v5173 = vpop.f32.mrb[0].mxu0
        %v5174 = vadd.f32 %v351, %v5173
        %v5175 = vpop.f32.mrb[0].mxu0
        %5176 = vmatprep.mubr.f32.mxu0 0.0
        %5177 = vmatmul.mubr.f32.gmra.mrb[0].mxu0 %v378
        %v5178 = vpop.f32.mrb[0].mxu0
        %v5179 = vadd.f32 %v357, %v5178
        %v5180 = vpop.f32.mrb[0].mxu0
        %5181 = vdwg.mxu0
        %v5182 = vmax.f32 %v5164, 0.0
        %v5183 = vmax.f32 %v5169, 0.0
        %v5184 = vmax.f32 %v5174, 0.0
        %v5185 = vmax.f32 %v5179, 0.0
        %5186 = vmatprep.subr.mxu0 0.0
        %5187 = vmatpush1.msra.mxu0 %v5093
        %5188 = vmatprep.subr.mxu0 0.0
        %5189 = vmatpush1.msra.mxu0 %v5094
        %5190 = vmatprep.subr.mxu0 0.0
        %5191 = vmatpush1.msra.mxu0 %v5095
        %5192 = vmatprep.subr.mxu0 0.0
        %5193 = vmatpush1.msra.mxu0 %v5096
        %5194 = vmatprep.subr.mxu0 0.0
        %5195 = vmatpush1.msra.mxu0 0.0
        %5196 = vmatprep.subr.mxu0 0.0
        %5197 = vmatpush1.msra.mxu0 0.0
        %5198 = vmatprep.subr.mxu0 0.0
        %5199 = vmatpush1.msra.mxu0 0.0
        %5200 = vmatprep.subr.mxu0 0.0
        %5201 = vmatpush1.msra.mxu0 0.0
        %5202 = vmatprep.subr.mxu0 0.0
        %5203 = vmatpush1.msra.mxu0 0.0
        %5204 = vmatprep.subr.mxu0 0.0
        %5205 = vmatpush1.msra.mxu0 0.0
        %5206 = vmatprep.subr.mxu0 0.0
        %5207 = vmatpush1.msra.mxu0 0.0
        %5208 = vmatprep.subr.mxu0 0.0
        %5209 = vmatpush1.msra.mxu0 0.0
        %5210 = vmatprep.subr.mxu0 0.0
        %5211 = vmatpush1.msra.mxu0 0.0
        %5212 = vmatprep.subr.mxu0 0.0
        %5213 = vmatpush1.msra.mxu0 0.0
        %5214 = vmatprep.subr.mxu0 0.0
        %5215 = vmatpush1.msra.mxu0 0.0
        %5216 = vmatprep.subr.mxu0 0.0
        %5217 = vmatpush1.msra.mxu0 0.0
        %5218 = vmatprep.subr.mxu0 0.0
        %5219 = vmatpush1.msra.mxu0 0.0
        %5220 = vmatprep.subr.mxu0 0.0
        %5221 = vmatpush1.msra.mxu0 0.0
        %5222 = vmatprep.subr.mxu0 0.0
        %5223 = vmatpush1.msra.mxu0 0.0
        %5224 = vmatprep.subr.mxu0 0.0
        %5225 = vmatpush1.msra.mxu0 0.0
        %5226 = vmatprep.subr.mxu0 0.0
        %5227 = vmatpush1.msra.mxu0 0.0
        %5228 = vmatprep.subr.mxu0 0.0
        %5229 = vmatpush1.msra.mxu0 0.0
        %5230 = vmatprep.subr.mxu0 0.0
        %5231 = vmatpush1.msra.mxu0 0.0
        %5232 = vmatprep.subr.mxu0 0.0
        %5233 = vmatpush1.msra.mxu0 0.0
        %5234 = vmatprep.subr.mxu0 0.0
        %5235 = vmatpush1.msra.mxu0 0.0
        %5236 = vmatprep.subr.mxu0 0.0
        %5237 = vmatpush1.msra.mxu0 0.0
        %5238 = vmatprep.subr.mxu0 0.0
        %5239 = vmatpush1.msra.mxu0 0.0
        %5240 = vmatprep.subr.mxu0 0.0
        %5241 = vmatpush1.msra.mxu0 0.0
        %5242 = vmatprep.subr.mxu0 0.0
        %5243 = vmatpush1.msra.mxu0 0.0
        %5244 = vmatprep.subr.mxu0 0.0
        %5245 = vmatpush1.msra.mxu0 0.0
        %5246 = vmatprep.subr.mxu0 0.0
        %5247 = vmatpush1.msra.mxu0 0.0
        %5248 = vmatprep.subr.mxu0 0.0
        %5249 = vmatpush1.msra.mxu0 0.0
        %5250 = vmatprep.mubr.f32.mxu0 0.0
        %5251 = vmatmul.mubr.f32.gmra.mrb[0].mxu0 %v369
        %v5252 = vpop.f32.mrb[0].mxu0
        %v5253 = vadd.f32 %v337, %v5252
        %v5254 = vpop.f32.mrb[0].mxu0
        %5255 = vmatprep.mubr.f32.mxu0 0.0
        %5256 = vmatmul.mubr.f32.gmra.mrb[0].mxu0 %v372
        %v5257 = vpop.f32.mrb[0].mxu0
        %v5258 = vadd.f32 %v343, %v5257
        %v5259 = vpop.f32.mrb[0].mxu0
        %5260 = vmatprep.mubr.f32.mxu0 0.0
        %5261 = vmatmul.mubr.f32.gmra.mrb[0].mxu0 %v375
        %v5262 = vpop.f32.mrb[0].mxu0
        %v5263 = vadd.f32 %v349, %v5262
        %v5264 = vpop.f32.mrb[0].mxu0
        %5265 = vmatprep.mubr.f32.mxu0 0.0
        %5266 = vmatmul.mubr.f32.gmra.mrb[0].mxu0 %v378
        %v5267 = vpop.f32.mrb[0].mxu0
        %v5268 = vadd.f32 %v355, %v5267
        %v5269 = vpop.f32.mrb[0].mxu0
        %5270 = vdwg.mxu0
        %v5271 = vmax.f32 %v5253, 0.0
        %v5272 = vmax.f32 %v5258, 0.0
        %v5273 = vmax.f32 %v5263, 0.0
        %v5274 = vmax.f32 %v5268, 0.0
        %5275 = vmatprep.subr.mxu0 0.0
        %5276 = vmatpush1.msra.mxu0 %v5182
        %5277 = vmatprep.subr.mxu0 0.0
        %5278 = vmatpush1.msra.mxu0 %v5183
        %5279 = vmatprep.subr.mxu0 0.0
        %5280 = vmatpush1.msra.mxu0 %v5184
        %5281 = vmatprep.subr.mxu0 0.0
        %5282 = vmatpush1.msra.mxu0 %v5185
        %5283 = vmatprep.subr.mxu0 0.0
        %5284 = vmatpush1.msra.mxu0 0.0
        %5285 = vmatprep.subr.mxu0 0.0
        %5286 = vmatpush1.msra.mxu0 0.0
        %5287 = vmatprep.subr.mxu0 0.0
        %5288 = vmatpush1.msra.mxu0 0.0
        %5289 = vmatprep.subr.mxu0 0.0
        %5290 = vmatpush1.msra.mxu0 0.0
        %5291 = vmatprep.subr.mxu0 0.0
        %5292 = vmatpush1.msra.mxu0 0.0
        %5293 = vmatprep.subr.mxu0 0.0
        %5294 = vmatpush1.msra.mxu0 0.0
        %5295 = vmatprep.subr.mxu0 0.0
        %5296 = vmatpush1.msra.mxu0 0.0
        %5297 = vmatprep.subr.mxu0 0.0
        %5298 = vmatpush1.msra.mxu0 0.0
        %5299 = vmatprep.subr.mxu0 0.0
        %5300 = vmatpush1.msra.mxu0 0.0
        %5301 = vmatprep.subr.mxu0 0.0
        %5302 = vmatpush1.msra.mxu0 0.0
        %5303 = vmatprep.subr.mxu0 0.0
        %5304 = vmatpush1.msra.mxu0 0.0
        %5305 = vmatprep.subr.mxu0 0.0
        %5306 = vmatpush1.msra.mxu0 0.0
        %5307 = vmatprep.subr.mxu0 0.0
        %5308 = vmatpush1.msra.mxu0 0.0
        %5309 = vmatprep.subr.mxu0 0.0
        %5310 = vmatpush1.msra.mxu0 0.0
        %5311 = vmatprep.subr.mxu0 0.0
        %5312 = vmatpush1.msra.mxu0 0.0
        %5313 = vmatprep.subr.mxu0 0.0
        %5314 = vmatpush1.msra.mxu0 0.0
        %5315 = vmatprep.subr.mxu0 0.0
        %5316 = vmatpush1.msra.mxu0 0.0
        %5317 = vmatprep.subr.mxu0 0.0
        %5318 = vmatpush1.msra.mxu0 0.0
        %5319 = vmatprep.subr.mxu0 0.0
        %5320 = vmatpush1.msra.mxu0 0.0
        %5321 = vmatprep.subr.mxu0 0.0
        %5322 = vmatpush1.msra.mxu0 0.0
        %5323 = vmatprep.subr.mxu0 0.0
        %5324 = vmatpush1.msra.mxu0 0.0
        %5325 = vmatprep.subr.mxu0 0.0
        %5326 = vmatpush1.msra.mxu0 0.0
        %5327 = vmatprep.subr.mxu0 0.0
        %5328 = vmatpush1.msra.mxu0 0.0
        %5329 = vmatprep.subr.mxu0 0.0
        %5330 = vmatpush1.msra.mxu0 0.0
        %5331 = vmatprep.subr.mxu0 0.0
        %5332 = vmatpush1.msra.mxu0 0.0
        %5333 = vmatprep.subr.mxu0 0.0
        %5334 = vmatpush1.msra.mxu0 0.0
        %5335 = vmatprep.subr.mxu0 0.0
        %5336 = vmatpush1.msra.mxu0 0.0
        %5337 = vmatprep.subr.mxu0 0.0
        %5338 = vmatpush1.msra.mxu0 0.0
        %5339 = vmatprep.mubr.f32.mxu0 0.0
        %5340 = vmatmul.mubr.f32.gmra.mrb[0].mxu0 %v369
        %v5341 = vpop.f32.mrb[0].mxu0
        %v5342 = vadd.f32 %v339, %v5341
        %v5343 = vpop.f32.mrb[0].mxu0
        %5344 = vmatprep.mubr.f32.mxu0 0.0
        %5345 = vmatmul.mubr.f32.gmra.mrb[0].mxu0 %v372
        %v5346 = vpop.f32.mrb[0].mxu0
        %v5347 = vadd.f32 %v345, %v5346
        %v5348 = vpop.f32.mrb[0].mxu0
        %5349 = vmatprep.mubr.f32.mxu0 0.0
        %5350 = vmatmul.mubr.f32.gmra.mrb[0].mxu0 %v375
        %v5351 = vpop.f32.mrb[0].mxu0
        %v5352 = vadd.f32 %v351, %v5351
        %v5353 = vpop.f32.mrb[0].mxu0
        %5354 = vmatprep.mubr.f32.mxu0 0.0
        %5355 = vmatmul.mubr.f32.gmra.mrb[0].mxu0 %v378
        %v5356 = vpop.f32.mrb[0].mxu0
        %v5357 = vadd.f32 %v357, %v5356
        %v5358 = vpop.f32.mrb[0].mxu0
        %5359 = vdwg.mxu0
        %v5360 = vmax.f32 %v5342, 0.0
        %v5361 = vmax.f32 %v5347, 0.0
        %v5362 = vmax.f32 %v5352, 0.0
        %v5363 = vmax.f32 %v5357, 0.0
        %5364 = vmatprep.subr.mxu0 0.0
        %5365 = vmatpush1.msra.mxu0 %v5271
        %5366 = vmatprep.subr.mxu0 0.0
        %5367 = vmatpush1.msra.mxu0 %v5272
        %5368 = vmatprep.subr.mxu0 0.0
        %5369 = vmatpush1.msra.mxu0 %v5273
        %5370 = vmatprep.subr.mxu0 0.0
        %5371 = vmatpush1.msra.mxu0 %v5274
        %5372 = vmatprep.subr.mxu0 0.0
        %5373 = vmatpush1.msra.mxu0 0.0
        %5374 = vmatprep.subr.mxu0 0.0
        %5375 = vmatpush1.msra.mxu0 0.0
        %5376 = vmatprep.subr.mxu0 0.0
        %5377 = vmatpush1.msra.mxu0 0.0
        %5378 = vmatprep.subr.mxu0 0.0
        %5379 = vmatpush1.msra.mxu0 0.0
        %5380 = vmatprep.subr.mxu0 0.0
        %5381 = vmatpush1.msra.mxu0 0.0
        %5382 = vmatprep.subr.mxu0 0.0
        %5383 = vmatpush1.msra.mxu0 0.0
        %5384 = vmatprep.subr.mxu0 0.0
        %5385 = vmatpush1.msra.mxu0 0.0
        %5386 = vmatprep.subr.mxu0 0.0
        %5387 = vmatpush1.msra.mxu0 0.0
        %5388 = vmatprep.subr.mxu0 0.0
        %5389 = vmatpush1.msra.mxu0 0.0
        %5390 = vmatprep.subr.mxu0 0.0
        %5391 = vmatpush1.msra.mxu0 0.0
        %5392 = vmatprep.subr.mxu0 0.0
        %5393 = vmatpush1.msra.mxu0 0.0
        %5394 = vmatprep.subr.mxu0 0.0
        %5395 = vmatpush1.msra.mxu0 0.0
        %5396 = vmatprep.subr.mxu0 0.0
        %5397 = vmatpush1.msra.mxu0 0.0
        %5398 = vmatprep.subr.mxu0 0.0
        %5399 = vmatpush1.msra.mxu0 0.0
        %5400 = vmatprep.subr.mxu0 0.0
        %5401 = vmatpush1.msra.mxu0 0.0
        %5402 = vmatprep.subr.mxu0 0.0
        %5403 = vmatpush1.msra.mxu0 0.0
        %5404 = vmatprep.subr.mxu0 0.0
        %5405 = vmatpush1.msra.mxu0 0.0
        %5406 = vmatprep.subr.mxu0 0.0
        %5407 = vmatpush1.msra.mxu0 0.0
        %5408 = vmatprep.subr.mxu0 0.0
        %5409 = vmatpush1.msra.mxu0 0.0
        %5410 = vmatprep.subr.mxu0 0.0
        %5411 = vmatpush1.msra.mxu0 0.0
        %5412 = vmatprep.subr.mxu0 0.0
        %5413 = vmatpush1.msra.mxu0 0.0
        %5414 = vmatprep.subr.mxu0 0.0
        %5415 = vmatpush1.msra.mxu0 0.0
        %5416 = vmatprep.subr.mxu0 0.0
        %5417 = vmatpush1.msra.mxu0 0.0
        %5418 = vmatprep.subr.mxu0 0.0
        %5419 = vmatpush1.msra.mxu0 0.0
        %5420 = vmatprep.subr.mxu0 0.0
        %5421 = vmatpush1.msra.mxu0 0.0
        %5422 = vmatprep.subr.mxu0 0.0
        %5423 = vmatpush1.msra.mxu0 0.0
        %5424 = vmatprep.subr.mxu0 0.0
        %5425 = vmatpush1.msra.mxu0 0.0
        %5426 = vmatprep.subr.mxu0 0.0
        %5427 = vmatpush1.msra.mxu0 0.0
        %5428 = vmatprep.mubr.f32.mxu0 0.0
        %5429 = vmatmul.mubr.f32.gmra.mrb[0].mxu0 %v369
        %v5430 = vpop.f32.mrb[0].mxu0
        %v5431 = vadd.f32 %v337, %v5430
        %v5432 = vpop.f32.mrb[0].mxu0
        %5433 = vmatprep.mubr.f32.mxu0 0.0
        %5434 = vmatmul.mubr.f32.gmra.mrb[0].mxu0 %v372
        %v5435 = vpop.f32.mrb[0].mxu0
        %v5436 = vadd.f32 %v343, %v5435
        %v5437 = vpop.f32.mrb[0].mxu0
        %5438 = vmatprep.mubr.f32.mxu0 0.0
        %5439 = vmatmul.mubr.f32.gmra.mrb[0].mxu0 %v375
        %v5440 = vpop.f32.mrb[0].mxu0
        %v5441 = vadd.f32 %v349, %v5440
        %v5442 = vpop.f32.mrb[0].mxu0
        %5443 = vmatprep.mubr.f32.mxu0 0.0
        %5444 = vmatmul.mubr.f32.gmra.mrb[0].mxu0 %v378
        %v5445 = vpop.f32.mrb[0].mxu0
        %v5446 = vadd.f32 %v355, %v5445
        %v5447 = vpop.f32.mrb[0].mxu0
        %5448 = vdwg.mxu0
        %v5449 = vmax.f32 %v5431, 0.0
        %v5450 = vmax.f32 %v5436, 0.0
        %v5451 = vmax.f32 %v5441, 0.0
        %v5452 = vmax.f32 %v5446, 0.0
        %5453 = vmatprep.subr.mxu0 0.0
        %5454 = vmatpush1.msra.mxu0 %v5360
        %5455 = vmatprep.subr.mxu0 0.0
        %5456 = vmatpush1.msra.mxu0 %v5361
        %5457 = vmatprep.subr.mxu0 0.0
        %5458 = vmatpush1.msra.mxu0 %v5362
        %5459 = vmatprep.subr.mxu0 0.0
        %5460 = vmatpush1.msra.mxu0 %v5363
        %5461 = vmatprep.subr.mxu0 0.0
        %5462 = vmatpush1.msra.mxu0 0.0
        %5463 = vmatprep.subr.mxu0 0.0
        %5464 = vmatpush1.msra.mxu0 0.0
        %5465 = vmatprep.subr.mxu0 0.0
        %5466 = vmatpush1.msra.mxu0 0.0
        %5467 = vmatprep.subr.mxu0 0.0
        %5468 = vmatpush1.msra.mxu0 0.0
        %5469 = vmatprep.subr.mxu0 0.0
        %5470 = vmatpush1.msra.mxu0 0.0
        %5471 = vmatprep.subr.mxu0 0.0
        %5472 = vmatpush1.msra.mxu0 0.0
        %5473 = vmatprep.subr.mxu0 0.0
        %5474 = vmatpush1.msra.mxu0 0.0
        %5475 = vmatprep.subr.mxu0 0.0
        %5476 = vmatpush1.msra.mxu0 0.0
        %5477 = vmatprep.subr.mxu0 0.0
        %5478 = vmatpush1.msra.mxu0 0.0
        %5479 = vmatprep.subr.mxu0 0.0
        %5480 = vmatpush1.msra.mxu0 0.0
        %5481 = vmatprep.subr.mxu0 0.0
        %5482 = vmatpush1.msra.mxu0 0.0
        %5483 = vmatprep.subr.mxu0 0.0
        %5484 = vmatpush1.msra.mxu0 0.0
        %5485 = vmatprep.subr.mxu0 0.0
        %5486 = vmatpush1.msra.mxu0 0.0
        %5487 = vmatprep.subr.mxu0 0.0
        %5488 = vmatpush1.msra.mxu0 0.0
        %5489 = vmatprep.subr.mxu0 0.0
        %5490 = vmatpush1.msra.mxu0 0.0
        %5491 = vmatprep.subr.mxu0 0.0
        %5492 = vmatpush1.msra.mxu0 0.0
        %5493 = vmatprep.subr.mxu0 0.0
        %5494 = vmatpush1.msra.mxu0 0.0
        %5495 = vmatprep.subr.mxu0 0.0
        %5496 = vmatpush1.msra.mxu0 0.0
        %5497 = vmatprep.subr.mxu0 0.0
        %5498 = vmatpush1.msra.mxu0 0.0
        %5499 = vmatprep.subr.mxu0 0.0
        %5500 = vmatpush1.msra.mxu0 0.0
        %5501 = vmatprep.subr.mxu0 0.0
        %5502 = vmatpush1.msra.mxu0 0.0
        %5503 = vmatprep.subr.mxu0 0.0
        %5504 = vmatpush1.msra.mxu0 0.0
        %5505 = vmatprep.subr.mxu0 0.0
        %5506 = vmatpush1.msra.mxu0 0.0
        %5507 = vmatprep.subr.mxu0 0.0
        %5508 = vmatpush1.msra.mxu0 0.0
        %5509 = vmatprep.subr.mxu0 0.0
        %5510 = vmatpush1.msra.mxu0 0.0
        %5511 = vmatprep.subr.mxu0 0.0
        %5512 = vmatpush1.msra.mxu0 0.0
        %5513 = vmatprep.subr.mxu0 0.0
        %5514 = vmatpush1.msra.mxu0 0.0
        %5515 = vmatprep.subr.mxu0 0.0
        %5516 = vmatpush1.msra.mxu0 0.0
        %5517 = vmatprep.mubr.f32.mxu0 0.0
        %5518 = vmatmul.mubr.f32.gmra.mrb[0].mxu0 %v369
        %v5519 = vpop.f32.mrb[0].mxu0
        %v5520 = vadd.f32 %v339, %v5519
        %v5521 = vpop.f32.mrb[0].mxu0
        %5522 = vmatprep.mubr.f32.mxu0 0.0
        %5523 = vmatmul.mubr.f32.gmra.mrb[0].mxu0 %v372
        %v5524 = vpop.f32.mrb[0].mxu0
        %v5525 = vadd.f32 %v345, %v5524
        %v5526 = vpop.f32.mrb[0].mxu0
        %5527 = vmatprep.mubr.f32.mxu0 0.0
        %5528 = vmatmul.mubr.f32.gmra.mrb[0].mxu0 %v375
        %v5529 = vpop.f32.mrb[0].mxu0
        %v5530 = vadd.f32 %v351, %v5529
        %v5531 = vpop.f32.mrb[0].mxu0
        %5532 = vmatprep.mubr.f32.mxu0 0.0
        %5533 = vmatmul.mubr.f32.gmra.mrb[0].mxu0 %v378
        %v5534 = vpop.f32.mrb[0].mxu0
        %v5535 = vadd.f32 %v357, %v5534
        %v5536 = vpop.f32.mrb[0].mxu0
        %5537 = vdwg.mxu0
        %v5538 = vmax.f32 %v5520, 0.0
        %v5539 = vmax.f32 %v5525, 0.0
        %v5540 = vmax.f32 %v5530, 0.0
        %v5541 = vmax.f32 %v5535, 0.0
        %5542 = vmatprep.subr.mxu0 0.0
        %5543 = vmatpush1.msra.mxu0 %v5449
        %5544 = vmatprep.subr.mxu0 0.0
        %5545 = vmatpush1.msra.mxu0 %v5450
        %5546 = vmatprep.subr.mxu0 0.0
        %5547 = vmatpush1.msra.mxu0 %v5451
        %5548 = vmatprep.subr.mxu0 0.0
        %5549 = vmatpush1.msra.mxu0 %v5452
        %5550 = vmatprep.subr.mxu0 0.0
        %5551 = vmatpush1.msra.mxu0 0.0
        %5552 = vmatprep.subr.mxu0 0.0
        %5553 = vmatpush1.msra.mxu0 0.0
        %5554 = vmatprep.subr.mxu0 0.0
        %5555 = vmatpush1.msra.mxu0 0.0
        %5556 = vmatprep.subr.mxu0 0.0
        %5557 = vmatpush1.msra.mxu0 0.0
        %5558 = vmatprep.subr.mxu0 0.0
        %5559 = vmatpush1.msra.mxu0 0.0
        %5560 = vmatprep.subr.mxu0 0.0
        %5561 = vmatpush1.msra.mxu0 0.0
        %5562 = vmatprep.subr.mxu0 0.0
        %5563 = vmatpush1.msra.mxu0 0.0
        %5564 = vmatprep.subr.mxu0 0.0
        %5565 = vmatpush1.msra.mxu0 0.0
        %5566 = vmatprep.subr.mxu0 0.0
        %5567 = vmatpush1.msra.mxu0 0.0
        %5568 = vmatprep.subr.mxu0 0.0
        %5569 = vmatpush1.msra.mxu0 0.0
        %5570 = vmatprep.subr.mxu0 0.0
        %5571 = vmatpush1.msra.mxu0 0.0
        %5572 = vmatprep.subr.mxu0 0.0
        %5573 = vmatpush1.msra.mxu0 0.0
        %5574 = vmatprep.subr.mxu0 0.0
        %5575 = vmatpush1.msra.mxu0 0.0
        %5576 = vmatprep.subr.mxu0 0.0
        %5577 = vmatpush1.msra.mxu0 0.0
        %5578 = vmatprep.subr.mxu0 0.0
        %5579 = vmatpush1.msra.mxu0 0.0
        %5580 = vmatprep.subr.mxu0 0.0
        %5581 = vmatpush1.msra.mxu0 0.0
        %5582 = vmatprep.subr.mxu0 0.0
        %5583 = vmatpush1.msra.mxu0 0.0
        %5584 = vmatprep.subr.mxu0 0.0
        %5585 = vmatpush1.msra.mxu0 0.0
        %5586 = vmatprep.subr.mxu0 0.0
        %5587 = vmatpush1.msra.mxu0 0.0
        %5588 = vmatprep.subr.mxu0 0.0
        %5589 = vmatpush1.msra.mxu0 0.0
        %5590 = vmatprep.subr.mxu0 0.0
        %5591 = vmatpush1.msra.mxu0 0.0
        %5592 = vmatprep.subr.mxu0 0.0
        %5593 = vmatpush1.msra.mxu0 0.0
        %5594 = vmatprep.subr.mxu0 0.0
        %5595 = vmatpush1.msra.mxu0 0.0
        %5596 = vmatprep.subr.mxu0 0.0
        %5597 = vmatpush1.msra.mxu0 0.0
        %5598 = vmatprep.subr.mxu0 0.0
        %5599 = vmatpush1.msra.mxu0 0.0
        %5600 = vmatprep.subr.mxu0 0.0
        %5601 = vmatpush1.msra.mxu0 0.0
        %5602 = vmatprep.subr.mxu0 0.0
        %5603 = vmatpush1.msra.mxu0 0.0
        %5604 = vmatprep.subr.mxu0 0.0
        %5605 = vmatpush1.msra.mxu0 0.0
        %5606 = vmatprep.mubr.f32.mxu0 0.0
        %5607 = vmatmul.mubr.f32.gmra.mrb[0].mxu0 %v369
        %v5608 = vpop.f32.mrb[0].mxu0
        %v5609 = vadd.f32 %v337, %v5608
        %v5610 = vpop.f32.mrb[0].mxu0
        %5611 = vmatprep.mubr.f32.mxu0 0.0
        %5612 = vmatmul.mubr.f32.gmra.mrb[0].mxu0 %v372
        %v5613 = vpop.f32.mrb[0].mxu0
        %v5614 = vadd.f32 %v343, %v5613
        %v5615 = vpop.f32.mrb[0].mxu0
        %5616 = vmatprep.mubr.f32.mxu0 0.0
        %5617 = vmatmul.mubr.f32.gmra.mrb[0].mxu0 %v375
        %v5618 = vpop.f32.mrb[0].mxu0
        %v5619 = vadd.f32 %v349, %v5618
        %v5620 = vpop.f32.mrb[0].mxu0
        %5621 = vmatprep.mubr.f32.mxu0 0.0
        %5622 = vmatmul.mubr.f32.gmra.mrb[0].mxu0 %v378
        %v5623 = vpop.f32.mrb[0].mxu0
        %v5624 = vadd.f32 %v355, %v5623
        %v5625 = vpop.f32.mrb[0].mxu0
        %5626 = vdwg.mxu0
        %v5627 = vmax.f32 %v5609, 0.0
        %v5628 = vmax.f32 %v5614, 0.0
        %v5629 = vmax.f32 %v5619, 0.0
        %v5630 = vmax.f32 %v5624, 0.0
        %5631 = vmatprep.subr.mxu0 0.0
        %5632 = vmatpush1.msra.mxu0 %v5538
        %5633 = vmatprep.subr.mxu0 0.0
        %5634 = vmatpush1.msra.mxu0 %v5539
        %5635 = vmatprep.subr.mxu0 0.0
        %5636 = vmatpush1.msra.mxu0 %v5540
        %5637 = vmatprep.subr.mxu0 0.0
        %5638 = vmatpush1.msra.mxu0 %v5541
        %5639 = vmatprep.subr.mxu0 0.0
        %5640 = vmatpush1.msra.mxu0 0.0
        %5641 = vmatprep.subr.mxu0 0.0
        %5642 = vmatpush1.msra.mxu0 0.0
        %5643 = vmatprep.subr.mxu0 0.0
        %5644 = vmatpush1.msra.mxu0 0.0
        %5645 = vmatprep.subr.mxu0 0.0
        %5646 = vmatpush1.msra.mxu0 0.0
        %5647 = vmatprep.subr.mxu0 0.0
        %5648 = vmatpush1.msra.mxu0 0.0
        %5649 = vmatprep.subr.mxu0 0.0
        %5650 = vmatpush1.msra.mxu0 0.0
        %5651 = vmatprep.subr.mxu0 0.0
        %5652 = vmatpush1.msra.mxu0 0.0
        %5653 = vmatprep.subr.mxu0 0.0
        %5654 = vmatpush1.msra.mxu0 0.0
        %5655 = vmatprep.subr.mxu0 0.0
        %5656 = vmatpush1.msra.mxu0 0.0
        %5657 = vmatprep.subr.mxu0 0.0
        %5658 = vmatpush1.msra.mxu0 0.0
        %5659 = vmatprep.subr.mxu0 0.0
        %5660 = vmatpush1.msra.mxu0 0.0
        %5661 = vmatprep.subr.mxu0 0.0
        %5662 = vmatpush1.msra.mxu0 0.0
        %5663 = vmatprep.subr.mxu0 0.0
        %5664 = vmatpush1.msra.mxu0 0.0
        %5665 = vmatprep.subr.mxu0 0.0
        %5666 = vmatpush1.msra.mxu0 0.0
        %5667 = vmatprep.subr.mxu0 0.0
        %5668 = vmatpush1.msra.mxu0 0.0
        %5669 = vmatprep.subr.mxu0 0.0
        %5670 = vmatpush1.msra.mxu0 0.0
        %5671 = vmatprep.subr.mxu0 0.0
        %5672 = vmatpush1.msra.mxu0 0.0
        %5673 = vmatprep.subr.mxu0 0.0
        %5674 = vmatpush1.msra.mxu0 0.0
        %5675 = vmatprep.subr.mxu0 0.0
        %5676 = vmatpush1.msra.mxu0 0.0
        %5677 = vmatprep.subr.mxu0 0.0
        %5678 = vmatpush1.msra.mxu0 0.0
        %5679 = vmatprep.subr.mxu0 0.0
        %5680 = vmatpush1.msra.mxu0 0.0
        %5681 = vmatprep.subr.mxu0 0.0
        %5682 = vmatpush1.msra.mxu0 0.0
        %5683 = vmatprep.subr.mxu0 0.0
        %5684 = vmatpush1.msra.mxu0 0.0
        %5685 = vmatprep.subr.mxu0 0.0
        %5686 = vmatpush1.msra.mxu0 0.0
        %5687 = vmatprep.subr.mxu0 0.0
        %5688 = vmatpush1.msra.mxu0 0.0
        %5689 = vmatprep.subr.mxu0 0.0
        %5690 = vmatpush1.msra.mxu0 0.0
        %5691 = vmatprep.subr.mxu0 0.0
        %5692 = vmatpush1.msra.mxu0 0.0
        %5693 = vmatprep.subr.mxu0 0.0
        %5694 = vmatpush1.msra.mxu0 0.0
        %5695 = vmatprep.mubr.f32.mxu0 0.0
        %5696 = vmatmul.mubr.f32.gmra.mrb[0].mxu0 %v369
        %v5697 = vpop.f32.mrb[0].mxu0
        %v5698 = vadd.f32 %v339, %v5697
        %v5699 = vpop.f32.mrb[0].mxu0
        %5700 = vmatprep.mubr.f32.mxu0 0.0
        %5701 = vmatmul.mubr.f32.gmra.mrb[0].mxu0 %v372
        %v5702 = vpop.f32.mrb[0].mxu0
        %v5703 = vadd.f32 %v345, %v5702
        %v5704 = vpop.f32.mrb[0].mxu0
        %5705 = vmatprep.mubr.f32.mxu0 0.0
        %5706 = vmatmul.mubr.f32.gmra.mrb[0].mxu0 %v375
        %v5707 = vpop.f32.mrb[0].mxu0
        %v5708 = vadd.f32 %v351, %v5707
        %v5709 = vpop.f32.mrb[0].mxu0
        %5710 = vmatprep.mubr.f32.mxu0 0.0
        %5711 = vmatmul.mubr.f32.gmra.mrb[0].mxu0 %v378
        %v5712 = vpop.f32.mrb[0].mxu0
        %v5713 = vadd.f32 %v357, %v5712
        %v5714 = vpop.f32.mrb[0].mxu0
        %5715 = vdwg.mxu0
        %v5716 = vmax.f32 %v5698, 0.0
        %v5717 = vmax.f32 %v5703, 0.0
        %v5718 = vmax.f32 %v5708, 0.0
        %v5719 = vmax.f32 %v5713, 0.0
        %5720 = vmatprep.subr.mxu0 0.0
        %5721 = vmatpush1.msra.mxu0 %v5627
        %5722 = vmatprep.subr.mxu0 0.0
        %5723 = vmatpush1.msra.mxu0 %v5628
        %5724 = vmatprep.subr.mxu0 0.0
        %5725 = vmatpush1.msra.mxu0 %v5629
        %5726 = vmatprep.subr.mxu0 0.0
        %5727 = vmatpush1.msra.mxu0 %v5630
        %5728 = vmatprep.subr.mxu0 0.0
        %5729 = vmatpush1.msra.mxu0 0.0
        %5730 = vmatprep.subr.mxu0 0.0
        %5731 = vmatpush1.msra.mxu0 0.0
        %5732 = vmatprep.subr.mxu0 0.0
        %5733 = vmatpush1.msra.mxu0 0.0
        %5734 = vmatprep.subr.mxu0 0.0
        %5735 = vmatpush1.msra.mxu0 0.0
        %5736 = vmatprep.subr.mxu0 0.0
        %5737 = vmatpush1.msra.mxu0 0.0
        %5738 = vmatprep.subr.mxu0 0.0
        %5739 = vmatpush1.msra.mxu0 0.0
        %5740 = vmatprep.subr.mxu0 0.0
        %5741 = vmatpush1.msra.mxu0 0.0
        %5742 = vmatprep.subr.mxu0 0.0
        %5743 = vmatpush1.msra.mxu0 0.0
        %5744 = vmatprep.subr.mxu0 0.0
        %5745 = vmatpush1.msra.mxu0 0.0
        %5746 = vmatprep.subr.mxu0 0.0
        %5747 = vmatpush1.msra.mxu0 0.0
        %5748 = vmatprep.subr.mxu0 0.0
        %5749 = vmatpush1.msra.mxu0 0.0
        %5750 = vmatprep.subr.mxu0 0.0
        %5751 = vmatpush1.msra.mxu0 0.0
        %5752 = vmatprep.subr.mxu0 0.0
        %5753 = vmatpush1.msra.mxu0 0.0
        %5754 = vmatprep.subr.mxu0 0.0
        %5755 = vmatpush1.msra.mxu0 0.0
        %5756 = vmatprep.subr.mxu0 0.0
        %5757 = vmatpush1.msra.mxu0 0.0
        %5758 = vmatprep.subr.mxu0 0.0
        %5759 = vmatpush1.msra.mxu0 0.0
        %5760 = vmatprep.subr.mxu0 0.0
        %5761 = vmatpush1.msra.mxu0 0.0
        %5762 = vmatprep.subr.mxu0 0.0
        %5763 = vmatpush1.msra.mxu0 0.0
        %5764 = vmatprep.subr.mxu0 0.0
        %5765 = vmatpush1.msra.mxu0 0.0
        %5766 = vmatprep.subr.mxu0 0.0
        %5767 = vmatpush1.msra.mxu0 0.0
        %5768 = vmatprep.subr.mxu0 0.0
        %5769 = vmatpush1.msra.mxu0 0.0
        %5770 = vmatprep.subr.mxu0 0.0
        %5771 = vmatpush1.msra.mxu0 0.0
        %5772 = vmatprep.subr.mxu0 0.0
        %5773 = vmatpush1.msra.mxu0 0.0
        %5774 = vmatprep.subr.mxu0 0.0
        %5775 = vmatpush1.msra.mxu0 0.0
        %5776 = vmatprep.subr.mxu0 0.0
        %5777 = vmatpush1.msra.mxu0 0.0
        %5778 = vmatprep.subr.mxu0 0.0
        %5779 = vmatpush1.msra.mxu0 0.0
        %5780 = vmatprep.subr.mxu0 0.0
        %5781 = vmatpush1.msra.mxu0 0.0
        %5782 = vmatprep.subr.mxu0 0.0
        %5783 = vmatpush1.msra.mxu0 0.0
        %5784 = vmatprep.mubr.f32.mxu0 0.0
        %5785 = vmatmul.mubr.f32.gmra.mrb[0].mxu0 %v369
        %v5786 = vpop.f32.mrb[0].mxu0
        %v5787 = vadd.f32 %v337, %v5786
        %v5788 = vpop.f32.mrb[0].mxu0
        %5789 = vmatprep.mubr.f32.mxu0 0.0
        %5790 = vmatmul.mubr.f32.gmra.mrb[0].mxu0 %v372
        %v5791 = vpop.f32.mrb[0].mxu0
        %v5792 = vadd.f32 %v343, %v5791
        %v5793 = vpop.f32.mrb[0].mxu0
        %5794 = vmatprep.mubr.f32.mxu0 0.0
        %5795 = vmatmul.mubr.f32.gmra.mrb[0].mxu0 %v375
        %v5796 = vpop.f32.mrb[0].mxu0
        %v5797 = vadd.f32 %v349, %v5796
        %v5798 = vpop.f32.mrb[0].mxu0
        %5799 = vmatprep.mubr.f32.mxu0 0.0
        %5800 = vmatmul.mubr.f32.gmra.mrb[0].mxu0 %v378
        %v5801 = vpop.f32.mrb[0].mxu0
        %v5802 = vadd.f32 %v355, %v5801
        %v5803 = vpop.f32.mrb[0].mxu0
        %5804 = vdwg.mxu0
        %v5805 = vmax.f32 %v5787, 0.0
        %v5806 = vmax.f32 %v5792, 0.0
        %v5807 = vmax.f32 %v5797, 0.0
        %v5808 = vmax.f32 %v5802, 0.0
        %5809 = vmatprep.subr.mxu0 0.0
        %5810 = vmatpush1.msra.mxu0 %v5716
        %5811 = vmatprep.subr.mxu0 0.0
        %5812 = vmatpush1.msra.mxu0 %v5717
        %5813 = vmatprep.subr.mxu0 0.0
        %5814 = vmatpush1.msra.mxu0 %v5718
        %5815 = vmatprep.subr.mxu0 0.0
        %5816 = vmatpush1.msra.mxu0 %v5719
        %5817 = vmatprep.subr.mxu0 0.0
        %5818 = vmatpush1.msra.mxu0 0.0
        %5819 = vmatprep.subr.mxu0 0.0
        %5820 = vmatpush1.msra.mxu0 0.0
        %5821 = vmatprep.subr.mxu0 0.0
        %5822 = vmatpush1.msra.mxu0 0.0
        %5823 = vmatprep.subr.mxu0 0.0
        %5824 = vmatpush1.msra.mxu0 0.0
        %5825 = vmatprep.subr.mxu0 0.0
        %5826 = vmatpush1.msra.mxu0 0.0
        %5827 = vmatprep.subr.mxu0 0.0
        %5828 = vmatpush1.msra.mxu0 0.0
        %5829 = vmatprep.subr.mxu0 0.0
        %5830 = vmatpush1.msra.mxu0 0.0
        %5831 = vmatprep.subr.mxu0 0.0
        %5832 = vmatpush1.msra.mxu0 0.0
        %5833 = vmatprep.subr.mxu0 0.0
        %5834 = vmatpush1.msra.mxu0 0.0
        %5835 = vmatprep.subr.mxu0 0.0
        %5836 = vmatpush1.msra.mxu0 0.0
        %5837 = vmatprep.subr.mxu0 0.0
        %5838 = vmatpush1.msra.mxu0 0.0
        %5839 = vmatprep.subr.mxu0 0.0
        %5840 = vmatpush1.msra.mxu0 0.0
        %5841 = vmatprep.subr.mxu0 0.0
        %5842 = vmatpush1.msra.mxu0 0.0
        %5843 = vmatprep.subr.mxu0 0.0
        %5844 = vmatpush1.msra.mxu0 0.0
        %5845 = vmatprep.subr.mxu0 0.0
        %5846 = vmatpush1.msra.mxu0 0.0
        %5847 = vmatprep.subr.mxu0 0.0
        %5848 = vmatpush1.msra.mxu0 0.0
        %5849 = vmatprep.subr.mxu0 0.0
        %5850 = vmatpush1.msra.mxu0 0.0
        %5851 = vmatprep.subr.mxu0 0.0
        %5852 = vmatpush1.msra.mxu0 0.0
        %5853 = vmatprep.subr.mxu0 0.0
        %5854 = vmatpush1.msra.mxu0 0.0
        %5855 = vmatprep.subr.mxu0 0.0
        %5856 = vmatpush1.msra.mxu0 0.0
        %5857 = vmatprep.subr.mxu0 0.0
        %5858 = vmatpush1.msra.mxu0 0.0
        %5859 = vmatprep.subr.mxu0 0.0
        %5860 = vmatpush1.msra.mxu0 0.0
        %5861 = vmatprep.subr.mxu0 0.0
        %5862 = vmatpush1.msra.mxu0 0.0
        %5863 = vmatprep.subr.mxu0 0.0
        %5864 = vmatpush1.msra.mxu0 0.0
        %5865 = vmatprep.subr.mxu0 0.0
        %5866 = vmatpush1.msra.mxu0 0.0
        %5867 = vmatprep.subr.mxu0 0.0
        %5868 = vmatpush1.msra.mxu0 0.0
        %5869 = vmatprep.subr.mxu0 0.0
        %5870 = vmatpush1.msra.mxu0 0.0
        %5871 = vmatprep.subr.mxu0 0.0
        %5872 = vmatpush1.msra.mxu0 0.0
        %5873 = vmatprep.mubr.f32.mxu0 0.0
        %5874 = vmatmul.mubr.f32.gmra.mrb[0].mxu0 %v369
        %v5875 = vpop.f32.mrb[0].mxu0
        %v5876 = vadd.f32 %v339, %v5875
        %v5877 = vpop.f32.mrb[0].mxu0
        %5878 = vmatprep.mubr.f32.mxu0 0.0
        %5879 = vmatmul.mubr.f32.gmra.mrb[0].mxu0 %v372
        %v5880 = vpop.f32.mrb[0].mxu0
        %v5881 = vadd.f32 %v345, %v5880
        %v5882 = vpop.f32.mrb[0].mxu0
        %5883 = vmatprep.mubr.f32.mxu0 0.0
        %5884 = vmatmul.mubr.f32.gmra.mrb[0].mxu0 %v375
        %v5885 = vpop.f32.mrb[0].mxu0
        %v5886 = vadd.f32 %v351, %v5885
        %v5887 = vpop.f32.mrb[0].mxu0
        %5888 = vmatprep.mubr.f32.mxu0 0.0
        %5889 = vmatmul.mubr.f32.gmra.mrb[0].mxu0 %v378
        %v5890 = vpop.f32.mrb[0].mxu0
        %v5891 = vadd.f32 %v357, %v5890
        %v5892 = vpop.f32.mrb[0].mxu0
        %5893 = vdwg.mxu0
        %v5894 = vmax.f32 %v5876, 0.0
        %v5895 = vmax.f32 %v5881, 0.0
        %v5896 = vmax.f32 %v5886, 0.0
        %v5897 = vmax.f32 %v5891, 0.0
        %v5898 = vld [vmem:[%s2] sm:$0xff]
        %v5899 = vld [vmem:[%s3] sm:$0xff]
        %v5901 = vsel %vm257, %v5899, 0
        %5903 = vmatprep.subr.mxu0 0.0
        %5904 = vmatpush1.msra.mxu0 %v249
        %5905 = vmatprep.subr.mxu0 0.0
        %5906 = vmatpush1.msra.mxu0 %v251
        %5907 = vmatprep.subr.mxu0 0.0
        %5908 = vmatpush1.msra.mxu0 0.0
        %5909 = vmatprep.subr.mxu0 0.0
        %5910 = vmatpush1.msra.mxu0 0.0
        %5911 = vmatprep.subr.mxu0 0.0
        %5912 = vmatpush1.msra.mxu0 0.0
        %5913 = vmatprep.subr.mxu0 0.0
        %5914 = vmatpush1.msra.mxu0 0.0
        %5915 = vmatprep.subr.mxu0 0.0
        %5916 = vmatpush1.msra.mxu0 0.0
        %5917 = vmatprep.subr.mxu0 0.0
        %5918 = vmatpush1.msra.mxu0 0.0
        %5919 = vmatprep.subr.mxu0 0.0
        %5920 = vmatpush1.msra.mxu0 0.0
        %5921 = vmatprep.subr.mxu0 0.0
        %5922 = vmatpush1.msra.mxu0 0.0
        %5923 = vmatprep.subr.mxu0 0.0
        %5924 = vmatpush1.msra.mxu0 0.0
        %5925 = vmatprep.subr.mxu0 0.0
        %5926 = vmatpush1.msra.mxu0 0.0
        %5927 = vmatprep.subr.mxu0 0.0
        %5928 = vmatpush1.msra.mxu0 0.0
        %5929 = vmatprep.subr.mxu0 0.0
        %5930 = vmatpush1.msra.mxu0 0.0
        %5931 = vmatprep.subr.mxu0 0.0
        %5932 = vmatpush1.msra.mxu0 0.0
        %5933 = vmatprep.subr.mxu0 0.0
        %5934 = vmatpush1.msra.mxu0 0.0
        %5935 = vmatprep.subr.mxu0 0.0
        %5936 = vmatpush1.msra.mxu0 0.0
        %5937 = vmatprep.subr.mxu0 0.0
        %5938 = vmatpush1.msra.mxu0 0.0
        %5939 = vmatprep.subr.mxu0 0.0
        %5940 = vmatpush1.msra.mxu0 0.0
        %5941 = vmatprep.subr.mxu0 0.0
        %5942 = vmatpush1.msra.mxu0 0.0
        %5943 = vmatprep.subr.mxu0 0.0
        %5944 = vmatpush1.msra.mxu0 0.0
        %5945 = vmatprep.subr.mxu0 0.0
        %5946 = vmatpush1.msra.mxu0 0.0
        %5947 = vmatprep.subr.mxu0 0.0
        %5948 = vmatpush1.msra.mxu0 0.0
        %5949 = vmatprep.subr.mxu0 0.0
        %5950 = vmatpush1.msra.mxu0 0.0
        %5951 = vmatprep.subr.mxu0 0.0
        %5952 = vmatpush1.msra.mxu0 0.0
        %5953 = vmatprep.subr.mxu0 0.0
        %5954 = vmatpush1.msra.mxu0 0.0
        %5955 = vmatprep.subr.mxu0 0.0
        %5956 = vmatpush1.msra.mxu0 0.0
        %5957 = vmatprep.subr.mxu0 0.0
        %5958 = vmatpush1.msra.mxu0 0.0
        %5959 = vmatprep.subr.mxu0 0.0
        %5960 = vmatpush1.msra.mxu0 0.0
        %5961 = vmatprep.subr.mxu0 0.0
        %5962 = vmatpush1.msra.mxu0 0.0
        %5963 = vmatprep.subr.mxu0 0.0
        %5964 = vmatpush1.msra.mxu0 0.0
        %5965 = vmatprep.subr.mxu0 0.0
        %5966 = vmatpush1.msra.mxu0 0.0
        %5967 = vmatprep.mubr.f32.mxu0 0.0
        %5968 = vmatmul.mubr.f32.gmra.mrb[0].mxu0 %v5901
        %v5969 = vpop.f32.mrb[0].mxu0
        %v5970 = vadd.f32 0.0, %v5969
        %v5971 = vpop.f32.mrb[0].mxu0
        %5972 = vdwg.mxu0
        %v5974 = vsel %vm367, %v5898, 0
        %5976 = vmatprep.subr.mxu0 0.0
        %5977 = vmatpush1.msra.mxu0 %v5805
        %5978 = vmatprep.subr.mxu0 0.0
        %5979 = vmatpush1.msra.mxu0 %v5806
        %5980 = vmatprep.subr.mxu0 0.0
        %5981 = vmatpush1.msra.mxu0 %v5807
        %5982 = vmatprep.subr.mxu0 0.0
        %5983 = vmatpush1.msra.mxu0 %v5808
        %5984 = vmatprep.subr.mxu0 0.0
        %5985 = vmatpush1.msra.mxu0 0.0
        %5986 = vmatprep.subr.mxu0 0.0
        %5987 = vmatpush1.msra.mxu0 0.0
        %5988 = vmatprep.subr.mxu0 0.0
        %5989 = vmatpush1.msra.mxu0 0.0
        %5990 = vmatprep.subr.mxu0 0.0
        %5991 = vmatpush1.msra.mxu0 0.0
        %5992 = vmatprep.subr.mxu0 0.0
        %5993 = vmatpush1.msra.mxu0 0.0
        %5994 = vmatprep.subr.mxu0 0.0
        %5995 = vmatpush1.msra.mxu0 0.0
        %5996 = vmatprep.subr.mxu0 0.0
        %5997 = vmatpush1.msra.mxu0 0.0
        %5998 = vmatprep.subr.mxu0 0.0
        %5999 = vmatpush1.msra.mxu0 0.0
        %6000 = vmatprep.subr.mxu0 0.0
        %6001 = vmatpush1.msra.mxu0 0.0
        %6002 = vmatprep.subr.mxu0 0.0
        %6003 = vmatpush1.msra.mxu0 0.0
        %6004 = vmatprep.subr.mxu0 0.0
        %6005 = vmatpush1.msra.mxu0 0.0
        %6006 = vmatprep.subr.mxu0 0.0
        %6007 = vmatpush1.msra.mxu0 0.0
        %6008 = vmatprep.subr.mxu0 0.0
        %6009 = vmatpush1.msra.mxu0 0.0
        %6010 = vmatprep.subr.mxu0 0.0
        %6011 = vmatpush1.msra.mxu0 0.0
        %6012 = vmatprep.subr.mxu0 0.0
        %6013 = vmatpush1.msra.mxu0 0.0
        %6014 = vmatprep.subr.mxu0 0.0
        %6015 = vmatpush1.msra.mxu0 0.0
        %6016 = vmatprep.subr.mxu0 0.0
        %6017 = vmatpush1.msra.mxu0 0.0
        %6018 = vmatprep.subr.mxu0 0.0
        %6019 = vmatpush1.msra.mxu0 0.0
        %6020 = vmatprep.subr.mxu0 0.0
        %6021 = vmatpush1.msra.mxu0 0.0
        %6022 = vmatprep.subr.mxu0 0.0
        %6023 = vmatpush1.msra.mxu0 0.0
        %6024 = vmatprep.subr.mxu0 0.0
        %6025 = vmatpush1.msra.mxu0 0.0
        %6026 = vmatprep.subr.mxu0 0.0
        %6027 = vmatpush1.msra.mxu0 0.0
        %6028 = vmatprep.subr.mxu0 0.0
        %6029 = vmatpush1.msra.mxu0 0.0
        %6030 = vmatprep.subr.mxu0 0.0
        %6031 = vmatpush1.msra.mxu0 0.0
        %6032 = vmatprep.subr.mxu0 0.0
        %6033 = vmatpush1.msra.mxu0 0.0
        %6034 = vmatprep.subr.mxu0 0.0
        %6035 = vmatpush1.msra.mxu0 0.0
        %6036 = vmatprep.subr.mxu0 0.0
        %6037 = vmatpush1.msra.mxu0 0.0
        %6038 = vmatprep.subr.mxu0 0.0
        %6039 = vmatpush1.msra.mxu0 0.0
        %6040 = vmatprep.mubr.f32.mxu0 0.0
        %6041 = vmatmul.mubr.f32.gmra.mrb[0].mxu0 %v5974
        %v6042 = vpop.f32.mrb[0].mxu0
        %v6043 = vadd.f32 %v5970, %v6042
        %v6044 = vpop.f32.mrb[0].mxu0
        %6045 = vdwg.mxu0
        %6046 = vst [vmem:[%s242] sm:$0xff] %v6043
        %6047 = vmatprep.subr.mxu0 0.0
        %6048 = vmatpush1.msra.mxu0 %v250
        %6049 = vmatprep.subr.mxu0 0.0
        %6050 = vmatpush1.msra.mxu0 %v252
        %6051 = vmatprep.subr.mxu0 0.0
        %6052 = vmatpush1.msra.mxu0 0.0
        %6053 = vmatprep.subr.mxu0 0.0
        %6054 = vmatpush1.msra.mxu0 0.0
        %6055 = vmatprep.subr.mxu0 0.0
        %6056 = vmatpush1.msra.mxu0 0.0
        %6057 = vmatprep.subr.mxu0 0.0
        %6058 = vmatpush1.msra.mxu0 0.0
        %6059 = vmatprep.subr.mxu0 0.0
        %6060 = vmatpush1.msra.mxu0 0.0
        %6061 = vmatprep.subr.mxu0 0.0
        %6062 = vmatpush1.msra.mxu0 0.0
        %6063 = vmatprep.subr.mxu0 0.0
        %6064 = vmatpush1.msra.mxu0 0.0
        %6065 = vmatprep.subr.mxu0 0.0
        %6066 = vmatpush1.msra.mxu0 0.0
        %6067 = vmatprep.subr.mxu0 0.0
        %6068 = vmatpush1.msra.mxu0 0.0
        %6069 = vmatprep.subr.mxu0 0.0
        %6070 = vmatpush1.msra.mxu0 0.0
        %6071 = vmatprep.subr.mxu0 0.0
        %6072 = vmatpush1.msra.mxu0 0.0
        %6073 = vmatprep.subr.mxu0 0.0
        %6074 = vmatpush1.msra.mxu0 0.0
        %6075 = vmatprep.subr.mxu0 0.0
        %6076 = vmatpush1.msra.mxu0 0.0
        %6077 = vmatprep.subr.mxu0 0.0
        %6078 = vmatpush1.msra.mxu0 0.0
        %6079 = vmatprep.subr.mxu0 0.0
        %6080 = vmatpush1.msra.mxu0 0.0
        %6081 = vmatprep.subr.mxu0 0.0
        %6082 = vmatpush1.msra.mxu0 0.0
        %6083 = vmatprep.subr.mxu0 0.0
        %6084 = vmatpush1.msra.mxu0 0.0
        %6085 = vmatprep.subr.mxu0 0.0
        %6086 = vmatpush1.msra.mxu0 0.0
        %6087 = vmatprep.subr.mxu0 0.0
        %6088 = vmatpush1.msra.mxu0 0.0
        %6089 = vmatprep.subr.mxu0 0.0
        %6090 = vmatpush1.msra.mxu0 0.0
        %6091 = vmatprep.subr.mxu0 0.0
        %6092 = vmatpush1.msra.mxu0 0.0
        %6093 = vmatprep.subr.mxu0 0.0
        %6094 = vmatpush1.msra.mxu0 0.0
        %6095 = vmatprep.subr.mxu0 0.0
        %6096 = vmatpush1.msra.mxu0 0.0
        %6097 = vmatprep.subr.mxu0 0.0
        %6098 = vmatpush1.msra.mxu0 0.0
        %6099 = vmatprep.subr.mxu0 0.0
        %6100 = vmatpush1.msra.mxu0 0.0
        %6101 = vmatprep.subr.mxu0 0.0
        %6102 = vmatpush1.msra.mxu0 0.0
        %6103 = vmatprep.subr.mxu0 0.0
        %6104 = vmatpush1.msra.mxu0 0.0
        %6105 = vmatprep.subr.mxu0 0.0
        %6106 = vmatpush1.msra.mxu0 0.0
        %6107 = vmatprep.subr.mxu0 0.0
        %6108 = vmatpush1.msra.mxu0 0.0
        %6109 = vmatprep.subr.mxu0 0.0
        %6110 = vmatpush1.msra.mxu0 0.0
        %6111 = vmatprep.mubr.f32.mxu0 0.0
        %6112 = vmatmul.mubr.f32.gmra.mrb[0].mxu0 %v5901
        %v6113 = vpop.f32.mrb[0].mxu0
        %v6114 = vadd.f32 0.0, %v6113
        %v6115 = vpop.f32.mrb[0].mxu0
        %6116 = vdwg.mxu0
        %6117 = vmatprep.subr.mxu0 0.0
        %6118 = vmatpush1.msra.mxu0 %v5894
        %6119 = vmatprep.subr.mxu0 0.0
        %6120 = vmatpush1.msra.mxu0 %v5895
        %6121 = vmatprep.subr.mxu0 0.0
        %6122 = vmatpush1.msra.mxu0 %v5896
        %6123 = vmatprep.subr.mxu0 0.0
        %6124 = vmatpush1.msra.mxu0 %v5897
        %6125 = vmatprep.subr.mxu0 0.0
        %6126 = vmatpush1.msra.mxu0 0.0
        %6127 = vmatprep.subr.mxu0 0.0
        %6128 = vmatpush1.msra.mxu0 0.0
        %6129 = vmatprep.subr.mxu0 0.0
        %6130 = vmatpush1.msra.mxu0 0.0
        %6131 = vmatprep.subr.mxu0 0.0
        %6132 = vmatpush1.msra.mxu0 0.0
        %6133 = vmatprep.subr.mxu0 0.0
        %6134 = vmatpush1.msra.mxu0 0.0
        %6135 = vmatprep.subr.mxu0 0.0
        %6136 = vmatpush1.msra.mxu0 0.0
        %6137 = vmatprep.subr.mxu0 0.0
        %6138 = vmatpush1.msra.mxu0 0.0
        %6139 = vmatprep.subr.mxu0 0.0
        %6140 = vmatpush1.msra.mxu0 0.0
        %6141 = vmatprep.subr.mxu0 0.0
        %6142 = vmatpush1.msra.mxu0 0.0
        %6143 = vmatprep.subr.mxu0 0.0
        %6144 = vmatpush1.msra.mxu0 0.0
        %6145 = vmatprep.subr.mxu0 0.0
        %6146 = vmatpush1.msra.mxu0 0.0
        %6147 = vmatprep.subr.mxu0 0.0
        %6148 = vmatpush1.msra.mxu0 0.0
        %6149 = vmatprep.subr.mxu0 0.0
        %6150 = vmatpush1.msra.mxu0 0.0
        %6151 = vmatprep.subr.mxu0 0.0
        %6152 = vmatpush1.msra.mxu0 0.0
        %6153 = vmatprep.subr.mxu0 0.0
        %6154 = vmatpush1.msra.mxu0 0.0
        %6155 = vmatprep.subr.mxu0 0.0
        %6156 = vmatpush1.msra.mxu0 0.0
        %6157 = vmatprep.subr.mxu0 0.0
        %6158 = vmatpush1.msra.mxu0 0.0
        %6159 = vmatprep.subr.mxu0 0.0
        %6160 = vmatpush1.msra.mxu0 0.0
        %6161 = vmatprep.subr.mxu0 0.0
        %6162 = vmatpush1.msra.mxu0 0.0
        %6163 = vmatprep.subr.mxu0 0.0
        %6164 = vmatpush1.msra.mxu0 0.0
        %6165 = vmatprep.subr.mxu0 0.0
        %6166 = vmatpush1.msra.mxu0 0.0
        %6167 = vmatprep.subr.mxu0 0.0
        %6168 = vmatpush1.msra.mxu0 0.0
        %6169 = vmatprep.subr.mxu0 0.0
        %6170 = vmatpush1.msra.mxu0 0.0
        %6171 = vmatprep.subr.mxu0 0.0
        %6172 = vmatpush1.msra.mxu0 0.0
        %6173 = vmatprep.subr.mxu0 0.0
        %6174 = vmatpush1.msra.mxu0 0.0
        %6175 = vmatprep.subr.mxu0 0.0
        %6176 = vmatpush1.msra.mxu0 0.0
        %6177 = vmatprep.subr.mxu0 0.0
        %6178 = vmatpush1.msra.mxu0 0.0
        %6179 = vmatprep.subr.mxu0 0.0
        %6180 = vmatpush1.msra.mxu0 0.0
        %6181 = vmatprep.mubr.f32.mxu0 0.0
        %6182 = vmatmul.mubr.f32.gmra.mrb[0].mxu0 %v5974
        %v6183 = vpop.f32.mrb[0].mxu0
        %v6184 = vadd.f32 %v6114, %v6183
        %v6185 = vpop.f32.mrb[0].mxu0
        %6186 = vdwg.mxu0
        %6187 = vst [vmem:[%s242 + $0x8] sm:$0xff] %v6184
        %s6188 = sand.u32 %s140, 1
        %s6189 = scalar_lea.sflag [#allocation4], %s6188
        %s6190 = sand.u32 %s140, 1
        %s6191 = smul.addr %s6190, 16
        %s6192 = scalar_lea.vmem [#allocation5], %s6191
        // Predicated region
        $region45: #{tpu_custom_call.1} parent=39 // pred_check
          %p6193 = pneg %p150
        $region46: #{tpu_custom_call.1} parent=39 // pred_check_branch
          %6195 = sbr.rel (%p6193) target = $region48
        $region47: #{tpu_custom_call.1} parent=39 // pred_region
          %s6196 = smul.u32 2, %s22
          %s6198 = ssub.s32 256, 256
          %6199 = vsyncadd %s6189, %s6198
          %s6200 = smul.addr %s6196, 128
          %s6201 = scalar_lea.hbm %s5, %s6200
          %s6203 = sshll.u32 %s6192, 4
          %s6204 = int_to_ptr.vmem [resolvable:$true] %s6203
          %6206 = dma.vmem_to_hbm [thread:$0]  %s6204, 256, %s6201, %s6189
        $region48: #{tpu_custom_call.1} parent=39 // pred_fallthru
          _
      $region40: #{tpu_custom_call.1} parent=5 // pred_fallthru
        _
      %p6207 = scmp.le.s32.totalorder 2, %s17
      // Predicated region
      $region49: #{tpu_custom_call.1} parent=5 // pred_check
        %p6208 = pneg %p6207
      $region50: #{tpu_custom_call.1} parent=5 // pred_check_branch
        %6210 = sbr.rel (%p6208) target = $region52
      $region51: #{tpu_custom_call.1} parent=5 // pred_region
        %s6211 = ssub.s32 %s17, 2
        // Predicated region
        $region53: #{tpu_custom_call.1} parent=51 // pred_check
          %p6212 = pneg %p156
        $region54: #{tpu_custom_call.1} parent=51 // pred_check_branch
          %6214 = sbr.rel (%p6212) target = $region56
        $region55: #{tpu_custom_call.1} parent=51 // pred_region
          %s6215 = sand.u32 %s141, 1
          %s6216 = scalar_lea.sflag [#allocation4], %s6215
          %s6217 = sand.u32 %s141, 1
          %s6218 = smul.addr %s6217, 16
          %s6219 = scalar_lea.vmem [#allocation5], %s6218
          %6220 = dma.done %s6216, 256
        $region56: #{tpu_custom_call.1} parent=51 // pred_fallthru
          _
      $region52: #{tpu_custom_call.1} parent=5 // pred_fallthru
        _
    $region6: #{tpu_custom_call.1} parent=1 // loop_footer
      %s21 = sadd.s32 1, %s17
    $region7: #{tpu_custom_call.1} parent=1 // loop_footer_branch
      %16 = sbr.rel target = $region3
    $region8: #{tpu_custom_call.1} parent=1 // loop_exit
      _
    %6221 = vsyncpa [#allocation3], 1
    %s6222 = scalar_lea.sflag [#allocation3], 1
    %6223 = vsyncpa %s6222, 1
    %6224 = vsyncpa [#allocation4], 1
    %s6225 = scalar_lea.sflag [#allocation4], 1
    %6226 = vsyncpa %s6225, 1

</llo_original>
